<compile_context>
chip_gen: v6e
topology: v6e:2x2x1
jax: 0.10.0
libtpu: 0.0.40
codegen_flags: <defaults>
</compile_context>

<pallas_src>
import functools

import jax
import jax.numpy as jnp
from jax.experimental import pallas as pl
from jax.experimental.pallas import tpu as pltpu


# ----------------------------------------------------------------------------
# Fused kernel: ConvTranspose2x2(s=2) -> [concat] -> Conv3x3+ReLU -> Conv3x3+ReLU
# ----------------------------------------------------------------------------

def _up_block_kernel(Hx, Wx, Co,
                     x_ref, br_ref, wt_ref, w1u_ref, w1b_ref, w2_ref,
                     bt_ref, b1_ref, b2_ref, o_ref):
    """Per-batch-element fused UNetUpBlock.

    x_ref  : (1, Hx*Wx, Cin)  bf16   coarse input, channels-last, spatial flat
    br_ref : (1, H*W,  Cb)    bf16   center-cropped bridge, channels-last
    wt_ref : (4, Cin, Co)     bf16   ConvTranspose2d weight, tap k = 2*p + q
    w1u_ref: (3, 3, Co, Co)   bf16   conv1 weight, `up` half of the concat
    w1b_ref: (3, 3, Cb, Co)   bf16   conv1 weight, `bridge` half of the concat
    w2_ref : (3, 3, Co, Co)   bf16   conv2 weight
    bt/b1/b2: (1, Co)         f32    biases
    o_ref  : (1, H, W, Co)    f32    output (NHWC)
    """
    H, W = 2 * Hx, 2 * Wx
    f32, bf16 = jnp.float32, jnp.bfloat16

    # ---- 1) ConvTranspose2d(kernel=2, stride=2) -----------------------------
    # out[2i+p, 2j+q, o] = sum_c x[i, j, c] * wt[p, q, c, o] + bt[o]
    x2d = x_ref[0]                                              # (Hx*Wx, Cin) bf16
    bt = bt_ref[...]                                            # (1, Co) f32
    taps = [
        (jnp.dot(x2d, wt_ref[k], preferred_element_type=f32) + bt)
        .reshape(Hx, Wx, Co)
        for k in range(4)                                       # k = 2*p + q
    ]
    # interleave the 4 taps into the upsampled map, entirely in VMEM
    row0 = jnp.stack([taps[0], taps[1]], axis=2).reshape(Hx, W, Co)   # p = 0
    row1 = jnp.stack([taps[2], taps[3]], axis=2).reshape(Hx, W, Co)   # p = 1
    u = jnp.stack([row0, row1], axis=1).reshape(H, W, Co)             # f32, bias incl.

    # ---- in-VMEM zero "same" padding ----------------------------------------
    def pad_hw(a):                                              # (H, W, C) -> (H+2, W+2, C)
        C = a.shape[-1]
        zr = jnp.zeros((1, W, C), a.dtype)
        a = jnp.concatenate([zr, a, zr], axis=0)
        zc = jnp.zeros((H + 2, 1, C), a.dtype)
        return jnp.concatenate([zc, a, zc], axis=1)

    # ---- 3x3 "same" conv: 9 shifted MXU matmuls, bf16 x bf16 -> f32 accum ---
    def conv3x3_acc(acc, xpad, w_ref):                          # xpad: (H+2, W+2, C)
        C = xpad.shape[-1]
        xb = xpad.astype(bf16)
        for dy in range(3):
            for dx in range(3):
                patch = xb[dy:dy + H, dx:dx + W, :].reshape(H * W, C)
                acc = acc + jnp.dot(patch, w_ref[dy, dx],
                                    preferred_element_type=f32)
        return acc

    # ---- 2) conv1 on concat([up, bridge]) without materializing the concat --
    br = br_ref[0].reshape(H, W, br_ref.shape[-1])              # (H, W, Cb) bf16
    acc = jnp.zeros((H * W, Co), f32)
    acc = conv3x3_acc(acc, pad_hw(u), w1u_ref)                  # `up` contribution
    acc = conv3x3_acc(acc, pad_hw(br), w1b_ref)                 # `bridge` contribution
    h1 = jnp.maximum(acc + b1_ref[...], 0.0)                    # (H*W, Co) f32

    # ---- 3) conv2 + ReLU -----------------------------------------------------
    acc2 = jnp.zeros((H * W, Co), f32)
    acc2 = conv3x3_acc(acc2, pad_hw(h1.reshape(H, W, Co)), w2_ref)
    h2 = jnp.maximum(acc2 + b2_ref[...], 0.0)                   # (H*W, Co) f32

    # ---- 4) single HBM store of the block output ----------------------------
    o_ref[0] = h2.reshape(H, W, Co).astype(o_ref.dtype)


# ----------------------------------------------------------------------------
# Wrapper: NCHW in / NCHW out (PyTorch layout), one pallas_call per forward
# ----------------------------------------------------------------------------

def unet_up_block(params, x_nchw, bridge_nchw):
    N, Cin, Hx, Wx = x_nchw.shape
    Co = int(params["bt"].shape[0])
    Cb = int(bridge_nchw.shape[1])
    H, W = 2 * Hx, 2 * Wx
    bf16 = jnp.bfloat16

    # NCHW -> NHWC entry transposes (only layout work done outside the kernel)
    x = jnp.transpose(x_nchw, (0, 2, 3, 1))
    bridge = jnp.transpose(bridge_nchw, (0, 2, 3, 1))

    # center_crop(bridge, up.shape[2:])  (static slice; no-op when sizes match)
    dy = (bridge.shape[1] - H) // 2
    dx = (bridge.shape[2] - W) // 2
    bridge = bridge[:, dy:dy + H, dx:dx + W, :]

    # bf16 matmul operands (halves input DMA bytes); biases stay f32
    x2 = x.reshape(N, Hx * Wx, Cin).astype(bf16)
    br2 = bridge.reshape(N, H * W, Cb).astype(bf16)
    wt4 = params["wt"].reshape(4, Cin, Co).astype(bf16)          # (p,q) -> k = 2p+q
    w1u = params["w1"][:, :, :Co, :].astype(bf16)                # `up` channels first in cat
    w1b = params["w1"][:, :, Co:, :].astype(bf16)                # then `bridge` channels
    w2 = params["w2"].astype(bf16)
    bt = params["bt"].reshape(1, Co)
    b1 = params["b1"].reshape(1, Co)
    b2 = params["b2"].reshape(1, Co)

    kernel = functools.partial(_up_block_kernel, Hx, Wx, Co)
    out = pl.pallas_call(
        kernel,
        out_shape=jax.ShapeDtypeStruct((N, H, W, Co), jnp.float32),
        grid=(N,),
        in_specs=[
            pl.BlockSpec((1, Hx * Wx, Cin), lambda n: (n, 0, 0)),
            pl.BlockSpec((1, H * W, Cb), lambda n: (n, 0, 0)),
            pl.BlockSpec((4, Cin, Co), lambda n: (0, 0, 0)),
            pl.BlockSpec((3, 3, Co, Co), lambda n: (0, 0, 0, 0)),
            pl.BlockSpec((3, 3, Cb, Co), lambda n: (0, 0, 0, 0)),
            pl.BlockSpec((3, 3, Co, Co), lambda n: (0, 0, 0, 0)),
            pl.BlockSpec((1, Co), lambda n: (0, 0)),
            pl.BlockSpec((1, Co), lambda n: (0, 0)),
            pl.BlockSpec((1, Co), lambda n: (0, 0)),
        ],
        out_specs=pl.BlockSpec((1, H, W, Co), lambda n: (n, 0, 0, 0)),
        compiler_params=pltpu.CompilerParams(
            dimension_semantics=("parallel",)),   # batch axis -> both v7x TCs
    )(x2, br2, wt4, w1u, w1b, w2, bt, b1, b2)

    return jnp.transpose(out, (0, 3, 1, 2))       # NHWC -> NCHW (PyTorch layout)


# ----------------------------------------------------------------------------
# Pure-XLA reference with the same bf16-operand / f32-accumulate numerics
# ----------------------------------------------------------------------------

def unet_up_block_reference(params, x_nchw, bridge_nchw):
    bf = lambda a: a.astype(jnp.bfloat16)
    x = jnp.transpose(x_nchw, (0, 2, 3, 1))
    bridge = jnp.transpose(bridge_nchw, (0, 2, 3, 1))

    # ConvTranspose2d(k=2, s=2): out[n, 2i+p, 2j+q, o] = sum_c x[n,i,j,c]*wt[p,q,c,o] + bt
    u = jnp.einsum("nijc,pqco->nipjqo", bf(x), bf(params["wt"]),
                   preferred_element_type=jnp.float32)
    N, Hx, _, Wx, _, Co = u.shape
    H, W = 2 * Hx, 2 * Wx
    u = u.reshape(N, H, W, Co) + params["bt"]

    dy = (bridge.shape[1] - H) // 2
    dx = (bridge.shape[2] - W) // 2
    crop = bridge[:, dy:dy + H, dx:dx + W, :]
    h = jnp.concatenate([u, crop], axis=-1)

    def conv3x3_relu(h, w, b):
        y = jax.lax.conv_general_dilated(
            bf(h), bf(w), window_strides=(1, 1), padding="SAME",
            dimension_numbers=("NHWC", "HWIO", "NHWC"),
            preferred_element_type=jnp.float32)
        return jnp.maximum(y + b, 0.0)

    h = conv3x3_relu(h, params["w1"], params["b1"])
    h = conv3x3_relu(h, params["w2"], params["b2"])
    return jnp.transpose(h, (0, 3, 1, 2))


# ----------------------------------------------------------------------------
# Parameters (deterministic init; shapes follow UNetUpBlock.__init__)
# ----------------------------------------------------------------------------

def init_params(key, in_size, out_size):
    kt, k1, k2 = jax.random.split(key, 3)

    def w(k, shape, fan_in):
        return jax.random.normal(k, shape, jnp.float32) * (2.0 / fan_in) ** 0.5

    return {
        # ConvTranspose2d(in_size, out_size, 2, 2); wt[p, q, c, o] == torch W[c, o, p, q]
        "wt": w(kt, (2, 2, in_size, out_size), 2 * 2 * in_size),
        "bt": jnp.full((out_size,), 0.01, jnp.float32),
        # Conv2d(in_size, out_size, 3, padding=1) on cat([up, bridge]) -- HWIO layout
        "w1": w(k1, (3, 3, in_size, out_size), 3 * 3 * in_size),
        "b1": jnp.full((out_size,), 0.01, jnp.float32),
        # Conv2d(out_size, out_size, 3, padding=1)
        "w2": w(k2, (3, 3, out_size, out_size), 3 * 3 * out_size),
        "b2": jnp.full((out_size,), 0.01, jnp.float32),
    }


# ----------------------------------------------------------------------------
# Main
# ----------------------------------------------------------------------------

if __name__ == "__main__":
    key = jax.random.PRNGKey(0)
    kp, kx, kb = jax.random.split(key, 3)

    # UNetUpBlock(in_size=32, out_size=16, up_mode='upconv', padding=True, batch_norm=False)
    in_size, out_size = 32, 16
    N, Hx, Wx = 2, 8, 8                      # x is the coarse map; bridge is 2x spatial
    Cb = in_size - out_size                  # bridge channels implied by cat -> Conv(in_size)

    params = init_params(kp, in_size, out_size)
    x = jax.random.normal(kx, (N, in_size, Hx, Wx), jnp.float32)          # NCHW
    bridge = jax.random.normal(kb, (N, Cb, 2 * Hx, 2 * Wx), jnp.float32)  # NCHW

    fwd = jax.jit(unet_up_block)
    out = jax.block_until_ready(fwd(params, x, bridge))
    assert out.shape == (N, out_size, 2 * Hx, 2 * Wx), out.shape
    assert bool(jnp.all(jnp.isfinite(out)))

    ref = jax.block_until_ready(jax.jit(unet_up_block_reference)(params, x, bridge))
    max_err = float(jnp.max(jnp.abs(out - ref)))
    assert jnp.allclose(out, ref, atol=2e-3, rtol=2e-3), f"max abs err {max_err}"

    print("KERNEL_OK")
</pallas_src>

<mosaic_0001>
module attributes {stable_mosaic.version = 11 : i64} {
  func.func @_up_block_kernel(%arg0: i32, %arg1: memref<1x64x32xbf16, #tpu.memory_space<vmem>>, %arg2: memref<1x256x16xbf16, #tpu.memory_space<vmem>>, %arg3: memref<4x32x16xbf16, #tpu.memory_space<vmem>>, %arg4: memref<3x3x16x16xbf16, #tpu.memory_space<vmem>>, %arg5: memref<3x3x16x16xbf16, #tpu.memory_space<vmem>>, %arg6: memref<3x3x16x16xbf16, #tpu.memory_space<vmem>>, %arg7: memref<1x16xf32, #tpu.memory_space<vmem>>, %arg8: memref<1x16xf32, #tpu.memory_space<vmem>>, %arg9: memref<1x16xf32, #tpu.memory_space<vmem>>, %arg10: memref<1x16x16x16xf32, #tpu.memory_space<vmem>>) attributes {dimension_semantics = [#tpu.dimension_semantics<parallel>], iteration_bounds = array<i64: 2>, scalar_prefetch = 0 : i64, scratch_operands = 0 : i64, tpu.core_type = #tpu.core_type<tc>, window_params = [{transform_indices = @transform_0, window_bounds = array<i64: 1, 64, 32>}, {transform_indices = @transform_1, window_bounds = array<i64: 1, 256, 16>}, {pipeline_mode = #tpu.pipeline_mode<synchronous>, transform_indices = @transform_2, window_bounds = array<i64: 4, 32, 16>}, {pipeline_mode = #tpu.pipeline_mode<synchronous>, transform_indices = @transform_3, window_bounds = array<i64: 3, 3, 16, 16>}, {pipeline_mode = #tpu.pipeline_mode<synchronous>, transform_indices = @transform_4, window_bounds = array<i64: 3, 3, 16, 16>}, {pipeline_mode = #tpu.pipeline_mode<synchronous>, transform_indices = @transform_5, window_bounds = array<i64: 3, 3, 16, 16>}, {pipeline_mode = #tpu.pipeline_mode<synchronous>, transform_indices = @transform_6, window_bounds = array<i64: 1, 16>}, {pipeline_mode = #tpu.pipeline_mode<synchronous>, transform_indices = @transform_7, window_bounds = array<i64: 1, 16>}, {pipeline_mode = #tpu.pipeline_mode<synchronous>, transform_indices = @transform_8, window_bounds = array<i64: 1, 16>}, {transform_indices = @transform_9, window_bounds = array<i64: 1, 16, 16, 16>}]} {
    %c0 = arith.constant 0 : index
    %c0_0 = arith.constant 0 : index
    %c0_1 = arith.constant 0 : index
    %0 = vector.load %arg1[%c0, %c0_0, %c0_1] : memref<1x64x32xbf16, #tpu.memory_space<vmem>>, vector<1x64x32xbf16>
    %1 = vector.shape_cast %0 : vector<1x64x32xbf16> to vector<64x32xbf16>
    %c0_2 = arith.constant 0 : index
    %c0_3 = arith.constant 0 : index
    %2 = vector.load %arg7[%c0_2, %c0_3] : memref<1x16xf32, #tpu.memory_space<vmem>>, vector<1x16xf32>
    %c0_4 = arith.constant 0 : index
    %c0_5 = arith.constant 0 : index
    %c0_6 = arith.constant 0 : index
    %3 = vector.load %arg3[%c0_4, %c0_5, %c0_6] : memref<4x32x16xbf16, #tpu.memory_space<vmem>>, vector<1x32x16xbf16>
    %4 = vector.shape_cast %3 : vector<1x32x16xbf16> to vector<32x16xbf16>
    %cst = arith.constant dense<0.000000e+00> : vector<64x16xf32>
    %5 = tpu.matmul %1, %4, %cst {dimension_numbers = #tpu.dot_dimension_numbers<[1], [0], [0], [1], [0, 0, 1, 1], [], []>} : vector<64x32xbf16>, vector<32x16xbf16>, vector<64x16xf32> -> vector<64x16xf32>
    %6 = vector.broadcast %2 : vector<1x16xf32> to vector<64x16xf32>
    %7 = arith.addf %5, %6 : vector<64x16xf32>
    %8 = vector.shape_cast %7 : vector<64x16xf32> to vector<8x8x16xf32>
    %c1 = arith.constant 1 : index
    %c0_7 = arith.constant 0 : index
    %c0_8 = arith.constant 0 : index
    %9 = vector.load %arg3[%c1, %c0_7, %c0_8] : memref<4x32x16xbf16, #tpu.memory_space<vmem>>, vector<1x32x16xbf16>
    %10 = vector.shape_cast %9 : vector<1x32x16xbf16> to vector<32x16xbf16>
    %cst_9 = arith.constant dense<0.000000e+00> : vector<64x16xf32>
    %11 = tpu.matmul %1, %10, %cst_9 {dimension_numbers = #tpu.dot_dimension_numbers<[1], [0], [0], [1], [0, 0, 1, 1], [], []>} : vector<64x32xbf16>, vector<32x16xbf16>, vector<64x16xf32> -> vector<64x16xf32>
    %12 = vector.broadcast %2 : vector<1x16xf32> to vector<64x16xf32>
    %13 = arith.addf %11, %12 : vector<64x16xf32>
    %14 = vector.shape_cast %13 : vector<64x16xf32> to vector<8x8x16xf32>
    %c2 = arith.constant 2 : index
    %c0_10 = arith.constant 0 : index
    %c0_11 = arith.constant 0 : index
    %15 = vector.load %arg3[%c2, %c0_10, %c0_11] : memref<4x32x16xbf16, #tpu.memory_space<vmem>>, vector<1x32x16xbf16>
    %16 = vector.shape_cast %15 : vector<1x32x16xbf16> to vector<32x16xbf16>
    %cst_12 = arith.constant dense<0.000000e+00> : vector<64x16xf32>
    %17 = tpu.matmul %1, %16, %cst_12 {dimension_numbers = #tpu.dot_dimension_numbers<[1], [0], [0], [1], [0, 0, 1, 1], [], []>} : vector<64x32xbf16>, vector<32x16xbf16>, vector<64x16xf32> -> vector<64x16xf32>
    %18 = vector.broadcast %2 : vector<1x16xf32> to vector<64x16xf32>
    %19 = arith.addf %17, %18 : vector<64x16xf32>
    %20 = vector.shape_cast %19 : vector<64x16xf32> to vector<8x8x16xf32>
    %c3 = arith.constant 3 : index
    %c0_13 = arith.constant 0 : index
    %c0_14 = arith.constant 0 : index
    %21 = vector.load %arg3[%c3, %c0_13, %c0_14] : memref<4x32x16xbf16, #tpu.memory_space<vmem>>, vector<1x32x16xbf16>
    %22 = vector.shape_cast %21 : vector<1x32x16xbf16> to vector<32x16xbf16>
    %cst_15 = arith.constant dense<0.000000e+00> : vector<64x16xf32>
    %23 = tpu.matmul %1, %22, %cst_15 {dimension_numbers = #tpu.dot_dimension_numbers<[1], [0], [0], [1], [0, 0, 1, 1], [], []>} : vector<64x32xbf16>, vector<32x16xbf16>, vector<64x16xf32> -> vector<64x16xf32>
    %24 = vector.broadcast %2 : vector<1x16xf32> to vector<64x16xf32>
    %25 = arith.addf %23, %24 : vector<64x16xf32>
    %26 = vector.shape_cast %25 : vector<64x16xf32> to vector<8x8x16xf32>
    %27 = vector.shape_cast %8 : vector<8x8x16xf32> to vector<8x8x1x16xf32>
    %28 = vector.shape_cast %14 : vector<8x8x16xf32> to vector<8x8x1x16xf32>
    %29 = tpu.concatenate %27, %28 in 2 : vector<8x8x1x16xf32>, vector<8x8x1x16xf32> -> vector<8x8x2x16xf32>
    %30 = vector.shape_cast %29 : vector<8x8x2x16xf32> to vector<8x16x16xf32>
    %31 = vector.shape_cast %20 : vector<8x8x16xf32> to vector<8x8x1x16xf32>
    %32 = vector.shape_cast %26 : vector<8x8x16xf32> to vector<8x8x1x16xf32>
    %33 = tpu.concatenate %31, %32 in 2 : vector<8x8x1x16xf32>, vector<8x8x1x16xf32> -> vector<8x8x2x16xf32>
    %34 = vector.shape_cast %33 : vector<8x8x2x16xf32> to vector<8x16x16xf32>
    %35 = vector.shape_cast %30 : vector<8x16x16xf32> to vector<8x1x16x16xf32>
    %36 = vector.shape_cast %34 : vector<8x16x16xf32> to vector<8x1x16x16xf32>
    %37 = tpu.concatenate %35, %36 in 1 : vector<8x1x16x16xf32>, vector<8x1x16x16xf32> -> vector<8x2x16x16xf32>
    %38 = vector.shape_cast %37 : vector<8x2x16x16xf32> to vector<16x16x16xf32>
    %c0_16 = arith.constant 0 : index
    %c0_17 = arith.constant 0 : index
    %c0_18 = arith.constant 0 : index
    %39 = vector.load %arg2[%c0_16, %c0_17, %c0_18] : memref<1x256x16xbf16, #tpu.memory_space<vmem>>, vector<1x256x16xbf16>
    %40 = vector.shape_cast %39 : vector<1x256x16xbf16> to vector<256x16xbf16>
    %41 = vector.shape_cast %40 : vector<256x16xbf16> to vector<16x16x16xbf16>
    %cst_19 = arith.constant 0.000000e+00 : f32
    %42 = vector.broadcast %cst_19 : f32 to vector<256x16xf32>
    %cst_20 = arith.constant 0.000000e+00 : f32
    %43 = vector.broadcast %cst_20 : f32 to vector<1x16x16xf32>
    %44 = tpu.concatenate %43, %38, %43 in 0 : vector<1x16x16xf32>, vector<16x16x16xf32>, vector<1x16x16xf32> -> vector<18x16x16xf32>
    %cst_21 = arith.constant 0.000000e+00 : f32
    %45 = vector.broadcast %cst_21 : f32 to vector<18x1x16xf32>
    %46 = tpu.concatenate %45, %44, %45 in 1 : vector<18x1x16xf32>, vector<18x16x16xf32>, vector<18x1x16xf32> -> vector<18x18x16xf32>
    %47 = arith.truncf %46 : vector<18x18x16xf32> to vector<18x18x16xbf16>
    %48 = vector.extract_strided_slice %47 {offsets = [0, 0, 0], sizes = [16, 16, 16], strides = [1, 1, 1]} : vector<18x18x16xbf16> to vector<16x16x16xbf16>
    %49 = vector.shape_cast %48 : vector<16x16x16xbf16> to vector<256x16xbf16>
    %c0_22 = arith.constant 0 : index
    %c0_23 = arith.constant 0 : index
    %c0_24 = arith.constant 0 : index
    %c0_25 = arith.constant 0 : index
    %50 = vector.load %arg4[%c0_22, %c0_23, %c0_24, %c0_25] : memref<3x3x16x16xbf16, #tpu.memory_space<vmem>>, vector<1x1x16x16xbf16>
    %51 = vector.shape_cast %50 : vector<1x1x16x16xbf16> to vector<16x16xbf16>
    %cst_26 = arith.constant dense<0.000000e+00> : vector<256x16xf32>
    %52 = tpu.matmul %49, %51, %cst_26 {dimension_numbers = #tpu.dot_dimension_numbers<[1], [0], [0], [1], [0, 0, 1, 1], [], []>} : vector<256x16xbf16>, vector<16x16xbf16>, vector<256x16xf32> -> vector<256x16xf32>
    %53 = arith.addf %42, %52 : vector<256x16xf32>
    %54 = vector.extract_strided_slice %47 {offsets = [0, 1, 0], sizes = [16, 16, 16], strides = [1, 1, 1]} : vector<18x18x16xbf16> to vector<16x16x16xbf16>
    %55 = vector.shape_cast %54 : vector<16x16x16xbf16> to vector<256x16xbf16>
    %c0_27 = arith.constant 0 : index
    %c1_28 = arith.constant 1 : index
    %c0_29 = arith.constant 0 : index
    %c0_30 = arith.constant 0 : index
    %56 = vector.load %arg4[%c0_27, %c1_28, %c0_29, %c0_30] : memref<3x3x16x16xbf16, #tpu.memory_space<vmem>>, vector<1x1x16x16xbf16>
    %57 = vector.shape_cast %56 : vector<1x1x16x16xbf16> to vector<16x16xbf16>
    %cst_31 = arith.constant dense<0.000000e+00> : vector<256x16xf32>
    %58 = tpu.matmul %55, %57, %cst_31 {dimension_numbers = #tpu.dot_dimension_numbers<[1], [0], [0], [1], [0, 0, 1, 1], [], []>} : vector<256x16xbf16>, vector<16x16xbf16>, vector<256x16xf32> -> vector<256x16xf32>
    %59 = arith.addf %53, %58 : vector<256x16xf32>
    %60 = vector.extract_strided_slice %47 {offsets = [0, 2, 0], sizes = [16, 16, 16], strides = [1, 1, 1]} : vector<18x18x16xbf16> to vector<16x16x16xbf16>
    %61 = vector.shape_cast %60 : vector<16x16x16xbf16> to vector<256x16xbf16>
    %c0_32 = arith.constant 0 : index
    %c2_33 = arith.constant 2 : index
    %c0_34 = arith.constant 0 : index
    %c0_35 = arith.constant 0 : index
    %62 = vector.load %arg4[%c0_32, %c2_33, %c0_34, %c0_35] : memref<3x3x16x16xbf16, #tpu.memory_space<vmem>>, vector<1x1x16x16xbf16>
    %63 = vector.shape_cast %62 : vector<1x1x16x16xbf16> to vector<16x16xbf16>
    %cst_36 = arith.constant dense<0.000000e+00> : vector<256x16xf32>
    %64 = tpu.matmul %61, %63, %cst_36 {dimension_numbers = #tpu.dot_dimension_numbers<[1], [0], [0], [1], [0, 0, 1, 1], [], []>} : vector<256x16xbf16>, vector<16x16xbf16>, vector<256x16xf32> -> vector<256x16xf32>
    %65 = arith.addf %59, %64 : vector<256x16xf32>
    %66 = vector.extract_strided_slice %47 {offsets = [1, 0, 0], sizes = [16, 16, 16], strides = [1, 1, 1]} : vector<18x18x16xbf16> to vector<16x16x16xbf16>
    %67 = vector.shape_cast %66 : vector<16x16x16xbf16> to vector<256x16xbf16>
    %c1_37 = arith.constant 1 : index
    %c0_38 = arith.constant 0 : index
    %c0_39 = arith.constant 0 : index
    %c0_40 = arith.constant 0 : index
    %68 = vector.load %arg4[%c1_37, %c0_38, %c0_39, %c0_40] : memref<3x3x16x16xbf16, #tpu.memory_space<vmem>>, vector<1x1x16x16xbf16>
    %69 = vector.shape_cast %68 : vector<1x1x16x16xbf16> to vector<16x16xbf16>
    %cst_41 = arith.constant dense<0.000000e+00> : vector<256x16xf32>
    %70 = tpu.matmul %67, %69, %cst_41 {dimension_numbers = #tpu.dot_dimension_numbers<[1], [0], [0], [1], [0, 0, 1, 1], [], []>} : vector<256x16xbf16>, vector<16x16xbf16>, vector<256x16xf32> -> vector<256x16xf32>
    %71 = arith.addf %65, %70 : vector<256x16xf32>
    %72 = vector.extract_strided_slice %47 {offsets = [1, 1, 0], sizes = [16, 16, 16], strides = [1, 1, 1]} : vector<18x18x16xbf16> to vector<16x16x16xbf16>
    %73 = vector.shape_cast %72 : vector<16x16x16xbf16> to vector<256x16xbf16>
    %c1_42 = arith.constant 1 : index
    %c1_43 = arith.constant 1 : index
    %c0_44 = arith.constant 0 : index
    %c0_45 = arith.constant 0 : index
    %74 = vector.load %arg4[%c1_42, %c1_43, %c0_44, %c0_45] : memref<3x3x16x16xbf16, #tpu.memory_space<vmem>>, vector<1x1x16x16xbf16>
    %75 = vector.shape_cast %74 : vector<1x1x16x16xbf16> to vector<16x16xbf16>
    %cst_46 = arith.constant dense<0.000000e+00> : vector<256x16xf32>
    %76 = tpu.matmul %73, %75, %cst_46 {dimension_numbers = #tpu.dot_dimension_numbers<[1], [0], [0], [1], [0, 0, 1, 1], [], []>} : vector<256x16xbf16>, vector<16x16xbf16>, vector<256x16xf32> -> vector<256x16xf32>
    %77 = arith.addf %71, %76 : vector<256x16xf32>
    %78 = vector.extract_strided_slice %47 {offsets = [1, 2, 0], sizes = [16, 16, 16], strides = [1, 1, 1]} : vector<18x18x16xbf16> to vector<16x16x16xbf16>
    %79 = vector.shape_cast %78 : vector<16x16x16xbf16> to vector<256x16xbf16>
    %c1_47 = arith.constant 1 : index
    %c2_48 = arith.constant 2 : index
    %c0_49 = arith.constant 0 : index
    %c0_50 = arith.constant 0 : index
    %80 = vector.load %arg4[%c1_47, %c2_48, %c0_49, %c0_50] : memref<3x3x16x16xbf16, #tpu.memory_space<vmem>>, vector<1x1x16x16xbf16>
    %81 = vector.shape_cast %80 : vector<1x1x16x16xbf16> to vector<16x16xbf16>
    %cst_51 = arith.constant dense<0.000000e+00> : vector<256x16xf32>
    %82 = tpu.matmul %79, %81, %cst_51 {dimension_numbers = #tpu.dot_dimension_numbers<[1], [0], [0], [1], [0, 0, 1, 1], [], []>} : vector<256x16xbf16>, vector<16x16xbf16>, vector<256x16xf32> -> vector<256x16xf32>
    %83 = arith.addf %77, %82 : vector<256x16xf32>
    %84 = vector.extract_strided_slice %47 {offsets = [2, 0, 0], sizes = [16, 16, 16], strides = [1, 1, 1]} : vector<18x18x16xbf16> to vector<16x16x16xbf16>
    %85 = vector.shape_cast %84 : vector<16x16x16xbf16> to vector<256x16xbf16>
    %c2_52 = arith.constant 2 : index
    %c0_53 = arith.constant 0 : index
    %c0_54 = arith.constant 0 : index
    %c0_55 = arith.constant 0 : index
    %86 = vector.load %arg4[%c2_52, %c0_53, %c0_54, %c0_55] : memref<3x3x16x16xbf16, #tpu.memory_space<vmem>>, vector<1x1x16x16xbf16>
    %87 = vector.shape_cast %86 : vector<1x1x16x16xbf16> to vector<16x16xbf16>
    %cst_56 = arith.constant dense<0.000000e+00> : vector<256x16xf32>
    %88 = tpu.matmul %85, %87, %cst_56 {dimension_numbers = #tpu.dot_dimension_numbers<[1], [0], [0], [1], [0, 0, 1, 1], [], []>} : vector<256x16xbf16>, vector<16x16xbf16>, vector<256x16xf32> -> vector<256x16xf32>
    %89 = arith.addf %83, %88 : vector<256x16xf32>
    %90 = vector.extract_strided_slice %47 {offsets = [2, 1, 0], sizes = [16, 16, 16], strides = [1, 1, 1]} : vector<18x18x16xbf16> to vector<16x16x16xbf16>
    %91 = vector.shape_cast %90 : vector<16x16x16xbf16> to vector<256x16xbf16>
    %c2_57 = arith.constant 2 : index
    %c1_58 = arith.constant 1 : index
    %c0_59 = arith.constant 0 : index
    %c0_60 = arith.constant 0 : index
    %92 = vector.load %arg4[%c2_57, %c1_58, %c0_59, %c0_60] : memref<3x3x16x16xbf16, #tpu.memory_space<vmem>>, vector<1x1x16x16xbf16>
    %93 = vector.shape_cast %92 : vector<1x1x16x16xbf16> to vector<16x16xbf16>
    %cst_61 = arith.constant dense<0.000000e+00> : vector<256x16xf32>
    %94 = tpu.matmul %91, %93, %cst_61 {dimension_numbers = #tpu.dot_dimension_numbers<[1], [0], [0], [1], [0, 0, 1, 1], [], []>} : vector<256x16xbf16>, vector<16x16xbf16>, vector<256x16xf32> -> vector<256x16xf32>
    %95 = arith.addf %89, %94 : vector<256x16xf32>
    %96 = vector.extract_strided_slice %47 {offsets = [2, 2, 0], sizes = [16, 16, 16], strides = [1, 1, 1]} : vector<18x18x16xbf16> to vector<16x16x16xbf16>
    %97 = vector.shape_cast %96 : vector<16x16x16xbf16> to vector<256x16xbf16>
    %c2_62 = arith.constant 2 : index
    %c2_63 = arith.constant 2 : index
    %c0_64 = arith.constant 0 : index
    %c0_65 = arith.constant 0 : index
    %98 = vector.load %arg4[%c2_62, %c2_63, %c0_64, %c0_65] : memref<3x3x16x16xbf16, #tpu.memory_space<vmem>>, vector<1x1x16x16xbf16>
    %99 = vector.shape_cast %98 : vector<1x1x16x16xbf16> to vector<16x16xbf16>
    %cst_66 = arith.constant dense<0.000000e+00> : vector<256x16xf32>
    %100 = tpu.matmul %97, %99, %cst_66 {dimension_numbers = #tpu.dot_dimension_numbers<[1], [0], [0], [1], [0, 0, 1, 1], [], []>} : vector<256x16xbf16>, vector<16x16xbf16>, vector<256x16xf32> -> vector<256x16xf32>
    %101 = arith.addf %95, %100 : vector<256x16xf32>
    %cst_67 = arith.constant 0.000000e+00 : bf16
    %102 = vector.broadcast %cst_67 : bf16 to vector<1x16x16xbf16>
    %103 = tpu.concatenate %102, %41, %102 in 0 : vector<1x16x16xbf16>, vector<16x16x16xbf16>, vector<1x16x16xbf16> -> vector<18x16x16xbf16>
    %cst_68 = arith.constant 0.000000e+00 : bf16
    %104 = vector.broadcast %cst_68 : bf16 to vector<18x1x16xbf16>
    %105 = tpu.concatenate %104, %103, %104 in 1 : vector<18x1x16xbf16>, vector<18x16x16xbf16>, vector<18x1x16xbf16> -> vector<18x18x16xbf16>
    %106 = vector.extract_strided_slice %105 {offsets = [0, 0, 0], sizes = [16, 16, 16], strides = [1, 1, 1]} : vector<18x18x16xbf16> to vector<16x16x16xbf16>
    %107 = vector.shape_cast %106 : vector<16x16x16xbf16> to vector<256x16xbf16>
    %c0_69 = arith.constant 0 : index
    %c0_70 = arith.constant 0 : index
    %c0_71 = arith.constant 0 : index
    %c0_72 = arith.constant 0 : index
    %108 = vector.load %arg5[%c0_69, %c0_70, %c0_71, %c0_72] : memref<3x3x16x16xbf16, #tpu.memory_space<vmem>>, vector<1x1x16x16xbf16>
    %109 = vector.shape_cast %108 : vector<1x1x16x16xbf16> to vector<16x16xbf16>
    %cst_73 = arith.constant dense<0.000000e+00> : vector<256x16xf32>
    %110 = tpu.matmul %107, %109, %cst_73 {dimension_numbers = #tpu.dot_dimension_numbers<[1], [0], [0], [1], [0, 0, 1, 1], [], []>} : vector<256x16xbf16>, vector<16x16xbf16>, vector<256x16xf32> -> vector<256x16xf32>
    %111 = arith.addf %101, %110 : vector<256x16xf32>
    %112 = vector.extract_strided_slice %105 {offsets = [0, 1, 0], sizes = [16, 16, 16], strides = [1, 1, 1]} : vector<18x18x16xbf16> to vector<16x16x16xbf16>
    %113 = vector.shape_cast %112 : vector<16x16x16xbf16> to vector<256x16xbf16>
    %c0_74 = arith.constant 0 : index
    %c1_75 = arith.constant 1 : index
    %c0_76 = arith.constant 0 : index
    %c0_77 = arith.constant 0 : index
    %114 = vector.load %arg5[%c0_74, %c1_75, %c0_76, %c0_77] : memref<3x3x16x16xbf16, #tpu.memory_space<vmem>>, vector<1x1x16x16xbf16>
    %115 = vector.shape_cast %114 : vector<1x1x16x16xbf16> to vector<16x16xbf16>
    %cst_78 = arith.constant dense<0.000000e+00> : vector<256x16xf32>
    %116 = tpu.matmul %113, %115, %cst_78 {dimension_numbers = #tpu.dot_dimension_numbers<[1], [0], [0], [1], [0, 0, 1, 1], [], []>} : vector<256x16xbf16>, vector<16x16xbf16>, vector<256x16xf32> -> vector<256x16xf32>
    %117 = arith.addf %111, %116 : vector<256x16xf32>
    %118 = vector.extract_strided_slice %105 {offsets = [0, 2, 0], sizes = [16, 16, 16], strides = [1, 1, 1]} : vector<18x18x16xbf16> to vector<16x16x16xbf16>
    %119 = vector.shape_cast %118 : vector<16x16x16xbf16> to vector<256x16xbf16>
    %c0_79 = arith.constant 0 : index
    %c2_80 = arith.constant 2 : index
    %c0_81 = arith.constant 0 : index
    %c0_82 = arith.constant 0 : index
    %120 = vector.load %arg5[%c0_79, %c2_80, %c0_81, %c0_82] : memref<3x3x16x16xbf16, #tpu.memory_space<vmem>>, vector<1x1x16x16xbf16>
    %121 = vector.shape_cast %120 : vector<1x1x16x16xbf16> to vector<16x16xbf16>
    %cst_83 = arith.constant dense<0.000000e+00> : vector<256x16xf32>
    %122 = tpu.matmul %119, %121, %cst_83 {dimension_numbers = #tpu.dot_dimension_numbers<[1], [0], [0], [1], [0, 0, 1, 1], [], []>} : vector<256x16xbf16>, vector<16x16xbf16>, vector<256x16xf32> -> vector<256x16xf32>
    %123 = arith.addf %117, %122 : vector<256x16xf32>
    %124 = vector.extract_strided_slice %105 {offsets = [1, 0, 0], sizes = [16, 16, 16], strides = [1, 1, 1]} : vector<18x18x16xbf16> to vector<16x16x16xbf16>
    %125 = vector.shape_cast %124 : vector<16x16x16xbf16> to vector<256x16xbf16>
    %c1_84 = arith.constant 1 : index
    %c0_85 = arith.constant 0 : index
    %c0_86 = arith.constant 0 : index
    %c0_87 = arith.constant 0 : index
    %126 = vector.load %arg5[%c1_84, %c0_85, %c0_86, %c0_87] : memref<3x3x16x16xbf16, #tpu.memory_space<vmem>>, vector<1x1x16x16xbf16>
    %127 = vector.shape_cast %126 : vector<1x1x16x16xbf16> to vector<16x16xbf16>
    %cst_88 = arith.constant dense<0.000000e+00> : vector<256x16xf32>
    %128 = tpu.matmul %125, %127, %cst_88 {dimension_numbers = #tpu.dot_dimension_numbers<[1], [0], [0], [1], [0, 0, 1, 1], [], []>} : vector<256x16xbf16>, vector<16x16xbf16>, vector<256x16xf32> -> vector<256x16xf32>
    %129 = arith.addf %123, %128 : vector<256x16xf32>
    %130 = vector.extract_strided_slice %105 {offsets = [1, 1, 0], sizes = [16, 16, 16], strides = [1, 1, 1]} : vector<18x18x16xbf16> to vector<16x16x16xbf16>
    %131 = vector.shape_cast %130 : vector<16x16x16xbf16> to vector<256x16xbf16>
    %c1_89 = arith.constant 1 : index
    %c1_90 = arith.constant 1 : index
    %c0_91 = arith.constant 0 : index
    %c0_92 = arith.constant 0 : index
    %132 = vector.load %arg5[%c1_89, %c1_90, %c0_91, %c0_92] : memref<3x3x16x16xbf16, #tpu.memory_space<vmem>>, vector<1x1x16x16xbf16>
    %133 = vector.shape_cast %132 : vector<1x1x16x16xbf16> to vector<16x16xbf16>
    %cst_93 = arith.constant dense<0.000000e+00> : vector<256x16xf32>
    %134 = tpu.matmul %131, %133, %cst_93 {dimension_numbers = #tpu.dot_dimension_numbers<[1], [0], [0], [1], [0, 0, 1, 1], [], []>} : vector<256x16xbf16>, vector<16x16xbf16>, vector<256x16xf32> -> vector<256x16xf32>
    %135 = arith.addf %129, %134 : vector<256x16xf32>
    %136 = vector.extract_strided_slice %105 {offsets = [1, 2, 0], sizes = [16, 16, 16], strides = [1, 1, 1]} : vector<18x18x16xbf16> to vector<16x16x16xbf16>
    %137 = vector.shape_cast %136 : vector<16x16x16xbf16> to vector<256x16xbf16>
    %c1_94 = arith.constant 1 : index
    %c2_95 = arith.constant 2 : index
    %c0_96 = arith.constant 0 : index
    %c0_97 = arith.constant 0 : index
    %138 = vector.load %arg5[%c1_94, %c2_95, %c0_96, %c0_97] : memref<3x3x16x16xbf16, #tpu.memory_space<vmem>>, vector<1x1x16x16xbf16>
    %139 = vector.shape_cast %138 : vector<1x1x16x16xbf16> to vector<16x16xbf16>
    %cst_98 = arith.constant dense<0.000000e+00> : vector<256x16xf32>
    %140 = tpu.matmul %137, %139, %cst_98 {dimension_numbers = #tpu.dot_dimension_numbers<[1], [0], [0], [1], [0, 0, 1, 1], [], []>} : vector<256x16xbf16>, vector<16x16xbf16>, vector<256x16xf32> -> vector<256x16xf32>
    %141 = arith.addf %135, %140 : vector<256x16xf32>
    %142 = vector.extract_strided_slice %105 {offsets = [2, 0, 0], sizes = [16, 16, 16], strides = [1, 1, 1]} : vector<18x18x16xbf16> to vector<16x16x16xbf16>
    %143 = vector.shape_cast %142 : vector<16x16x16xbf16> to vector<256x16xbf16>
    %c2_99 = arith.constant 2 : index
    %c0_100 = arith.constant 0 : index
    %c0_101 = arith.constant 0 : index
    %c0_102 = arith.constant 0 : index
    %144 = vector.load %arg5[%c2_99, %c0_100, %c0_101, %c0_102] : memref<3x3x16x16xbf16, #tpu.memory_space<vmem>>, vector<1x1x16x16xbf16>
    %145 = vector.shape_cast %144 : vector<1x1x16x16xbf16> to vector<16x16xbf16>
    %cst_103 = arith.constant dense<0.000000e+00> : vector<256x16xf32>
    %146 = tpu.matmul %143, %145, %cst_103 {dimension_numbers = #tpu.dot_dimension_numbers<[1], [0], [0], [1], [0, 0, 1, 1], [], []>} : vector<256x16xbf16>, vector<16x16xbf16>, vector<256x16xf32> -> vector<256x16xf32>
    %147 = arith.addf %141, %146 : vector<256x16xf32>
    %148 = vector.extract_strided_slice %105 {offsets = [2, 1, 0], sizes = [16, 16, 16], strides = [1, 1, 1]} : vector<18x18x16xbf16> to vector<16x16x16xbf16>
    %149 = vector.shape_cast %148 : vector<16x16x16xbf16> to vector<256x16xbf16>
    %c2_104 = arith.constant 2 : index
    %c1_105 = arith.constant 1 : index
    %c0_106 = arith.constant 0 : index
    %c0_107 = arith.constant 0 : index
    %150 = vector.load %arg5[%c2_104, %c1_105, %c0_106, %c0_107] : memref<3x3x16x16xbf16, #tpu.memory_space<vmem>>, vector<1x1x16x16xbf16>
    %151 = vector.shape_cast %150 : vector<1x1x16x16xbf16> to vector<16x16xbf16>
    %cst_108 = arith.constant dense<0.000000e+00> : vector<256x16xf32>
    %152 = tpu.matmul %149, %151, %cst_108 {dimension_numbers = #tpu.dot_dimension_numbers<[1], [0], [0], [1], [0, 0, 1, 1], [], []>} : vector<256x16xbf16>, vector<16x16xbf16>, vector<256x16xf32> -> vector<256x16xf32>
    %153 = arith.addf %147, %152 : vector<256x16xf32>
    %154 = vector.extract_strided_slice %105 {offsets = [2, 2, 0], sizes = [16, 16, 16], strides = [1, 1, 1]} : vector<18x18x16xbf16> to vector<16x16x16xbf16>
    %155 = vector.shape_cast %154 : vector<16x16x16xbf16> to vector<256x16xbf16>
    %c2_109 = arith.constant 2 : index
    %c2_110 = arith.constant 2 : index
    %c0_111 = arith.constant 0 : index
    %c0_112 = arith.constant 0 : index
    %156 = vector.load %arg5[%c2_109, %c2_110, %c0_111, %c0_112] : memref<3x3x16x16xbf16, #tpu.memory_space<vmem>>, vector<1x1x16x16xbf16>
    %157 = vector.shape_cast %156 : vector<1x1x16x16xbf16> to vector<16x16xbf16>
    %cst_113 = arith.constant dense<0.000000e+00> : vector<256x16xf32>
    %158 = tpu.matmul %155, %157, %cst_113 {dimension_numbers = #tpu.dot_dimension_numbers<[1], [0], [0], [1], [0, 0, 1, 1], [], []>} : vector<256x16xbf16>, vector<16x16xbf16>, vector<256x16xf32> -> vector<256x16xf32>
    %159 = arith.addf %153, %158 : vector<256x16xf32>
    %c0_114 = arith.constant 0 : index
    %c0_115 = arith.constant 0 : index
    %160 = vector.load %arg8[%c0_114, %c0_115] : memref<1x16xf32, #tpu.memory_space<vmem>>, vector<1x16xf32>
    %161 = vector.broadcast %160 : vector<1x16xf32> to vector<256x16xf32>
    %162 = arith.addf %159, %161 : vector<256x16xf32>
    %cst_116 = arith.constant 0.000000e+00 : f32
    %163 = vector.broadcast %cst_116 : f32 to vector<256x16xf32>
    %164 = arith.maximumf %162, %163 : vector<256x16xf32>
    %cst_117 = arith.constant 0.000000e+00 : f32
    %165 = vector.broadcast %cst_117 : f32 to vector<256x16xf32>
    %166 = vector.shape_cast %164 : vector<256x16xf32> to vector<16x16x16xf32>
    %cst_118 = arith.constant 0.000000e+00 : f32
    %167 = vector.broadcast %cst_118 : f32 to vector<1x16x16xf32>
    %168 = tpu.concatenate %167, %166, %167 in 0 : vector<1x16x16xf32>, vector<16x16x16xf32>, vector<1x16x16xf32> -> vector<18x16x16xf32>
    %cst_119 = arith.constant 0.000000e+00 : f32
    %169 = vector.broadcast %cst_119 : f32 to vector<18x1x16xf32>
    %170 = tpu.concatenate %169, %168, %169 in 1 : vector<18x1x16xf32>, vector<18x16x16xf32>, vector<18x1x16xf32> -> vector<18x18x16xf32>
    %171 = arith.truncf %170 : vector<18x18x16xf32> to vector<18x18x16xbf16>
    %172 = vector.extract_strided_slice %171 {offsets = [0, 0, 0], sizes = [16, 16, 16], strides = [1, 1, 1]} : vector<18x18x16xbf16> to vector<16x16x16xbf16>
    %173 = vector.shape_cast %172 : vector<16x16x16xbf16> to vector<256x16xbf16>
    %c0_120 = arith.constant 0 : index
    %c0_121 = arith.constant 0 : index
    %c0_122 = arith.constant 0 : index
    %c0_123 = arith.constant 0 : index
    %174 = vector.load %arg6[%c0_120, %c0_121, %c0_122, %c0_123] : memref<3x3x16x16xbf16, #tpu.memory_space<vmem>>, vector<1x1x16x16xbf16>
    %175 = vector.shape_cast %174 : vector<1x1x16x16xbf16> to vector<16x16xbf16>
    %cst_124 = arith.constant dense<0.000000e+00> : vector<256x16xf32>
    %176 = tpu.matmul %173, %175, %cst_124 {dimension_numbers = #tpu.dot_dimension_numbers<[1], [0], [0], [1], [0, 0, 1, 1], [], []>} : vector<256x16xbf16>, vector<16x16xbf16>, vector<256x16xf32> -> vector<256x16xf32>
    %177 = arith.addf %165, %176 : vector<256x16xf32>
    %178 = vector.extract_strided_slice %171 {offsets = [0, 1, 0], sizes = [16, 16, 16], strides = [1, 1, 1]} : vector<18x18x16xbf16> to vector<16x16x16xbf16>
    %179 = vector.shape_cast %178 : vector<16x16x16xbf16> to vector<256x16xbf16>
    %c0_125 = arith.constant 0 : index
    %c1_126 = arith.constant 1 : index
    %c0_127 = arith.constant 0 : index
    %c0_128 = arith.constant 0 : index
    %180 = vector.load %arg6[%c0_125, %c1_126, %c0_127, %c0_128] : memref<3x3x16x16xbf16, #tpu.memory_space<vmem>>, vector<1x1x16x16xbf16>
    %181 = vector.shape_cast %180 : vector<1x1x16x16xbf16> to vector<16x16xbf16>
    %cst_129 = arith.constant dense<0.000000e+00> : vector<256x16xf32>
    %182 = tpu.matmul %179, %181, %cst_129 {dimension_numbers = #tpu.dot_dimension_numbers<[1], [0], [0], [1], [0, 0, 1, 1], [], []>} : vector<256x16xbf16>, vector<16x16xbf16>, vector<256x16xf32> -> vector<256x16xf32>
    %183 = arith.addf %177, %182 : vector<256x16xf32>
    %184 = vector.extract_strided_slice %171 {offsets = [0, 2, 0], sizes = [16, 16, 16], strides = [1, 1, 1]} : vector<18x18x16xbf16> to vector<16x16x16xbf16>
    %185 = vector.shape_cast %184 : vector<16x16x16xbf16> to vector<256x16xbf16>
    %c0_130 = arith.constant 0 : index
    %c2_131 = arith.constant 2 : index
    %c0_132 = arith.constant 0 : index
    %c0_133 = arith.constant 0 : index
    %186 = vector.load %arg6[%c0_130, %c2_131, %c0_132, %c0_133] : memref<3x3x16x16xbf16, #tpu.memory_space<vmem>>, vector<1x1x16x16xbf16>
    %187 = vector.shape_cast %186 : vector<1x1x16x16xbf16> to vector<16x16xbf16>
    %cst_134 = arith.constant dense<0.000000e+00> : vector<256x16xf32>
    %188 = tpu.matmul %185, %187, %cst_134 {dimension_numbers = #tpu.dot_dimension_numbers<[1], [0], [0], [1], [0, 0, 1, 1], [], []>} : vector<256x16xbf16>, vector<16x16xbf16>, vector<256x16xf32> -> vector<256x16xf32>
    %189 = arith.addf %183, %188 : vector<256x16xf32>
    %190 = vector.extract_strided_slice %171 {offsets = [1, 0, 0], sizes = [16, 16, 16], strides = [1, 1, 1]} : vector<18x18x16xbf16> to vector<16x16x16xbf16>
    %191 = vector.shape_cast %190 : vector<16x16x16xbf16> to vector<256x16xbf16>
    %c1_135 = arith.constant 1 : index
    %c0_136 = arith.constant 0 : index
    %c0_137 = arith.constant 0 : index
    %c0_138 = arith.constant 0 : index
    %192 = vector.load %arg6[%c1_135, %c0_136, %c0_137, %c0_138] : memref<3x3x16x16xbf16, #tpu.memory_space<vmem>>, vector<1x1x16x16xbf16>
    %193 = vector.shape_cast %192 : vector<1x1x16x16xbf16> to vector<16x16xbf16>
    %cst_139 = arith.constant dense<0.000000e+00> : vector<256x16xf32>
    %194 = tpu.matmul %191, %193, %cst_139 {dimension_numbers = #tpu.dot_dimension_numbers<[1], [0], [0], [1], [0, 0, 1, 1], [], []>} : vector<256x16xbf16>, vector<16x16xbf16>, vector<256x16xf32> -> vector<256x16xf32>
    %195 = arith.addf %189, %194 : vector<256x16xf32>
    %196 = vector.extract_strided_slice %171 {offsets = [1, 1, 0], sizes = [16, 16, 16], strides = [1, 1, 1]} : vector<18x18x16xbf16> to vector<16x16x16xbf16>
    %197 = vector.shape_cast %196 : vector<16x16x16xbf16> to vector<256x16xbf16>
    %c1_140 = arith.constant 1 : index
    %c1_141 = arith.constant 1 : index
    %c0_142 = arith.constant 0 : index
    %c0_143 = arith.constant 0 : index
    %198 = vector.load %arg6[%c1_140, %c1_141, %c0_142, %c0_143] : memref<3x3x16x16xbf16, #tpu.memory_space<vmem>>, vector<1x1x16x16xbf16>
    %199 = vector.shape_cast %198 : vector<1x1x16x16xbf16> to vector<16x16xbf16>
    %cst_144 = arith.constant dense<0.000000e+00> : vector<256x16xf32>
    %200 = tpu.matmul %197, %199, %cst_144 {dimension_numbers = #tpu.dot_dimension_numbers<[1], [0], [0], [1], [0, 0, 1, 1], [], []>} : vector<256x16xbf16>, vector<16x16xbf16>, vector<256x16xf32> -> vector<256x16xf32>
    %201 = arith.addf %195, %200 : vector<256x16xf32>
    %202 = vector.extract_strided_slice %171 {offsets = [1, 2, 0], sizes = [16, 16, 16], strides = [1, 1, 1]} : vector<18x18x16xbf16> to vector<16x16x16xbf16>
    %203 = vector.shape_cast %202 : vector<16x16x16xbf16> to vector<256x16xbf16>
    %c1_145 = arith.constant 1 : index
    %c2_146 = arith.constant 2 : index
    %c0_147 = arith.constant 0 : index
    %c0_148 = arith.constant 0 : index
    %204 = vector.load %arg6[%c1_145, %c2_146, %c0_147, %c0_148] : memref<3x3x16x16xbf16, #tpu.memory_space<vmem>>, vector<1x1x16x16xbf16>
    %205 = vector.shape_cast %204 : vector<1x1x16x16xbf16> to vector<16x16xbf16>
    %cst_149 = arith.constant dense<0.000000e+00> : vector<256x16xf32>
    %206 = tpu.matmul %203, %205, %cst_149 {dimension_numbers = #tpu.dot_dimension_numbers<[1], [0], [0], [1], [0, 0, 1, 1], [], []>} : vector<256x16xbf16>, vector<16x16xbf16>, vector<256x16xf32> -> vector<256x16xf32>
    %207 = arith.addf %201, %206 : vector<256x16xf32>
    %208 = vector.extract_strided_slice %171 {offsets = [2, 0, 0], sizes = [16, 16, 16], strides = [1, 1, 1]} : vector<18x18x16xbf16> to vector<16x16x16xbf16>
    %209 = vector.shape_cast %208 : vector<16x16x16xbf16> to vector<256x16xbf16>
    %c2_150 = arith.constant 2 : index
    %c0_151 = arith.constant 0 : index
    %c0_152 = arith.constant 0 : index
    %c0_153 = arith.constant 0 : index
    %210 = vector.load %arg6[%c2_150, %c0_151, %c0_152, %c0_153] : memref<3x3x16x16xbf16, #tpu.memory_space<vmem>>, vector<1x1x16x16xbf16>
    %211 = vector.shape_cast %210 : vector<1x1x16x16xbf16> to vector<16x16xbf16>
    %cst_154 = arith.constant dense<0.000000e+00> : vector<256x16xf32>
    %212 = tpu.matmul %209, %211, %cst_154 {dimension_numbers = #tpu.dot_dimension_numbers<[1], [0], [0], [1], [0, 0, 1, 1], [], []>} : vector<256x16xbf16>, vector<16x16xbf16>, vector<256x16xf32> -> vector<256x16xf32>
    %213 = arith.addf %207, %212 : vector<256x16xf32>
    %214 = vector.extract_strided_slice %171 {offsets = [2, 1, 0], sizes = [16, 16, 16], strides = [1, 1, 1]} : vector<18x18x16xbf16> to vector<16x16x16xbf16>
    %215 = vector.shape_cast %214 : vector<16x16x16xbf16> to vector<256x16xbf16>
    %c2_155 = arith.constant 2 : index
    %c1_156 = arith.constant 1 : index
    %c0_157 = arith.constant 0 : index
    %c0_158 = arith.constant 0 : index
    %216 = vector.load %arg6[%c2_155, %c1_156, %c0_157, %c0_158] : memref<3x3x16x16xbf16, #tpu.memory_space<vmem>>, vector<1x1x16x16xbf16>
    %217 = vector.shape_cast %216 : vector<1x1x16x16xbf16> to vector<16x16xbf16>
    %cst_159 = arith.constant dense<0.000000e+00> : vector<256x16xf32>
    %218 = tpu.matmul %215, %217, %cst_159 {dimension_numbers = #tpu.dot_dimension_numbers<[1], [0], [0], [1], [0, 0, 1, 1], [], []>} : vector<256x16xbf16>, vector<16x16xbf16>, vector<256x16xf32> -> vector<256x16xf32>
    %219 = arith.addf %213, %218 : vector<256x16xf32>
    %220 = vector.extract_strided_slice %171 {offsets = [2, 2, 0], sizes = [16, 16, 16], strides = [1, 1, 1]} : vector<18x18x16xbf16> to vector<16x16x16xbf16>
    %221 = vector.shape_cast %220 : vector<16x16x16xbf16> to vector<256x16xbf16>
    %c2_160 = arith.constant 2 : index
    %c2_161 = arith.constant 2 : index
    %c0_162 = arith.constant 0 : index
    %c0_163 = arith.constant 0 : index
    %222 = vector.load %arg6[%c2_160, %c2_161, %c0_162, %c0_163] : memref<3x3x16x16xbf16, #tpu.memory_space<vmem>>, vector<1x1x16x16xbf16>
    %223 = vector.shape_cast %222 : vector<1x1x16x16xbf16> to vector<16x16xbf16>
    %cst_164 = arith.constant dense<0.000000e+00> : vector<256x16xf32>
    %224 = tpu.matmul %221, %223, %cst_164 {dimension_numbers = #tpu.dot_dimension_numbers<[1], [0], [0], [1], [0, 0, 1, 1], [], []>} : vector<256x16xbf16>, vector<16x16xbf16>, vector<256x16xf32> -> vector<256x16xf32>
    %225 = arith.addf %219, %224 : vector<256x16xf32>
    %c0_165 = arith.constant 0 : index
    %c0_166 = arith.constant 0 : index
    %226 = vector.load %arg9[%c0_165, %c0_166] : memref<1x16xf32, #tpu.memory_space<vmem>>, vector<1x16xf32>
    %227 = vector.broadcast %226 : vector<1x16xf32> to vector<256x16xf32>
    %228 = arith.addf %225, %227 : vector<256x16xf32>
    %cst_167 = arith.constant 0.000000e+00 : f32
    %229 = vector.broadcast %cst_167 : f32 to vector<256x16xf32>
    %230 = arith.maximumf %228, %229 : vector<256x16xf32>
    %231 = vector.shape_cast %230 : vector<256x16xf32> to vector<16x16x16xf32>
    %c0_168 = arith.constant 0 : index
    %c0_169 = arith.constant 0 : index
    %c0_170 = arith.constant 0 : index
    %c0_171 = arith.constant 0 : index
    %232 = vector.load %arg10[%c0_168, %c0_169, %c0_170, %c0_171] : memref<1x16x16x16xf32, #tpu.memory_space<vmem>>, vector<1x16x16x16xf32>
    %233 = vector.shape_cast %232 : vector<1x16x16x16xf32> to vector<16x16x16xf32>
    %234 = vector.shape_cast %231 : vector<16x16x16xf32> to vector<1x16x16x16xf32>
    tpu.vector_store %arg10[%c0_168, %c0_169, %c0_170, %c0_171], %234 {strides = array<i32>} : memref<1x16x16x16xf32, #tpu.memory_space<vmem>>, vector<1x16x16x16xf32>,
    return
  }
  func.func @transform_0(%arg0: i32) -> (i32, i32, i32) {
    %c0_i32 = arith.constant 0 : i32
    %c0_i32_0 = arith.constant 0 : i32
    %c0_i32_1 = arith.constant 0 : i32
    return %arg0, %c0_i32, %c0_i32_0 : i32, i32, i32
  }
  func.func @transform_1(%arg0: i32) -> (i32, i32, i32) {
    %c0_i32 = arith.constant 0 : i32
    %c0_i32_0 = arith.constant 0 : i32
    %c0_i32_1 = arith.constant 0 : i32
    return %arg0, %c0_i32, %c0_i32_0 : i32, i32, i32
  }
  func.func @transform_2(%arg0: i32) -> (i32, i32, i32) {
    %c0_i32 = arith.constant 0 : i32
    %c0_i32_0 = arith.constant 0 : i32
    %c0_i32_1 = arith.constant 0 : i32
    %c0_i32_2 = arith.constant 0 : i32
    return %c0_i32, %c0_i32_0, %c0_i32_1 : i32, i32, i32
  }
  func.func @transform_3(%arg0: i32) -> (i32, i32, i32, i32) {
    %c0_i32 = arith.constant 0 : i32
    %c0_i32_0 = arith.constant 0 : i32
    %c0_i32_1 = arith.constant 0 : i32
    %c0_i32_2 = arith.constant 0 : i32
    %c0_i32_3 = arith.constant 0 : i32
    return %c0_i32, %c0_i32_0, %c0_i32_1, %c0_i32_2 : i32, i32, i32, i32
  }
  func.func @transform_4(%arg0: i32) -> (i32, i32, i32, i32) {
    %c0_i32 = arith.constant 0 : i32
    %c0_i32_0 = arith.constant 0 : i32
    %c0_i32_1 = arith.constant 0 : i32
    %c0_i32_2 = arith.constant 0 : i32
    %c0_i32_3 = arith.constant 0 : i32
    return %c0_i32, %c0_i32_0, %c0_i32_1, %c0_i32_2 : i32, i32, i32, i32
  }
  func.func @transform_5(%arg0: i32) -> (i32, i32, i32, i32) {
    %c0_i32 = arith.constant 0 : i32
    %c0_i32_0 = arith.constant 0 : i32
    %c0_i32_1 = arith.constant 0 : i32
    %c0_i32_2 = arith.constant 0 : i32
    %c0_i32_3 = arith.constant 0 : i32
    return %c0_i32, %c0_i32_0, %c0_i32_1, %c0_i32_2 : i32, i32, i32, i32
  }
  func.func @transform_6(%arg0: i32) -> (i32, i32) {
    %c0_i32 = arith.constant 0 : i32
    %c0_i32_0 = arith.constant 0 : i32
    %c0_i32_1 = arith.constant 0 : i32
    return %c0_i32, %c0_i32_0 : i32, i32
  }
  func.func @transform_7(%arg0: i32) -> (i32, i32) {
    %c0_i32 = arith.constant 0 : i32
    %c0_i32_0 = arith.constant 0 : i32
    %c0_i32_1 = arith.constant 0 : i32
    return %c0_i32, %c0_i32_0 : i32, i32
  }
  func.func @transform_8(%arg0: i32) -> (i32, i32) {
    %c0_i32 = arith.constant 0 : i32
    %c0_i32_0 = arith.constant 0 : i32
    %c0_i32_1 = arith.constant 0 : i32
    return %c0_i32, %c0_i32_0 : i32, i32
  }
  func.func @transform_9(%arg0: i32) -> (i32, i32, i32, i32) {
    %c0_i32 = arith.constant 0 : i32
    %c0_i32_0 = arith.constant 0 : i32
    %c0_i32_1 = arith.constant 0 : i32
    %c0_i32_2 = arith.constant 0 : i32
    return %arg0, %c0_i32, %c0_i32_0, %c0_i32_1 : i32, i32, i32, i32
  }
}

</mosaic_0001>

<llo_original>
// kernel: unet_up_block.1
$region0: #{unet_up_block.1}
  #allocation0 [shape = 'u32[]', space=smem, size = 0x4, offset = 0x4, fixed_abs, tag = 'smem constant byte address 0x4 - core index']
  #allocation1 [shape = 'u32[144,128]{1,0:T(1,128)}', space=vmem, size = 0x12000, scoped, tag = 'internal scratch']
  %s0 = inlined_call_operand.vmem [shape: bf16[2,64,32], index: 0, kind: input, shape index: {}]
  %s1 = inlined_call_operand.vmem [shape: bf16[2,256,16], index: 1, kind: input, shape index: {}]
  %s2 = inlined_call_operand.vmem [shape: bf16[4,32,16], index: 2, kind: input, shape index: {}]
  %s3 = inlined_call_operand.vmem [shape: bf16[3,3,16,16], index: 3, kind: input, shape index: {}]
  %s4 = inlined_call_operand.vmem [shape: bf16[3,3,16,16], index: 4, kind: input, shape index: {}]
  %s5 = inlined_call_operand.vmem [shape: bf16[3,3,16,16], index: 5, kind: input, shape index: {}]
  %s6 = inlined_call_operand.vmem [shape: f32[1,16], index: 6, kind: input, shape index: {}]
  %s7 = inlined_call_operand.vmem [shape: f32[1,16], index: 7, kind: input, shape index: {}]
  %s8 = inlined_call_operand.vmem [shape: f32[1,16], index: 8, kind: input, shape index: {}]
  %s9 = inlined_call_operand.vmem [shape: f32[2,16,16,16], index: 9, kind: output, shape index: {}]
  %s10 = sld [smem:[#allocation0]]
  $region69: #{unet_up_block.1} parent=0
    _
  %s12 = ssub.s32 1, %s10
  %s13 = scalar_select 0, %s12, %s10
  loop: start=0, step=1, limit=4
  $region2: #{unet_up_block.1} parent=0 // loop_pre_header
    _
  $region3: #{unet_up_block.1} parent=0 // loop_header
    %s15 = sphi 0, %s19
    %p16 = scmp.ge.s32.totalorder %s15, 4
    %s25 = sphi 0, %s27
    %s28 = sphi 0, %s25
    %s29 = sphi 0, %s28
    %s45 = sphi 0, %s29
    %s51 = sphi 0, %s53
    %s54 = sphi 0, %s51
    %s55 = sphi 0, %s54
    %s71 = sphi 0, %s55
    %s75 = sphi 0, %s75
    %s77 = sphi 0, %s75
    %s78 = sphi 0, %s77
    %s92 = sphi 0, %s78
    %s96 = sphi 0, %s96
    %s98 = sphi 0, %s96
    %s99 = sphi 0, %s98
    %s113 = sphi 0, %s99
    %s117 = sphi 0, %s117
    %s119 = sphi 0, %s117
    %s120 = sphi 0, %s119
    %s134 = sphi 0, %s120
    %s138 = sphi 0, %s138
    %s140 = sphi 0, %s138
    %s141 = sphi 0, %s140
    %s155 = sphi 0, %s141
    %s159 = sphi 0, %s159
    %s161 = sphi 0, %s159
    %s162 = sphi 0, %s161
    %s176 = sphi 0, %s162
    %s180 = sphi 0, %s180
    %s182 = sphi 0, %s180
    %s183 = sphi 0, %s182
    %s197 = sphi 0, %s183
    %s201 = sphi 0, %s201
    %s203 = sphi 0, %s201
    %s204 = sphi 0, %s203
    %s218 = sphi 0, %s204
    %s224 = sphi 0, %s226
    %s227 = sphi 0, %s224
    %s228 = sphi 0, %s227
    %s244 = sphi 0, %s228
  $region4: #{unet_up_block.1} parent=0 // loop_header_branch
    %18 = sbr.rel (%p16) target = $region8
  $region5: #{unet_up_block.1} parent=0 // loop_body
    %s20 = ssub.s32 %s15, 1
    %s21 = ssub.s32 %s15, 2
    %s22 = sadd.s32 %s15, 1
    %s23 = ssub.s32 %s15, %s22
    %p24 = scmp.eq.s32.totalorder %s23, 0
    %s26 = sadd.s32 %s25, 1
    %s27 = scalar_select %p24, %s25, %s26
    %p30 = pneg %p24
    %p31 = scmp.eq.s32.totalorder %s15, 1
    %p32 = por %p30, %p31
    %p33 = scmp.ne.s32.totalorder %s25, %s28
    %p34 = scmp.eq.s32.totalorder %s15, 0
    %p35 = por %p33, %p34
    %p36 = scmp.ne.s32.totalorder %s25, %s28
    %p37 = scmp.eq.s32.totalorder %s20, 1
    %p38 = por %p36, %p37
    %p39 = scmp.ne.s32.totalorder %s28, %s29
    %p40 = scmp.eq.s32.totalorder %s20, 0
    %p41 = por %p39, %p40
    %p42 = scmp.ne.s32.totalorder %s28, %s29
    %p43 = scmp.eq.s32.totalorder %s21, 1
    %p44 = por %p42, %p43
    %p46 = scmp.ne.s32.totalorder %s29, %s45
    %p47 = scmp.eq.s32.totalorder %s21, 0
    %p48 = por %p46, %p47
    %s49 = ssub.s32 %s15, %s22
    %p50 = scmp.eq.s32.totalorder %s49, 0
    %s52 = sadd.s32 %s51, 1
    %s53 = scalar_select %p50, %s51, %s52
    %p56 = pneg %p50
    %p57 = scmp.eq.s32.totalorder %s15, 1
    %p58 = por %p56, %p57
    %p59 = scmp.ne.s32.totalorder %s51, %s54
    %p60 = scmp.eq.s32.totalorder %s15, 0
    %p61 = por %p59, %p60
    %p62 = scmp.ne.s32.totalorder %s51, %s54
    %p63 = scmp.eq.s32.totalorder %s20, 1
    %p64 = por %p62, %p63
    %p65 = scmp.ne.s32.totalorder %s54, %s55
    %p66 = scmp.eq.s32.totalorder %s20, 0
    %p67 = por %p65, %p66
    %p68 = scmp.ne.s32.totalorder %s54, %s55
    %p69 = scmp.eq.s32.totalorder %s21, 1
    %p70 = por %p68, %p69
    %p72 = scmp.ne.s32.totalorder %s55, %s71
    %p73 = scmp.eq.s32.totalorder %s21, 0
    %p74 = por %p72, %p73
    %s76 = sadd.s32 %s75, 1
    %p79 = scmp.eq.s32.totalorder %s15, 1
    %p80 = scmp.ne.s32.totalorder %s75, %s77
    %p81 = scmp.eq.s32.totalorder %s15, 0
    %p82 = por %p80, %p81
    %p83 = scmp.ne.s32.totalorder %s75, %s77
    %p84 = scmp.eq.s32.totalorder %s20, 1
    %p85 = por %p83, %p84
    %p86 = scmp.ne.s32.totalorder %s77, %s78
    %p87 = scmp.eq.s32.totalorder %s20, 0
    %p88 = por %p86, %p87
    %p89 = scmp.ne.s32.totalorder %s77, %s78
    %p90 = scmp.eq.s32.totalorder %s21, 1
    %p91 = por %p89, %p90
    %p93 = scmp.ne.s32.totalorder %s78, %s92
    %p94 = scmp.eq.s32.totalorder %s21, 0
    %p95 = por %p93, %p94
    %s97 = sadd.s32 %s96, 1
    %p100 = scmp.eq.s32.totalorder %s15, 1
    %p101 = scmp.ne.s32.totalorder %s96, %s98
    %p102 = scmp.eq.s32.totalorder %s15, 0
    %p103 = por %p101, %p102
    %p104 = scmp.ne.s32.totalorder %s96, %s98
    %p105 = scmp.eq.s32.totalorder %s20, 1
    %p106 = por %p104, %p105
    %p107 = scmp.ne.s32.totalorder %s98, %s99
    %p108 = scmp.eq.s32.totalorder %s20, 0
    %p109 = por %p107, %p108
    %p110 = scmp.ne.s32.totalorder %s98, %s99
    %p111 = scmp.eq.s32.totalorder %s21, 1
    %p112 = por %p110, %p111
    %p114 = scmp.ne.s32.totalorder %s99, %s113
    %p115 = scmp.eq.s32.totalorder %s21, 0
    %p116 = por %p114, %p115
    %s118 = sadd.s32 %s117, 1
    %p121 = scmp.eq.s32.totalorder %s15, 1
    %p122 = scmp.ne.s32.totalorder %s117, %s119
    %p123 = scmp.eq.s32.totalorder %s15, 0
    %p124 = por %p122, %p123
    %p125 = scmp.ne.s32.totalorder %s117, %s119
    %p126 = scmp.eq.s32.totalorder %s20, 1
    %p127 = por %p125, %p126
    %p128 = scmp.ne.s32.totalorder %s119, %s120
    %p129 = scmp.eq.s32.totalorder %s20, 0
    %p130 = por %p128, %p129
    %p131 = scmp.ne.s32.totalorder %s119, %s120
    %p132 = scmp.eq.s32.totalorder %s21, 1
    %p133 = por %p131, %p132
    %p135 = scmp.ne.s32.totalorder %s120, %s134
    %p136 = scmp.eq.s32.totalorder %s21, 0
    %p137 = por %p135, %p136
    %s139 = sadd.s32 %s138, 1
    %p142 = scmp.eq.s32.totalorder %s15, 1
    %p143 = scmp.ne.s32.totalorder %s138, %s140
    %p144 = scmp.eq.s32.totalorder %s15, 0
    %p145 = por %p143, %p144
    %p146 = scmp.ne.s32.totalorder %s138, %s140
    %p147 = scmp.eq.s32.totalorder %s20, 1
    %p148 = por %p146, %p147
    %p149 = scmp.ne.s32.totalorder %s140, %s141
    %p150 = scmp.eq.s32.totalorder %s20, 0
    %p151 = por %p149, %p150
    %p152 = scmp.ne.s32.totalorder %s140, %s141
    %p153 = scmp.eq.s32.totalorder %s21, 1
    %p154 = por %p152, %p153
    %p156 = scmp.ne.s32.totalorder %s141, %s155
    %p157 = scmp.eq.s32.totalorder %s21, 0
    %p158 = por %p156, %p157
    %s160 = sadd.s32 %s159, 1
    %p163 = scmp.eq.s32.totalorder %s15, 1
    %p164 = scmp.ne.s32.totalorder %s159, %s161
    %p165 = scmp.eq.s32.totalorder %s15, 0
    %p166 = por %p164, %p165
    %p167 = scmp.ne.s32.totalorder %s159, %s161
    %p168 = scmp.eq.s32.totalorder %s20, 1
    %p169 = por %p167, %p168
    %p170 = scmp.ne.s32.totalorder %s161, %s162
    %p171 = scmp.eq.s32.totalorder %s20, 0
    %p172 = por %p170, %p171
    %p173 = scmp.ne.s32.totalorder %s161, %s162
    %p174 = scmp.eq.s32.totalorder %s21, 1
    %p175 = por %p173, %p174
    %p177 = scmp.ne.s32.totalorder %s162, %s176
    %p178 = scmp.eq.s32.totalorder %s21, 0
    %p179 = por %p177, %p178
    %s181 = sadd.s32 %s180, 1
    %p184 = scmp.eq.s32.totalorder %s15, 1
    %p185 = scmp.ne.s32.totalorder %s180, %s182
    %p186 = scmp.eq.s32.totalorder %s15, 0
    %p187 = por %p185, %p186
    %p188 = scmp.ne.s32.totalorder %s180, %s182
    %p189 = scmp.eq.s32.totalorder %s20, 1
    %p190 = por %p188, %p189
    %p191 = scmp.ne.s32.totalorder %s182, %s183
    %p192 = scmp.eq.s32.totalorder %s20, 0
    %p193 = por %p191, %p192
    %p194 = scmp.ne.s32.totalorder %s182, %s183
    %p195 = scmp.eq.s32.totalorder %s21, 1
    %p196 = por %p194, %p195
    %p198 = scmp.ne.s32.totalorder %s183, %s197
    %p199 = scmp.eq.s32.totalorder %s21, 0
    %p200 = por %p198, %p199
    %s202 = sadd.s32 %s201, 1
    %p205 = scmp.eq.s32.totalorder %s15, 1
    %p206 = scmp.ne.s32.totalorder %s201, %s203
    %p207 = scmp.eq.s32.totalorder %s15, 0
    %p208 = por %p206, %p207
    %p209 = scmp.ne.s32.totalorder %s201, %s203
    %p210 = scmp.eq.s32.totalorder %s20, 1
    %p211 = por %p209, %p210
    %p212 = scmp.ne.s32.totalorder %s203, %s204
    %p213 = scmp.eq.s32.totalorder %s20, 0
    %p214 = por %p212, %p213
    %p215 = scmp.ne.s32.totalorder %s203, %s204
    %p216 = scmp.eq.s32.totalorder %s21, 1
    %p217 = por %p215, %p216
    %p219 = scmp.ne.s32.totalorder %s204, %s218
    %p220 = scmp.eq.s32.totalorder %s21, 0
    %p221 = por %p219, %p220
    %s222 = ssub.s32 %s15, %s22
    %p223 = scmp.eq.s32.totalorder %s222, 0
    %s225 = sadd.s32 %s224, 1
    %s226 = scalar_select %p223, %s224, %s225
    %p229 = pneg %p223
    %p230 = scmp.eq.s32.totalorder %s15, 1
    %p231 = por %p229, %p230
    %p232 = scmp.ne.s32.totalorder %s224, %s227
    %p233 = scmp.eq.s32.totalorder %s15, 0
    %p234 = por %p232, %p233
    %p235 = scmp.ne.s32.totalorder %s224, %s227
    %p236 = scmp.eq.s32.totalorder %s20, 1
    %p237 = por %p235, %p236
    %p238 = scmp.ne.s32.totalorder %s227, %s228
    %p239 = scmp.eq.s32.totalorder %s20, 0
    %p240 = por %p238, %p239
    %p241 = scmp.ne.s32.totalorder %s227, %s228
    %p242 = scmp.eq.s32.totalorder %s21, 1
    %p243 = por %p241, %p242
    %p245 = scmp.ne.s32.totalorder %s228, %s244
    %p246 = scmp.eq.s32.totalorder %s21, 0
    %p247 = por %p245, %p246
    %p248 = scmp.le.s32.totalorder 1, %s15
    %p249 = scmp.lt.s32.totalorder %s15, 3
    %p250 = pnand %p248, %p249
    %p251 = pneg %p250
    // Predicated region
    $region9: #{unet_up_block.1} parent=5 // pred_check
      _
    $region10: #{unet_up_block.1} parent=5 // pred_check_branch
      %253 = sbr.rel (%p250) target = $region12
    $region11: #{unet_up_block.1} parent=5 // pred_region
      %s254 = ssub.s32 %s15, 1
      // Predicated region
      $region13: #{unet_up_block.1} parent=11 // pred_check
        %p255 = pneg %p88
      $region14: #{unet_up_block.1} parent=11 // pred_check_branch
        %257 = sbr.rel (%p255) target = $region16
      $region15: #{unet_up_block.1} parent=11 // pred_region
        _
      $region16: #{unet_up_block.1} parent=11 // pred_fallthru
        _
      // Predicated region
      $region17: #{unet_up_block.1} parent=11 // pred_check
        %p258 = pneg %p109
      $region18: #{unet_up_block.1} parent=11 // pred_check_branch
        %260 = sbr.rel (%p258) target = $region20
      $region19: #{unet_up_block.1} parent=11 // pred_region
        _
      $region20: #{unet_up_block.1} parent=11 // pred_fallthru
        _
      // Predicated region
      $region21: #{unet_up_block.1} parent=11 // pred_check
        %p261 = pneg %p130
      $region22: #{unet_up_block.1} parent=11 // pred_check_branch
        %263 = sbr.rel (%p261) target = $region24
      $region23: #{unet_up_block.1} parent=11 // pred_region
        _
      $region24: #{unet_up_block.1} parent=11 // pred_fallthru
        _
      // Predicated region
      $region25: #{unet_up_block.1} parent=11 // pred_check
        %p264 = pneg %p151
      $region26: #{unet_up_block.1} parent=11 // pred_check_branch
        %266 = sbr.rel (%p264) target = $region28
      $region27: #{unet_up_block.1} parent=11 // pred_region
        _
      $region28: #{unet_up_block.1} parent=11 // pred_fallthru
        _
      // Predicated region
      $region29: #{unet_up_block.1} parent=11 // pred_check
        %p267 = pneg %p172
      $region30: #{unet_up_block.1} parent=11 // pred_check_branch
        %269 = sbr.rel (%p267) target = $region32
      $region31: #{unet_up_block.1} parent=11 // pred_region
        _
      $region32: #{unet_up_block.1} parent=11 // pred_fallthru
        _
      // Predicated region
      $region33: #{unet_up_block.1} parent=11 // pred_check
        %p270 = pneg %p193
      $region34: #{unet_up_block.1} parent=11 // pred_check_branch
        %272 = sbr.rel (%p270) target = $region36
      $region35: #{unet_up_block.1} parent=11 // pred_region
        _
      $region36: #{unet_up_block.1} parent=11 // pred_fallthru
        _
      // Predicated region
      $region37: #{unet_up_block.1} parent=11 // pred_check
        %p273 = pneg %p214
      $region38: #{unet_up_block.1} parent=11 // pred_check_branch
        %275 = sbr.rel (%p273) target = $region40
      $region39: #{unet_up_block.1} parent=11 // pred_region
        _
      $region40: #{unet_up_block.1} parent=11 // pred_fallthru
        _
    $region12: #{unet_up_block.1} parent=5 // pred_fallthru
      _
    %p276 = scmp.lt.s32.totalorder %s15, 2
    // Predicated region
    $region41: #{unet_up_block.1} parent=5 // pred_check
      %p277 = pneg %p276
    $region42: #{unet_up_block.1} parent=5 // pred_check_branch
      %279 = sbr.rel (%p277) target = $region44
    $region43: #{unet_up_block.1} parent=5 // pred_region
      // Predicated region
      $region45: #{unet_up_block.1} parent=43 // pred_check
        %p280 = pneg %p35
      $region46: #{unet_up_block.1} parent=43 // pred_check_branch
        %282 = sbr.rel (%p280) target = $region48
      $region47: #{unet_up_block.1} parent=43 // pred_region
        %p283 = scmp.lt.s32.totalorder %s15, 1
        %s284 = scalar_select %p283, %s15, 1
        %s285 = smul.addr %s284, 8
        %s286 = smul.addr %s285, 4
        %s287 = scalar_lea.vmem %s0, %s286
      $region48: #{unet_up_block.1} parent=43 // pred_fallthru
        _
      // Predicated region
      $region49: #{unet_up_block.1} parent=43 // pred_check
        %p288 = pneg %p61
      $region50: #{unet_up_block.1} parent=43 // pred_check_branch
        %290 = sbr.rel (%p288) target = $region52
      $region51: #{unet_up_block.1} parent=43 // pred_region
        %p291 = scmp.lt.s32.totalorder %s15, 1
        %s292 = scalar_select %p291, %s15, 1
        %s293 = smul.addr %s292, 32
        %s294 = smul.addr %s293, 4
        %s295 = scalar_lea.vmem %s1, %s294
      $region52: #{unet_up_block.1} parent=43 // pred_fallthru
        _
    $region44: #{unet_up_block.1} parent=5 // pred_fallthru
      _
    %p296 = scmp.le.s32.totalorder 1, %s15
    %p297 = scmp.lt.s32.totalorder %s15, 3
    %p298 = pnand %p296, %p297
    %p299 = pneg %p298
    // Predicated region
    $region53: #{unet_up_block.1} parent=5 // pred_check
      _
    $region54: #{unet_up_block.1} parent=5 // pred_check_branch
      %301 = sbr.rel (%p298) target = $region56
    $region55: #{unet_up_block.1} parent=5 // pred_region
      %s302 = ssub.s32 %s15, 1
      %p303 = scmp.lt.s32.totalorder %s20, 1
      %s304 = scalar_select %p303, %s20, 1
      %s305 = smul.addr %s304, 8
      %s306 = smul.addr %s305, 4
      %s307 = scalar_lea.vmem %s0, %s306
      %p308 = pneg %p41
      %p309 = pneg %p38
      %p310 = scmp.lt.s32.totalorder %s20, 1
      %s311 = scalar_select %p310, %s20, 1
      %s312 = smul.addr %s311, 32
      %s313 = smul.addr %s312, 4
      %s314 = scalar_lea.vmem %s1, %s313
      %p315 = pneg %p67
      %p316 = pneg %p64
      %p317 = pneg %p88
      %p318 = pneg %p85
      %p319 = pneg %p109
      %p320 = pneg %p106
      %p321 = pneg %p130
      %p322 = pneg %p127
      %p323 = pneg %p151
      %p324 = pneg %p148
      %p325 = pneg %p172
      %p326 = pneg %p169
      %p327 = pneg %p193
      %p328 = pneg %p190
      %p329 = pneg %p214
      %p330 = pneg %p211
      %p331 = pneg %p240
      %p332 = pneg %p237
      %p333 = scmp.lt.s32.totalorder %s20, 1
      %s334 = scalar_select %p333, %s20, 1
      %s335 = smul.addr %s334, 32
      %s336 = smul.addr %s335, 8
      %s337 = scalar_lea.vmem %s9, %s336
      %p338 = scmp.lt.s32.totalorder %s20, 1
      %s339 = scalar_select %p338, %s20, 1
      %s340 = smul.addr %s339, 8
      %s341 = smul.addr %s340, 4
      %s342 = scalar_lea.vmem %s0, %s341
      %p343 = scmp.lt.s32.totalorder %s20, 1
      %s344 = scalar_select %p343, %s20, 1
      %s345 = smul.addr %s344, 32
      %s346 = smul.addr %s345, 4
      %s347 = scalar_lea.vmem %s1, %s346
      %p348 = scmp.lt.s32.totalorder %s20, 1
      %s349 = scalar_select %p348, %s20, 1
      %s350 = smul.addr %s349, 32
      %s351 = smul.addr %s350, 8
      %s352 = scalar_lea.vmem %s9, %s351
      %v354 = vld [vmem:[%s342] sm:$0xf]
      %v355 = vld [vmem:[%s342 + $0x4] sm:$0xf]
      %v356 = vld [vmem:[%s342 + $0x8] sm:$0xf]
      %v357 = vld [vmem:[%s342 + $0xc] sm:$0xf]
      %v358 = vld [vmem:[%s342 + $0x10] sm:$0xf]
      %v359 = vld [vmem:[%s342 + $0x14] sm:$0xf]
      %v360 = vld [vmem:[%s342 + $0x18] sm:$0xf]
      %v361 = vld [vmem:[%s342 + $0x1c] sm:$0xf]
      %v362 = vld [vmem:[%s6] sm:$0x1]
      %v363 = vld [vmem:[%s2] sm:$0xf]
      %v364 = vld [vmem:[%s2 + $0x4] sm:$0xf]
      %v365 = vld [vmem:[%s2 + $0x8] sm:$0xf]
      %v366 = vld [vmem:[%s2 + $0xc] sm:$0xf]
      %v368 = vlaneseq
      %v369 = vshrl.u32 %v368, 7
      %v370 = vsub.s32 0, %v369
      %v371 = vrot.slane %v362, %v370
      %v381 = vunpack.c.l.b16 %v354
      %v382 = vunpack.c.l.b16 %v355
      %v383 = vunpack.c.l.b16 %v356
      %v384 = vunpack.c.l.b16 %v357
      %v385 = vunpack.c.l.b16 %v358
      %v386 = vunpack.c.l.b16 %v359
      %v387 = vunpack.c.l.b16 %v360
      %v388 = vunpack.c.l.b16 %v361
      %v389 = vpack.c.b16 %v382, %v381
      %v390 = vpack.c.b16 %v384, %v383
      %v391 = vpack.c.b16 %v386, %v385
      %v392 = vpack.c.b16 %v388, %v387
      %v397 = vunpack.c.l.b16 %v363
      %v398 = vunpack.c.l.b16 %v364
      %v399 = vunpack.c.l.b16 %v365
      %v400 = vunpack.c.l.b16 %v366
      %v401 = vpack.c.b16 %v398, %v397
      %v402 = vpack.c.b16 %v400, %v399
      %vm405 = vcmask 261120
      %v407 = vsel %vm405, %v389, 0
      %v410 = vsel %vm405, %v390, 0
      %v413 = vsel %vm405, %v391, 0
      %v416 = vsel %vm405, %v392, 0
      %418 = vmatprep.subr.bf16.mxu0 0
      %419 = vmatpush1.bf16.msra.mxu0 0
      %420 = vmatprep.subr.bf16.mxu0 0
      %421 = vmatpush1.bf16.msra.mxu0 0
      %422 = vmatprep.subr.bf16.mxu0 0
      %423 = vmatpush1.bf16.msra.mxu0 0
      %424 = vmatprep.subr.bf16.mxu0 0
      %425 = vmatpush1.bf16.msra.mxu0 0
      %426 = vmatprep.subr.bf16.mxu0 0
      %427 = vmatpush1.bf16.msra.mxu0 0
      %428 = vmatprep.subr.bf16.mxu0 0
      %429 = vmatpush1.bf16.msra.mxu0 0
      %430 = vmatprep.subr.bf16.mxu0 0
      %431 = vmatpush1.bf16.msra.mxu0 %v402
      %432 = vmatprep.subr.bf16.mxu0 0
      %433 = vmatpush1.bf16.msra.mxu0 %v401
      %434 = vmatprep.subr.bf16.mxu0 0
      %435 = vmatpush2.bf16.msra.mxu0 0
      %436 = vmatprep.subr.bf16.mxu0 0
      %437 = vmatpush2.bf16.msra.mxu0 0
      %438 = vmatprep.subr.bf16.mxu0 0
      %439 = vmatpush2.bf16.msra.mxu0 0
      %440 = vmatprep.subr.bf16.mxu0 0
      %441 = vmatpush2.bf16.msra.mxu0 0
      %442 = vmatprep.subr.bf16.mxu0 0
      %443 = vmatpush2.bf16.msra.mxu0 0
      %444 = vmatprep.subr.bf16.mxu0 0
      %445 = vmatpush2.bf16.msra.mxu0 0
      %446 = vmatprep.subr.bf16.mxu0 0
      %447 = vmatpush2.bf16.msra.mxu0 0
      %448 = vmatprep.subr.bf16.mxu0 0
      %449 = vmatpush2.bf16.msra.mxu0 0
      %450 = vmatprep.mubr.bf16.mxu0 0
      %451 = vmatmul.mubr.bf16.gmra.mxu0 %v407
      %v452 = vpop.f32.mrf.mxu0
      %v453 = vadd.f32 %v371, %v452
      %v454 = vpop.f32.mrf.mxu0
      %v455 = vpop.f32.mrf.mxu0
      %v456 = vadd.f32 %v371, %v455
      %v457 = vpop.f32.mrf.mxu0
      %458 = vmatprep.mubr.bf16.mxu0 0
      %459 = vmatmul.mubr.bf16.gmra.mxu0 %v410
      %v460 = vpop.f32.mrf.mxu0
      %v461 = vadd.f32 %v371, %v460
      %v462 = vpop.f32.mrf.mxu0
      %v463 = vpop.f32.mrf.mxu0
      %v464 = vadd.f32 %v371, %v463
      %v465 = vpop.f32.mrf.mxu0
      %466 = vmatprep.mubr.bf16.mxu0 0
      %467 = vmatmul.mubr.bf16.gmra.mxu0 %v413
      %v468 = vpop.f32.mrf.mxu0
      %v469 = vadd.f32 %v371, %v468
      %v470 = vpop.f32.mrf.mxu0
      %v471 = vpop.f32.mrf.mxu0
      %v472 = vadd.f32 %v371, %v471
      %v473 = vpop.f32.mrf.mxu0
      %474 = vmatprep.mubr.bf16.mxu0 0
      %475 = vmatmul.mubr.bf16.gmra.mxu0 %v416
      %v476 = vpop.f32.mrf.mxu0
      %v477 = vadd.f32 %v371, %v476
      %v478 = vpop.f32.mrf.mxu0
      %v479 = vpop.f32.mrf.mxu0
      %v480 = vadd.f32 %v371, %v479
      %v481 = vpop.f32.mrf.mxu0
      %482 = vdwg.mxu0
      %s483 = scalar_lea.vmem %s2, 16
      %v484 = vld [vmem:[%s483] sm:$0xf]
      %v485 = vld [vmem:[%s483 + $0x4] sm:$0xf]
      %v486 = vld [vmem:[%s483 + $0x8] sm:$0xf]
      %v487 = vld [vmem:[%s483 + $0xc] sm:$0xf]
      %v492 = vunpack.c.l.b16 %v484
      %v493 = vunpack.c.l.b16 %v485
      %v494 = vunpack.c.l.b16 %v486
      %v495 = vunpack.c.l.b16 %v487
      %v496 = vpack.c.b16 %v493, %v492
      %v497 = vpack.c.b16 %v495, %v494
      %500 = vmatprep.subr.bf16.mxu0 0
      %501 = vmatpush1.bf16.msra.mxu0 0
      %502 = vmatprep.subr.bf16.mxu0 0
      %503 = vmatpush1.bf16.msra.mxu0 0
      %504 = vmatprep.subr.bf16.mxu0 0
      %505 = vmatpush1.bf16.msra.mxu0 0
      %506 = vmatprep.subr.bf16.mxu0 0
      %507 = vmatpush1.bf16.msra.mxu0 0
      %508 = vmatprep.subr.bf16.mxu0 0
      %509 = vmatpush1.bf16.msra.mxu0 0
      %510 = vmatprep.subr.bf16.mxu0 0
      %511 = vmatpush1.bf16.msra.mxu0 0
      %512 = vmatprep.subr.bf16.mxu0 0
      %513 = vmatpush1.bf16.msra.mxu0 %v497
      %514 = vmatprep.subr.bf16.mxu0 0
      %515 = vmatpush1.bf16.msra.mxu0 %v496
      %516 = vmatprep.subr.bf16.mxu0 0
      %517 = vmatpush2.bf16.msra.mxu0 0
      %518 = vmatprep.subr.bf16.mxu0 0
      %519 = vmatpush2.bf16.msra.mxu0 0
      %520 = vmatprep.subr.bf16.mxu0 0
      %521 = vmatpush2.bf16.msra.mxu0 0
      %522 = vmatprep.subr.bf16.mxu0 0
      %523 = vmatpush2.bf16.msra.mxu0 0
      %524 = vmatprep.subr.bf16.mxu0 0
      %525 = vmatpush2.bf16.msra.mxu0 0
      %526 = vmatprep.subr.bf16.mxu0 0
      %527 = vmatpush2.bf16.msra.mxu0 0
      %528 = vmatprep.subr.bf16.mxu0 0
      %529 = vmatpush2.bf16.msra.mxu0 0
      %530 = vmatprep.subr.bf16.mxu0 0
      %531 = vmatpush2.bf16.msra.mxu0 0
      %532 = vmatprep.mubr.bf16.mxu0 0
      %533 = vmatmul.mubr.bf16.gmra.mxu0 %v407
      %v534 = vpop.f32.mrf.mxu0
      %v535 = vadd.f32 %v371, %v534
      %v536 = vpop.f32.mrf.mxu0
      %v537 = vpop.f32.mrf.mxu0
      %v538 = vadd.f32 %v371, %v537
      %v539 = vpop.f32.mrf.mxu0
      %540 = vmatprep.mubr.bf16.mxu0 0
      %541 = vmatmul.mubr.bf16.gmra.mxu0 %v410
      %v542 = vpop.f32.mrf.mxu0
      %v543 = vadd.f32 %v371, %v542
      %v544 = vpop.f32.mrf.mxu0
      %v545 = vpop.f32.mrf.mxu0
      %v546 = vadd.f32 %v371, %v545
      %v547 = vpop.f32.mrf.mxu0
      %548 = vmatprep.mubr.bf16.mxu0 0
      %549 = vmatmul.mubr.bf16.gmra.mxu0 %v413
      %v550 = vpop.f32.mrf.mxu0
      %v551 = vadd.f32 %v371, %v550
      %v552 = vpop.f32.mrf.mxu0
      %v553 = vpop.f32.mrf.mxu0
      %v554 = vadd.f32 %v371, %v553
      %v555 = vpop.f32.mrf.mxu0
      %556 = vmatprep.mubr.bf16.mxu0 0
      %557 = vmatmul.mubr.bf16.gmra.mxu0 %v416
      %v558 = vpop.f32.mrf.mxu0
      %v559 = vadd.f32 %v371, %v558
      %v560 = vpop.f32.mrf.mxu0
      %v561 = vpop.f32.mrf.mxu0
      %v562 = vadd.f32 %v371, %v561
      %v563 = vpop.f32.mrf.mxu0
      %564 = vdwg.mxu0
      %s565 = scalar_lea.vmem %s2, 32
      %v566 = vld [vmem:[%s565] sm:$0xf]
      %v567 = vld [vmem:[%s565 + $0x4] sm:$0xf]
      %v568 = vld [vmem:[%s565 + $0x8] sm:$0xf]
      %v569 = vld [vmem:[%s565 + $0xc] sm:$0xf]
      %v574 = vunpack.c.l.b16 %v566
      %v575 = vunpack.c.l.b16 %v567
      %v576 = vunpack.c.l.b16 %v568
      %v577 = vunpack.c.l.b16 %v569
      %v578 = vpack.c.b16 %v575, %v574
      %v579 = vpack.c.b16 %v577, %v576
      %582 = vmatprep.subr.bf16.mxu0 0
      %583 = vmatpush1.bf16.msra.mxu0 0
      %584 = vmatprep.subr.bf16.mxu0 0
      %585 = vmatpush1.bf16.msra.mxu0 0
      %586 = vmatprep.subr.bf16.mxu0 0
      %587 = vmatpush1.bf16.msra.mxu0 0
      %588 = vmatprep.subr.bf16.mxu0 0
      %589 = vmatpush1.bf16.msra.mxu0 0
      %590 = vmatprep.subr.bf16.mxu0 0
      %591 = vmatpush1.bf16.msra.mxu0 0
      %592 = vmatprep.subr.bf16.mxu0 0
      %593 = vmatpush1.bf16.msra.mxu0 0
      %594 = vmatprep.subr.bf16.mxu0 0
      %595 = vmatpush1.bf16.msra.mxu0 %v579
      %596 = vmatprep.subr.bf16.mxu0 0
      %597 = vmatpush1.bf16.msra.mxu0 %v578
      %598 = vmatprep.subr.bf16.mxu0 0
      %599 = vmatpush2.bf16.msra.mxu0 0
      %600 = vmatprep.subr.bf16.mxu0 0
      %601 = vmatpush2.bf16.msra.mxu0 0
      %602 = vmatprep.subr.bf16.mxu0 0
      %603 = vmatpush2.bf16.msra.mxu0 0
      %604 = vmatprep.subr.bf16.mxu0 0
      %605 = vmatpush2.bf16.msra.mxu0 0
      %606 = vmatprep.subr.bf16.mxu0 0
      %607 = vmatpush2.bf16.msra.mxu0 0
      %608 = vmatprep.subr.bf16.mxu0 0
      %609 = vmatpush2.bf16.msra.mxu0 0
      %610 = vmatprep.subr.bf16.mxu0 0
      %611 = vmatpush2.bf16.msra.mxu0 0
      %612 = vmatprep.subr.bf16.mxu0 0
      %613 = vmatpush2.bf16.msra.mxu0 0
      %614 = vmatprep.mubr.bf16.mxu0 0
      %615 = vmatmul.mubr.bf16.gmra.mxu0 %v407
      %v616 = vpop.f32.mrf.mxu0
      %v617 = vadd.f32 %v371, %v616
      %v618 = vpop.f32.mrf.mxu0
      %v619 = vpop.f32.mrf.mxu0
      %v620 = vadd.f32 %v371, %v619
      %v621 = vpop.f32.mrf.mxu0
      %622 = vmatprep.mubr.bf16.mxu0 0
      %623 = vmatmul.mubr.bf16.gmra.mxu0 %v410
      %v624 = vpop.f32.mrf.mxu0
      %v625 = vadd.f32 %v371, %v624
      %v626 = vpop.f32.mrf.mxu0
      %v627 = vpop.f32.mrf.mxu0
      %v628 = vadd.f32 %v371, %v627
      %v629 = vpop.f32.mrf.mxu0
      %630 = vmatprep.mubr.bf16.mxu0 0
      %631 = vmatmul.mubr.bf16.gmra.mxu0 %v413
      %v632 = vpop.f32.mrf.mxu0
      %v633 = vadd.f32 %v371, %v632
      %v634 = vpop.f32.mrf.mxu0
      %v635 = vpop.f32.mrf.mxu0
      %v636 = vadd.f32 %v371, %v635
      %v637 = vpop.f32.mrf.mxu0
      %638 = vmatprep.mubr.bf16.mxu0 0
      %639 = vmatmul.mubr.bf16.gmra.mxu0 %v416
      %v640 = vpop.f32.mrf.mxu0
      %v641 = vadd.f32 %v371, %v640
      %v642 = vpop.f32.mrf.mxu0
      %v643 = vpop.f32.mrf.mxu0
      %v644 = vadd.f32 %v371, %v643
      %v645 = vpop.f32.mrf.mxu0
      %646 = vdwg.mxu0
      %s647 = scalar_lea.vmem %s2, 48
      %v648 = vld [vmem:[%s647] sm:$0xf]
      %v649 = vld [vmem:[%s647 + $0x4] sm:$0xf]
      %v650 = vld [vmem:[%s647 + $0x8] sm:$0xf]
      %v651 = vld [vmem:[%s647 + $0xc] sm:$0xf]
      %v656 = vunpack.c.l.b16 %v648
      %v657 = vunpack.c.l.b16 %v649
      %v658 = vunpack.c.l.b16 %v650
      %v659 = vunpack.c.l.b16 %v651
      %v660 = vpack.c.b16 %v657, %v656
      %v661 = vpack.c.b16 %v659, %v658
      %664 = vmatprep.subr.bf16.mxu0 0
      %665 = vmatpush1.bf16.msra.mxu0 0
      %666 = vmatprep.subr.bf16.mxu0 0
      %667 = vmatpush1.bf16.msra.mxu0 0
      %668 = vmatprep.subr.bf16.mxu0 0
      %669 = vmatpush1.bf16.msra.mxu0 0
      %670 = vmatprep.subr.bf16.mxu0 0
      %671 = vmatpush1.bf16.msra.mxu0 0
      %672 = vmatprep.subr.bf16.mxu0 0
      %673 = vmatpush1.bf16.msra.mxu0 0
      %674 = vmatprep.subr.bf16.mxu0 0
      %675 = vmatpush1.bf16.msra.mxu0 0
      %676 = vmatprep.subr.bf16.mxu0 0
      %677 = vmatpush1.bf16.msra.mxu0 %v661
      %678 = vmatprep.subr.bf16.mxu0 0
      %679 = vmatpush1.bf16.msra.mxu0 %v660
      %680 = vmatprep.subr.bf16.mxu0 0
      %681 = vmatpush2.bf16.msra.mxu0 0
      %682 = vmatprep.subr.bf16.mxu0 0
      %683 = vmatpush2.bf16.msra.mxu0 0
      %684 = vmatprep.subr.bf16.mxu0 0
      %685 = vmatpush2.bf16.msra.mxu0 0
      %686 = vmatprep.subr.bf16.mxu0 0
      %687 = vmatpush2.bf16.msra.mxu0 0
      %688 = vmatprep.subr.bf16.mxu0 0
      %689 = vmatpush2.bf16.msra.mxu0 0
      %690 = vmatprep.subr.bf16.mxu0 0
      %691 = vmatpush2.bf16.msra.mxu0 0
      %692 = vmatprep.subr.bf16.mxu0 0
      %693 = vmatpush2.bf16.msra.mxu0 0
      %694 = vmatprep.subr.bf16.mxu0 0
      %695 = vmatpush2.bf16.msra.mxu0 0
      %696 = vmatprep.mubr.bf16.mxu0 0
      %697 = vmatmul.mubr.bf16.gmra.mxu0 %v407
      %v698 = vpop.f32.mrf.mxu0
      %v699 = vadd.f32 %v371, %v698
      %v700 = vpop.f32.mrf.mxu0
      %v701 = vpop.f32.mrf.mxu0
      %v702 = vadd.f32 %v371, %v701
      %v703 = vpop.f32.mrf.mxu0
      %704 = vmatprep.mubr.bf16.mxu0 0
      %705 = vmatmul.mubr.bf16.gmra.mxu0 %v410
      %v706 = vpop.f32.mrf.mxu0
      %v707 = vadd.f32 %v371, %v706
      %v708 = vpop.f32.mrf.mxu0
      %v709 = vpop.f32.mrf.mxu0
      %v710 = vadd.f32 %v371, %v709
      %v711 = vpop.f32.mrf.mxu0
      %712 = vmatprep.mubr.bf16.mxu0 0
      %713 = vmatmul.mubr.bf16.gmra.mxu0 %v413
      %v714 = vpop.f32.mrf.mxu0
      %v715 = vadd.f32 %v371, %v714
      %v716 = vpop.f32.mrf.mxu0
      %v717 = vpop.f32.mrf.mxu0
      %v718 = vadd.f32 %v371, %v717
      %v719 = vpop.f32.mrf.mxu0
      %720 = vmatprep.mubr.bf16.mxu0 0
      %721 = vmatmul.mubr.bf16.gmra.mxu0 %v416
      %v722 = vpop.f32.mrf.mxu0
      %v723 = vadd.f32 %v371, %v722
      %v724 = vpop.f32.mrf.mxu0
      %v725 = vpop.f32.mrf.mxu0
      %v726 = vadd.f32 %v371, %v725
      %v727 = vpop.f32.mrf.mxu0
      %728 = vdwg.mxu0
      %v737 = vcombine.high %v453, %v453
      %v739 = vunpack.c.l.s4 1966171168
      %v740 = vunpack.c.0.s8 %v739
      %v741 = vlaneseq
      %v742 = vshrl.u32 %v741, 7
      %v743 = vsub.s32 %v740, %v742
      %v744 = vrot.slane %v453, %v743
      %v746 = vunpack.c.l.s4 1966171168
      %v747 = vunpack.c.0.s8 %v746
      %v748 = vlaneseq
      %v749 = vshrl.u32 %v748, 7
      %v750 = vsub.s32 %v747, %v749
      %v751 = vrot.slane %v737, %v750
      %v752 = vcombine.high %v744, %v744
      %v753 = vcombine.high %v751, %v751
      %v755 = vunpack.c.l.s4 1966171168
      %v756 = vunpack.c.0.s8 %v755
      %v757 = vlaneseq
      %v758 = vshrl.u32 %v757, 7
      %v759 = vsub.s32 %v756, %v758
      %v760 = vrot.slane %v744, %v759
      %v762 = vunpack.c.l.s4 1966171168
      %v763 = vunpack.c.0.s8 %v762
      %v764 = vlaneseq
      %v765 = vshrl.u32 %v764, 7
      %v766 = vsub.s32 %v763, %v765
      %v767 = vrot.slane %v751, %v766
      %v769 = vunpack.c.l.s4 1966171168
      %v770 = vunpack.c.0.s8 %v769
      %v771 = vlaneseq
      %v772 = vshrl.u32 %v771, 7
      %v773 = vsub.s32 %v770, %v772
      %v774 = vrot.slane %v752, %v773
      %v776 = vunpack.c.l.s4 1966171168
      %v777 = vunpack.c.0.s8 %v776
      %v778 = vlaneseq
      %v779 = vshrl.u32 %v778, 7
      %v780 = vsub.s32 %v777, %v779
      %v781 = vrot.slane %v753, %v780
      %v782 = vcombine.high %v760, %v760
      %v783 = vcombine.high %v767, %v767
      %v784 = vcombine.high %v774, %v774
      %v785 = vcombine.high %v781, %v781
      %v786 = vcombine.high %v456, %v456
      %v788 = vunpack.c.l.s4 1966171168
      %v789 = vunpack.c.0.s8 %v788
      %v790 = vlaneseq
      %v791 = vshrl.u32 %v790, 7
      %v792 = vsub.s32 %v789, %v791
      %v793 = vrot.slane %v456, %v792
      %v795 = vunpack.c.l.s4 1966171168
      %v796 = vunpack.c.0.s8 %v795
      %v797 = vlaneseq
      %v798 = vshrl.u32 %v797, 7
      %v799 = vsub.s32 %v796, %v798
      %v800 = vrot.slane %v786, %v799
      %v801 = vcombine.high %v793, %v793
      %v802 = vcombine.high %v800, %v800
      %v804 = vunpack.c.l.s4 1966171168
      %v805 = vunpack.c.0.s8 %v804
      %v806 = vlaneseq
      %v807 = vshrl.u32 %v806, 7
      %v808 = vsub.s32 %v805, %v807
      %v809 = vrot.slane %v793, %v808
      %v811 = vunpack.c.l.s4 1966171168
      %v812 = vunpack.c.0.s8 %v811
      %v813 = vlaneseq
      %v814 = vshrl.u32 %v813, 7
      %v815 = vsub.s32 %v812, %v814
      %v816 = vrot.slane %v800, %v815
      %v818 = vunpack.c.l.s4 1966171168
      %v819 = vunpack.c.0.s8 %v818
      %v820 = vlaneseq
      %v821 = vshrl.u32 %v820, 7
      %v822 = vsub.s32 %v819, %v821
      %v823 = vrot.slane %v801, %v822
      %v825 = vunpack.c.l.s4 1966171168
      %v826 = vunpack.c.0.s8 %v825
      %v827 = vlaneseq
      %v828 = vshrl.u32 %v827, 7
      %v829 = vsub.s32 %v826, %v828
      %v830 = vrot.slane %v802, %v829
      %v831 = vcombine.high %v809, %v809
      %v832 = vcombine.high %v816, %v816
      %v833 = vcombine.high %v823, %v823
      %v834 = vcombine.high %v830, %v830
      %v835 = vcombine.high %v461, %v461
      %v837 = vunpack.c.l.s4 1966171168
      %v838 = vunpack.c.0.s8 %v837
      %v839 = vlaneseq
      %v840 = vshrl.u32 %v839, 7
      %v841 = vsub.s32 %v838, %v840
      %v842 = vrot.slane %v461, %v841
      %v844 = vunpack.c.l.s4 1966171168
      %v845 = vunpack.c.0.s8 %v844
      %v846 = vlaneseq
      %v847 = vshrl.u32 %v846, 7
      %v848 = vsub.s32 %v845, %v847
      %v849 = vrot.slane %v835, %v848
      %v850 = vcombine.high %v842, %v842
      %v851 = vcombine.high %v849, %v849
      %v853 = vunpack.c.l.s4 1966171168
      %v854 = vunpack.c.0.s8 %v853
      %v855 = vlaneseq
      %v856 = vshrl.u32 %v855, 7
      %v857 = vsub.s32 %v854, %v856
      %v858 = vrot.slane %v842, %v857
      %v860 = vunpack.c.l.s4 1966171168
      %v861 = vunpack.c.0.s8 %v860
      %v862 = vlaneseq
      %v863 = vshrl.u32 %v862, 7
      %v864 = vsub.s32 %v861, %v863
      %v865 = vrot.slane %v849, %v864
      %v867 = vunpack.c.l.s4 1966171168
      %v868 = vunpack.c.0.s8 %v867
      %v869 = vlaneseq
      %v870 = vshrl.u32 %v869, 7
      %v871 = vsub.s32 %v868, %v870
      %v872 = vrot.slane %v850, %v871
      %v874 = vunpack.c.l.s4 1966171168
      %v875 = vunpack.c.0.s8 %v874
      %v876 = vlaneseq
      %v877 = vshrl.u32 %v876, 7
      %v878 = vsub.s32 %v875, %v877
      %v879 = vrot.slane %v851, %v878
      %v880 = vcombine.high %v858, %v858
      %v881 = vcombine.high %v865, %v865
      %v882 = vcombine.high %v872, %v872
      %v883 = vcombine.high %v879, %v879
      %v884 = vcombine.high %v464, %v464
      %v886 = vunpack.c.l.s4 1966171168
      %v887 = vunpack.c.0.s8 %v886
      %v888 = vlaneseq
      %v889 = vshrl.u32 %v888, 7
      %v890 = vsub.s32 %v887, %v889
      %v891 = vrot.slane %v464, %v890
      %v893 = vunpack.c.l.s4 1966171168
      %v894 = vunpack.c.0.s8 %v893
      %v895 = vlaneseq
      %v896 = vshrl.u32 %v895, 7
      %v897 = vsub.s32 %v894, %v896
      %v898 = vrot.slane %v884, %v897
      %v899 = vcombine.high %v891, %v891
      %v900 = vcombine.high %v898, %v898
      %v902 = vunpack.c.l.s4 1966171168
      %v903 = vunpack.c.0.s8 %v902
      %v904 = vlaneseq
      %v905 = vshrl.u32 %v904, 7
      %v906 = vsub.s32 %v903, %v905
      %v907 = vrot.slane %v891, %v906
      %v909 = vunpack.c.l.s4 1966171168
      %v910 = vunpack.c.0.s8 %v909
      %v911 = vlaneseq
      %v912 = vshrl.u32 %v911, 7
      %v913 = vsub.s32 %v910, %v912
      %v914 = vrot.slane %v898, %v913
      %v916 = vunpack.c.l.s4 1966171168
      %v917 = vunpack.c.0.s8 %v916
      %v918 = vlaneseq
      %v919 = vshrl.u32 %v918, 7
      %v920 = vsub.s32 %v917, %v919
      %v921 = vrot.slane %v899, %v920
      %v923 = vunpack.c.l.s4 1966171168
      %v924 = vunpack.c.0.s8 %v923
      %v925 = vlaneseq
      %v926 = vshrl.u32 %v925, 7
      %v927 = vsub.s32 %v924, %v926
      %v928 = vrot.slane %v900, %v927
      %v929 = vcombine.high %v907, %v907
      %v930 = vcombine.high %v914, %v914
      %v931 = vcombine.high %v921, %v921
      %v932 = vcombine.high %v928, %v928
      %v933 = vcombine.high %v469, %v469
      %v935 = vunpack.c.l.s4 1966171168
      %v936 = vunpack.c.0.s8 %v935
      %v937 = vlaneseq
      %v938 = vshrl.u32 %v937, 7
      %v939 = vsub.s32 %v936, %v938
      %v940 = vrot.slane %v469, %v939
      %v942 = vunpack.c.l.s4 1966171168
      %v943 = vunpack.c.0.s8 %v942
      %v944 = vlaneseq
      %v945 = vshrl.u32 %v944, 7
      %v946 = vsub.s32 %v943, %v945
      %v947 = vrot.slane %v933, %v946
      %v948 = vcombine.high %v940, %v940
      %v949 = vcombine.high %v947, %v947
      %v951 = vunpack.c.l.s4 1966171168
      %v952 = vunpack.c.0.s8 %v951
      %v953 = vlaneseq
      %v954 = vshrl.u32 %v953, 7
      %v955 = vsub.s32 %v952, %v954
      %v956 = vrot.slane %v940, %v955
      %v958 = vunpack.c.l.s4 1966171168
      %v959 = vunpack.c.0.s8 %v958
      %v960 = vlaneseq
      %v961 = vshrl.u32 %v960, 7
      %v962 = vsub.s32 %v959, %v961
      %v963 = vrot.slane %v947, %v962
      %v965 = vunpack.c.l.s4 1966171168
      %v966 = vunpack.c.0.s8 %v965
      %v967 = vlaneseq
      %v968 = vshrl.u32 %v967, 7
      %v969 = vsub.s32 %v966, %v968
      %v970 = vrot.slane %v948, %v969
      %v972 = vunpack.c.l.s4 1966171168
      %v973 = vunpack.c.0.s8 %v972
      %v974 = vlaneseq
      %v975 = vshrl.u32 %v974, 7
      %v976 = vsub.s32 %v973, %v975
      %v977 = vrot.slane %v949, %v976
      %v978 = vcombine.high %v956, %v956
      %v979 = vcombine.high %v963, %v963
      %v980 = vcombine.high %v970, %v970
      %v981 = vcombine.high %v977, %v977
      %v982 = vcombine.high %v472, %v472
      %v984 = vunpack.c.l.s4 1966171168
      %v985 = vunpack.c.0.s8 %v984
      %v986 = vlaneseq
      %v987 = vshrl.u32 %v986, 7
      %v988 = vsub.s32 %v985, %v987
      %v989 = vrot.slane %v472, %v988
      %v991 = vunpack.c.l.s4 1966171168
      %v992 = vunpack.c.0.s8 %v991
      %v993 = vlaneseq
      %v994 = vshrl.u32 %v993, 7
      %v995 = vsub.s32 %v992, %v994
      %v996 = vrot.slane %v982, %v995
      %v997 = vcombine.high %v989, %v989
      %v998 = vcombine.high %v996, %v996
      %v1000 = vunpack.c.l.s4 1966171168
      %v1001 = vunpack.c.0.s8 %v1000
      %v1002 = vlaneseq
      %v1003 = vshrl.u32 %v1002, 7
      %v1004 = vsub.s32 %v1001, %v1003
      %v1005 = vrot.slane %v989, %v1004
      %v1007 = vunpack.c.l.s4 1966171168
      %v1008 = vunpack.c.0.s8 %v1007
      %v1009 = vlaneseq
      %v1010 = vshrl.u32 %v1009, 7
      %v1011 = vsub.s32 %v1008, %v1010
      %v1012 = vrot.slane %v996, %v1011
      %v1014 = vunpack.c.l.s4 1966171168
      %v1015 = vunpack.c.0.s8 %v1014
      %v1016 = vlaneseq
      %v1017 = vshrl.u32 %v1016, 7
      %v1018 = vsub.s32 %v1015, %v1017
      %v1019 = vrot.slane %v997, %v1018
      %v1021 = vunpack.c.l.s4 1966171168
      %v1022 = vunpack.c.0.s8 %v1021
      %v1023 = vlaneseq
      %v1024 = vshrl.u32 %v1023, 7
      %v1025 = vsub.s32 %v1022, %v1024
      %v1026 = vrot.slane %v998, %v1025
      %v1027 = vcombine.high %v1005, %v1005
      %v1028 = vcombine.high %v1012, %v1012
      %v1029 = vcombine.high %v1019, %v1019
      %v1030 = vcombine.high %v1026, %v1026
      %v1031 = vcombine.high %v477, %v477
      %v1033 = vunpack.c.l.s4 1966171168
      %v1034 = vunpack.c.0.s8 %v1033
      %v1035 = vlaneseq
      %v1036 = vshrl.u32 %v1035, 7
      %v1037 = vsub.s32 %v1034, %v1036
      %v1038 = vrot.slane %v477, %v1037
      %v1040 = vunpack.c.l.s4 1966171168
      %v1041 = vunpack.c.0.s8 %v1040
      %v1042 = vlaneseq
      %v1043 = vshrl.u32 %v1042, 7
      %v1044 = vsub.s32 %v1041, %v1043
      %v1045 = vrot.slane %v1031, %v1044
      %v1046 = vcombine.high %v1038, %v1038
      %v1047 = vcombine.high %v1045, %v1045
      %v1049 = vunpack.c.l.s4 1966171168
      %v1050 = vunpack.c.0.s8 %v1049
      %v1051 = vlaneseq
      %v1052 = vshrl.u32 %v1051, 7
      %v1053 = vsub.s32 %v1050, %v1052
      %v1054 = vrot.slane %v1038, %v1053
      %v1056 = vunpack.c.l.s4 1966171168
      %v1057 = vunpack.c.0.s8 %v1056
      %v1058 = vlaneseq
      %v1059 = vshrl.u32 %v1058, 7
      %v1060 = vsub.s32 %v1057, %v1059
      %v1061 = vrot.slane %v1045, %v1060
      %v1063 = vunpack.c.l.s4 1966171168
      %v1064 = vunpack.c.0.s8 %v1063
      %v1065 = vlaneseq
      %v1066 = vshrl.u32 %v1065, 7
      %v1067 = vsub.s32 %v1064, %v1066
      %v1068 = vrot.slane %v1046, %v1067
      %v1070 = vunpack.c.l.s4 1966171168
      %v1071 = vunpack.c.0.s8 %v1070
      %v1072 = vlaneseq
      %v1073 = vshrl.u32 %v1072, 7
      %v1074 = vsub.s32 %v1071, %v1073
      %v1075 = vrot.slane %v1047, %v1074
      %v1076 = vcombine.high %v1054, %v1054
      %v1077 = vcombine.high %v1061, %v1061
      %v1078 = vcombine.high %v1068, %v1068
      %v1079 = vcombine.high %v1075, %v1075
      %v1080 = vcombine.high %v480, %v480
      %v1082 = vunpack.c.l.s4 1966171168
      %v1083 = vunpack.c.0.s8 %v1082
      %v1084 = vlaneseq
      %v1085 = vshrl.u32 %v1084, 7
      %v1086 = vsub.s32 %v1083, %v1085
      %v1087 = vrot.slane %v480, %v1086
      %v1089 = vunpack.c.l.s4 1966171168
      %v1090 = vunpack.c.0.s8 %v1089
      %v1091 = vlaneseq
      %v1092 = vshrl.u32 %v1091, 7
      %v1093 = vsub.s32 %v1090, %v1092
      %v1094 = vrot.slane %v1080, %v1093
      %v1095 = vcombine.high %v1087, %v1087
      %v1096 = vcombine.high %v1094, %v1094
      %v1098 = vunpack.c.l.s4 1966171168
      %v1099 = vunpack.c.0.s8 %v1098
      %v1100 = vlaneseq
      %v1101 = vshrl.u32 %v1100, 7
      %v1102 = vsub.s32 %v1099, %v1101
      %v1103 = vrot.slane %v1087, %v1102
      %v1105 = vunpack.c.l.s4 1966171168
      %v1106 = vunpack.c.0.s8 %v1105
      %v1107 = vlaneseq
      %v1108 = vshrl.u32 %v1107, 7
      %v1109 = vsub.s32 %v1106, %v1108
      %v1110 = vrot.slane %v1094, %v1109
      %v1112 = vunpack.c.l.s4 1966171168
      %v1113 = vunpack.c.0.s8 %v1112
      %v1114 = vlaneseq
      %v1115 = vshrl.u32 %v1114, 7
      %v1116 = vsub.s32 %v1113, %v1115
      %v1117 = vrot.slane %v1095, %v1116
      %v1119 = vunpack.c.l.s4 1966171168
      %v1120 = vunpack.c.0.s8 %v1119
      %v1121 = vlaneseq
      %v1122 = vshrl.u32 %v1121, 7
      %v1123 = vsub.s32 %v1120, %v1122
      %v1124 = vrot.slane %v1096, %v1123
      %v1125 = vcombine.high %v1103, %v1103
      %v1126 = vcombine.high %v1110, %v1110
      %v1127 = vcombine.high %v1117, %v1117
      %v1128 = vcombine.high %v1124, %v1124
      %v1201 = vcombine.high %v535, %v535
      %v1203 = vunpack.c.l.s4 1966171168
      %v1204 = vunpack.c.0.s8 %v1203
      %v1205 = vlaneseq
      %v1206 = vshrl.u32 %v1205, 7
      %v1207 = vsub.s32 %v1204, %v1206
      %v1208 = vrot.slane %v535, %v1207
      %v1210 = vunpack.c.l.s4 1966171168
      %v1211 = vunpack.c.0.s8 %v1210
      %v1212 = vlaneseq
      %v1213 = vshrl.u32 %v1212, 7
      %v1214 = vsub.s32 %v1211, %v1213
      %v1215 = vrot.slane %v1201, %v1214
      %v1216 = vcombine.high %v1208, %v1208
      %v1217 = vcombine.high %v1215, %v1215
      %v1219 = vunpack.c.l.s4 1966171168
      %v1220 = vunpack.c.0.s8 %v1219
      %v1221 = vlaneseq
      %v1222 = vshrl.u32 %v1221, 7
      %v1223 = vsub.s32 %v1220, %v1222
      %v1224 = vrot.slane %v1208, %v1223
      %v1226 = vunpack.c.l.s4 1966171168
      %v1227 = vunpack.c.0.s8 %v1226
      %v1228 = vlaneseq
      %v1229 = vshrl.u32 %v1228, 7
      %v1230 = vsub.s32 %v1227, %v1229
      %v1231 = vrot.slane %v1215, %v1230
      %v1233 = vunpack.c.l.s4 1966171168
      %v1234 = vunpack.c.0.s8 %v1233
      %v1235 = vlaneseq
      %v1236 = vshrl.u32 %v1235, 7
      %v1237 = vsub.s32 %v1234, %v1236
      %v1238 = vrot.slane %v1216, %v1237
      %v1240 = vunpack.c.l.s4 1966171168
      %v1241 = vunpack.c.0.s8 %v1240
      %v1242 = vlaneseq
      %v1243 = vshrl.u32 %v1242, 7
      %v1244 = vsub.s32 %v1241, %v1243
      %v1245 = vrot.slane %v1217, %v1244
      %v1246 = vcombine.high %v1224, %v1224
      %v1247 = vcombine.high %v1231, %v1231
      %v1248 = vcombine.high %v1238, %v1238
      %v1249 = vcombine.high %v1245, %v1245
      %v1250 = vcombine.high %v538, %v538
      %v1252 = vunpack.c.l.s4 1966171168
      %v1253 = vunpack.c.0.s8 %v1252
      %v1254 = vlaneseq
      %v1255 = vshrl.u32 %v1254, 7
      %v1256 = vsub.s32 %v1253, %v1255
      %v1257 = vrot.slane %v538, %v1256
      %v1259 = vunpack.c.l.s4 1966171168
      %v1260 = vunpack.c.0.s8 %v1259
      %v1261 = vlaneseq
      %v1262 = vshrl.u32 %v1261, 7
      %v1263 = vsub.s32 %v1260, %v1262
      %v1264 = vrot.slane %v1250, %v1263
      %v1265 = vcombine.high %v1257, %v1257
      %v1266 = vcombine.high %v1264, %v1264
      %v1268 = vunpack.c.l.s4 1966171168
      %v1269 = vunpack.c.0.s8 %v1268
      %v1270 = vlaneseq
      %v1271 = vshrl.u32 %v1270, 7
      %v1272 = vsub.s32 %v1269, %v1271
      %v1273 = vrot.slane %v1257, %v1272
      %v1275 = vunpack.c.l.s4 1966171168
      %v1276 = vunpack.c.0.s8 %v1275
      %v1277 = vlaneseq
      %v1278 = vshrl.u32 %v1277, 7
      %v1279 = vsub.s32 %v1276, %v1278
      %v1280 = vrot.slane %v1264, %v1279
      %v1282 = vunpack.c.l.s4 1966171168
      %v1283 = vunpack.c.0.s8 %v1282
      %v1284 = vlaneseq
      %v1285 = vshrl.u32 %v1284, 7
      %v1286 = vsub.s32 %v1283, %v1285
      %v1287 = vrot.slane %v1265, %v1286
      %v1289 = vunpack.c.l.s4 1966171168
      %v1290 = vunpack.c.0.s8 %v1289
      %v1291 = vlaneseq
      %v1292 = vshrl.u32 %v1291, 7
      %v1293 = vsub.s32 %v1290, %v1292
      %v1294 = vrot.slane %v1266, %v1293
      %v1295 = vcombine.high %v1273, %v1273
      %v1296 = vcombine.high %v1280, %v1280
      %v1297 = vcombine.high %v1287, %v1287
      %v1298 = vcombine.high %v1294, %v1294
      %v1299 = vcombine.high %v543, %v543
      %v1301 = vunpack.c.l.s4 1966171168
      %v1302 = vunpack.c.0.s8 %v1301
      %v1303 = vlaneseq
      %v1304 = vshrl.u32 %v1303, 7
      %v1305 = vsub.s32 %v1302, %v1304
      %v1306 = vrot.slane %v543, %v1305
      %v1308 = vunpack.c.l.s4 1966171168
      %v1309 = vunpack.c.0.s8 %v1308
      %v1310 = vlaneseq
      %v1311 = vshrl.u32 %v1310, 7
      %v1312 = vsub.s32 %v1309, %v1311
      %v1313 = vrot.slane %v1299, %v1312
      %v1314 = vcombine.high %v1306, %v1306
      %v1315 = vcombine.high %v1313, %v1313
      %v1317 = vunpack.c.l.s4 1966171168
      %v1318 = vunpack.c.0.s8 %v1317
      %v1319 = vlaneseq
      %v1320 = vshrl.u32 %v1319, 7
      %v1321 = vsub.s32 %v1318, %v1320
      %v1322 = vrot.slane %v1306, %v1321
      %v1324 = vunpack.c.l.s4 1966171168
      %v1325 = vunpack.c.0.s8 %v1324
      %v1326 = vlaneseq
      %v1327 = vshrl.u32 %v1326, 7
      %v1328 = vsub.s32 %v1325, %v1327
      %v1329 = vrot.slane %v1313, %v1328
      %v1331 = vunpack.c.l.s4 1966171168
      %v1332 = vunpack.c.0.s8 %v1331
      %v1333 = vlaneseq
      %v1334 = vshrl.u32 %v1333, 7
      %v1335 = vsub.s32 %v1332, %v1334
      %v1336 = vrot.slane %v1314, %v1335
      %v1338 = vunpack.c.l.s4 1966171168
      %v1339 = vunpack.c.0.s8 %v1338
      %v1340 = vlaneseq
      %v1341 = vshrl.u32 %v1340, 7
      %v1342 = vsub.s32 %v1339, %v1341
      %v1343 = vrot.slane %v1315, %v1342
      %v1344 = vcombine.high %v1322, %v1322
      %v1345 = vcombine.high %v1329, %v1329
      %v1346 = vcombine.high %v1336, %v1336
      %v1347 = vcombine.high %v1343, %v1343
      %v1348 = vcombine.high %v546, %v546
      %v1350 = vunpack.c.l.s4 1966171168
      %v1351 = vunpack.c.0.s8 %v1350
      %v1352 = vlaneseq
      %v1353 = vshrl.u32 %v1352, 7
      %v1354 = vsub.s32 %v1351, %v1353
      %v1355 = vrot.slane %v546, %v1354
      %v1357 = vunpack.c.l.s4 1966171168
      %v1358 = vunpack.c.0.s8 %v1357
      %v1359 = vlaneseq
      %v1360 = vshrl.u32 %v1359, 7
      %v1361 = vsub.s32 %v1358, %v1360
      %v1362 = vrot.slane %v1348, %v1361
      %v1363 = vcombine.high %v1355, %v1355
      %v1364 = vcombine.high %v1362, %v1362
      %v1366 = vunpack.c.l.s4 1966171168
      %v1367 = vunpack.c.0.s8 %v1366
      %v1368 = vlaneseq
      %v1369 = vshrl.u32 %v1368, 7
      %v1370 = vsub.s32 %v1367, %v1369
      %v1371 = vrot.slane %v1355, %v1370
      %v1373 = vunpack.c.l.s4 1966171168
      %v1374 = vunpack.c.0.s8 %v1373
      %v1375 = vlaneseq
      %v1376 = vshrl.u32 %v1375, 7
      %v1377 = vsub.s32 %v1374, %v1376
      %v1378 = vrot.slane %v1362, %v1377
      %v1380 = vunpack.c.l.s4 1966171168
      %v1381 = vunpack.c.0.s8 %v1380
      %v1382 = vlaneseq
      %v1383 = vshrl.u32 %v1382, 7
      %v1384 = vsub.s32 %v1381, %v1383
      %v1385 = vrot.slane %v1363, %v1384
      %v1387 = vunpack.c.l.s4 1966171168
      %v1388 = vunpack.c.0.s8 %v1387
      %v1389 = vlaneseq
      %v1390 = vshrl.u32 %v1389, 7
      %v1391 = vsub.s32 %v1388, %v1390
      %v1392 = vrot.slane %v1364, %v1391
      %v1393 = vcombine.high %v1371, %v1371
      %v1394 = vcombine.high %v1378, %v1378
      %v1395 = vcombine.high %v1385, %v1385
      %v1396 = vcombine.high %v1392, %v1392
      %v1397 = vcombine.high %v551, %v551
      %v1399 = vunpack.c.l.s4 1966171168
      %v1400 = vunpack.c.0.s8 %v1399
      %v1401 = vlaneseq
      %v1402 = vshrl.u32 %v1401, 7
      %v1403 = vsub.s32 %v1400, %v1402
      %v1404 = vrot.slane %v551, %v1403
      %v1406 = vunpack.c.l.s4 1966171168
      %v1407 = vunpack.c.0.s8 %v1406
      %v1408 = vlaneseq
      %v1409 = vshrl.u32 %v1408, 7
      %v1410 = vsub.s32 %v1407, %v1409
      %v1411 = vrot.slane %v1397, %v1410
      %v1412 = vcombine.high %v1404, %v1404
      %v1413 = vcombine.high %v1411, %v1411
      %v1415 = vunpack.c.l.s4 1966171168
      %v1416 = vunpack.c.0.s8 %v1415
      %v1417 = vlaneseq
      %v1418 = vshrl.u32 %v1417, 7
      %v1419 = vsub.s32 %v1416, %v1418
      %v1420 = vrot.slane %v1404, %v1419
      %v1422 = vunpack.c.l.s4 1966171168
      %v1423 = vunpack.c.0.s8 %v1422
      %v1424 = vlaneseq
      %v1425 = vshrl.u32 %v1424, 7
      %v1426 = vsub.s32 %v1423, %v1425
      %v1427 = vrot.slane %v1411, %v1426
      %v1429 = vunpack.c.l.s4 1966171168
      %v1430 = vunpack.c.0.s8 %v1429
      %v1431 = vlaneseq
      %v1432 = vshrl.u32 %v1431, 7
      %v1433 = vsub.s32 %v1430, %v1432
      %v1434 = vrot.slane %v1412, %v1433
      %v1436 = vunpack.c.l.s4 1966171168
      %v1437 = vunpack.c.0.s8 %v1436
      %v1438 = vlaneseq
      %v1439 = vshrl.u32 %v1438, 7
      %v1440 = vsub.s32 %v1437, %v1439
      %v1441 = vrot.slane %v1413, %v1440
      %v1442 = vcombine.high %v1420, %v1420
      %v1443 = vcombine.high %v1427, %v1427
      %v1444 = vcombine.high %v1434, %v1434
      %v1445 = vcombine.high %v1441, %v1441
      %v1446 = vcombine.high %v554, %v554
      %v1448 = vunpack.c.l.s4 1966171168
      %v1449 = vunpack.c.0.s8 %v1448
      %v1450 = vlaneseq
      %v1451 = vshrl.u32 %v1450, 7
      %v1452 = vsub.s32 %v1449, %v1451
      %v1453 = vrot.slane %v554, %v1452
      %v1455 = vunpack.c.l.s4 1966171168
      %v1456 = vunpack.c.0.s8 %v1455
      %v1457 = vlaneseq
      %v1458 = vshrl.u32 %v1457, 7
      %v1459 = vsub.s32 %v1456, %v1458
      %v1460 = vrot.slane %v1446, %v1459
      %v1461 = vcombine.high %v1453, %v1453
      %v1462 = vcombine.high %v1460, %v1460
      %v1464 = vunpack.c.l.s4 1966171168
      %v1465 = vunpack.c.0.s8 %v1464
      %v1466 = vlaneseq
      %v1467 = vshrl.u32 %v1466, 7
      %v1468 = vsub.s32 %v1465, %v1467
      %v1469 = vrot.slane %v1453, %v1468
      %v1471 = vunpack.c.l.s4 1966171168
      %v1472 = vunpack.c.0.s8 %v1471
      %v1473 = vlaneseq
      %v1474 = vshrl.u32 %v1473, 7
      %v1475 = vsub.s32 %v1472, %v1474
      %v1476 = vrot.slane %v1460, %v1475
      %v1478 = vunpack.c.l.s4 1966171168
      %v1479 = vunpack.c.0.s8 %v1478
      %v1480 = vlaneseq
      %v1481 = vshrl.u32 %v1480, 7
      %v1482 = vsub.s32 %v1479, %v1481
      %v1483 = vrot.slane %v1461, %v1482
      %v1485 = vunpack.c.l.s4 1966171168
      %v1486 = vunpack.c.0.s8 %v1485
      %v1487 = vlaneseq
      %v1488 = vshrl.u32 %v1487, 7
      %v1489 = vsub.s32 %v1486, %v1488
      %v1490 = vrot.slane %v1462, %v1489
      %v1491 = vcombine.high %v1469, %v1469
      %v1492 = vcombine.high %v1476, %v1476
      %v1493 = vcombine.high %v1483, %v1483
      %v1494 = vcombine.high %v1490, %v1490
      %v1495 = vcombine.high %v559, %v559
      %v1497 = vunpack.c.l.s4 1966171168
      %v1498 = vunpack.c.0.s8 %v1497
      %v1499 = vlaneseq
      %v1500 = vshrl.u32 %v1499, 7
      %v1501 = vsub.s32 %v1498, %v1500
      %v1502 = vrot.slane %v559, %v1501
      %v1504 = vunpack.c.l.s4 1966171168
      %v1505 = vunpack.c.0.s8 %v1504
      %v1506 = vlaneseq
      %v1507 = vshrl.u32 %v1506, 7
      %v1508 = vsub.s32 %v1505, %v1507
      %v1509 = vrot.slane %v1495, %v1508
      %v1510 = vcombine.high %v1502, %v1502
      %v1511 = vcombine.high %v1509, %v1509
      %v1513 = vunpack.c.l.s4 1966171168
      %v1514 = vunpack.c.0.s8 %v1513
      %v1515 = vlaneseq
      %v1516 = vshrl.u32 %v1515, 7
      %v1517 = vsub.s32 %v1514, %v1516
      %v1518 = vrot.slane %v1502, %v1517
      %v1520 = vunpack.c.l.s4 1966171168
      %v1521 = vunpack.c.0.s8 %v1520
      %v1522 = vlaneseq
      %v1523 = vshrl.u32 %v1522, 7
      %v1524 = vsub.s32 %v1521, %v1523
      %v1525 = vrot.slane %v1509, %v1524
      %v1527 = vunpack.c.l.s4 1966171168
      %v1528 = vunpack.c.0.s8 %v1527
      %v1529 = vlaneseq
      %v1530 = vshrl.u32 %v1529, 7
      %v1531 = vsub.s32 %v1528, %v1530
      %v1532 = vrot.slane %v1510, %v1531
      %v1534 = vunpack.c.l.s4 1966171168
      %v1535 = vunpack.c.0.s8 %v1534
      %v1536 = vlaneseq
      %v1537 = vshrl.u32 %v1536, 7
      %v1538 = vsub.s32 %v1535, %v1537
      %v1539 = vrot.slane %v1511, %v1538
      %v1540 = vcombine.high %v1518, %v1518
      %v1541 = vcombine.high %v1525, %v1525
      %v1542 = vcombine.high %v1532, %v1532
      %v1543 = vcombine.high %v1539, %v1539
      %v1544 = vcombine.high %v562, %v562
      %v1546 = vunpack.c.l.s4 1966171168
      %v1547 = vunpack.c.0.s8 %v1546
      %v1548 = vlaneseq
      %v1549 = vshrl.u32 %v1548, 7
      %v1550 = vsub.s32 %v1547, %v1549
      %v1551 = vrot.slane %v562, %v1550
      %v1553 = vunpack.c.l.s4 1966171168
      %v1554 = vunpack.c.0.s8 %v1553
      %v1555 = vlaneseq
      %v1556 = vshrl.u32 %v1555, 7
      %v1557 = vsub.s32 %v1554, %v1556
      %v1558 = vrot.slane %v1544, %v1557
      %v1559 = vcombine.high %v1551, %v1551
      %v1560 = vcombine.high %v1558, %v1558
      %v1562 = vunpack.c.l.s4 1966171168
      %v1563 = vunpack.c.0.s8 %v1562
      %v1564 = vlaneseq
      %v1565 = vshrl.u32 %v1564, 7
      %v1566 = vsub.s32 %v1563, %v1565
      %v1567 = vrot.slane %v1551, %v1566
      %v1569 = vunpack.c.l.s4 1966171168
      %v1570 = vunpack.c.0.s8 %v1569
      %v1571 = vlaneseq
      %v1572 = vshrl.u32 %v1571, 7
      %v1573 = vsub.s32 %v1570, %v1572
      %v1574 = vrot.slane %v1558, %v1573
      %v1576 = vunpack.c.l.s4 1966171168
      %v1577 = vunpack.c.0.s8 %v1576
      %v1578 = vlaneseq
      %v1579 = vshrl.u32 %v1578, 7
      %v1580 = vsub.s32 %v1577, %v1579
      %v1581 = vrot.slane %v1559, %v1580
      %v1583 = vunpack.c.l.s4 1966171168
      %v1584 = vunpack.c.0.s8 %v1583
      %v1585 = vlaneseq
      %v1586 = vshrl.u32 %v1585, 7
      %v1587 = vsub.s32 %v1584, %v1586
      %v1588 = vrot.slane %v1560, %v1587
      %v1589 = vcombine.high %v1567, %v1567
      %v1590 = vcombine.high %v1574, %v1574
      %v1591 = vcombine.high %v1581, %v1581
      %v1592 = vcombine.high %v1588, %v1588
      %v1593 = vlaneseq
      %v1594 = vshrl.u32 %v1593, 7
      %v1595 = vsub.s32 0, %v1594
      %v1596 = vrot.slane %v1224, %v1595
      %v1597 = vlaneseq
      %v1598 = vshrl.u32 %v1597, 7
      %v1599 = vsub.s32 0, %v1598
      %v1600 = vrot.slane %v1238, %v1599
      %v1601 = vlaneseq
      %v1602 = vshrl.u32 %v1601, 7
      %v1603 = vsub.s32 0, %v1602
      %v1604 = vrot.slane %v1246, %v1603
      %v1605 = vlaneseq
      %v1606 = vshrl.u32 %v1605, 7
      %v1607 = vsub.s32 0, %v1606
      %v1608 = vrot.slane %v1248, %v1607
      %v1609 = vlaneseq
      %v1610 = vshrl.u32 %v1609, 7
      %v1611 = vsub.s32 0, %v1610
      %v1612 = vrot.slane %v1231, %v1611
      %v1613 = vlaneseq
      %v1614 = vshrl.u32 %v1613, 7
      %v1615 = vsub.s32 0, %v1614
      %v1616 = vrot.slane %v1245, %v1615
      %v1617 = vlaneseq
      %v1618 = vshrl.u32 %v1617, 7
      %v1619 = vsub.s32 0, %v1618
      %v1620 = vrot.slane %v1247, %v1619
      %v1621 = vlaneseq
      %v1622 = vshrl.u32 %v1621, 7
      %v1623 = vsub.s32 0, %v1622
      %v1624 = vrot.slane %v1249, %v1623
      %v1625 = vlaneseq
      %v1626 = vshrl.u32 %v1625, 7
      %v1627 = vsub.s32 0, %v1626
      %v1628 = vrot.slane %v1273, %v1627
      %v1629 = vlaneseq
      %v1630 = vshrl.u32 %v1629, 7
      %v1631 = vsub.s32 0, %v1630
      %v1632 = vrot.slane %v1287, %v1631
      %v1633 = vlaneseq
      %v1634 = vshrl.u32 %v1633, 7
      %v1635 = vsub.s32 0, %v1634
      %v1636 = vrot.slane %v1295, %v1635
      %v1637 = vlaneseq
      %v1638 = vshrl.u32 %v1637, 7
      %v1639 = vsub.s32 0, %v1638
      %v1640 = vrot.slane %v1297, %v1639
      %v1641 = vlaneseq
      %v1642 = vshrl.u32 %v1641, 7
      %v1643 = vsub.s32 0, %v1642
      %v1644 = vrot.slane %v1280, %v1643
      %v1645 = vlaneseq
      %v1646 = vshrl.u32 %v1645, 7
      %v1647 = vsub.s32 0, %v1646
      %v1648 = vrot.slane %v1294, %v1647
      %v1649 = vlaneseq
      %v1650 = vshrl.u32 %v1649, 7
      %v1651 = vsub.s32 0, %v1650
      %v1652 = vrot.slane %v1296, %v1651
      %v1653 = vlaneseq
      %v1654 = vshrl.u32 %v1653, 7
      %v1655 = vsub.s32 0, %v1654
      %v1656 = vrot.slane %v1298, %v1655
      %v1657 = vlaneseq
      %v1658 = vshrl.u32 %v1657, 7
      %v1659 = vsub.s32 0, %v1658
      %v1660 = vrot.slane %v1322, %v1659
      %v1661 = vlaneseq
      %v1662 = vshrl.u32 %v1661, 7
      %v1663 = vsub.s32 0, %v1662
      %v1664 = vrot.slane %v1336, %v1663
      %v1665 = vlaneseq
      %v1666 = vshrl.u32 %v1665, 7
      %v1667 = vsub.s32 0, %v1666
      %v1668 = vrot.slane %v1344, %v1667
      %v1669 = vlaneseq
      %v1670 = vshrl.u32 %v1669, 7
      %v1671 = vsub.s32 0, %v1670
      %v1672 = vrot.slane %v1346, %v1671
      %v1673 = vlaneseq
      %v1674 = vshrl.u32 %v1673, 7
      %v1675 = vsub.s32 0, %v1674
      %v1676 = vrot.slane %v1329, %v1675
      %v1677 = vlaneseq
      %v1678 = vshrl.u32 %v1677, 7
      %v1679 = vsub.s32 0, %v1678
      %v1680 = vrot.slane %v1343, %v1679
      %v1681 = vlaneseq
      %v1682 = vshrl.u32 %v1681, 7
      %v1683 = vsub.s32 0, %v1682
      %v1684 = vrot.slane %v1345, %v1683
      %v1685 = vlaneseq
      %v1686 = vshrl.u32 %v1685, 7
      %v1687 = vsub.s32 0, %v1686
      %v1688 = vrot.slane %v1347, %v1687
      %v1689 = vlaneseq
      %v1690 = vshrl.u32 %v1689, 7
      %v1691 = vsub.s32 0, %v1690
      %v1692 = vrot.slane %v1371, %v1691
      %v1693 = vlaneseq
      %v1694 = vshrl.u32 %v1693, 7
      %v1695 = vsub.s32 0, %v1694
      %v1696 = vrot.slane %v1385, %v1695
      %v1697 = vlaneseq
      %v1698 = vshrl.u32 %v1697, 7
      %v1699 = vsub.s32 0, %v1698
      %v1700 = vrot.slane %v1393, %v1699
      %v1701 = vlaneseq
      %v1702 = vshrl.u32 %v1701, 7
      %v1703 = vsub.s32 0, %v1702
      %v1704 = vrot.slane %v1395, %v1703
      %v1705 = vlaneseq
      %v1706 = vshrl.u32 %v1705, 7
      %v1707 = vsub.s32 0, %v1706
      %v1708 = vrot.slane %v1378, %v1707
      %v1709 = vlaneseq
      %v1710 = vshrl.u32 %v1709, 7
      %v1711 = vsub.s32 0, %v1710
      %v1712 = vrot.slane %v1392, %v1711
      %v1713 = vlaneseq
      %v1714 = vshrl.u32 %v1713, 7
      %v1715 = vsub.s32 0, %v1714
      %v1716 = vrot.slane %v1394, %v1715
      %v1717 = vlaneseq
      %v1718 = vshrl.u32 %v1717, 7
      %v1719 = vsub.s32 0, %v1718
      %v1720 = vrot.slane %v1396, %v1719
      %v1721 = vlaneseq
      %v1722 = vshrl.u32 %v1721, 7
      %v1723 = vsub.s32 0, %v1722
      %v1724 = vrot.slane %v1420, %v1723
      %v1725 = vlaneseq
      %v1726 = vshrl.u32 %v1725, 7
      %v1727 = vsub.s32 0, %v1726
      %v1728 = vrot.slane %v1434, %v1727
      %v1729 = vlaneseq
      %v1730 = vshrl.u32 %v1729, 7
      %v1731 = vsub.s32 0, %v1730
      %v1732 = vrot.slane %v1442, %v1731
      %v1733 = vlaneseq
      %v1734 = vshrl.u32 %v1733, 7
      %v1735 = vsub.s32 0, %v1734
      %v1736 = vrot.slane %v1444, %v1735
      %v1737 = vlaneseq
      %v1738 = vshrl.u32 %v1737, 7
      %v1739 = vsub.s32 0, %v1738
      %v1740 = vrot.slane %v1427, %v1739
      %v1741 = vlaneseq
      %v1742 = vshrl.u32 %v1741, 7
      %v1743 = vsub.s32 0, %v1742
      %v1744 = vrot.slane %v1441, %v1743
      %v1745 = vlaneseq
      %v1746 = vshrl.u32 %v1745, 7
      %v1747 = vsub.s32 0, %v1746
      %v1748 = vrot.slane %v1443, %v1747
      %v1749 = vlaneseq
      %v1750 = vshrl.u32 %v1749, 7
      %v1751 = vsub.s32 0, %v1750
      %v1752 = vrot.slane %v1445, %v1751
      %v1753 = vlaneseq
      %v1754 = vshrl.u32 %v1753, 7
      %v1755 = vsub.s32 0, %v1754
      %v1756 = vrot.slane %v1469, %v1755
      %v1757 = vlaneseq
      %v1758 = vshrl.u32 %v1757, 7
      %v1759 = vsub.s32 0, %v1758
      %v1760 = vrot.slane %v1483, %v1759
      %v1761 = vlaneseq
      %v1762 = vshrl.u32 %v1761, 7
      %v1763 = vsub.s32 0, %v1762
      %v1764 = vrot.slane %v1491, %v1763
      %v1765 = vlaneseq
      %v1766 = vshrl.u32 %v1765, 7
      %v1767 = vsub.s32 0, %v1766
      %v1768 = vrot.slane %v1493, %v1767
      %v1769 = vlaneseq
      %v1770 = vshrl.u32 %v1769, 7
      %v1771 = vsub.s32 0, %v1770
      %v1772 = vrot.slane %v1476, %v1771
      %v1773 = vlaneseq
      %v1774 = vshrl.u32 %v1773, 7
      %v1775 = vsub.s32 0, %v1774
      %v1776 = vrot.slane %v1490, %v1775
      %v1777 = vlaneseq
      %v1778 = vshrl.u32 %v1777, 7
      %v1779 = vsub.s32 0, %v1778
      %v1780 = vrot.slane %v1492, %v1779
      %v1781 = vlaneseq
      %v1782 = vshrl.u32 %v1781, 7
      %v1783 = vsub.s32 0, %v1782
      %v1784 = vrot.slane %v1494, %v1783
      %v1785 = vlaneseq
      %v1786 = vshrl.u32 %v1785, 7
      %v1787 = vsub.s32 0, %v1786
      %v1788 = vrot.slane %v1518, %v1787
      %v1789 = vlaneseq
      %v1790 = vshrl.u32 %v1789, 7
      %v1791 = vsub.s32 0, %v1790
      %v1792 = vrot.slane %v1532, %v1791
      %v1793 = vlaneseq
      %v1794 = vshrl.u32 %v1793, 7
      %v1795 = vsub.s32 0, %v1794
      %v1796 = vrot.slane %v1540, %v1795
      %v1797 = vlaneseq
      %v1798 = vshrl.u32 %v1797, 7
      %v1799 = vsub.s32 0, %v1798
      %v1800 = vrot.slane %v1542, %v1799
      %v1801 = vlaneseq
      %v1802 = vshrl.u32 %v1801, 7
      %v1803 = vsub.s32 0, %v1802
      %v1804 = vrot.slane %v1525, %v1803
      %v1805 = vlaneseq
      %v1806 = vshrl.u32 %v1805, 7
      %v1807 = vsub.s32 0, %v1806
      %v1808 = vrot.slane %v1539, %v1807
      %v1809 = vlaneseq
      %v1810 = vshrl.u32 %v1809, 7
      %v1811 = vsub.s32 0, %v1810
      %v1812 = vrot.slane %v1541, %v1811
      %v1813 = vlaneseq
      %v1814 = vshrl.u32 %v1813, 7
      %v1815 = vsub.s32 0, %v1814
      %v1816 = vrot.slane %v1543, %v1815
      %v1817 = vlaneseq
      %v1818 = vshrl.u32 %v1817, 7
      %v1819 = vsub.s32 0, %v1818
      %v1820 = vrot.slane %v1567, %v1819
      %v1821 = vlaneseq
      %v1822 = vshrl.u32 %v1821, 7
      %v1823 = vsub.s32 0, %v1822
      %v1824 = vrot.slane %v1581, %v1823
      %v1825 = vlaneseq
      %v1826 = vshrl.u32 %v1825, 7
      %v1827 = vsub.s32 0, %v1826
      %v1828 = vrot.slane %v1589, %v1827
      %v1829 = vlaneseq
      %v1830 = vshrl.u32 %v1829, 7
      %v1831 = vsub.s32 0, %v1830
      %v1832 = vrot.slane %v1591, %v1831
      %v1833 = vlaneseq
      %v1834 = vshrl.u32 %v1833, 7
      %v1835 = vsub.s32 0, %v1834
      %v1836 = vrot.slane %v1574, %v1835
      %v1837 = vlaneseq
      %v1838 = vshrl.u32 %v1837, 7
      %v1839 = vsub.s32 0, %v1838
      %v1840 = vrot.slane %v1588, %v1839
      %v1841 = vlaneseq
      %v1842 = vshrl.u32 %v1841, 7
      %v1843 = vsub.s32 0, %v1842
      %v1844 = vrot.slane %v1590, %v1843
      %v1845 = vlaneseq
      %v1846 = vshrl.u32 %v1845, 7
      %v1847 = vsub.s32 0, %v1846
      %v1848 = vrot.slane %v1592, %v1847
      %vm1913 = vcmask 1040384
      %v1914 = vsel %vm1913, %v760, %v1596
      %v1915 = vsel %vm1913, %v774, %v1600
      %v1916 = vsel %vm1913, %v782, %v1604
      %v1917 = vsel %vm1913, %v784, %v1608
      %v1918 = vsel %vm1913, %v767, %v1612
      %v1919 = vsel %vm1913, %v781, %v1616
      %v1920 = vsel %vm1913, %v783, %v1620
      %v1921 = vsel %vm1913, %v785, %v1624
      %v1922 = vsel %vm1913, %v809, %v1628
      %v1923 = vsel %vm1913, %v823, %v1632
      %v1924 = vsel %vm1913, %v831, %v1636
      %v1925 = vsel %vm1913, %v833, %v1640
      %v1926 = vsel %vm1913, %v816, %v1644
      %v1927 = vsel %vm1913, %v830, %v1648
      %v1928 = vsel %vm1913, %v832, %v1652
      %v1929 = vsel %vm1913, %v834, %v1656
      %v1930 = vsel %vm1913, %v858, %v1660
      %v1931 = vsel %vm1913, %v872, %v1664
      %v1932 = vsel %vm1913, %v880, %v1668
      %v1933 = vsel %vm1913, %v882, %v1672
      %v1934 = vsel %vm1913, %v865, %v1676
      %v1935 = vsel %vm1913, %v879, %v1680
      %v1936 = vsel %vm1913, %v881, %v1684
      %v1937 = vsel %vm1913, %v883, %v1688
      %v1938 = vsel %vm1913, %v907, %v1692
      %v1939 = vsel %vm1913, %v921, %v1696
      %v1940 = vsel %vm1913, %v929, %v1700
      %v1941 = vsel %vm1913, %v931, %v1704
      %v1942 = vsel %vm1913, %v914, %v1708
      %v1943 = vsel %vm1913, %v928, %v1712
      %v1944 = vsel %vm1913, %v930, %v1716
      %v1945 = vsel %vm1913, %v932, %v1720
      %v1946 = vsel %vm1913, %v956, %v1724
      %v1947 = vsel %vm1913, %v970, %v1728
      %v1948 = vsel %vm1913, %v978, %v1732
      %v1949 = vsel %vm1913, %v980, %v1736
      %v1950 = vsel %vm1913, %v963, %v1740
      %v1951 = vsel %vm1913, %v977, %v1744
      %v1952 = vsel %vm1913, %v979, %v1748
      %v1953 = vsel %vm1913, %v981, %v1752
      %v1954 = vsel %vm1913, %v1005, %v1756
      %v1955 = vsel %vm1913, %v1019, %v1760
      %v1956 = vsel %vm1913, %v1027, %v1764
      %v1957 = vsel %vm1913, %v1029, %v1768
      %v1958 = vsel %vm1913, %v1012, %v1772
      %v1959 = vsel %vm1913, %v1026, %v1776
      %v1960 = vsel %vm1913, %v1028, %v1780
      %v1961 = vsel %vm1913, %v1030, %v1784
      %v1962 = vsel %vm1913, %v1054, %v1788
      %v1963 = vsel %vm1913, %v1068, %v1792
      %v1964 = vsel %vm1913, %v1076, %v1796
      %v1965 = vsel %vm1913, %v1078, %v1800
      %v1966 = vsel %vm1913, %v1061, %v1804
      %v1967 = vsel %vm1913, %v1075, %v1808
      %v1968 = vsel %vm1913, %v1077, %v1812
      %v1969 = vsel %vm1913, %v1079, %v1816
      %v1970 = vsel %vm1913, %v1103, %v1820
      %v1971 = vsel %vm1913, %v1117, %v1824
      %v1972 = vsel %vm1913, %v1125, %v1828
      %v1973 = vsel %vm1913, %v1127, %v1832
      %v1974 = vsel %vm1913, %v1110, %v1836
      %v1975 = vsel %vm1913, %v1124, %v1840
      %v1976 = vsel %vm1913, %v1126, %v1844
      %v1977 = vsel %vm1913, %v1128, %v1848
      %v1986 = vcombine.high %v617, %v617
      %v1988 = vunpack.c.l.s4 1966171168
      %v1989 = vunpack.c.0.s8 %v1988
      %v1990 = vlaneseq
      %v1991 = vshrl.u32 %v1990, 7
      %v1992 = vsub.s32 %v1989, %v1991
      %v1993 = vrot.slane %v617, %v1992
      %v1995 = vunpack.c.l.s4 1966171168
      %v1996 = vunpack.c.0.s8 %v1995
      %v1997 = vlaneseq
      %v1998 = vshrl.u32 %v1997, 7
      %v1999 = vsub.s32 %v1996, %v1998
      %v2000 = vrot.slane %v1986, %v1999
      %v2001 = vcombine.high %v1993, %v1993
      %v2002 = vcombine.high %v2000, %v2000
      %v2004 = vunpack.c.l.s4 1966171168
      %v2005 = vunpack.c.0.s8 %v2004
      %v2006 = vlaneseq
      %v2007 = vshrl.u32 %v2006, 7
      %v2008 = vsub.s32 %v2005, %v2007
      %v2009 = vrot.slane %v1993, %v2008
      %v2011 = vunpack.c.l.s4 1966171168
      %v2012 = vunpack.c.0.s8 %v2011
      %v2013 = vlaneseq
      %v2014 = vshrl.u32 %v2013, 7
      %v2015 = vsub.s32 %v2012, %v2014
      %v2016 = vrot.slane %v2000, %v2015
      %v2018 = vunpack.c.l.s4 1966171168
      %v2019 = vunpack.c.0.s8 %v2018
      %v2020 = vlaneseq
      %v2021 = vshrl.u32 %v2020, 7
      %v2022 = vsub.s32 %v2019, %v2021
      %v2023 = vrot.slane %v2001, %v2022
      %v2025 = vunpack.c.l.s4 1966171168
      %v2026 = vunpack.c.0.s8 %v2025
      %v2027 = vlaneseq
      %v2028 = vshrl.u32 %v2027, 7
      %v2029 = vsub.s32 %v2026, %v2028
      %v2030 = vrot.slane %v2002, %v2029
      %v2031 = vcombine.high %v2009, %v2009
      %v2032 = vcombine.high %v2016, %v2016
      %v2033 = vcombine.high %v2023, %v2023
      %v2034 = vcombine.high %v2030, %v2030
      %v2035 = vcombine.high %v620, %v620
      %v2037 = vunpack.c.l.s4 1966171168
      %v2038 = vunpack.c.0.s8 %v2037
      %v2039 = vlaneseq
      %v2040 = vshrl.u32 %v2039, 7
      %v2041 = vsub.s32 %v2038, %v2040
      %v2042 = vrot.slane %v620, %v2041
      %v2044 = vunpack.c.l.s4 1966171168
      %v2045 = vunpack.c.0.s8 %v2044
      %v2046 = vlaneseq
      %v2047 = vshrl.u32 %v2046, 7
      %v2048 = vsub.s32 %v2045, %v2047
      %v2049 = vrot.slane %v2035, %v2048
      %v2050 = vcombine.high %v2042, %v2042
      %v2051 = vcombine.high %v2049, %v2049
      %v2053 = vunpack.c.l.s4 1966171168
      %v2054 = vunpack.c.0.s8 %v2053
      %v2055 = vlaneseq
      %v2056 = vshrl.u32 %v2055, 7
      %v2057 = vsub.s32 %v2054, %v2056
      %v2058 = vrot.slane %v2042, %v2057
      %v2060 = vunpack.c.l.s4 1966171168
      %v2061 = vunpack.c.0.s8 %v2060
      %v2062 = vlaneseq
      %v2063 = vshrl.u32 %v2062, 7
      %v2064 = vsub.s32 %v2061, %v2063
      %v2065 = vrot.slane %v2049, %v2064
      %v2067 = vunpack.c.l.s4 1966171168
      %v2068 = vunpack.c.0.s8 %v2067
      %v2069 = vlaneseq
      %v2070 = vshrl.u32 %v2069, 7
      %v2071 = vsub.s32 %v2068, %v2070
      %v2072 = vrot.slane %v2050, %v2071
      %v2074 = vunpack.c.l.s4 1966171168
      %v2075 = vunpack.c.0.s8 %v2074
      %v2076 = vlaneseq
      %v2077 = vshrl.u32 %v2076, 7
      %v2078 = vsub.s32 %v2075, %v2077
      %v2079 = vrot.slane %v2051, %v2078
      %v2080 = vcombine.high %v2058, %v2058
      %v2081 = vcombine.high %v2065, %v2065
      %v2082 = vcombine.high %v2072, %v2072
      %v2083 = vcombine.high %v2079, %v2079
      %v2084 = vcombine.high %v625, %v625
      %v2086 = vunpack.c.l.s4 1966171168
      %v2087 = vunpack.c.0.s8 %v2086
      %v2088 = vlaneseq
      %v2089 = vshrl.u32 %v2088, 7
      %v2090 = vsub.s32 %v2087, %v2089
      %v2091 = vrot.slane %v625, %v2090
      %v2093 = vunpack.c.l.s4 1966171168
      %v2094 = vunpack.c.0.s8 %v2093
      %v2095 = vlaneseq
      %v2096 = vshrl.u32 %v2095, 7
      %v2097 = vsub.s32 %v2094, %v2096
      %v2098 = vrot.slane %v2084, %v2097
      %v2099 = vcombine.high %v2091, %v2091
      %v2100 = vcombine.high %v2098, %v2098
      %v2102 = vunpack.c.l.s4 1966171168
      %v2103 = vunpack.c.0.s8 %v2102
      %v2104 = vlaneseq
      %v2105 = vshrl.u32 %v2104, 7
      %v2106 = vsub.s32 %v2103, %v2105
      %v2107 = vrot.slane %v2091, %v2106
      %v2109 = vunpack.c.l.s4 1966171168
      %v2110 = vunpack.c.0.s8 %v2109
      %v2111 = vlaneseq
      %v2112 = vshrl.u32 %v2111, 7
      %v2113 = vsub.s32 %v2110, %v2112
      %v2114 = vrot.slane %v2098, %v2113
      %v2116 = vunpack.c.l.s4 1966171168
      %v2117 = vunpack.c.0.s8 %v2116
      %v2118 = vlaneseq
      %v2119 = vshrl.u32 %v2118, 7
      %v2120 = vsub.s32 %v2117, %v2119
      %v2121 = vrot.slane %v2099, %v2120
      %v2123 = vunpack.c.l.s4 1966171168
      %v2124 = vunpack.c.0.s8 %v2123
      %v2125 = vlaneseq
      %v2126 = vshrl.u32 %v2125, 7
      %v2127 = vsub.s32 %v2124, %v2126
      %v2128 = vrot.slane %v2100, %v2127
      %v2129 = vcombine.high %v2107, %v2107
      %v2130 = vcombine.high %v2114, %v2114
      %v2131 = vcombine.high %v2121, %v2121
      %v2132 = vcombine.high %v2128, %v2128
      %v2133 = vcombine.high %v628, %v628
      %v2135 = vunpack.c.l.s4 1966171168
      %v2136 = vunpack.c.0.s8 %v2135
      %v2137 = vlaneseq
      %v2138 = vshrl.u32 %v2137, 7
      %v2139 = vsub.s32 %v2136, %v2138
      %v2140 = vrot.slane %v628, %v2139
      %v2142 = vunpack.c.l.s4 1966171168
      %v2143 = vunpack.c.0.s8 %v2142
      %v2144 = vlaneseq
      %v2145 = vshrl.u32 %v2144, 7
      %v2146 = vsub.s32 %v2143, %v2145
      %v2147 = vrot.slane %v2133, %v2146
      %v2148 = vcombine.high %v2140, %v2140
      %v2149 = vcombine.high %v2147, %v2147
      %v2151 = vunpack.c.l.s4 1966171168
      %v2152 = vunpack.c.0.s8 %v2151
      %v2153 = vlaneseq
      %v2154 = vshrl.u32 %v2153, 7
      %v2155 = vsub.s32 %v2152, %v2154
      %v2156 = vrot.slane %v2140, %v2155
      %v2158 = vunpack.c.l.s4 1966171168
      %v2159 = vunpack.c.0.s8 %v2158
      %v2160 = vlaneseq
      %v2161 = vshrl.u32 %v2160, 7
      %v2162 = vsub.s32 %v2159, %v2161
      %v2163 = vrot.slane %v2147, %v2162
      %v2165 = vunpack.c.l.s4 1966171168
      %v2166 = vunpack.c.0.s8 %v2165
      %v2167 = vlaneseq
      %v2168 = vshrl.u32 %v2167, 7
      %v2169 = vsub.s32 %v2166, %v2168
      %v2170 = vrot.slane %v2148, %v2169
      %v2172 = vunpack.c.l.s4 1966171168
      %v2173 = vunpack.c.0.s8 %v2172
      %v2174 = vlaneseq
      %v2175 = vshrl.u32 %v2174, 7
      %v2176 = vsub.s32 %v2173, %v2175
      %v2177 = vrot.slane %v2149, %v2176
      %v2178 = vcombine.high %v2156, %v2156
      %v2179 = vcombine.high %v2163, %v2163
      %v2180 = vcombine.high %v2170, %v2170
      %v2181 = vcombine.high %v2177, %v2177
      %v2182 = vcombine.high %v633, %v633
      %v2184 = vunpack.c.l.s4 1966171168
      %v2185 = vunpack.c.0.s8 %v2184
      %v2186 = vlaneseq
      %v2187 = vshrl.u32 %v2186, 7
      %v2188 = vsub.s32 %v2185, %v2187
      %v2189 = vrot.slane %v633, %v2188
      %v2191 = vunpack.c.l.s4 1966171168
      %v2192 = vunpack.c.0.s8 %v2191
      %v2193 = vlaneseq
      %v2194 = vshrl.u32 %v2193, 7
      %v2195 = vsub.s32 %v2192, %v2194
      %v2196 = vrot.slane %v2182, %v2195
      %v2197 = vcombine.high %v2189, %v2189
      %v2198 = vcombine.high %v2196, %v2196
      %v2200 = vunpack.c.l.s4 1966171168
      %v2201 = vunpack.c.0.s8 %v2200
      %v2202 = vlaneseq
      %v2203 = vshrl.u32 %v2202, 7
      %v2204 = vsub.s32 %v2201, %v2203
      %v2205 = vrot.slane %v2189, %v2204
      %v2207 = vunpack.c.l.s4 1966171168
      %v2208 = vunpack.c.0.s8 %v2207
      %v2209 = vlaneseq
      %v2210 = vshrl.u32 %v2209, 7
      %v2211 = vsub.s32 %v2208, %v2210
      %v2212 = vrot.slane %v2196, %v2211
      %v2214 = vunpack.c.l.s4 1966171168
      %v2215 = vunpack.c.0.s8 %v2214
      %v2216 = vlaneseq
      %v2217 = vshrl.u32 %v2216, 7
      %v2218 = vsub.s32 %v2215, %v2217
      %v2219 = vrot.slane %v2197, %v2218
      %v2221 = vunpack.c.l.s4 1966171168
      %v2222 = vunpack.c.0.s8 %v2221
      %v2223 = vlaneseq
      %v2224 = vshrl.u32 %v2223, 7
      %v2225 = vsub.s32 %v2222, %v2224
      %v2226 = vrot.slane %v2198, %v2225
      %v2227 = vcombine.high %v2205, %v2205
      %v2228 = vcombine.high %v2212, %v2212
      %v2229 = vcombine.high %v2219, %v2219
      %v2230 = vcombine.high %v2226, %v2226
      %v2231 = vcombine.high %v636, %v636
      %v2233 = vunpack.c.l.s4 1966171168
      %v2234 = vunpack.c.0.s8 %v2233
      %v2235 = vlaneseq
      %v2236 = vshrl.u32 %v2235, 7
      %v2237 = vsub.s32 %v2234, %v2236
      %v2238 = vrot.slane %v636, %v2237
      %v2240 = vunpack.c.l.s4 1966171168
      %v2241 = vunpack.c.0.s8 %v2240
      %v2242 = vlaneseq
      %v2243 = vshrl.u32 %v2242, 7
      %v2244 = vsub.s32 %v2241, %v2243
      %v2245 = vrot.slane %v2231, %v2244
      %v2246 = vcombine.high %v2238, %v2238
      %v2247 = vcombine.high %v2245, %v2245
      %v2249 = vunpack.c.l.s4 1966171168
      %v2250 = vunpack.c.0.s8 %v2249
      %v2251 = vlaneseq
      %v2252 = vshrl.u32 %v2251, 7
      %v2253 = vsub.s32 %v2250, %v2252
      %v2254 = vrot.slane %v2238, %v2253
      %v2256 = vunpack.c.l.s4 1966171168
      %v2257 = vunpack.c.0.s8 %v2256
      %v2258 = vlaneseq
      %v2259 = vshrl.u32 %v2258, 7
      %v2260 = vsub.s32 %v2257, %v2259
      %v2261 = vrot.slane %v2245, %v2260
      %v2263 = vunpack.c.l.s4 1966171168
      %v2264 = vunpack.c.0.s8 %v2263
      %v2265 = vlaneseq
      %v2266 = vshrl.u32 %v2265, 7
      %v2267 = vsub.s32 %v2264, %v2266
      %v2268 = vrot.slane %v2246, %v2267
      %v2270 = vunpack.c.l.s4 1966171168
      %v2271 = vunpack.c.0.s8 %v2270
      %v2272 = vlaneseq
      %v2273 = vshrl.u32 %v2272, 7
      %v2274 = vsub.s32 %v2271, %v2273
      %v2275 = vrot.slane %v2247, %v2274
      %v2276 = vcombine.high %v2254, %v2254
      %v2277 = vcombine.high %v2261, %v2261
      %v2278 = vcombine.high %v2268, %v2268
      %v2279 = vcombine.high %v2275, %v2275
      %v2280 = vcombine.high %v641, %v641
      %v2282 = vunpack.c.l.s4 1966171168
      %v2283 = vunpack.c.0.s8 %v2282
      %v2284 = vlaneseq
      %v2285 = vshrl.u32 %v2284, 7
      %v2286 = vsub.s32 %v2283, %v2285
      %v2287 = vrot.slane %v641, %v2286
      %v2289 = vunpack.c.l.s4 1966171168
      %v2290 = vunpack.c.0.s8 %v2289
      %v2291 = vlaneseq
      %v2292 = vshrl.u32 %v2291, 7
      %v2293 = vsub.s32 %v2290, %v2292
      %v2294 = vrot.slane %v2280, %v2293
      %v2295 = vcombine.high %v2287, %v2287
      %v2296 = vcombine.high %v2294, %v2294
      %v2298 = vunpack.c.l.s4 1966171168
      %v2299 = vunpack.c.0.s8 %v2298
      %v2300 = vlaneseq
      %v2301 = vshrl.u32 %v2300, 7
      %v2302 = vsub.s32 %v2299, %v2301
      %v2303 = vrot.slane %v2287, %v2302
      %v2305 = vunpack.c.l.s4 1966171168
      %v2306 = vunpack.c.0.s8 %v2305
      %v2307 = vlaneseq
      %v2308 = vshrl.u32 %v2307, 7
      %v2309 = vsub.s32 %v2306, %v2308
      %v2310 = vrot.slane %v2294, %v2309
      %v2312 = vunpack.c.l.s4 1966171168
      %v2313 = vunpack.c.0.s8 %v2312
      %v2314 = vlaneseq
      %v2315 = vshrl.u32 %v2314, 7
      %v2316 = vsub.s32 %v2313, %v2315
      %v2317 = vrot.slane %v2295, %v2316
      %v2319 = vunpack.c.l.s4 1966171168
      %v2320 = vunpack.c.0.s8 %v2319
      %v2321 = vlaneseq
      %v2322 = vshrl.u32 %v2321, 7
      %v2323 = vsub.s32 %v2320, %v2322
      %v2324 = vrot.slane %v2296, %v2323
      %v2325 = vcombine.high %v2303, %v2303
      %v2326 = vcombine.high %v2310, %v2310
      %v2327 = vcombine.high %v2317, %v2317
      %v2328 = vcombine.high %v2324, %v2324
      %v2329 = vcombine.high %v644, %v644
      %v2331 = vunpack.c.l.s4 1966171168
      %v2332 = vunpack.c.0.s8 %v2331
      %v2333 = vlaneseq
      %v2334 = vshrl.u32 %v2333, 7
      %v2335 = vsub.s32 %v2332, %v2334
      %v2336 = vrot.slane %v644, %v2335
      %v2338 = vunpack.c.l.s4 1966171168
      %v2339 = vunpack.c.0.s8 %v2338
      %v2340 = vlaneseq
      %v2341 = vshrl.u32 %v2340, 7
      %v2342 = vsub.s32 %v2339, %v2341
      %v2343 = vrot.slane %v2329, %v2342
      %v2344 = vcombine.high %v2336, %v2336
      %v2345 = vcombine.high %v2343, %v2343
      %v2347 = vunpack.c.l.s4 1966171168
      %v2348 = vunpack.c.0.s8 %v2347
      %v2349 = vlaneseq
      %v2350 = vshrl.u32 %v2349, 7
      %v2351 = vsub.s32 %v2348, %v2350
      %v2352 = vrot.slane %v2336, %v2351
      %v2354 = vunpack.c.l.s4 1966171168
      %v2355 = vunpack.c.0.s8 %v2354
      %v2356 = vlaneseq
      %v2357 = vshrl.u32 %v2356, 7
      %v2358 = vsub.s32 %v2355, %v2357
      %v2359 = vrot.slane %v2343, %v2358
      %v2361 = vunpack.c.l.s4 1966171168
      %v2362 = vunpack.c.0.s8 %v2361
      %v2363 = vlaneseq
      %v2364 = vshrl.u32 %v2363, 7
      %v2365 = vsub.s32 %v2362, %v2364
      %v2366 = vrot.slane %v2344, %v2365
      %v2368 = vunpack.c.l.s4 1966171168
      %v2369 = vunpack.c.0.s8 %v2368
      %v2370 = vlaneseq
      %v2371 = vshrl.u32 %v2370, 7
      %v2372 = vsub.s32 %v2369, %v2371
      %v2373 = vrot.slane %v2345, %v2372
      %v2374 = vcombine.high %v2352, %v2352
      %v2375 = vcombine.high %v2359, %v2359
      %v2376 = vcombine.high %v2366, %v2366
      %v2377 = vcombine.high %v2373, %v2373
      %v2450 = vcombine.high %v699, %v699
      %v2452 = vunpack.c.l.s4 1966171168
      %v2453 = vunpack.c.0.s8 %v2452
      %v2454 = vlaneseq
      %v2455 = vshrl.u32 %v2454, 7
      %v2456 = vsub.s32 %v2453, %v2455
      %v2457 = vrot.slane %v699, %v2456
      %v2459 = vunpack.c.l.s4 1966171168
      %v2460 = vunpack.c.0.s8 %v2459
      %v2461 = vlaneseq
      %v2462 = vshrl.u32 %v2461, 7
      %v2463 = vsub.s32 %v2460, %v2462
      %v2464 = vrot.slane %v2450, %v2463
      %v2465 = vcombine.high %v2457, %v2457
      %v2466 = vcombine.high %v2464, %v2464
      %v2468 = vunpack.c.l.s4 1966171168
      %v2469 = vunpack.c.0.s8 %v2468
      %v2470 = vlaneseq
      %v2471 = vshrl.u32 %v2470, 7
      %v2472 = vsub.s32 %v2469, %v2471
      %v2473 = vrot.slane %v2457, %v2472
      %v2475 = vunpack.c.l.s4 1966171168
      %v2476 = vunpack.c.0.s8 %v2475
      %v2477 = vlaneseq
      %v2478 = vshrl.u32 %v2477, 7
      %v2479 = vsub.s32 %v2476, %v2478
      %v2480 = vrot.slane %v2464, %v2479
      %v2482 = vunpack.c.l.s4 1966171168
      %v2483 = vunpack.c.0.s8 %v2482
      %v2484 = vlaneseq
      %v2485 = vshrl.u32 %v2484, 7
      %v2486 = vsub.s32 %v2483, %v2485
      %v2487 = vrot.slane %v2465, %v2486
      %v2489 = vunpack.c.l.s4 1966171168
      %v2490 = vunpack.c.0.s8 %v2489
      %v2491 = vlaneseq
      %v2492 = vshrl.u32 %v2491, 7
      %v2493 = vsub.s32 %v2490, %v2492
      %v2494 = vrot.slane %v2466, %v2493
      %v2495 = vcombine.high %v2473, %v2473
      %v2496 = vcombine.high %v2480, %v2480
      %v2497 = vcombine.high %v2487, %v2487
      %v2498 = vcombine.high %v2494, %v2494
      %v2499 = vcombine.high %v702, %v702
      %v2501 = vunpack.c.l.s4 1966171168
      %v2502 = vunpack.c.0.s8 %v2501
      %v2503 = vlaneseq
      %v2504 = vshrl.u32 %v2503, 7
      %v2505 = vsub.s32 %v2502, %v2504
      %v2506 = vrot.slane %v702, %v2505
      %v2508 = vunpack.c.l.s4 1966171168
      %v2509 = vunpack.c.0.s8 %v2508
      %v2510 = vlaneseq
      %v2511 = vshrl.u32 %v2510, 7
      %v2512 = vsub.s32 %v2509, %v2511
      %v2513 = vrot.slane %v2499, %v2512
      %v2514 = vcombine.high %v2506, %v2506
      %v2515 = vcombine.high %v2513, %v2513
      %v2517 = vunpack.c.l.s4 1966171168
      %v2518 = vunpack.c.0.s8 %v2517
      %v2519 = vlaneseq
      %v2520 = vshrl.u32 %v2519, 7
      %v2521 = vsub.s32 %v2518, %v2520
      %v2522 = vrot.slane %v2506, %v2521
      %v2524 = vunpack.c.l.s4 1966171168
      %v2525 = vunpack.c.0.s8 %v2524
      %v2526 = vlaneseq
      %v2527 = vshrl.u32 %v2526, 7
      %v2528 = vsub.s32 %v2525, %v2527
      %v2529 = vrot.slane %v2513, %v2528
      %v2531 = vunpack.c.l.s4 1966171168
      %v2532 = vunpack.c.0.s8 %v2531
      %v2533 = vlaneseq
      %v2534 = vshrl.u32 %v2533, 7
      %v2535 = vsub.s32 %v2532, %v2534
      %v2536 = vrot.slane %v2514, %v2535
      %v2538 = vunpack.c.l.s4 1966171168
      %v2539 = vunpack.c.0.s8 %v2538
      %v2540 = vlaneseq
      %v2541 = vshrl.u32 %v2540, 7
      %v2542 = vsub.s32 %v2539, %v2541
      %v2543 = vrot.slane %v2515, %v2542
      %v2544 = vcombine.high %v2522, %v2522
      %v2545 = vcombine.high %v2529, %v2529
      %v2546 = vcombine.high %v2536, %v2536
      %v2547 = vcombine.high %v2543, %v2543
      %v2548 = vcombine.high %v707, %v707
      %v2550 = vunpack.c.l.s4 1966171168
      %v2551 = vunpack.c.0.s8 %v2550
      %v2552 = vlaneseq
      %v2553 = vshrl.u32 %v2552, 7
      %v2554 = vsub.s32 %v2551, %v2553
      %v2555 = vrot.slane %v707, %v2554
      %v2557 = vunpack.c.l.s4 1966171168
      %v2558 = vunpack.c.0.s8 %v2557
      %v2559 = vlaneseq
      %v2560 = vshrl.u32 %v2559, 7
      %v2561 = vsub.s32 %v2558, %v2560
      %v2562 = vrot.slane %v2548, %v2561
      %v2563 = vcombine.high %v2555, %v2555
      %v2564 = vcombine.high %v2562, %v2562
      %v2566 = vunpack.c.l.s4 1966171168
      %v2567 = vunpack.c.0.s8 %v2566
      %v2568 = vlaneseq
      %v2569 = vshrl.u32 %v2568, 7
      %v2570 = vsub.s32 %v2567, %v2569
      %v2571 = vrot.slane %v2555, %v2570
      %v2573 = vunpack.c.l.s4 1966171168
      %v2574 = vunpack.c.0.s8 %v2573
      %v2575 = vlaneseq
      %v2576 = vshrl.u32 %v2575, 7
      %v2577 = vsub.s32 %v2574, %v2576
      %v2578 = vrot.slane %v2562, %v2577
      %v2580 = vunpack.c.l.s4 1966171168
      %v2581 = vunpack.c.0.s8 %v2580
      %v2582 = vlaneseq
      %v2583 = vshrl.u32 %v2582, 7
      %v2584 = vsub.s32 %v2581, %v2583
      %v2585 = vrot.slane %v2563, %v2584
      %v2587 = vunpack.c.l.s4 1966171168
      %v2588 = vunpack.c.0.s8 %v2587
      %v2589 = vlaneseq
      %v2590 = vshrl.u32 %v2589, 7
      %v2591 = vsub.s32 %v2588, %v2590
      %v2592 = vrot.slane %v2564, %v2591
      %v2593 = vcombine.high %v2571, %v2571
      %v2594 = vcombine.high %v2578, %v2578
      %v2595 = vcombine.high %v2585, %v2585
      %v2596 = vcombine.high %v2592, %v2592
      %v2597 = vcombine.high %v710, %v710
      %v2599 = vunpack.c.l.s4 1966171168
      %v2600 = vunpack.c.0.s8 %v2599
      %v2601 = vlaneseq
      %v2602 = vshrl.u32 %v2601, 7
      %v2603 = vsub.s32 %v2600, %v2602
      %v2604 = vrot.slane %v710, %v2603
      %v2606 = vunpack.c.l.s4 1966171168
      %v2607 = vunpack.c.0.s8 %v2606
      %v2608 = vlaneseq
      %v2609 = vshrl.u32 %v2608, 7
      %v2610 = vsub.s32 %v2607, %v2609
      %v2611 = vrot.slane %v2597, %v2610
      %v2612 = vcombine.high %v2604, %v2604
      %v2613 = vcombine.high %v2611, %v2611
      %v2615 = vunpack.c.l.s4 1966171168
      %v2616 = vunpack.c.0.s8 %v2615
      %v2617 = vlaneseq
      %v2618 = vshrl.u32 %v2617, 7
      %v2619 = vsub.s32 %v2616, %v2618
      %v2620 = vrot.slane %v2604, %v2619
      %v2622 = vunpack.c.l.s4 1966171168
      %v2623 = vunpack.c.0.s8 %v2622
      %v2624 = vlaneseq
      %v2625 = vshrl.u32 %v2624, 7
      %v2626 = vsub.s32 %v2623, %v2625
      %v2627 = vrot.slane %v2611, %v2626
      %v2629 = vunpack.c.l.s4 1966171168
      %v2630 = vunpack.c.0.s8 %v2629
      %v2631 = vlaneseq
      %v2632 = vshrl.u32 %v2631, 7
      %v2633 = vsub.s32 %v2630, %v2632
      %v2634 = vrot.slane %v2612, %v2633
      %v2636 = vunpack.c.l.s4 1966171168
      %v2637 = vunpack.c.0.s8 %v2636
      %v2638 = vlaneseq
      %v2639 = vshrl.u32 %v2638, 7
      %v2640 = vsub.s32 %v2637, %v2639
      %v2641 = vrot.slane %v2613, %v2640
      %v2642 = vcombine.high %v2620, %v2620
      %v2643 = vcombine.high %v2627, %v2627
      %v2644 = vcombine.high %v2634, %v2634
      %v2645 = vcombine.high %v2641, %v2641
      %v2646 = vcombine.high %v715, %v715
      %v2648 = vunpack.c.l.s4 1966171168
      %v2649 = vunpack.c.0.s8 %v2648
      %v2650 = vlaneseq
      %v2651 = vshrl.u32 %v2650, 7
      %v2652 = vsub.s32 %v2649, %v2651
      %v2653 = vrot.slane %v715, %v2652
      %v2655 = vunpack.c.l.s4 1966171168
      %v2656 = vunpack.c.0.s8 %v2655
      %v2657 = vlaneseq
      %v2658 = vshrl.u32 %v2657, 7
      %v2659 = vsub.s32 %v2656, %v2658
      %v2660 = vrot.slane %v2646, %v2659
      %v2661 = vcombine.high %v2653, %v2653
      %v2662 = vcombine.high %v2660, %v2660
      %v2664 = vunpack.c.l.s4 1966171168
      %v2665 = vunpack.c.0.s8 %v2664
      %v2666 = vlaneseq
      %v2667 = vshrl.u32 %v2666, 7
      %v2668 = vsub.s32 %v2665, %v2667
      %v2669 = vrot.slane %v2653, %v2668
      %v2671 = vunpack.c.l.s4 1966171168
      %v2672 = vunpack.c.0.s8 %v2671
      %v2673 = vlaneseq
      %v2674 = vshrl.u32 %v2673, 7
      %v2675 = vsub.s32 %v2672, %v2674
      %v2676 = vrot.slane %v2660, %v2675
      %v2678 = vunpack.c.l.s4 1966171168
      %v2679 = vunpack.c.0.s8 %v2678
      %v2680 = vlaneseq
      %v2681 = vshrl.u32 %v2680, 7
      %v2682 = vsub.s32 %v2679, %v2681
      %v2683 = vrot.slane %v2661, %v2682
      %v2685 = vunpack.c.l.s4 1966171168
      %v2686 = vunpack.c.0.s8 %v2685
      %v2687 = vlaneseq
      %v2688 = vshrl.u32 %v2687, 7
      %v2689 = vsub.s32 %v2686, %v2688
      %v2690 = vrot.slane %v2662, %v2689
      %v2691 = vcombine.high %v2669, %v2669
      %v2692 = vcombine.high %v2676, %v2676
      %v2693 = vcombine.high %v2683, %v2683
      %v2694 = vcombine.high %v2690, %v2690
      %v2695 = vcombine.high %v718, %v718
      %v2697 = vunpack.c.l.s4 1966171168
      %v2698 = vunpack.c.0.s8 %v2697
      %v2699 = vlaneseq
      %v2700 = vshrl.u32 %v2699, 7
      %v2701 = vsub.s32 %v2698, %v2700
      %v2702 = vrot.slane %v718, %v2701
      %v2704 = vunpack.c.l.s4 1966171168
      %v2705 = vunpack.c.0.s8 %v2704
      %v2706 = vlaneseq
      %v2707 = vshrl.u32 %v2706, 7
      %v2708 = vsub.s32 %v2705, %v2707
      %v2709 = vrot.slane %v2695, %v2708
      %v2710 = vcombine.high %v2702, %v2702
      %v2711 = vcombine.high %v2709, %v2709
      %v2713 = vunpack.c.l.s4 1966171168
      %v2714 = vunpack.c.0.s8 %v2713
      %v2715 = vlaneseq
      %v2716 = vshrl.u32 %v2715, 7
      %v2717 = vsub.s32 %v2714, %v2716
      %v2718 = vrot.slane %v2702, %v2717
      %v2720 = vunpack.c.l.s4 1966171168
      %v2721 = vunpack.c.0.s8 %v2720
      %v2722 = vlaneseq
      %v2723 = vshrl.u32 %v2722, 7
      %v2724 = vsub.s32 %v2721, %v2723
      %v2725 = vrot.slane %v2709, %v2724
      %v2727 = vunpack.c.l.s4 1966171168
      %v2728 = vunpack.c.0.s8 %v2727
      %v2729 = vlaneseq
      %v2730 = vshrl.u32 %v2729, 7
      %v2731 = vsub.s32 %v2728, %v2730
      %v2732 = vrot.slane %v2710, %v2731
      %v2734 = vunpack.c.l.s4 1966171168
      %v2735 = vunpack.c.0.s8 %v2734
      %v2736 = vlaneseq
      %v2737 = vshrl.u32 %v2736, 7
      %v2738 = vsub.s32 %v2735, %v2737
      %v2739 = vrot.slane %v2711, %v2738
      %v2740 = vcombine.high %v2718, %v2718
      %v2741 = vcombine.high %v2725, %v2725
      %v2742 = vcombine.high %v2732, %v2732
      %v2743 = vcombine.high %v2739, %v2739
      %v2744 = vcombine.high %v723, %v723
      %v2746 = vunpack.c.l.s4 1966171168
      %v2747 = vunpack.c.0.s8 %v2746
      %v2748 = vlaneseq
      %v2749 = vshrl.u32 %v2748, 7
      %v2750 = vsub.s32 %v2747, %v2749
      %v2751 = vrot.slane %v723, %v2750
      %v2753 = vunpack.c.l.s4 1966171168
      %v2754 = vunpack.c.0.s8 %v2753
      %v2755 = vlaneseq
      %v2756 = vshrl.u32 %v2755, 7
      %v2757 = vsub.s32 %v2754, %v2756
      %v2758 = vrot.slane %v2744, %v2757
      %v2759 = vcombine.high %v2751, %v2751
      %v2760 = vcombine.high %v2758, %v2758
      %v2762 = vunpack.c.l.s4 1966171168
      %v2763 = vunpack.c.0.s8 %v2762
      %v2764 = vlaneseq
      %v2765 = vshrl.u32 %v2764, 7
      %v2766 = vsub.s32 %v2763, %v2765
      %v2767 = vrot.slane %v2751, %v2766
      %v2769 = vunpack.c.l.s4 1966171168
      %v2770 = vunpack.c.0.s8 %v2769
      %v2771 = vlaneseq
      %v2772 = vshrl.u32 %v2771, 7
      %v2773 = vsub.s32 %v2770, %v2772
      %v2774 = vrot.slane %v2758, %v2773
      %v2776 = vunpack.c.l.s4 1966171168
      %v2777 = vunpack.c.0.s8 %v2776
      %v2778 = vlaneseq
      %v2779 = vshrl.u32 %v2778, 7
      %v2780 = vsub.s32 %v2777, %v2779
      %v2781 = vrot.slane %v2759, %v2780
      %v2783 = vunpack.c.l.s4 1966171168
      %v2784 = vunpack.c.0.s8 %v2783
      %v2785 = vlaneseq
      %v2786 = vshrl.u32 %v2785, 7
      %v2787 = vsub.s32 %v2784, %v2786
      %v2788 = vrot.slane %v2760, %v2787
      %v2789 = vcombine.high %v2767, %v2767
      %v2790 = vcombine.high %v2774, %v2774
      %v2791 = vcombine.high %v2781, %v2781
      %v2792 = vcombine.high %v2788, %v2788
      %v2793 = vcombine.high %v726, %v726
      %v2795 = vunpack.c.l.s4 1966171168
      %v2796 = vunpack.c.0.s8 %v2795
      %v2797 = vlaneseq
      %v2798 = vshrl.u32 %v2797, 7
      %v2799 = vsub.s32 %v2796, %v2798
      %v2800 = vrot.slane %v726, %v2799
      %v2802 = vunpack.c.l.s4 1966171168
      %v2803 = vunpack.c.0.s8 %v2802
      %v2804 = vlaneseq
      %v2805 = vshrl.u32 %v2804, 7
      %v2806 = vsub.s32 %v2803, %v2805
      %v2807 = vrot.slane %v2793, %v2806
      %v2808 = vcombine.high %v2800, %v2800
      %v2809 = vcombine.high %v2807, %v2807
      %v2811 = vunpack.c.l.s4 1966171168
      %v2812 = vunpack.c.0.s8 %v2811
      %v2813 = vlaneseq
      %v2814 = vshrl.u32 %v2813, 7
      %v2815 = vsub.s32 %v2812, %v2814
      %v2816 = vrot.slane %v2800, %v2815
      %v2818 = vunpack.c.l.s4 1966171168
      %v2819 = vunpack.c.0.s8 %v2818
      %v2820 = vlaneseq
      %v2821 = vshrl.u32 %v2820, 7
      %v2822 = vsub.s32 %v2819, %v2821
      %v2823 = vrot.slane %v2807, %v2822
      %v2825 = vunpack.c.l.s4 1966171168
      %v2826 = vunpack.c.0.s8 %v2825
      %v2827 = vlaneseq
      %v2828 = vshrl.u32 %v2827, 7
      %v2829 = vsub.s32 %v2826, %v2828
      %v2830 = vrot.slane %v2808, %v2829
      %v2832 = vunpack.c.l.s4 1966171168
      %v2833 = vunpack.c.0.s8 %v2832
      %v2834 = vlaneseq
      %v2835 = vshrl.u32 %v2834, 7
      %v2836 = vsub.s32 %v2833, %v2835
      %v2837 = vrot.slane %v2809, %v2836
      %v2838 = vcombine.high %v2816, %v2816
      %v2839 = vcombine.high %v2823, %v2823
      %v2840 = vcombine.high %v2830, %v2830
      %v2841 = vcombine.high %v2837, %v2837
      %v2842 = vlaneseq
      %v2843 = vshrl.u32 %v2842, 7
      %v2844 = vsub.s32 0, %v2843
      %v2845 = vrot.slane %v2473, %v2844
      %v2846 = vlaneseq
      %v2847 = vshrl.u32 %v2846, 7
      %v2848 = vsub.s32 0, %v2847
      %v2849 = vrot.slane %v2487, %v2848
      %v2850 = vlaneseq
      %v2851 = vshrl.u32 %v2850, 7
      %v2852 = vsub.s32 0, %v2851
      %v2853 = vrot.slane %v2495, %v2852
      %v2854 = vlaneseq
      %v2855 = vshrl.u32 %v2854, 7
      %v2856 = vsub.s32 0, %v2855
      %v2857 = vrot.slane %v2497, %v2856
      %v2858 = vlaneseq
      %v2859 = vshrl.u32 %v2858, 7
      %v2860 = vsub.s32 0, %v2859
      %v2861 = vrot.slane %v2480, %v2860
      %v2862 = vlaneseq
      %v2863 = vshrl.u32 %v2862, 7
      %v2864 = vsub.s32 0, %v2863
      %v2865 = vrot.slane %v2494, %v2864
      %v2866 = vlaneseq
      %v2867 = vshrl.u32 %v2866, 7
      %v2868 = vsub.s32 0, %v2867
      %v2869 = vrot.slane %v2496, %v2868
      %v2870 = vlaneseq
      %v2871 = vshrl.u32 %v2870, 7
      %v2872 = vsub.s32 0, %v2871
      %v2873 = vrot.slane %v2498, %v2872
      %v2874 = vlaneseq
      %v2875 = vshrl.u32 %v2874, 7
      %v2876 = vsub.s32 0, %v2875
      %v2877 = vrot.slane %v2522, %v2876
      %v2878 = vlaneseq
      %v2879 = vshrl.u32 %v2878, 7
      %v2880 = vsub.s32 0, %v2879
      %v2881 = vrot.slane %v2536, %v2880
      %v2882 = vlaneseq
      %v2883 = vshrl.u32 %v2882, 7
      %v2884 = vsub.s32 0, %v2883
      %v2885 = vrot.slane %v2544, %v2884
      %v2886 = vlaneseq
      %v2887 = vshrl.u32 %v2886, 7
      %v2888 = vsub.s32 0, %v2887
      %v2889 = vrot.slane %v2546, %v2888
      %v2890 = vlaneseq
      %v2891 = vshrl.u32 %v2890, 7
      %v2892 = vsub.s32 0, %v2891
      %v2893 = vrot.slane %v2529, %v2892
      %v2894 = vlaneseq
      %v2895 = vshrl.u32 %v2894, 7
      %v2896 = vsub.s32 0, %v2895
      %v2897 = vrot.slane %v2543, %v2896
      %v2898 = vlaneseq
      %v2899 = vshrl.u32 %v2898, 7
      %v2900 = vsub.s32 0, %v2899
      %v2901 = vrot.slane %v2545, %v2900
      %v2902 = vlaneseq
      %v2903 = vshrl.u32 %v2902, 7
      %v2904 = vsub.s32 0, %v2903
      %v2905 = vrot.slane %v2547, %v2904
      %v2906 = vlaneseq
      %v2907 = vshrl.u32 %v2906, 7
      %v2908 = vsub.s32 0, %v2907
      %v2909 = vrot.slane %v2571, %v2908
      %v2910 = vlaneseq
      %v2911 = vshrl.u32 %v2910, 7
      %v2912 = vsub.s32 0, %v2911
      %v2913 = vrot.slane %v2585, %v2912
      %v2914 = vlaneseq
      %v2915 = vshrl.u32 %v2914, 7
      %v2916 = vsub.s32 0, %v2915
      %v2917 = vrot.slane %v2593, %v2916
      %v2918 = vlaneseq
      %v2919 = vshrl.u32 %v2918, 7
      %v2920 = vsub.s32 0, %v2919
      %v2921 = vrot.slane %v2595, %v2920
      %v2922 = vlaneseq
      %v2923 = vshrl.u32 %v2922, 7
      %v2924 = vsub.s32 0, %v2923
      %v2925 = vrot.slane %v2578, %v2924
      %v2926 = vlaneseq
      %v2927 = vshrl.u32 %v2926, 7
      %v2928 = vsub.s32 0, %v2927
      %v2929 = vrot.slane %v2592, %v2928
      %v2930 = vlaneseq
      %v2931 = vshrl.u32 %v2930, 7
      %v2932 = vsub.s32 0, %v2931
      %v2933 = vrot.slane %v2594, %v2932
      %v2934 = vlaneseq
      %v2935 = vshrl.u32 %v2934, 7
      %v2936 = vsub.s32 0, %v2935
      %v2937 = vrot.slane %v2596, %v2936
      %v2938 = vlaneseq
      %v2939 = vshrl.u32 %v2938, 7
      %v2940 = vsub.s32 0, %v2939
      %v2941 = vrot.slane %v2620, %v2940
      %v2942 = vlaneseq
      %v2943 = vshrl.u32 %v2942, 7
      %v2944 = vsub.s32 0, %v2943
      %v2945 = vrot.slane %v2634, %v2944
      %v2946 = vlaneseq
      %v2947 = vshrl.u32 %v2946, 7
      %v2948 = vsub.s32 0, %v2947
      %v2949 = vrot.slane %v2642, %v2948
      %v2950 = vlaneseq
      %v2951 = vshrl.u32 %v2950, 7
      %v2952 = vsub.s32 0, %v2951
      %v2953 = vrot.slane %v2644, %v2952
      %v2954 = vlaneseq
      %v2955 = vshrl.u32 %v2954, 7
      %v2956 = vsub.s32 0, %v2955
      %v2957 = vrot.slane %v2627, %v2956
      %v2958 = vlaneseq
      %v2959 = vshrl.u32 %v2958, 7
      %v2960 = vsub.s32 0, %v2959
      %v2961 = vrot.slane %v2641, %v2960
      %v2962 = vlaneseq
      %v2963 = vshrl.u32 %v2962, 7
      %v2964 = vsub.s32 0, %v2963
      %v2965 = vrot.slane %v2643, %v2964
      %v2966 = vlaneseq
      %v2967 = vshrl.u32 %v2966, 7
      %v2968 = vsub.s32 0, %v2967
      %v2969 = vrot.slane %v2645, %v2968
      %v2970 = vlaneseq
      %v2971 = vshrl.u32 %v2970, 7
      %v2972 = vsub.s32 0, %v2971
      %v2973 = vrot.slane %v2669, %v2972
      %v2974 = vlaneseq
      %v2975 = vshrl.u32 %v2974, 7
      %v2976 = vsub.s32 0, %v2975
      %v2977 = vrot.slane %v2683, %v2976
      %v2978 = vlaneseq
      %v2979 = vshrl.u32 %v2978, 7
      %v2980 = vsub.s32 0, %v2979
      %v2981 = vrot.slane %v2691, %v2980
      %v2982 = vlaneseq
      %v2983 = vshrl.u32 %v2982, 7
      %v2984 = vsub.s32 0, %v2983
      %v2985 = vrot.slane %v2693, %v2984
      %v2986 = vlaneseq
      %v2987 = vshrl.u32 %v2986, 7
      %v2988 = vsub.s32 0, %v2987
      %v2989 = vrot.slane %v2676, %v2988
      %v2990 = vlaneseq
      %v2991 = vshrl.u32 %v2990, 7
      %v2992 = vsub.s32 0, %v2991
      %v2993 = vrot.slane %v2690, %v2992
      %v2994 = vlaneseq
      %v2995 = vshrl.u32 %v2994, 7
      %v2996 = vsub.s32 0, %v2995
      %v2997 = vrot.slane %v2692, %v2996
      %v2998 = vlaneseq
      %v2999 = vshrl.u32 %v2998, 7
      %v3000 = vsub.s32 0, %v2999
      %v3001 = vrot.slane %v2694, %v3000
      %v3002 = vlaneseq
      %v3003 = vshrl.u32 %v3002, 7
      %v3004 = vsub.s32 0, %v3003
      %v3005 = vrot.slane %v2718, %v3004
      %v3006 = vlaneseq
      %v3007 = vshrl.u32 %v3006, 7
      %v3008 = vsub.s32 0, %v3007
      %v3009 = vrot.slane %v2732, %v3008
      %v3010 = vlaneseq
      %v3011 = vshrl.u32 %v3010, 7
      %v3012 = vsub.s32 0, %v3011
      %v3013 = vrot.slane %v2740, %v3012
      %v3014 = vlaneseq
      %v3015 = vshrl.u32 %v3014, 7
      %v3016 = vsub.s32 0, %v3015
      %v3017 = vrot.slane %v2742, %v3016
      %v3018 = vlaneseq
      %v3019 = vshrl.u32 %v3018, 7
      %v3020 = vsub.s32 0, %v3019
      %v3021 = vrot.slane %v2725, %v3020
      %v3022 = vlaneseq
      %v3023 = vshrl.u32 %v3022, 7
      %v3024 = vsub.s32 0, %v3023
      %v3025 = vrot.slane %v2739, %v3024
      %v3026 = vlaneseq
      %v3027 = vshrl.u32 %v3026, 7
      %v3028 = vsub.s32 0, %v3027
      %v3029 = vrot.slane %v2741, %v3028
      %v3030 = vlaneseq
      %v3031 = vshrl.u32 %v3030, 7
      %v3032 = vsub.s32 0, %v3031
      %v3033 = vrot.slane %v2743, %v3032
      %v3034 = vlaneseq
      %v3035 = vshrl.u32 %v3034, 7
      %v3036 = vsub.s32 0, %v3035
      %v3037 = vrot.slane %v2767, %v3036
      %v3038 = vlaneseq
      %v3039 = vshrl.u32 %v3038, 7
      %v3040 = vsub.s32 0, %v3039
      %v3041 = vrot.slane %v2781, %v3040
      %v3042 = vlaneseq
      %v3043 = vshrl.u32 %v3042, 7
      %v3044 = vsub.s32 0, %v3043
      %v3045 = vrot.slane %v2789, %v3044
      %v3046 = vlaneseq
      %v3047 = vshrl.u32 %v3046, 7
      %v3048 = vsub.s32 0, %v3047
      %v3049 = vrot.slane %v2791, %v3048
      %v3050 = vlaneseq
      %v3051 = vshrl.u32 %v3050, 7
      %v3052 = vsub.s32 0, %v3051
      %v3053 = vrot.slane %v2774, %v3052
      %v3054 = vlaneseq
      %v3055 = vshrl.u32 %v3054, 7
      %v3056 = vsub.s32 0, %v3055
      %v3057 = vrot.slane %v2788, %v3056
      %v3058 = vlaneseq
      %v3059 = vshrl.u32 %v3058, 7
      %v3060 = vsub.s32 0, %v3059
      %v3061 = vrot.slane %v2790, %v3060
      %v3062 = vlaneseq
      %v3063 = vshrl.u32 %v3062, 7
      %v3064 = vsub.s32 0, %v3063
      %v3065 = vrot.slane %v2792, %v3064
      %v3066 = vlaneseq
      %v3067 = vshrl.u32 %v3066, 7
      %v3068 = vsub.s32 0, %v3067
      %v3069 = vrot.slane %v2816, %v3068
      %v3070 = vlaneseq
      %v3071 = vshrl.u32 %v3070, 7
      %v3072 = vsub.s32 0, %v3071
      %v3073 = vrot.slane %v2830, %v3072
      %v3074 = vlaneseq
      %v3075 = vshrl.u32 %v3074, 7
      %v3076 = vsub.s32 0, %v3075
      %v3077 = vrot.slane %v2838, %v3076
      %v3078 = vlaneseq
      %v3079 = vshrl.u32 %v3078, 7
      %v3080 = vsub.s32 0, %v3079
      %v3081 = vrot.slane %v2840, %v3080
      %v3082 = vlaneseq
      %v3083 = vshrl.u32 %v3082, 7
      %v3084 = vsub.s32 0, %v3083
      %v3085 = vrot.slane %v2823, %v3084
      %v3086 = vlaneseq
      %v3087 = vshrl.u32 %v3086, 7
      %v3088 = vsub.s32 0, %v3087
      %v3089 = vrot.slane %v2837, %v3088
      %v3090 = vlaneseq
      %v3091 = vshrl.u32 %v3090, 7
      %v3092 = vsub.s32 0, %v3091
      %v3093 = vrot.slane %v2839, %v3092
      %v3094 = vlaneseq
      %v3095 = vshrl.u32 %v3094, 7
      %v3096 = vsub.s32 0, %v3095
      %v3097 = vrot.slane %v2841, %v3096
      %v3162 = vsel %vm1913, %v2009, %v2845
      %v3163 = vsel %vm1913, %v2023, %v2849
      %v3164 = vsel %vm1913, %v2031, %v2853
      %v3165 = vsel %vm1913, %v2033, %v2857
      %v3166 = vsel %vm1913, %v2016, %v2861
      %v3167 = vsel %vm1913, %v2030, %v2865
      %v3168 = vsel %vm1913, %v2032, %v2869
      %v3169 = vsel %vm1913, %v2034, %v2873
      %v3170 = vsel %vm1913, %v2058, %v2877
      %v3171 = vsel %vm1913, %v2072, %v2881
      %v3172 = vsel %vm1913, %v2080, %v2885
      %v3173 = vsel %vm1913, %v2082, %v2889
      %v3174 = vsel %vm1913, %v2065, %v2893
      %v3175 = vsel %vm1913, %v2079, %v2897
      %v3176 = vsel %vm1913, %v2081, %v2901
      %v3177 = vsel %vm1913, %v2083, %v2905
      %v3178 = vsel %vm1913, %v2107, %v2909
      %v3179 = vsel %vm1913, %v2121, %v2913
      %v3180 = vsel %vm1913, %v2129, %v2917
      %v3181 = vsel %vm1913, %v2131, %v2921
      %v3182 = vsel %vm1913, %v2114, %v2925
      %v3183 = vsel %vm1913, %v2128, %v2929
      %v3184 = vsel %vm1913, %v2130, %v2933
      %v3185 = vsel %vm1913, %v2132, %v2937
      %v3186 = vsel %vm1913, %v2156, %v2941
      %v3187 = vsel %vm1913, %v2170, %v2945
      %v3188 = vsel %vm1913, %v2178, %v2949
      %v3189 = vsel %vm1913, %v2180, %v2953
      %v3190 = vsel %vm1913, %v2163, %v2957
      %v3191 = vsel %vm1913, %v2177, %v2961
      %v3192 = vsel %vm1913, %v2179, %v2965
      %v3193 = vsel %vm1913, %v2181, %v2969
      %v3194 = vsel %vm1913, %v2205, %v2973
      %v3195 = vsel %vm1913, %v2219, %v2977
      %v3196 = vsel %vm1913, %v2227, %v2981
      %v3197 = vsel %vm1913, %v2229, %v2985
      %v3198 = vsel %vm1913, %v2212, %v2989
      %v3199 = vsel %vm1913, %v2226, %v2993
      %v3200 = vsel %vm1913, %v2228, %v2997
      %v3201 = vsel %vm1913, %v2230, %v3001
      %v3202 = vsel %vm1913, %v2254, %v3005
      %v3203 = vsel %vm1913, %v2268, %v3009
      %v3204 = vsel %vm1913, %v2276, %v3013
      %v3205 = vsel %vm1913, %v2278, %v3017
      %v3206 = vsel %vm1913, %v2261, %v3021
      %v3207 = vsel %vm1913, %v2275, %v3025
      %v3208 = vsel %vm1913, %v2277, %v3029
      %v3209 = vsel %vm1913, %v2279, %v3033
      %v3210 = vsel %vm1913, %v2303, %v3037
      %v3211 = vsel %vm1913, %v2317, %v3041
      %v3212 = vsel %vm1913, %v2325, %v3045
      %v3213 = vsel %vm1913, %v2327, %v3049
      %v3214 = vsel %vm1913, %v2310, %v3053
      %v3215 = vsel %vm1913, %v2324, %v3057
      %v3216 = vsel %vm1913, %v2326, %v3061
      %v3217 = vsel %vm1913, %v2328, %v3065
      %v3218 = vsel %vm1913, %v2352, %v3069
      %v3219 = vsel %vm1913, %v2366, %v3073
      %v3220 = vsel %vm1913, %v2374, %v3077
      %v3221 = vsel %vm1913, %v2376, %v3081
      %v3222 = vsel %vm1913, %v2359, %v3085
      %v3223 = vsel %vm1913, %v2373, %v3089
      %v3224 = vsel %vm1913, %v2375, %v3093
      %v3225 = vsel %vm1913, %v2377, %v3097
      %v3226 = vld [vmem:[%s347] sm:$0xf]
      %v3227 = vld [vmem:[%s347 + $0x4] sm:$0xf]
      %v3228 = vld [vmem:[%s347 + $0x8] sm:$0xf]
      %v3229 = vld [vmem:[%s347 + $0xc] sm:$0xf]
      %v3230 = vld [vmem:[%s347 + $0x10] sm:$0xf]
      %v3231 = vld [vmem:[%s347 + $0x14] sm:$0xf]
      %v3232 = vld [vmem:[%s347 + $0x18] sm:$0xf]
      %v3233 = vld [vmem:[%s347 + $0x1c] sm:$0xf]
      %v3234 = vld [vmem:[%s347 + $0x20] sm:$0xf]
      %v3235 = vld [vmem:[%s347 + $0x24] sm:$0xf]
      %v3236 = vld [vmem:[%s347 + $0x28] sm:$0xf]
      %v3237 = vld [vmem:[%s347 + $0x2c] sm:$0xf]
      %v3238 = vld [vmem:[%s347 + $0x30] sm:$0xf]
      %v3239 = vld [vmem:[%s347 + $0x34] sm:$0xf]
      %v3240 = vld [vmem:[%s347 + $0x38] sm:$0xf]
      %v3241 = vld [vmem:[%s347 + $0x3c] sm:$0xf]
      %v3242 = vld [vmem:[%s347 + $0x40] sm:$0xf]
      %v3243 = vld [vmem:[%s347 + $0x44] sm:$0xf]
      %v3244 = vld [vmem:[%s347 + $0x48] sm:$0xf]
      %v3245 = vld [vmem:[%s347 + $0x4c] sm:$0xf]
      %v3246 = vld [vmem:[%s347 + $0x50] sm:$0xf]
      %v3247 = vld [vmem:[%s347 + $0x54] sm:$0xf]
      %v3248 = vld [vmem:[%s347 + $0x58] sm:$0xf]
      %v3249 = vld [vmem:[%s347 + $0x5c] sm:$0xf]
      %v3250 = vld [vmem:[%s347 + $0x60] sm:$0xf]
      %v3251 = vld [vmem:[%s347 + $0x64] sm:$0xf]
      %v3252 = vld [vmem:[%s347 + $0x68] sm:$0xf]
      %v3253 = vld [vmem:[%s347 + $0x6c] sm:$0xf]
      %v3254 = vld [vmem:[%s347 + $0x70] sm:$0xf]
      %v3255 = vld [vmem:[%s347 + $0x74] sm:$0xf]
      %v3256 = vld [vmem:[%s347 + $0x78] sm:$0xf]
      %v3257 = vld [vmem:[%s347 + $0x7c] sm:$0xf]
      %v3386 = vcombine.low %v1914, %v1915
      %v3387 = vcombine.low %v1916, %v1917
      %v3389 = vunpack.c.l.s4 1983009808
      %v3390 = vunpack.c.0.s8 %v3389
      %v3391 = vlaneseq
      %v3392 = vshrl.u32 %v3391, 7
      %v3393 = vsub.s32 %v3390, %v3392
      %v3394 = vrot.slane %v3386, %v3393
      %v3396 = vunpack.c.l.s4 1983009808
      %v3397 = vunpack.c.0.s8 %v3396
      %v3398 = vlaneseq
      %v3399 = vshrl.u32 %v3398, 7
      %v3400 = vsub.s32 %v3397, %v3399
      %v3401 = vrot.slane %v3387, %v3400
      %v3402 = vcombine.low %v3394, %v3401
      %v3403 = vcombine.low %v1918, %v1919
      %v3404 = vcombine.low %v1920, %v1921
      %v3406 = vunpack.c.l.s4 1983009808
      %v3407 = vunpack.c.0.s8 %v3406
      %v3408 = vlaneseq
      %v3409 = vshrl.u32 %v3408, 7
      %v3410 = vsub.s32 %v3407, %v3409
      %v3411 = vrot.slane %v3403, %v3410
      %v3413 = vunpack.c.l.s4 1983009808
      %v3414 = vunpack.c.0.s8 %v3413
      %v3415 = vlaneseq
      %v3416 = vshrl.u32 %v3415, 7
      %v3417 = vsub.s32 %v3414, %v3416
      %v3418 = vrot.slane %v3404, %v3417
      %v3419 = vcombine.low %v3411, %v3418
      %v3420 = vcombine.low %v3162, %v3163
      %v3421 = vcombine.low %v3164, %v3165
      %v3423 = vunpack.c.l.s4 1983009808
      %v3424 = vunpack.c.0.s8 %v3423
      %v3425 = vlaneseq
      %v3426 = vshrl.u32 %v3425, 7
      %v3427 = vsub.s32 %v3424, %v3426
      %v3428 = vrot.slane %v3420, %v3427
      %v3430 = vunpack.c.l.s4 1983009808
      %v3431 = vunpack.c.0.s8 %v3430
      %v3432 = vlaneseq
      %v3433 = vshrl.u32 %v3432, 7
      %v3434 = vsub.s32 %v3431, %v3433
      %v3435 = vrot.slane %v3421, %v3434
      %v3436 = vcombine.low %v3428, %v3435
      %v3437 = vcombine.low %v3166, %v3167
      %v3438 = vcombine.low %v3168, %v3169
      %v3440 = vunpack.c.l.s4 1983009808
      %v3441 = vunpack.c.0.s8 %v3440
      %v3442 = vlaneseq
      %v3443 = vshrl.u32 %v3442, 7
      %v3444 = vsub.s32 %v3441, %v3443
      %v3445 = vrot.slane %v3437, %v3444
      %v3447 = vunpack.c.l.s4 1983009808
      %v3448 = vunpack.c.0.s8 %v3447
      %v3449 = vlaneseq
      %v3450 = vshrl.u32 %v3449, 7
      %v3451 = vsub.s32 %v3448, %v3450
      %v3452 = vrot.slane %v3438, %v3451
      %v3453 = vcombine.low %v3445, %v3452
      %v3454 = vcombine.low %v1922, %v1923
      %v3455 = vcombine.low %v1924, %v1925
      %v3457 = vunpack.c.l.s4 1983009808
      %v3458 = vunpack.c.0.s8 %v3457
      %v3459 = vlaneseq
      %v3460 = vshrl.u32 %v3459, 7
      %v3461 = vsub.s32 %v3458, %v3460
      %v3462 = vrot.slane %v3454, %v3461
      %v3464 = vunpack.c.l.s4 1983009808
      %v3465 = vunpack.c.0.s8 %v3464
      %v3466 = vlaneseq
      %v3467 = vshrl.u32 %v3466, 7
      %v3468 = vsub.s32 %v3465, %v3467
      %v3469 = vrot.slane %v3455, %v3468
      %v3470 = vcombine.low %v3462, %v3469
      %v3471 = vcombine.low %v1926, %v1927
      %v3472 = vcombine.low %v1928, %v1929
      %v3474 = vunpack.c.l.s4 1983009808
      %v3475 = vunpack.c.0.s8 %v3474
      %v3476 = vlaneseq
      %v3477 = vshrl.u32 %v3476, 7
      %v3478 = vsub.s32 %v3475, %v3477
      %v3479 = vrot.slane %v3471, %v3478
      %v3481 = vunpack.c.l.s4 1983009808
      %v3482 = vunpack.c.0.s8 %v3481
      %v3483 = vlaneseq
      %v3484 = vshrl.u32 %v3483, 7
      %v3485 = vsub.s32 %v3482, %v3484
      %v3486 = vrot.slane %v3472, %v3485
      %v3487 = vcombine.low %v3479, %v3486
      %v3488 = vcombine.low %v3170, %v3171
      %v3489 = vcombine.low %v3172, %v3173
      %v3491 = vunpack.c.l.s4 1983009808
      %v3492 = vunpack.c.0.s8 %v3491
      %v3493 = vlaneseq
      %v3494 = vshrl.u32 %v3493, 7
      %v3495 = vsub.s32 %v3492, %v3494
      %v3496 = vrot.slane %v3488, %v3495
      %v3498 = vunpack.c.l.s4 1983009808
      %v3499 = vunpack.c.0.s8 %v3498
      %v3500 = vlaneseq
      %v3501 = vshrl.u32 %v3500, 7
      %v3502 = vsub.s32 %v3499, %v3501
      %v3503 = vrot.slane %v3489, %v3502
      %v3504 = vcombine.low %v3496, %v3503
      %v3505 = vcombine.low %v3174, %v3175
      %v3506 = vcombine.low %v3176, %v3177
      %v3508 = vunpack.c.l.s4 1983009808
      %v3509 = vunpack.c.0.s8 %v3508
      %v3510 = vlaneseq
      %v3511 = vshrl.u32 %v3510, 7
      %v3512 = vsub.s32 %v3509, %v3511
      %v3513 = vrot.slane %v3505, %v3512
      %v3515 = vunpack.c.l.s4 1983009808
      %v3516 = vunpack.c.0.s8 %v3515
      %v3517 = vlaneseq
      %v3518 = vshrl.u32 %v3517, 7
      %v3519 = vsub.s32 %v3516, %v3518
      %v3520 = vrot.slane %v3506, %v3519
      %v3521 = vcombine.low %v3513, %v3520
      %v3522 = vcombine.low %v1930, %v1931
      %v3523 = vcombine.low %v1932, %v1933
      %v3525 = vunpack.c.l.s4 1983009808
      %v3526 = vunpack.c.0.s8 %v3525
      %v3527 = vlaneseq
      %v3528 = vshrl.u32 %v3527, 7
      %v3529 = vsub.s32 %v3526, %v3528
      %v3530 = vrot.slane %v3522, %v3529
      %v3532 = vunpack.c.l.s4 1983009808
      %v3533 = vunpack.c.0.s8 %v3532
      %v3534 = vlaneseq
      %v3535 = vshrl.u32 %v3534, 7
      %v3536 = vsub.s32 %v3533, %v3535
      %v3537 = vrot.slane %v3523, %v3536
      %v3538 = vcombine.low %v3530, %v3537
      %v3539 = vcombine.low %v1934, %v1935
      %v3540 = vcombine.low %v1936, %v1937
      %v3542 = vunpack.c.l.s4 1983009808
      %v3543 = vunpack.c.0.s8 %v3542
      %v3544 = vlaneseq
      %v3545 = vshrl.u32 %v3544, 7
      %v3546 = vsub.s32 %v3543, %v3545
      %v3547 = vrot.slane %v3539, %v3546
      %v3549 = vunpack.c.l.s4 1983009808
      %v3550 = vunpack.c.0.s8 %v3549
      %v3551 = vlaneseq
      %v3552 = vshrl.u32 %v3551, 7
      %v3553 = vsub.s32 %v3550, %v3552
      %v3554 = vrot.slane %v3540, %v3553
      %v3555 = vcombine.low %v3547, %v3554
      %v3556 = vcombine.low %v3178, %v3179
      %v3557 = vcombine.low %v3180, %v3181
      %v3559 = vunpack.c.l.s4 1983009808
      %v3560 = vunpack.c.0.s8 %v3559
      %v3561 = vlaneseq
      %v3562 = vshrl.u32 %v3561, 7
      %v3563 = vsub.s32 %v3560, %v3562
      %v3564 = vrot.slane %v3556, %v3563
      %v3566 = vunpack.c.l.s4 1983009808
      %v3567 = vunpack.c.0.s8 %v3566
      %v3568 = vlaneseq
      %v3569 = vshrl.u32 %v3568, 7
      %v3570 = vsub.s32 %v3567, %v3569
      %v3571 = vrot.slane %v3557, %v3570
      %v3572 = vcombine.low %v3564, %v3571
      %v3573 = vcombine.low %v3182, %v3183
      %v3574 = vcombine.low %v3184, %v3185
      %v3576 = vunpack.c.l.s4 1983009808
      %v3577 = vunpack.c.0.s8 %v3576
      %v3578 = vlaneseq
      %v3579 = vshrl.u32 %v3578, 7
      %v3580 = vsub.s32 %v3577, %v3579
      %v3581 = vrot.slane %v3573, %v3580
      %v3583 = vunpack.c.l.s4 1983009808
      %v3584 = vunpack.c.0.s8 %v3583
      %v3585 = vlaneseq
      %v3586 = vshrl.u32 %v3585, 7
      %v3587 = vsub.s32 %v3584, %v3586
      %v3588 = vrot.slane %v3574, %v3587
      %v3589 = vcombine.low %v3581, %v3588
      %v3590 = vcombine.low %v1938, %v1939
      %v3591 = vcombine.low %v1940, %v1941
      %v3593 = vunpack.c.l.s4 1983009808
      %v3594 = vunpack.c.0.s8 %v3593
      %v3595 = vlaneseq
      %v3596 = vshrl.u32 %v3595, 7
      %v3597 = vsub.s32 %v3594, %v3596
      %v3598 = vrot.slane %v3590, %v3597
      %v3600 = vunpack.c.l.s4 1983009808
      %v3601 = vunpack.c.0.s8 %v3600
      %v3602 = vlaneseq
      %v3603 = vshrl.u32 %v3602, 7
      %v3604 = vsub.s32 %v3601, %v3603
      %v3605 = vrot.slane %v3591, %v3604
      %v3606 = vcombine.low %v3598, %v3605
      %v3607 = vcombine.low %v1942, %v1943
      %v3608 = vcombine.low %v1944, %v1945
      %v3610 = vunpack.c.l.s4 1983009808
      %v3611 = vunpack.c.0.s8 %v3610
      %v3612 = vlaneseq
      %v3613 = vshrl.u32 %v3612, 7
      %v3614 = vsub.s32 %v3611, %v3613
      %v3615 = vrot.slane %v3607, %v3614
      %v3617 = vunpack.c.l.s4 1983009808
      %v3618 = vunpack.c.0.s8 %v3617
      %v3619 = vlaneseq
      %v3620 = vshrl.u32 %v3619, 7
      %v3621 = vsub.s32 %v3618, %v3620
      %v3622 = vrot.slane %v3608, %v3621
      %v3623 = vcombine.low %v3615, %v3622
      %v3624 = vcombine.low %v3186, %v3187
      %v3625 = vcombine.low %v3188, %v3189
      %v3627 = vunpack.c.l.s4 1983009808
      %v3628 = vunpack.c.0.s8 %v3627
      %v3629 = vlaneseq
      %v3630 = vshrl.u32 %v3629, 7
      %v3631 = vsub.s32 %v3628, %v3630
      %v3632 = vrot.slane %v3624, %v3631
      %v3634 = vunpack.c.l.s4 1983009808
      %v3635 = vunpack.c.0.s8 %v3634
      %v3636 = vlaneseq
      %v3637 = vshrl.u32 %v3636, 7
      %v3638 = vsub.s32 %v3635, %v3637
      %v3639 = vrot.slane %v3625, %v3638
      %v3640 = vcombine.low %v3632, %v3639
      %v3641 = vcombine.low %v3190, %v3191
      %v3642 = vcombine.low %v3192, %v3193
      %v3644 = vunpack.c.l.s4 1983009808
      %v3645 = vunpack.c.0.s8 %v3644
      %v3646 = vlaneseq
      %v3647 = vshrl.u32 %v3646, 7
      %v3648 = vsub.s32 %v3645, %v3647
      %v3649 = vrot.slane %v3641, %v3648
      %v3651 = vunpack.c.l.s4 1983009808
      %v3652 = vunpack.c.0.s8 %v3651
      %v3653 = vlaneseq
      %v3654 = vshrl.u32 %v3653, 7
      %v3655 = vsub.s32 %v3652, %v3654
      %v3656 = vrot.slane %v3642, %v3655
      %v3657 = vcombine.low %v3649, %v3656
      %v3658 = vcombine.low %v1946, %v1947
      %v3659 = vcombine.low %v1948, %v1949
      %v3661 = vunpack.c.l.s4 1983009808
      %v3662 = vunpack.c.0.s8 %v3661
      %v3663 = vlaneseq
      %v3664 = vshrl.u32 %v3663, 7
      %v3665 = vsub.s32 %v3662, %v3664
      %v3666 = vrot.slane %v3658, %v3665
      %v3668 = vunpack.c.l.s4 1983009808
      %v3669 = vunpack.c.0.s8 %v3668
      %v3670 = vlaneseq
      %v3671 = vshrl.u32 %v3670, 7
      %v3672 = vsub.s32 %v3669, %v3671
      %v3673 = vrot.slane %v3659, %v3672
      %v3674 = vcombine.low %v3666, %v3673
      %v3675 = vcombine.low %v1950, %v1951
      %v3676 = vcombine.low %v1952, %v1953
      %v3678 = vunpack.c.l.s4 1983009808
      %v3679 = vunpack.c.0.s8 %v3678
      %v3680 = vlaneseq
      %v3681 = vshrl.u32 %v3680, 7
      %v3682 = vsub.s32 %v3679, %v3681
      %v3683 = vrot.slane %v3675, %v3682
      %v3685 = vunpack.c.l.s4 1983009808
      %v3686 = vunpack.c.0.s8 %v3685
      %v3687 = vlaneseq
      %v3688 = vshrl.u32 %v3687, 7
      %v3689 = vsub.s32 %v3686, %v3688
      %v3690 = vrot.slane %v3676, %v3689
      %v3691 = vcombine.low %v3683, %v3690
      %v3692 = vcombine.low %v3194, %v3195
      %v3693 = vcombine.low %v3196, %v3197
      %v3695 = vunpack.c.l.s4 1983009808
      %v3696 = vunpack.c.0.s8 %v3695
      %v3697 = vlaneseq
      %v3698 = vshrl.u32 %v3697, 7
      %v3699 = vsub.s32 %v3696, %v3698
      %v3700 = vrot.slane %v3692, %v3699
      %v3702 = vunpack.c.l.s4 1983009808
      %v3703 = vunpack.c.0.s8 %v3702
      %v3704 = vlaneseq
      %v3705 = vshrl.u32 %v3704, 7
      %v3706 = vsub.s32 %v3703, %v3705
      %v3707 = vrot.slane %v3693, %v3706
      %v3708 = vcombine.low %v3700, %v3707
      %v3709 = vcombine.low %v3198, %v3199
      %v3710 = vcombine.low %v3200, %v3201
      %v3712 = vunpack.c.l.s4 1983009808
      %v3713 = vunpack.c.0.s8 %v3712
      %v3714 = vlaneseq
      %v3715 = vshrl.u32 %v3714, 7
      %v3716 = vsub.s32 %v3713, %v3715
      %v3717 = vrot.slane %v3709, %v3716
      %v3719 = vunpack.c.l.s4 1983009808
      %v3720 = vunpack.c.0.s8 %v3719
      %v3721 = vlaneseq
      %v3722 = vshrl.u32 %v3721, 7
      %v3723 = vsub.s32 %v3720, %v3722
      %v3724 = vrot.slane %v3710, %v3723
      %v3725 = vcombine.low %v3717, %v3724
      %v3726 = vcombine.low %v1954, %v1955
      %v3727 = vcombine.low %v1956, %v1957
      %v3729 = vunpack.c.l.s4 1983009808
      %v3730 = vunpack.c.0.s8 %v3729
      %v3731 = vlaneseq
      %v3732 = vshrl.u32 %v3731, 7
      %v3733 = vsub.s32 %v3730, %v3732
      %v3734 = vrot.slane %v3726, %v3733
      %v3736 = vunpack.c.l.s4 1983009808
      %v3737 = vunpack.c.0.s8 %v3736
      %v3738 = vlaneseq
      %v3739 = vshrl.u32 %v3738, 7
      %v3740 = vsub.s32 %v3737, %v3739
      %v3741 = vrot.slane %v3727, %v3740
      %v3742 = vcombine.low %v3734, %v3741
      %v3743 = vcombine.low %v1958, %v1959
      %v3744 = vcombine.low %v1960, %v1961
      %v3746 = vunpack.c.l.s4 1983009808
      %v3747 = vunpack.c.0.s8 %v3746
      %v3748 = vlaneseq
      %v3749 = vshrl.u32 %v3748, 7
      %v3750 = vsub.s32 %v3747, %v3749
      %v3751 = vrot.slane %v3743, %v3750
      %v3753 = vunpack.c.l.s4 1983009808
      %v3754 = vunpack.c.0.s8 %v3753
      %v3755 = vlaneseq
      %v3756 = vshrl.u32 %v3755, 7
      %v3757 = vsub.s32 %v3754, %v3756
      %v3758 = vrot.slane %v3744, %v3757
      %v3759 = vcombine.low %v3751, %v3758
      %v3760 = vcombine.low %v3202, %v3203
      %v3761 = vcombine.low %v3204, %v3205
      %v3763 = vunpack.c.l.s4 1983009808
      %v3764 = vunpack.c.0.s8 %v3763
      %v3765 = vlaneseq
      %v3766 = vshrl.u32 %v3765, 7
      %v3767 = vsub.s32 %v3764, %v3766
      %v3768 = vrot.slane %v3760, %v3767
      %v3770 = vunpack.c.l.s4 1983009808
      %v3771 = vunpack.c.0.s8 %v3770
      %v3772 = vlaneseq
      %v3773 = vshrl.u32 %v3772, 7
      %v3774 = vsub.s32 %v3771, %v3773
      %v3775 = vrot.slane %v3761, %v3774
      %v3776 = vcombine.low %v3768, %v3775
      %v3777 = vcombine.low %v3206, %v3207
      %v3778 = vcombine.low %v3208, %v3209
      %v3780 = vunpack.c.l.s4 1983009808
      %v3781 = vunpack.c.0.s8 %v3780
      %v3782 = vlaneseq
      %v3783 = vshrl.u32 %v3782, 7
      %v3784 = vsub.s32 %v3781, %v3783
      %v3785 = vrot.slane %v3777, %v3784
      %v3787 = vunpack.c.l.s4 1983009808
      %v3788 = vunpack.c.0.s8 %v3787
      %v3789 = vlaneseq
      %v3790 = vshrl.u32 %v3789, 7
      %v3791 = vsub.s32 %v3788, %v3790
      %v3792 = vrot.slane %v3778, %v3791
      %v3793 = vcombine.low %v3785, %v3792
      %v3794 = vcombine.low %v1962, %v1963
      %v3795 = vcombine.low %v1964, %v1965
      %v3797 = vunpack.c.l.s4 1983009808
      %v3798 = vunpack.c.0.s8 %v3797
      %v3799 = vlaneseq
      %v3800 = vshrl.u32 %v3799, 7
      %v3801 = vsub.s32 %v3798, %v3800
      %v3802 = vrot.slane %v3794, %v3801
      %v3804 = vunpack.c.l.s4 1983009808
      %v3805 = vunpack.c.0.s8 %v3804
      %v3806 = vlaneseq
      %v3807 = vshrl.u32 %v3806, 7
      %v3808 = vsub.s32 %v3805, %v3807
      %v3809 = vrot.slane %v3795, %v3808
      %v3810 = vcombine.low %v3802, %v3809
      %v3811 = vcombine.low %v1966, %v1967
      %v3812 = vcombine.low %v1968, %v1969
      %v3814 = vunpack.c.l.s4 1983009808
      %v3815 = vunpack.c.0.s8 %v3814
      %v3816 = vlaneseq
      %v3817 = vshrl.u32 %v3816, 7
      %v3818 = vsub.s32 %v3815, %v3817
      %v3819 = vrot.slane %v3811, %v3818
      %v3821 = vunpack.c.l.s4 1983009808
      %v3822 = vunpack.c.0.s8 %v3821
      %v3823 = vlaneseq
      %v3824 = vshrl.u32 %v3823, 7
      %v3825 = vsub.s32 %v3822, %v3824
      %v3826 = vrot.slane %v3812, %v3825
      %v3827 = vcombine.low %v3819, %v3826
      %v3828 = vcombine.low %v3210, %v3211
      %v3829 = vcombine.low %v3212, %v3213
      %v3831 = vunpack.c.l.s4 1983009808
      %v3832 = vunpack.c.0.s8 %v3831
      %v3833 = vlaneseq
      %v3834 = vshrl.u32 %v3833, 7
      %v3835 = vsub.s32 %v3832, %v3834
      %v3836 = vrot.slane %v3828, %v3835
      %v3838 = vunpack.c.l.s4 1983009808
      %v3839 = vunpack.c.0.s8 %v3838
      %v3840 = vlaneseq
      %v3841 = vshrl.u32 %v3840, 7
      %v3842 = vsub.s32 %v3839, %v3841
      %v3843 = vrot.slane %v3829, %v3842
      %v3844 = vcombine.low %v3836, %v3843
      %v3845 = vcombine.low %v3214, %v3215
      %v3846 = vcombine.low %v3216, %v3217
      %v3848 = vunpack.c.l.s4 1983009808
      %v3849 = vunpack.c.0.s8 %v3848
      %v3850 = vlaneseq
      %v3851 = vshrl.u32 %v3850, 7
      %v3852 = vsub.s32 %v3849, %v3851
      %v3853 = vrot.slane %v3845, %v3852
      %v3855 = vunpack.c.l.s4 1983009808
      %v3856 = vunpack.c.0.s8 %v3855
      %v3857 = vlaneseq
      %v3858 = vshrl.u32 %v3857, 7
      %v3859 = vsub.s32 %v3856, %v3858
      %v3860 = vrot.slane %v3846, %v3859
      %v3861 = vcombine.low %v3853, %v3860
      %v3862 = vcombine.low %v1970, %v1971
      %v3863 = vcombine.low %v1972, %v1973
      %v3865 = vunpack.c.l.s4 1983009808
      %v3866 = vunpack.c.0.s8 %v3865
      %v3867 = vlaneseq
      %v3868 = vshrl.u32 %v3867, 7
      %v3869 = vsub.s32 %v3866, %v3868
      %v3870 = vrot.slane %v3862, %v3869
      %v3872 = vunpack.c.l.s4 1983009808
      %v3873 = vunpack.c.0.s8 %v3872
      %v3874 = vlaneseq
      %v3875 = vshrl.u32 %v3874, 7
      %v3876 = vsub.s32 %v3873, %v3875
      %v3877 = vrot.slane %v3863, %v3876
      %v3878 = vcombine.low %v3870, %v3877
      %v3879 = vcombine.low %v1974, %v1975
      %v3880 = vcombine.low %v1976, %v1977
      %v3882 = vunpack.c.l.s4 1983009808
      %v3883 = vunpack.c.0.s8 %v3882
      %v3884 = vlaneseq
      %v3885 = vshrl.u32 %v3884, 7
      %v3886 = vsub.s32 %v3883, %v3885
      %v3887 = vrot.slane %v3879, %v3886
      %v3889 = vunpack.c.l.s4 1983009808
      %v3890 = vunpack.c.0.s8 %v3889
      %v3891 = vlaneseq
      %v3892 = vshrl.u32 %v3891, 7
      %v3893 = vsub.s32 %v3890, %v3892
      %v3894 = vrot.slane %v3880, %v3893
      %v3895 = vcombine.low %v3887, %v3894
      %v3896 = vcombine.low %v3218, %v3219
      %v3897 = vcombine.low %v3220, %v3221
      %v3899 = vunpack.c.l.s4 1983009808
      %v3900 = vunpack.c.0.s8 %v3899
      %v3901 = vlaneseq
      %v3902 = vshrl.u32 %v3901, 7
      %v3903 = vsub.s32 %v3900, %v3902
      %v3904 = vrot.slane %v3896, %v3903
      %v3906 = vunpack.c.l.s4 1983009808
      %v3907 = vunpack.c.0.s8 %v3906
      %v3908 = vlaneseq
      %v3909 = vshrl.u32 %v3908, 7
      %v3910 = vsub.s32 %v3907, %v3909
      %v3911 = vrot.slane %v3897, %v3910
      %v3912 = vcombine.low %v3904, %v3911
      %v3913 = vcombine.low %v3222, %v3223
      %v3914 = vcombine.low %v3224, %v3225
      %v3916 = vunpack.c.l.s4 1983009808
      %v3917 = vunpack.c.0.s8 %v3916
      %v3918 = vlaneseq
      %v3919 = vshrl.u32 %v3918, 7
      %v3920 = vsub.s32 %v3917, %v3919
      %v3921 = vrot.slane %v3913, %v3920
      %v3923 = vunpack.c.l.s4 1983009808
      %v3924 = vunpack.c.0.s8 %v3923
      %v3925 = vlaneseq
      %v3926 = vshrl.u32 %v3925, 7
      %v3927 = vsub.s32 %v3924, %v3926
      %v3928 = vrot.slane %v3914, %v3927
      %v3929 = vcombine.low %v3921, %v3928
      %v3931 = vrot.slane 0.0, 7
      %v3932 = vsel %vm1913, %v3931, %v3931
      %v3933 = vrot.slane %v3402, 7
      %v3934 = vrot.slane %v3419, 7
      %v3935 = vsel %vm1913, %v3933, %v3934
      %v3936 = vrot.slane %v3436, 7
      %v3937 = vrot.slane %v3453, 7
      %v3938 = vsel %vm1913, %v3936, %v3937
      %v3939 = vrot.slane %v3470, 7
      %v3940 = vrot.slane %v3487, 7
      %v3941 = vsel %vm1913, %v3939, %v3940
      %v3942 = vrot.slane %v3504, 7
      %v3943 = vrot.slane %v3521, 7
      %v3944 = vsel %vm1913, %v3942, %v3943
      %v3945 = vrot.slane %v3538, 7
      %v3946 = vrot.slane %v3555, 7
      %v3947 = vsel %vm1913, %v3945, %v3946
      %v3948 = vrot.slane %v3572, 7
      %v3949 = vrot.slane %v3589, 7
      %v3950 = vsel %vm1913, %v3948, %v3949
      %v3951 = vrot.slane %v3606, 7
      %v3952 = vrot.slane %v3623, 7
      %v3953 = vsel %vm1913, %v3951, %v3952
      %v3954 = vrot.slane %v3640, 7
      %v3955 = vrot.slane %v3657, 7
      %v3956 = vsel %vm1913, %v3954, %v3955
      %v3957 = vrot.slane %v3674, 7
      %v3958 = vrot.slane %v3691, 7
      %v3959 = vsel %vm1913, %v3957, %v3958
      %v3960 = vrot.slane %v3708, 7
      %v3961 = vrot.slane %v3725, 7
      %v3962 = vsel %vm1913, %v3960, %v3961
      %v3963 = vrot.slane %v3742, 7
      %v3964 = vrot.slane %v3759, 7
      %v3965 = vsel %vm1913, %v3963, %v3964
      %v3966 = vrot.slane %v3776, 7
      %v3967 = vrot.slane %v3793, 7
      %v3968 = vsel %vm1913, %v3966, %v3967
      %v3969 = vrot.slane %v3810, 7
      %v3970 = vrot.slane %v3827, 7
      %v3971 = vsel %vm1913, %v3969, %v3970
      %v3972 = vrot.slane %v3844, 7
      %v3973 = vrot.slane %v3861, 7
      %v3974 = vsel %vm1913, %v3972, %v3973
      %v3975 = vrot.slane %v3878, 7
      %v3976 = vrot.slane %v3895, 7
      %v3977 = vsel %vm1913, %v3975, %v3976
      %v3978 = vrot.slane %v3912, 7
      %v3979 = vrot.slane %v3929, 7
      %v3980 = vsel %vm1913, %v3978, %v3979
      %v4031 = vsel %vm1913, 0.0, %v3931
      %v4032 = vsel %vm1913, 0.0, %v3933
      %v4033 = vsel %vm1913, 0.0, %v3936
      %v4034 = vsel %vm1913, 0.0, %v3939
      %v4035 = vsel %vm1913, 0.0, %v3942
      %v4036 = vsel %vm1913, 0.0, %v3945
      %v4037 = vsel %vm1913, 0.0, %v3948
      %v4038 = vsel %vm1913, 0.0, %v3951
      %v4039 = vsel %vm1913, 0.0, %v3954
      %v4040 = vsel %vm1913, 0.0, %v3957
      %v4041 = vsel %vm1913, 0.0, %v3960
      %v4042 = vsel %vm1913, 0.0, %v3963
      %v4043 = vsel %vm1913, 0.0, %v3966
      %v4044 = vsel %vm1913, 0.0, %v3969
      %v4045 = vsel %vm1913, 0.0, %v3972
      %v4046 = vsel %vm1913, 0.0, %v3975
      %v4047 = vsel %vm1913, 0.0, %v3978
      %v4048 = vsel %vm1913, %v3931, 0.0
      %v4049 = vsel %vm1913, %v3934, 0.0
      %v4050 = vsel %vm1913, %v3937, 0.0
      %v4051 = vsel %vm1913, %v3940, 0.0
      %v4052 = vsel %vm1913, %v3943, 0.0
      %v4053 = vsel %vm1913, %v3946, 0.0
      %v4054 = vsel %vm1913, %v3949, 0.0
      %v4055 = vsel %vm1913, %v3952, 0.0
      %v4056 = vsel %vm1913, %v3955, 0.0
      %v4057 = vsel %vm1913, %v3958, 0.0
      %v4058 = vsel %vm1913, %v3961, 0.0
      %v4059 = vsel %vm1913, %v3964, 0.0
      %v4060 = vsel %vm1913, %v3967, 0.0
      %v4061 = vsel %vm1913, %v3970, 0.0
      %v4062 = vsel %vm1913, %v3973, 0.0
      %v4063 = vsel %vm1913, %v3976, 0.0
      %v4064 = vsel %vm1913, %v3979, 0.0
      %v4065 = vpack.c.bf16 %v3932, %v4031
      %v4066 = vpack.c.bf16 %v4048, %v4048
      %v4067 = vpack.c.bf16 %v3935, %v4032
      %v4068 = vpack.c.bf16 %v4049, %v4049
      %v4069 = vpack.c.bf16 %v3938, %v4033
      %v4070 = vpack.c.bf16 %v4050, %v4050
      %v4071 = vpack.c.bf16 %v3941, %v4034
      %v4072 = vpack.c.bf16 %v4051, %v4051
      %v4073 = vpack.c.bf16 %v3944, %v4035
      %v4074 = vpack.c.bf16 %v4052, %v4052
      %v4075 = vpack.c.bf16 %v3947, %v4036
      %v4076 = vpack.c.bf16 %v4053, %v4053
      %v4077 = vpack.c.bf16 %v3950, %v4037
      %v4078 = vpack.c.bf16 %v4054, %v4054
      %v4079 = vpack.c.bf16 %v3953, %v4038
      %v4080 = vpack.c.bf16 %v4055, %v4055
      %v4081 = vpack.c.bf16 %v3956, %v4039
      %v4082 = vpack.c.bf16 %v4056, %v4056
      %v4083 = vpack.c.bf16 %v3959, %v4040
      %v4084 = vpack.c.bf16 %v4057, %v4057
      %v4085 = vpack.c.bf16 %v3962, %v4041
      %v4086 = vpack.c.bf16 %v4058, %v4058
      %v4087 = vpack.c.bf16 %v3965, %v4042
      %v4088 = vpack.c.bf16 %v4059, %v4059
      %v4089 = vpack.c.bf16 %v3968, %v4043
      %v4090 = vpack.c.bf16 %v4060, %v4060
      %v4091 = vpack.c.bf16 %v3971, %v4044
      %v4092 = vpack.c.bf16 %v4061, %v4061
      %v4093 = vpack.c.bf16 %v3974, %v4045
      %v4094 = vpack.c.bf16 %v4062, %v4062
      %v4095 = vpack.c.bf16 %v3977, %v4046
      %v4096 = vpack.c.bf16 %v4063, %v4063
      %v4097 = vpack.c.bf16 %v3980, %v4047
      %v4098 = vpack.c.bf16 %v4064, %v4064
      %v4099 = vld [vmem:[%s3] sm:$0xf]
      %v4100 = vld [vmem:[%s3 + $0x4] sm:$0xf]
      %vm4101 = vsmask.f32 7424
      %v4103 = vshrl.u32 %v4065, 16
      %v4105 = vshll.u32 %v4065, 16
      %v4107 = vrot.slane %v4105, 1
      %v4108 = vor.u32 %v4103, %v4107
      %v4110 = vshll.u32 %v4066, 16
      %v4112 = vrot.slane %v4110, 1
      %v4113 = vsel %vm4101, %v4108, %v4112
      %v4115 = vshrl.u32 %v4067, 16
      %v4117 = vshll.u32 %v4067, 16
      %v4119 = vrot.slane %v4117, 1
      %v4120 = vor.u32 %v4115, %v4119
      %v4122 = vshll.u32 %v4068, 16
      %v4124 = vrot.slane %v4122, 1
      %v4125 = vsel %vm4101, %v4120, %v4124
      %v4127 = vshrl.u32 %v4069, 16
      %v4129 = vshll.u32 %v4069, 16
      %v4131 = vrot.slane %v4129, 1
      %v4132 = vor.u32 %v4127, %v4131
      %v4134 = vshll.u32 %v4070, 16
      %v4136 = vrot.slane %v4134, 1
      %v4137 = vsel %vm4101, %v4132, %v4136
      %v4139 = vshrl.u32 %v4071, 16
      %v4141 = vshll.u32 %v4071, 16
      %v4143 = vrot.slane %v4141, 1
      %v4144 = vor.u32 %v4139, %v4143
      %v4146 = vshll.u32 %v4072, 16
      %v4148 = vrot.slane %v4146, 1
      %v4149 = vsel %vm4101, %v4144, %v4148
      %v4151 = vshrl.u32 %v4073, 16
      %v4153 = vshll.u32 %v4073, 16
      %v4155 = vrot.slane %v4153, 1
      %v4156 = vor.u32 %v4151, %v4155
      %v4158 = vshll.u32 %v4074, 16
      %v4160 = vrot.slane %v4158, 1
      %v4161 = vsel %vm4101, %v4156, %v4160
      %v4163 = vshrl.u32 %v4075, 16
      %v4165 = vshll.u32 %v4075, 16
      %v4167 = vrot.slane %v4165, 1
      %v4168 = vor.u32 %v4163, %v4167
      %v4170 = vshll.u32 %v4076, 16
      %v4172 = vrot.slane %v4170, 1
      %v4173 = vsel %vm4101, %v4168, %v4172
      %v4175 = vshrl.u32 %v4077, 16
      %v4177 = vshll.u32 %v4077, 16
      %v4179 = vrot.slane %v4177, 1
      %v4180 = vor.u32 %v4175, %v4179
      %v4182 = vshll.u32 %v4078, 16
      %v4184 = vrot.slane %v4182, 1
      %v4185 = vsel %vm4101, %v4180, %v4184
      %v4187 = vshrl.u32 %v4079, 16
      %v4189 = vshll.u32 %v4079, 16
      %v4191 = vrot.slane %v4189, 1
      %v4192 = vor.u32 %v4187, %v4191
      %v4194 = vshll.u32 %v4080, 16
      %v4196 = vrot.slane %v4194, 1
      %v4197 = vsel %vm4101, %v4192, %v4196
      %v4199 = vshrl.u32 %v4081, 16
      %v4201 = vshll.u32 %v4081, 16
      %v4203 = vrot.slane %v4201, 1
      %v4204 = vor.u32 %v4199, %v4203
      %v4206 = vshll.u32 %v4082, 16
      %v4208 = vrot.slane %v4206, 1
      %v4209 = vsel %vm4101, %v4204, %v4208
      %v4211 = vshrl.u32 %v4083, 16
      %v4213 = vshll.u32 %v4083, 16
      %v4215 = vrot.slane %v4213, 1
      %v4216 = vor.u32 %v4211, %v4215
      %v4218 = vshll.u32 %v4084, 16
      %v4220 = vrot.slane %v4218, 1
      %v4221 = vsel %vm4101, %v4216, %v4220
      %v4223 = vshrl.u32 %v4085, 16
      %v4225 = vshll.u32 %v4085, 16
      %v4227 = vrot.slane %v4225, 1
      %v4228 = vor.u32 %v4223, %v4227
      %v4230 = vshll.u32 %v4086, 16
      %v4232 = vrot.slane %v4230, 1
      %v4233 = vsel %vm4101, %v4228, %v4232
      %v4235 = vshrl.u32 %v4087, 16
      %v4237 = vshll.u32 %v4087, 16
      %v4239 = vrot.slane %v4237, 1
      %v4240 = vor.u32 %v4235, %v4239
      %v4242 = vshll.u32 %v4088, 16
      %v4244 = vrot.slane %v4242, 1
      %v4245 = vsel %vm4101, %v4240, %v4244
      %v4247 = vshrl.u32 %v4089, 16
      %v4249 = vshll.u32 %v4089, 16
      %v4251 = vrot.slane %v4249, 1
      %v4252 = vor.u32 %v4247, %v4251
      %v4254 = vshll.u32 %v4090, 16
      %v4256 = vrot.slane %v4254, 1
      %v4257 = vsel %vm4101, %v4252, %v4256
      %v4259 = vshrl.u32 %v4091, 16
      %v4261 = vshll.u32 %v4091, 16
      %v4263 = vrot.slane %v4261, 1
      %v4264 = vor.u32 %v4259, %v4263
      %v4266 = vshll.u32 %v4092, 16
      %v4268 = vrot.slane %v4266, 1
      %v4269 = vsel %vm4101, %v4264, %v4268
      %v4271 = vshrl.u32 %v4093, 16
      %v4273 = vshll.u32 %v4093, 16
      %v4275 = vrot.slane %v4273, 1
      %v4276 = vor.u32 %v4271, %v4275
      %v4278 = vshll.u32 %v4094, 16
      %v4280 = vrot.slane %v4278, 1
      %v4281 = vsel %vm4101, %v4276, %v4280
      %v4283 = vshrl.u32 %v4095, 16
      %v4285 = vshll.u32 %v4095, 16
      %v4287 = vrot.slane %v4285, 1
      %v4288 = vor.u32 %v4283, %v4287
      %v4290 = vshll.u32 %v4096, 16
      %v4292 = vrot.slane %v4290, 1
      %v4293 = vsel %vm4101, %v4288, %v4292
      %s4294 = scalar_lea.vmem %s3, 8
      %v4295 = vld [vmem:[%s4294] sm:$0xf]
      %v4296 = vld [vmem:[%s4294 + $0x4] sm:$0xf]
      %v4299 = vunpack.c.l.b16 %v4295
      %v4300 = vunpack.c.l.b16 %v4296
      %v4301 = vpack.c.b16 %v4300, %v4299
      %vm4303 = vcmask 130048
      %v4305 = vsel %vm4303, %v4113, 0
      %v4308 = vsel %vm4303, %v4125, 0
      %v4311 = vsel %vm4303, %v4137, 0
      %v4314 = vsel %vm4303, %v4149, 0
      %v4317 = vsel %vm4303, %v4161, 0
      %v4320 = vsel %vm4303, %v4173, 0
      %v4323 = vsel %vm4303, %v4185, 0
      %v4326 = vsel %vm4303, %v4197, 0
      %v4329 = vsel %vm4303, %v4209, 0
      %v4332 = vsel %vm4303, %v4221, 0
      %v4335 = vsel %vm4303, %v4233, 0
      %v4338 = vsel %vm4303, %v4245, 0
      %v4341 = vsel %vm4303, %v4257, 0
      %v4344 = vsel %vm4303, %v4269, 0
      %v4347 = vsel %vm4303, %v4281, 0
      %v4350 = vsel %vm4303, %v4293, 0
      %4352 = vmatprep.subr.bf16.mxu0 0
      %4353 = vmatpush1.bf16.msra.mxu0 0
      %4354 = vmatprep.subr.bf16.mxu0 0
      %4355 = vmatpush1.bf16.msra.mxu0 0
      %4356 = vmatprep.subr.bf16.mxu0 0
      %4357 = vmatpush1.bf16.msra.mxu0 0
      %4358 = vmatprep.subr.bf16.mxu0 0
      %4359 = vmatpush1.bf16.msra.mxu0 0
      %4360 = vmatprep.subr.bf16.mxu0 0
      %4361 = vmatpush1.bf16.msra.mxu0 0
      %4362 = vmatprep.subr.bf16.mxu0 0
      %4363 = vmatpush1.bf16.msra.mxu0 0
      %4364 = vmatprep.subr.bf16.mxu0 0
      %4365 = vmatpush1.bf16.msra.mxu0 0
      %4366 = vmatprep.subr.bf16.mxu0 0
      %4367 = vmatpush1.bf16.msra.mxu0 %v4301
      %4368 = vmatprep.subr.bf16.mxu0 0
      %4369 = vmatpush2.bf16.msra.mxu0 0
      %4370 = vmatprep.subr.bf16.mxu0 0
      %4371 = vmatpush2.bf16.msra.mxu0 0
      %4372 = vmatprep.subr.bf16.mxu0 0
      %4373 = vmatpush2.bf16.msra.mxu0 0
      %4374 = vmatprep.subr.bf16.mxu0 0
      %4375 = vmatpush2.bf16.msra.mxu0 0
      %4376 = vmatprep.subr.bf16.mxu0 0
      %4377 = vmatpush2.bf16.msra.mxu0 0
      %4378 = vmatprep.subr.bf16.mxu0 0
      %4379 = vmatpush2.bf16.msra.mxu0 0
      %4380 = vmatprep.subr.bf16.mxu0 0
      %4381 = vmatpush2.bf16.msra.mxu0 0
      %4382 = vmatprep.subr.bf16.mxu0 0
      %4383 = vmatpush2.bf16.msra.mxu0 0
      %4384 = vmatprep.mubr.bf16.mxu0 0
      %4385 = vmatmul.mubr.bf16.gmra.mxu0 %v4305
      %v4386 = vpop.f32.mrf.mxu0
      %v4387 = vadd.f32 0.0, %v4386
      %v4388 = vpop.f32.mrf.mxu0
      %v4389 = vpop.f32.mrf.mxu0
      %v4390 = vadd.f32 0.0, %v4389
      %v4391 = vpop.f32.mrf.mxu0
      %4392 = vmatprep.mubr.bf16.mxu0 0
      %4393 = vmatmul.mubr.bf16.gmra.mxu0 %v4308
      %v4394 = vpop.f32.mrf.mxu0
      %v4395 = vadd.f32 0.0, %v4394
      %v4396 = vpop.f32.mrf.mxu0
      %v4397 = vpop.f32.mrf.mxu0
      %v4398 = vadd.f32 0.0, %v4397
      %v4399 = vpop.f32.mrf.mxu0
      %4400 = vmatprep.mubr.bf16.mxu0 0
      %4401 = vmatmul.mubr.bf16.gmra.mxu0 %v4311
      %v4402 = vpop.f32.mrf.mxu0
      %v4403 = vadd.f32 0.0, %v4402
      %v4404 = vpop.f32.mrf.mxu0
      %v4405 = vpop.f32.mrf.mxu0
      %v4406 = vadd.f32 0.0, %v4405
      %v4407 = vpop.f32.mrf.mxu0
      %4408 = vmatprep.mubr.bf16.mxu0 0
      %4409 = vmatmul.mubr.bf16.gmra.mxu0 %v4314
      %v4410 = vpop.f32.mrf.mxu0
      %v4411 = vadd.f32 0.0, %v4410
      %v4412 = vpop.f32.mrf.mxu0
      %v4413 = vpop.f32.mrf.mxu0
      %v4414 = vadd.f32 0.0, %v4413
      %v4415 = vpop.f32.mrf.mxu0
      %4416 = vmatprep.mubr.bf16.mxu0 0
      %4417 = vmatmul.mubr.bf16.gmra.mxu0 %v4317
      %v4418 = vpop.f32.mrf.mxu0
      %v4419 = vadd.f32 0.0, %v4418
      %v4420 = vpop.f32.mrf.mxu0
      %v4421 = vpop.f32.mrf.mxu0
      %v4422 = vadd.f32 0.0, %v4421
      %v4423 = vpop.f32.mrf.mxu0
      %4424 = vmatprep.mubr.bf16.mxu0 0
      %4425 = vmatmul.mubr.bf16.gmra.mxu0 %v4320
      %v4426 = vpop.f32.mrf.mxu0
      %v4427 = vadd.f32 0.0, %v4426
      %v4428 = vpop.f32.mrf.mxu0
      %v4429 = vpop.f32.mrf.mxu0
      %v4430 = vadd.f32 0.0, %v4429
      %v4431 = vpop.f32.mrf.mxu0
      %4432 = vmatprep.mubr.bf16.mxu0 0
      %4433 = vmatmul.mubr.bf16.gmra.mxu0 %v4323
      %v4434 = vpop.f32.mrf.mxu0
      %v4435 = vadd.f32 0.0, %v4434
      %v4436 = vpop.f32.mrf.mxu0
      %v4437 = vpop.f32.mrf.mxu0
      %v4438 = vadd.f32 0.0, %v4437
      %v4439 = vpop.f32.mrf.mxu0
      %4440 = vmatprep.mubr.bf16.mxu0 0
      %4441 = vmatmul.mubr.bf16.gmra.mxu0 %v4326
      %v4442 = vpop.f32.mrf.mxu0
      %v4443 = vadd.f32 0.0, %v4442
      %v4444 = vpop.f32.mrf.mxu0
      %v4445 = vpop.f32.mrf.mxu0
      %v4446 = vadd.f32 0.0, %v4445
      %v4447 = vpop.f32.mrf.mxu0
      %4448 = vmatprep.mubr.bf16.mxu0 0
      %4449 = vmatmul.mubr.bf16.gmra.mxu0 %v4329
      %v4450 = vpop.f32.mrf.mxu0
      %v4451 = vadd.f32 0.0, %v4450
      %v4452 = vpop.f32.mrf.mxu0
      %v4453 = vpop.f32.mrf.mxu0
      %v4454 = vadd.f32 0.0, %v4453
      %v4455 = vpop.f32.mrf.mxu0
      %4456 = vmatprep.mubr.bf16.mxu0 0
      %4457 = vmatmul.mubr.bf16.gmra.mxu0 %v4332
      %v4458 = vpop.f32.mrf.mxu0
      %v4459 = vadd.f32 0.0, %v4458
      %v4460 = vpop.f32.mrf.mxu0
      %v4461 = vpop.f32.mrf.mxu0
      %v4462 = vadd.f32 0.0, %v4461
      %v4463 = vpop.f32.mrf.mxu0
      %4464 = vmatprep.mubr.bf16.mxu0 0
      %4465 = vmatmul.mubr.bf16.gmra.mxu0 %v4335
      %v4466 = vpop.f32.mrf.mxu0
      %v4467 = vadd.f32 0.0, %v4466
      %v4468 = vpop.f32.mrf.mxu0
      %v4469 = vpop.f32.mrf.mxu0
      %v4470 = vadd.f32 0.0, %v4469
      %v4471 = vpop.f32.mrf.mxu0
      %4472 = vmatprep.mubr.bf16.mxu0 0
      %4473 = vmatmul.mubr.bf16.gmra.mxu0 %v4338
      %v4474 = vpop.f32.mrf.mxu0
      %v4475 = vadd.f32 0.0, %v4474
      %v4476 = vpop.f32.mrf.mxu0
      %v4477 = vpop.f32.mrf.mxu0
      %v4478 = vadd.f32 0.0, %v4477
      %v4479 = vpop.f32.mrf.mxu0
      %4480 = vmatprep.mubr.bf16.mxu0 0
      %4481 = vmatmul.mubr.bf16.gmra.mxu0 %v4341
      %v4482 = vpop.f32.mrf.mxu0
      %v4483 = vadd.f32 0.0, %v4482
      %v4484 = vpop.f32.mrf.mxu0
      %v4485 = vpop.f32.mrf.mxu0
      %v4486 = vadd.f32 0.0, %v4485
      %v4487 = vpop.f32.mrf.mxu0
      %4488 = vmatprep.mubr.bf16.mxu0 0
      %4489 = vmatmul.mubr.bf16.gmra.mxu0 %v4344
      %v4490 = vpop.f32.mrf.mxu0
      %v4491 = vadd.f32 0.0, %v4490
      %v4492 = vpop.f32.mrf.mxu0
      %v4493 = vpop.f32.mrf.mxu0
      %v4494 = vadd.f32 0.0, %v4493
      %v4495 = vpop.f32.mrf.mxu0
      %4496 = vmatprep.mubr.bf16.mxu0 0
      %4497 = vmatmul.mubr.bf16.gmra.mxu0 %v4347
      %v4498 = vpop.f32.mrf.mxu0
      %v4499 = vadd.f32 0.0, %v4498
      %v4500 = vpop.f32.mrf.mxu0
      %v4501 = vpop.f32.mrf.mxu0
      %v4502 = vadd.f32 0.0, %v4501
      %v4503 = vpop.f32.mrf.mxu0
      %4504 = vmatprep.mubr.bf16.mxu0 0
      %4505 = vmatmul.mubr.bf16.gmra.mxu0 %v4350
      %v4506 = vpop.f32.mrf.mxu0
      %v4507 = vadd.f32 0.0, %v4506
      %v4508 = vpop.f32.mrf.mxu0
      %v4509 = vpop.f32.mrf.mxu0
      %v4510 = vadd.f32 0.0, %v4509
      %v4511 = vpop.f32.mrf.mxu0
      %4512 = vdwg.mxu0
      %v4515 = vunpack.c.l.b16 %v4099
      %v4516 = vunpack.c.l.b16 %v4100
      %v4517 = vpack.c.b16 %v4516, %v4515
      %v4519 = vsel %vm4303, %v4065, 0
      %v4521 = vsel %vm4303, %v4067, 0
      %v4523 = vsel %vm4303, %v4069, 0
      %v4525 = vsel %vm4303, %v4071, 0
      %v4527 = vsel %vm4303, %v4073, 0
      %v4529 = vsel %vm4303, %v4075, 0
      %v4531 = vsel %vm4303, %v4077, 0
      %v4533 = vsel %vm4303, %v4079, 0
      %v4535 = vsel %vm4303, %v4081, 0
      %v4537 = vsel %vm4303, %v4083, 0
      %v4539 = vsel %vm4303, %v4085, 0
      %v4541 = vsel %vm4303, %v4087, 0
      %v4543 = vsel %vm4303, %v4089, 0
      %v4545 = vsel %vm4303, %v4091, 0
      %v4547 = vsel %vm4303, %v4093, 0
      %v4549 = vsel %vm4303, %v4095, 0
      %4551 = vmatprep.subr.bf16.mxu0 0
      %4552 = vmatpush1.bf16.msra.mxu0 0
      %4553 = vmatprep.subr.bf16.mxu0 0
      %4554 = vmatpush1.bf16.msra.mxu0 0
      %4555 = vmatprep.subr.bf16.mxu0 0
      %4556 = vmatpush1.bf16.msra.mxu0 0
      %4557 = vmatprep.subr.bf16.mxu0 0
      %4558 = vmatpush1.bf16.msra.mxu0 0
      %4559 = vmatprep.subr.bf16.mxu0 0
      %4560 = vmatpush1.bf16.msra.mxu0 0
      %4561 = vmatprep.subr.bf16.mxu0 0
      %4562 = vmatpush1.bf16.msra.mxu0 0
      %4563 = vmatprep.subr.bf16.mxu0 0
      %4564 = vmatpush1.bf16.msra.mxu0 0
      %4565 = vmatprep.subr.bf16.mxu0 0
      %4566 = vmatpush1.bf16.msra.mxu0 %v4517
      %4567 = vmatprep.subr.bf16.mxu0 0
      %4568 = vmatpush2.bf16.msra.mxu0 0
      %4569 = vmatprep.subr.bf16.mxu0 0
      %4570 = vmatpush2.bf16.msra.mxu0 0
      %4571 = vmatprep.subr.bf16.mxu0 0
      %4572 = vmatpush2.bf16.msra.mxu0 0
      %4573 = vmatprep.subr.bf16.mxu0 0
      %4574 = vmatpush2.bf16.msra.mxu0 0
      %4575 = vmatprep.subr.bf16.mxu0 0
      %4576 = vmatpush2.bf16.msra.mxu0 0
      %4577 = vmatprep.subr.bf16.mxu0 0
      %4578 = vmatpush2.bf16.msra.mxu0 0
      %4579 = vmatprep.subr.bf16.mxu0 0
      %4580 = vmatpush2.bf16.msra.mxu0 0
      %4581 = vmatprep.subr.bf16.mxu0 0
      %4582 = vmatpush2.bf16.msra.mxu0 0
      %4583 = vmatprep.mubr.bf16.mxu0 0
      %4584 = vmatmul.mubr.bf16.gmra.mxu0 %v4519
      %v4585 = vpop.f32.mrf.mxu0
      %v4586 = vadd.f32 %v4387, %v4585
      %v4587 = vpop.f32.mrf.mxu0
      %v4588 = vpop.f32.mrf.mxu0
      %v4589 = vadd.f32 %v4390, %v4588
      %v4590 = vpop.f32.mrf.mxu0
      %4591 = vmatprep.mubr.bf16.mxu0 0
      %4592 = vmatmul.mubr.bf16.gmra.mxu0 %v4521
      %v4593 = vpop.f32.mrf.mxu0
      %v4594 = vadd.f32 %v4395, %v4593
      %v4595 = vpop.f32.mrf.mxu0
      %v4596 = vpop.f32.mrf.mxu0
      %v4597 = vadd.f32 %v4398, %v4596
      %v4598 = vpop.f32.mrf.mxu0
      %4599 = vmatprep.mubr.bf16.mxu0 0
      %4600 = vmatmul.mubr.bf16.gmra.mxu0 %v4523
      %v4601 = vpop.f32.mrf.mxu0
      %v4602 = vadd.f32 %v4403, %v4601
      %v4603 = vpop.f32.mrf.mxu0
      %v4604 = vpop.f32.mrf.mxu0
      %v4605 = vadd.f32 %v4406, %v4604
      %v4606 = vpop.f32.mrf.mxu0
      %4607 = vmatprep.mubr.bf16.mxu0 0
      %4608 = vmatmul.mubr.bf16.gmra.mxu0 %v4525
      %v4609 = vpop.f32.mrf.mxu0
      %v4610 = vadd.f32 %v4411, %v4609
      %v4611 = vpop.f32.mrf.mxu0
      %v4612 = vpop.f32.mrf.mxu0
      %v4613 = vadd.f32 %v4414, %v4612
      %v4614 = vpop.f32.mrf.mxu0
      %4615 = vmatprep.mubr.bf16.mxu0 0
      %4616 = vmatmul.mubr.bf16.gmra.mxu0 %v4527
      %v4617 = vpop.f32.mrf.mxu0
      %v4618 = vadd.f32 %v4419, %v4617
      %v4619 = vpop.f32.mrf.mxu0
      %v4620 = vpop.f32.mrf.mxu0
      %v4621 = vadd.f32 %v4422, %v4620
      %v4622 = vpop.f32.mrf.mxu0
      %4623 = vmatprep.mubr.bf16.mxu0 0
      %4624 = vmatmul.mubr.bf16.gmra.mxu0 %v4529
      %v4625 = vpop.f32.mrf.mxu0
      %v4626 = vadd.f32 %v4427, %v4625
      %v4627 = vpop.f32.mrf.mxu0
      %v4628 = vpop.f32.mrf.mxu0
      %v4629 = vadd.f32 %v4430, %v4628
      %v4630 = vpop.f32.mrf.mxu0
      %4631 = vmatprep.mubr.bf16.mxu0 0
      %4632 = vmatmul.mubr.bf16.gmra.mxu0 %v4531
      %v4633 = vpop.f32.mrf.mxu0
      %v4634 = vadd.f32 %v4435, %v4633
      %v4635 = vpop.f32.mrf.mxu0
      %v4636 = vpop.f32.mrf.mxu0
      %v4637 = vadd.f32 %v4438, %v4636
      %v4638 = vpop.f32.mrf.mxu0
      %4639 = vmatprep.mubr.bf16.mxu0 0
      %4640 = vmatmul.mubr.bf16.gmra.mxu0 %v4533
      %v4641 = vpop.f32.mrf.mxu0
      %v4642 = vadd.f32 %v4443, %v4641
      %v4643 = vpop.f32.mrf.mxu0
      %v4644 = vpop.f32.mrf.mxu0
      %v4645 = vadd.f32 %v4446, %v4644
      %v4646 = vpop.f32.mrf.mxu0
      %4647 = vmatprep.mubr.bf16.mxu0 0
      %4648 = vmatmul.mubr.bf16.gmra.mxu0 %v4535
      %v4649 = vpop.f32.mrf.mxu0
      %v4650 = vadd.f32 %v4451, %v4649
      %v4651 = vpop.f32.mrf.mxu0
      %v4652 = vpop.f32.mrf.mxu0
      %v4653 = vadd.f32 %v4454, %v4652
      %v4654 = vpop.f32.mrf.mxu0
      %4655 = vmatprep.mubr.bf16.mxu0 0
      %4656 = vmatmul.mubr.bf16.gmra.mxu0 %v4537
      %v4657 = vpop.f32.mrf.mxu0
      %v4658 = vadd.f32 %v4459, %v4657
      %v4659 = vpop.f32.mrf.mxu0
      %v4660 = vpop.f32.mrf.mxu0
      %v4661 = vadd.f32 %v4462, %v4660
      %v4662 = vpop.f32.mrf.mxu0
      %4663 = vmatprep.mubr.bf16.mxu0 0
      %4664 = vmatmul.mubr.bf16.gmra.mxu0 %v4539
      %v4665 = vpop.f32.mrf.mxu0
      %v4666 = vadd.f32 %v4467, %v4665
      %v4667 = vpop.f32.mrf.mxu0
      %v4668 = vpop.f32.mrf.mxu0
      %v4669 = vadd.f32 %v4470, %v4668
      %v4670 = vpop.f32.mrf.mxu0
      %4671 = vmatprep.mubr.bf16.mxu0 0
      %4672 = vmatmul.mubr.bf16.gmra.mxu0 %v4541
      %v4673 = vpop.f32.mrf.mxu0
      %v4674 = vadd.f32 %v4475, %v4673
      %v4675 = vpop.f32.mrf.mxu0
      %v4676 = vpop.f32.mrf.mxu0
      %v4677 = vadd.f32 %v4478, %v4676
      %v4678 = vpop.f32.mrf.mxu0
      %4679 = vmatprep.mubr.bf16.mxu0 0
      %4680 = vmatmul.mubr.bf16.gmra.mxu0 %v4543
      %v4681 = vpop.f32.mrf.mxu0
      %v4682 = vadd.f32 %v4483, %v4681
      %v4683 = vpop.f32.mrf.mxu0
      %v4684 = vpop.f32.mrf.mxu0
      %v4685 = vadd.f32 %v4486, %v4684
      %v4686 = vpop.f32.mrf.mxu0
      %4687 = vmatprep.mubr.bf16.mxu0 0
      %4688 = vmatmul.mubr.bf16.gmra.mxu0 %v4545
      %v4689 = vpop.f32.mrf.mxu0
      %v4690 = vadd.f32 %v4491, %v4689
      %v4691 = vpop.f32.mrf.mxu0
      %v4692 = vpop.f32.mrf.mxu0
      %v4693 = vadd.f32 %v4494, %v4692
      %v4694 = vpop.f32.mrf.mxu0
      %4695 = vmatprep.mubr.bf16.mxu0 0
      %4696 = vmatmul.mubr.bf16.gmra.mxu0 %v4547
      %v4697 = vpop.f32.mrf.mxu0
      %v4698 = vadd.f32 %v4499, %v4697
      %v4699 = vpop.f32.mrf.mxu0
      %v4700 = vpop.f32.mrf.mxu0
      %v4701 = vadd.f32 %v4502, %v4700
      %v4702 = vpop.f32.mrf.mxu0
      %4703 = vmatprep.mubr.bf16.mxu0 0
      %4704 = vmatmul.mubr.bf16.gmra.mxu0 %v4549
      %v4705 = vpop.f32.mrf.mxu0
      %v4706 = vadd.f32 %v4507, %v4705
      %v4707 = vpop.f32.mrf.mxu0
      %v4708 = vpop.f32.mrf.mxu0
      %v4709 = vadd.f32 %v4510, %v4708
      %v4710 = vpop.f32.mrf.mxu0
      %4711 = vdwg.mxu0
      %vm4744 = vcmask 1046528
      %v4745 = vrot.slane %v4065, 1
      %v4746 = vrot.slane %v4066, 1
      %v4747 = vsel %vm4744, %v4745, %v4746
      %v4748 = vrot.slane %v4067, 1
      %v4749 = vrot.slane %v4068, 1
      %v4750 = vsel %vm4744, %v4748, %v4749
      %v4751 = vrot.slane %v4069, 1
      %v4752 = vrot.slane %v4070, 1
      %v4753 = vsel %vm4744, %v4751, %v4752
      %v4754 = vrot.slane %v4071, 1
      %v4755 = vrot.slane %v4072, 1
      %v4756 = vsel %vm4744, %v4754, %v4755
      %v4757 = vrot.slane %v4073, 1
      %v4758 = vrot.slane %v4074, 1
      %v4759 = vsel %vm4744, %v4757, %v4758
      %v4760 = vrot.slane %v4075, 1
      %v4761 = vrot.slane %v4076, 1
      %v4762 = vsel %vm4744, %v4760, %v4761
      %v4763 = vrot.slane %v4077, 1
      %v4764 = vrot.slane %v4078, 1
      %v4765 = vsel %vm4744, %v4763, %v4764
      %v4766 = vrot.slane %v4079, 1
      %v4767 = vrot.slane %v4080, 1
      %v4768 = vsel %vm4744, %v4766, %v4767
      %v4769 = vrot.slane %v4081, 1
      %v4770 = vrot.slane %v4082, 1
      %v4771 = vsel %vm4744, %v4769, %v4770
      %v4772 = vrot.slane %v4083, 1
      %v4773 = vrot.slane %v4084, 1
      %v4774 = vsel %vm4744, %v4772, %v4773
      %v4775 = vrot.slane %v4085, 1
      %v4776 = vrot.slane %v4086, 1
      %v4777 = vsel %vm4744, %v4775, %v4776
      %v4778 = vrot.slane %v4087, 1
      %v4779 = vrot.slane %v4088, 1
      %v4780 = vsel %vm4744, %v4778, %v4779
      %v4781 = vrot.slane %v4089, 1
      %v4782 = vrot.slane %v4090, 1
      %v4783 = vsel %vm4744, %v4781, %v4782
      %v4784 = vrot.slane %v4091, 1
      %v4785 = vrot.slane %v4092, 1
      %v4786 = vsel %vm4744, %v4784, %v4785
      %v4787 = vrot.slane %v4093, 1
      %v4788 = vrot.slane %v4094, 1
      %v4789 = vsel %vm4744, %v4787, %v4788
      %v4790 = vrot.slane %v4095, 1
      %v4791 = vrot.slane %v4096, 1
      %v4792 = vsel %vm4744, %v4790, %v4791
      %s4793 = scalar_lea.vmem %s3, 16
      %v4794 = vld [vmem:[%s4793] sm:$0xf]
      %v4795 = vld [vmem:[%s4793 + $0x4] sm:$0xf]
      %v4798 = vunpack.c.l.b16 %v4794
      %v4799 = vunpack.c.l.b16 %v4795
      %v4800 = vpack.c.b16 %v4799, %v4798
      %v4803 = vsel %vm4303, %v4747, 0
      %v4806 = vsel %vm4303, %v4750, 0
      %v4809 = vsel %vm4303, %v4753, 0
      %v4812 = vsel %vm4303, %v4756, 0
      %v4815 = vsel %vm4303, %v4759, 0
      %v4818 = vsel %vm4303, %v4762, 0
      %v4821 = vsel %vm4303, %v4765, 0
      %v4824 = vsel %vm4303, %v4768, 0
      %v4827 = vsel %vm4303, %v4771, 0
      %v4830 = vsel %vm4303, %v4774, 0
      %v4833 = vsel %vm4303, %v4777, 0
      %v4836 = vsel %vm4303, %v4780, 0
      %v4839 = vsel %vm4303, %v4783, 0
      %v4842 = vsel %vm4303, %v4786, 0
      %v4845 = vsel %vm4303, %v4789, 0
      %v4848 = vsel %vm4303, %v4792, 0
      %4850 = vmatprep.subr.bf16.mxu0 0
      %4851 = vmatpush1.bf16.msra.mxu0 0
      %4852 = vmatprep.subr.bf16.mxu0 0
      %4853 = vmatpush1.bf16.msra.mxu0 0
      %4854 = vmatprep.subr.bf16.mxu0 0
      %4855 = vmatpush1.bf16.msra.mxu0 0
      %4856 = vmatprep.subr.bf16.mxu0 0
      %4857 = vmatpush1.bf16.msra.mxu0 0
      %4858 = vmatprep.subr.bf16.mxu0 0
      %4859 = vmatpush1.bf16.msra.mxu0 0
      %4860 = vmatprep.subr.bf16.mxu0 0
      %4861 = vmatpush1.bf16.msra.mxu0 0
      %4862 = vmatprep.subr.bf16.mxu0 0
      %4863 = vmatpush1.bf16.msra.mxu0 0
      %4864 = vmatprep.subr.bf16.mxu0 0
      %4865 = vmatpush1.bf16.msra.mxu0 %v4800
      %4866 = vmatprep.subr.bf16.mxu0 0
      %4867 = vmatpush2.bf16.msra.mxu0 0
      %4868 = vmatprep.subr.bf16.mxu0 0
      %4869 = vmatpush2.bf16.msra.mxu0 0
      %4870 = vmatprep.subr.bf16.mxu0 0
      %4871 = vmatpush2.bf16.msra.mxu0 0
      %4872 = vmatprep.subr.bf16.mxu0 0
      %4873 = vmatpush2.bf16.msra.mxu0 0
      %4874 = vmatprep.subr.bf16.mxu0 0
      %4875 = vmatpush2.bf16.msra.mxu0 0
      %4876 = vmatprep.subr.bf16.mxu0 0
      %4877 = vmatpush2.bf16.msra.mxu0 0
      %4878 = vmatprep.subr.bf16.mxu0 0
      %4879 = vmatpush2.bf16.msra.mxu0 0
      %4880 = vmatprep.subr.bf16.mxu0 0
      %4881 = vmatpush2.bf16.msra.mxu0 0
      %4882 = vmatprep.mubr.bf16.mxu0 0
      %4883 = vmatmul.mubr.bf16.gmra.mxu0 %v4803
      %v4884 = vpop.f32.mrf.mxu0
      %v4885 = vadd.f32 0.0, %v4884
      %v4886 = vpop.f32.mrf.mxu0
      %v4887 = vpop.f32.mrf.mxu0
      %v4888 = vadd.f32 0.0, %v4887
      %v4889 = vpop.f32.mrf.mxu0
      %4890 = vmatprep.mubr.bf16.mxu0 0
      %4891 = vmatmul.mubr.bf16.gmra.mxu0 %v4806
      %v4892 = vpop.f32.mrf.mxu0
      %v4893 = vadd.f32 0.0, %v4892
      %v4894 = vpop.f32.mrf.mxu0
      %v4895 = vpop.f32.mrf.mxu0
      %v4896 = vadd.f32 0.0, %v4895
      %v4897 = vpop.f32.mrf.mxu0
      %4898 = vmatprep.mubr.bf16.mxu0 0
      %4899 = vmatmul.mubr.bf16.gmra.mxu0 %v4809
      %v4900 = vpop.f32.mrf.mxu0
      %v4901 = vadd.f32 0.0, %v4900
      %v4902 = vpop.f32.mrf.mxu0
      %v4903 = vpop.f32.mrf.mxu0
      %v4904 = vadd.f32 0.0, %v4903
      %v4905 = vpop.f32.mrf.mxu0
      %4906 = vmatprep.mubr.bf16.mxu0 0
      %4907 = vmatmul.mubr.bf16.gmra.mxu0 %v4812
      %v4908 = vpop.f32.mrf.mxu0
      %v4909 = vadd.f32 0.0, %v4908
      %v4910 = vpop.f32.mrf.mxu0
      %v4911 = vpop.f32.mrf.mxu0
      %v4912 = vadd.f32 0.0, %v4911
      %v4913 = vpop.f32.mrf.mxu0
      %4914 = vmatprep.mubr.bf16.mxu0 0
      %4915 = vmatmul.mubr.bf16.gmra.mxu0 %v4815
      %v4916 = vpop.f32.mrf.mxu0
      %v4917 = vadd.f32 0.0, %v4916
      %v4918 = vpop.f32.mrf.mxu0
      %v4919 = vpop.f32.mrf.mxu0
      %v4920 = vadd.f32 0.0, %v4919
      %v4921 = vpop.f32.mrf.mxu0
      %4922 = vmatprep.mubr.bf16.mxu0 0
      %4923 = vmatmul.mubr.bf16.gmra.mxu0 %v4818
      %v4924 = vpop.f32.mrf.mxu0
      %v4925 = vadd.f32 0.0, %v4924
      %v4926 = vpop.f32.mrf.mxu0
      %v4927 = vpop.f32.mrf.mxu0
      %v4928 = vadd.f32 0.0, %v4927
      %v4929 = vpop.f32.mrf.mxu0
      %4930 = vmatprep.mubr.bf16.mxu0 0
      %4931 = vmatmul.mubr.bf16.gmra.mxu0 %v4821
      %v4932 = vpop.f32.mrf.mxu0
      %v4933 = vadd.f32 0.0, %v4932
      %v4934 = vpop.f32.mrf.mxu0
      %v4935 = vpop.f32.mrf.mxu0
      %v4936 = vadd.f32 0.0, %v4935
      %v4937 = vpop.f32.mrf.mxu0
      %4938 = vmatprep.mubr.bf16.mxu0 0
      %4939 = vmatmul.mubr.bf16.gmra.mxu0 %v4824
      %v4940 = vpop.f32.mrf.mxu0
      %v4941 = vadd.f32 0.0, %v4940
      %v4942 = vpop.f32.mrf.mxu0
      %v4943 = vpop.f32.mrf.mxu0
      %v4944 = vadd.f32 0.0, %v4943
      %v4945 = vpop.f32.mrf.mxu0
      %4946 = vmatprep.mubr.bf16.mxu0 0
      %4947 = vmatmul.mubr.bf16.gmra.mxu0 %v4827
      %v4948 = vpop.f32.mrf.mxu0
      %v4949 = vadd.f32 0.0, %v4948
      %v4950 = vpop.f32.mrf.mxu0
      %v4951 = vpop.f32.mrf.mxu0
      %v4952 = vadd.f32 0.0, %v4951
      %v4953 = vpop.f32.mrf.mxu0
      %4954 = vmatprep.mubr.bf16.mxu0 0
      %4955 = vmatmul.mubr.bf16.gmra.mxu0 %v4830
      %v4956 = vpop.f32.mrf.mxu0
      %v4957 = vadd.f32 0.0, %v4956
      %v4958 = vpop.f32.mrf.mxu0
      %v4959 = vpop.f32.mrf.mxu0
      %v4960 = vadd.f32 0.0, %v4959
      %v4961 = vpop.f32.mrf.mxu0
      %4962 = vmatprep.mubr.bf16.mxu0 0
      %4963 = vmatmul.mubr.bf16.gmra.mxu0 %v4833
      %v4964 = vpop.f32.mrf.mxu0
      %v4965 = vadd.f32 0.0, %v4964
      %v4966 = vpop.f32.mrf.mxu0
      %v4967 = vpop.f32.mrf.mxu0
      %v4968 = vadd.f32 0.0, %v4967
      %v4969 = vpop.f32.mrf.mxu0
      %4970 = vmatprep.mubr.bf16.mxu0 0
      %4971 = vmatmul.mubr.bf16.gmra.mxu0 %v4836
      %v4972 = vpop.f32.mrf.mxu0
      %v4973 = vadd.f32 0.0, %v4972
      %v4974 = vpop.f32.mrf.mxu0
      %v4975 = vpop.f32.mrf.mxu0
      %v4976 = vadd.f32 0.0, %v4975
      %v4977 = vpop.f32.mrf.mxu0
      %4978 = vmatprep.mubr.bf16.mxu0 0
      %4979 = vmatmul.mubr.bf16.gmra.mxu0 %v4839
      %v4980 = vpop.f32.mrf.mxu0
      %v4981 = vadd.f32 0.0, %v4980
      %v4982 = vpop.f32.mrf.mxu0
      %v4983 = vpop.f32.mrf.mxu0
      %v4984 = vadd.f32 0.0, %v4983
      %v4985 = vpop.f32.mrf.mxu0
      %4986 = vmatprep.mubr.bf16.mxu0 0
      %4987 = vmatmul.mubr.bf16.gmra.mxu0 %v4842
      %v4988 = vpop.f32.mrf.mxu0
      %v4989 = vadd.f32 0.0, %v4988
      %v4990 = vpop.f32.mrf.mxu0
      %v4991 = vpop.f32.mrf.mxu0
      %v4992 = vadd.f32 0.0, %v4991
      %v4993 = vpop.f32.mrf.mxu0
      %4994 = vmatprep.mubr.bf16.mxu0 0
      %4995 = vmatmul.mubr.bf16.gmra.mxu0 %v4845
      %v4996 = vpop.f32.mrf.mxu0
      %v4997 = vadd.f32 0.0, %v4996
      %v4998 = vpop.f32.mrf.mxu0
      %v4999 = vpop.f32.mrf.mxu0
      %v5000 = vadd.f32 0.0, %v4999
      %v5001 = vpop.f32.mrf.mxu0
      %5002 = vmatprep.mubr.bf16.mxu0 0
      %5003 = vmatmul.mubr.bf16.gmra.mxu0 %v4848
      %v5004 = vpop.f32.mrf.mxu0
      %v5005 = vadd.f32 0.0, %v5004
      %v5006 = vpop.f32.mrf.mxu0
      %v5007 = vpop.f32.mrf.mxu0
      %v5008 = vadd.f32 0.0, %v5007
      %v5009 = vpop.f32.mrf.mxu0
      %5010 = vdwg.mxu0
      %v5011 = vadd.f32 %v4586, %v4885
      %v5012 = vadd.f32 %v4589, %v4888
      %v5013 = vadd.f32 %v4594, %v4893
      %v5014 = vadd.f32 %v4597, %v4896
      %v5015 = vadd.f32 %v4602, %v4901
      %v5016 = vadd.f32 %v4605, %v4904
      %v5017 = vadd.f32 %v4610, %v4909
      %v5018 = vadd.f32 %v4613, %v4912
      %v5019 = vadd.f32 %v4618, %v4917
      %v5020 = vadd.f32 %v4621, %v4920
      %v5021 = vadd.f32 %v4626, %v4925
      %v5022 = vadd.f32 %v4629, %v4928
      %v5023 = vadd.f32 %v4634, %v4933
      %v5024 = vadd.f32 %v4637, %v4936
      %v5025 = vadd.f32 %v4642, %v4941
      %v5026 = vadd.f32 %v4645, %v4944
      %v5027 = vadd.f32 %v4650, %v4949
      %v5028 = vadd.f32 %v4653, %v4952
      %v5029 = vadd.f32 %v4658, %v4957
      %v5030 = vadd.f32 %v4661, %v4960
      %v5031 = vadd.f32 %v4666, %v4965
      %v5032 = vadd.f32 %v4669, %v4968
      %v5033 = vadd.f32 %v4674, %v4973
      %v5034 = vadd.f32 %v4677, %v4976
      %v5035 = vadd.f32 %v4682, %v4981
      %v5036 = vadd.f32 %v4685, %v4984
      %v5037 = vadd.f32 %v4690, %v4989
      %v5038 = vadd.f32 %v4693, %v4992
      %v5039 = vadd.f32 %v4698, %v4997
      %v5040 = vadd.f32 %v4701, %v5000
      %v5041 = vadd.f32 %v4706, %v5005
      %v5042 = vadd.f32 %v4709, %v5008
      %s5043 = scalar_lea.vmem %s3, 24
      %v5044 = vld [vmem:[%s5043] sm:$0xf]
      %v5045 = vld [vmem:[%s5043 + $0x4] sm:$0xf]
      %v5048 = vunpack.c.l.b16 %v5044
      %v5049 = vunpack.c.l.b16 %v5045
      %v5050 = vpack.c.b16 %v5049, %v5048
      %v5053 = vsel %vm4303, %v4097, 0
      %5055 = vmatprep.subr.bf16.mxu0 0
      %5056 = vmatpush1.bf16.msra.mxu0 0
      %5057 = vmatprep.subr.bf16.mxu0 0
      %5058 = vmatpush1.bf16.msra.mxu0 0
      %5059 = vmatprep.subr.bf16.mxu0 0
      %5060 = vmatpush1.bf16.msra.mxu0 0
      %5061 = vmatprep.subr.bf16.mxu0 0
      %5062 = vmatpush1.bf16.msra.mxu0 0
      %5063 = vmatprep.subr.bf16.mxu0 0
      %5064 = vmatpush1.bf16.msra.mxu0 0
      %5065 = vmatprep.subr.bf16.mxu0 0
      %5066 = vmatpush1.bf16.msra.mxu0 0
      %5067 = vmatprep.subr.bf16.mxu0 0
      %5068 = vmatpush1.bf16.msra.mxu0 0
      %5069 = vmatprep.subr.bf16.mxu0 0
      %5070 = vmatpush1.bf16.msra.mxu0 %v5050
      %5071 = vmatprep.subr.bf16.mxu0 0
      %5072 = vmatpush2.bf16.msra.mxu0 0
      %5073 = vmatprep.subr.bf16.mxu0 0
      %5074 = vmatpush2.bf16.msra.mxu0 0
      %5075 = vmatprep.subr.bf16.mxu0 0
      %5076 = vmatpush2.bf16.msra.mxu0 0
      %5077 = vmatprep.subr.bf16.mxu0 0
      %5078 = vmatpush2.bf16.msra.mxu0 0
      %5079 = vmatprep.subr.bf16.mxu0 0
      %5080 = vmatpush2.bf16.msra.mxu0 0
      %5081 = vmatprep.subr.bf16.mxu0 0
      %5082 = vmatpush2.bf16.msra.mxu0 0
      %5083 = vmatprep.subr.bf16.mxu0 0
      %5084 = vmatpush2.bf16.msra.mxu0 0
      %5085 = vmatprep.subr.bf16.mxu0 0
      %5086 = vmatpush2.bf16.msra.mxu0 0
      %5087 = vmatprep.mubr.bf16.mxu0 0
      %5088 = vmatmul.mubr.bf16.gmra.mxu0 %v4521
      %v5089 = vpop.f32.mrf.mxu0
      %v5090 = vadd.f32 0.0, %v5089
      %v5091 = vpop.f32.mrf.mxu0
      %v5092 = vpop.f32.mrf.mxu0
      %v5093 = vadd.f32 0.0, %v5092
      %v5094 = vpop.f32.mrf.mxu0
      %5095 = vmatprep.mubr.bf16.mxu0 0
      %5096 = vmatmul.mubr.bf16.gmra.mxu0 %v4523
      %v5097 = vpop.f32.mrf.mxu0
      %v5098 = vadd.f32 0.0, %v5097
      %v5099 = vpop.f32.mrf.mxu0
      %v5100 = vpop.f32.mrf.mxu0
      %v5101 = vadd.f32 0.0, %v5100
      %v5102 = vpop.f32.mrf.mxu0
      %5103 = vmatprep.mubr.bf16.mxu0 0
      %5104 = vmatmul.mubr.bf16.gmra.mxu0 %v4525
      %v5105 = vpop.f32.mrf.mxu0
      %v5106 = vadd.f32 0.0, %v5105
      %v5107 = vpop.f32.mrf.mxu0
      %v5108 = vpop.f32.mrf.mxu0
      %v5109 = vadd.f32 0.0, %v5108
      %v5110 = vpop.f32.mrf.mxu0
      %5111 = vmatprep.mubr.bf16.mxu0 0
      %5112 = vmatmul.mubr.bf16.gmra.mxu0 %v4527
      %v5113 = vpop.f32.mrf.mxu0
      %v5114 = vadd.f32 0.0, %v5113
      %v5115 = vpop.f32.mrf.mxu0
      %v5116 = vpop.f32.mrf.mxu0
      %v5117 = vadd.f32 0.0, %v5116
      %v5118 = vpop.f32.mrf.mxu0
      %5119 = vmatprep.mubr.bf16.mxu0 0
      %5120 = vmatmul.mubr.bf16.gmra.mxu0 %v4529
      %v5121 = vpop.f32.mrf.mxu0
      %v5122 = vadd.f32 0.0, %v5121
      %v5123 = vpop.f32.mrf.mxu0
      %v5124 = vpop.f32.mrf.mxu0
      %v5125 = vadd.f32 0.0, %v5124
      %v5126 = vpop.f32.mrf.mxu0
      %5127 = vmatprep.mubr.bf16.mxu0 0
      %5128 = vmatmul.mubr.bf16.gmra.mxu0 %v4531
      %v5129 = vpop.f32.mrf.mxu0
      %v5130 = vadd.f32 0.0, %v5129
      %v5131 = vpop.f32.mrf.mxu0
      %v5132 = vpop.f32.mrf.mxu0
      %v5133 = vadd.f32 0.0, %v5132
      %v5134 = vpop.f32.mrf.mxu0
      %5135 = vmatprep.mubr.bf16.mxu0 0
      %5136 = vmatmul.mubr.bf16.gmra.mxu0 %v4533
      %v5137 = vpop.f32.mrf.mxu0
      %v5138 = vadd.f32 0.0, %v5137
      %v5139 = vpop.f32.mrf.mxu0
      %v5140 = vpop.f32.mrf.mxu0
      %v5141 = vadd.f32 0.0, %v5140
      %v5142 = vpop.f32.mrf.mxu0
      %5143 = vmatprep.mubr.bf16.mxu0 0
      %5144 = vmatmul.mubr.bf16.gmra.mxu0 %v4535
      %v5145 = vpop.f32.mrf.mxu0
      %v5146 = vadd.f32 0.0, %v5145
      %v5147 = vpop.f32.mrf.mxu0
      %v5148 = vpop.f32.mrf.mxu0
      %v5149 = vadd.f32 0.0, %v5148
      %v5150 = vpop.f32.mrf.mxu0
      %5151 = vmatprep.mubr.bf16.mxu0 0
      %5152 = vmatmul.mubr.bf16.gmra.mxu0 %v4537
      %v5153 = vpop.f32.mrf.mxu0
      %v5154 = vadd.f32 0.0, %v5153
      %v5155 = vpop.f32.mrf.mxu0
      %v5156 = vpop.f32.mrf.mxu0
      %v5157 = vadd.f32 0.0, %v5156
      %v5158 = vpop.f32.mrf.mxu0
      %5159 = vmatprep.mubr.bf16.mxu0 0
      %5160 = vmatmul.mubr.bf16.gmra.mxu0 %v4539
      %v5161 = vpop.f32.mrf.mxu0
      %v5162 = vadd.f32 0.0, %v5161
      %v5163 = vpop.f32.mrf.mxu0
      %v5164 = vpop.f32.mrf.mxu0
      %v5165 = vadd.f32 0.0, %v5164
      %v5166 = vpop.f32.mrf.mxu0
      %5167 = vmatprep.mubr.bf16.mxu0 0
      %5168 = vmatmul.mubr.bf16.gmra.mxu0 %v4541
      %v5169 = vpop.f32.mrf.mxu0
      %v5170 = vadd.f32 0.0, %v5169
      %v5171 = vpop.f32.mrf.mxu0
      %v5172 = vpop.f32.mrf.mxu0
      %v5173 = vadd.f32 0.0, %v5172
      %v5174 = vpop.f32.mrf.mxu0
      %5175 = vmatprep.mubr.bf16.mxu0 0
      %5176 = vmatmul.mubr.bf16.gmra.mxu0 %v4543
      %v5177 = vpop.f32.mrf.mxu0
      %v5178 = vadd.f32 0.0, %v5177
      %v5179 = vpop.f32.mrf.mxu0
      %v5180 = vpop.f32.mrf.mxu0
      %v5181 = vadd.f32 0.0, %v5180
      %v5182 = vpop.f32.mrf.mxu0
      %5183 = vmatprep.mubr.bf16.mxu0 0
      %5184 = vmatmul.mubr.bf16.gmra.mxu0 %v4545
      %v5185 = vpop.f32.mrf.mxu0
      %v5186 = vadd.f32 0.0, %v5185
      %v5187 = vpop.f32.mrf.mxu0
      %v5188 = vpop.f32.mrf.mxu0
      %v5189 = vadd.f32 0.0, %v5188
      %v5190 = vpop.f32.mrf.mxu0
      %5191 = vmatprep.mubr.bf16.mxu0 0
      %5192 = vmatmul.mubr.bf16.gmra.mxu0 %v4547
      %v5193 = vpop.f32.mrf.mxu0
      %v5194 = vadd.f32 0.0, %v5193
      %v5195 = vpop.f32.mrf.mxu0
      %v5196 = vpop.f32.mrf.mxu0
      %v5197 = vadd.f32 0.0, %v5196
      %v5198 = vpop.f32.mrf.mxu0
      %5199 = vmatprep.mubr.bf16.mxu0 0
      %5200 = vmatmul.mubr.bf16.gmra.mxu0 %v4549
      %v5201 = vpop.f32.mrf.mxu0
      %v5202 = vadd.f32 0.0, %v5201
      %v5203 = vpop.f32.mrf.mxu0
      %v5204 = vpop.f32.mrf.mxu0
      %v5205 = vadd.f32 0.0, %v5204
      %v5206 = vpop.f32.mrf.mxu0
      %5207 = vmatprep.mubr.bf16.mxu0 0
      %5208 = vmatmul.mubr.bf16.gmra.mxu0 %v5053
      %v5209 = vpop.f32.mrf.mxu0
      %v5210 = vadd.f32 0.0, %v5209
      %v5211 = vpop.f32.mrf.mxu0
      %v5212 = vpop.f32.mrf.mxu0
      %v5213 = vadd.f32 0.0, %v5212
      %v5214 = vpop.f32.mrf.mxu0
      %5215 = vdwg.mxu0
      %v5216 = vadd.f32 %v5011, %v5090
      %v5217 = vadd.f32 %v5012, %v5093
      %v5218 = vadd.f32 %v5013, %v5098
      %v5219 = vadd.f32 %v5014, %v5101
      %v5220 = vadd.f32 %v5015, %v5106
      %v5221 = vadd.f32 %v5016, %v5109
      %v5222 = vadd.f32 %v5017, %v5114
      %v5223 = vadd.f32 %v5018, %v5117
      %v5224 = vadd.f32 %v5019, %v5122
      %v5225 = vadd.f32 %v5020, %v5125
      %v5226 = vadd.f32 %v5021, %v5130
      %v5227 = vadd.f32 %v5022, %v5133
      %v5228 = vadd.f32 %v5023, %v5138
      %v5229 = vadd.f32 %v5024, %v5141
      %v5230 = vadd.f32 %v5025, %v5146
      %v5231 = vadd.f32 %v5026, %v5149
      %v5232 = vadd.f32 %v5027, %v5154
      %v5233 = vadd.f32 %v5028, %v5157
      %v5234 = vadd.f32 %v5029, %v5162
      %v5235 = vadd.f32 %v5030, %v5165
      %v5236 = vadd.f32 %v5031, %v5170
      %v5237 = vadd.f32 %v5032, %v5173
      %v5238 = vadd.f32 %v5033, %v5178
      %v5239 = vadd.f32 %v5034, %v5181
      %v5240 = vadd.f32 %v5035, %v5186
      %v5241 = vadd.f32 %v5036, %v5189
      %v5242 = vadd.f32 %v5037, %v5194
      %v5243 = vadd.f32 %v5038, %v5197
      %v5244 = vadd.f32 %v5039, %v5202
      %v5245 = vadd.f32 %v5040, %v5205
      %v5246 = vadd.f32 %v5041, %v5210
      %v5247 = vadd.f32 %v5042, %v5213
      %v5248 = vshrl.u32 %v4097, 16
      %v5250 = vshll.u32 %v4097, 16
      %v5252 = vrot.slane %v5250, 1
      %v5253 = vor.u32 %v5248, %v5252
      %v5255 = vshll.u32 %v4098, 16
      %v5257 = vrot.slane %v5255, 1
      %v5258 = vsel %vm4101, %v5253, %v5257
      %s5259 = scalar_lea.vmem %s3, 32
      %v5260 = vld [vmem:[%s5259] sm:$0xf]
      %v5261 = vld [vmem:[%s5259 + $0x4] sm:$0xf]
      %v5264 = vunpack.c.l.b16 %v5260
      %v5265 = vunpack.c.l.b16 %v5261
      %v5266 = vpack.c.b16 %v5265, %v5264
      %v5269 = vsel %vm4303, %v5258, 0
      %5271 = vmatprep.subr.bf16.mxu0 0
      %5272 = vmatpush1.bf16.msra.mxu0 0
      %5273 = vmatprep.subr.bf16.mxu0 0
      %5274 = vmatpush1.bf16.msra.mxu0 0
      %5275 = vmatprep.subr.bf16.mxu0 0
      %5276 = vmatpush1.bf16.msra.mxu0 0
      %5277 = vmatprep.subr.bf16.mxu0 0
      %5278 = vmatpush1.bf16.msra.mxu0 0
      %5279 = vmatprep.subr.bf16.mxu0 0
      %5280 = vmatpush1.bf16.msra.mxu0 0
      %5281 = vmatprep.subr.bf16.mxu0 0
      %5282 = vmatpush1.bf16.msra.mxu0 0
      %5283 = vmatprep.subr.bf16.mxu0 0
      %5284 = vmatpush1.bf16.msra.mxu0 0
      %5285 = vmatprep.subr.bf16.mxu0 0
      %5286 = vmatpush1.bf16.msra.mxu0 %v5266
      %5287 = vmatprep.subr.bf16.mxu0 0
      %5288 = vmatpush2.bf16.msra.mxu0 0
      %5289 = vmatprep.subr.bf16.mxu0 0
      %5290 = vmatpush2.bf16.msra.mxu0 0
      %5291 = vmatprep.subr.bf16.mxu0 0
      %5292 = vmatpush2.bf16.msra.mxu0 0
      %5293 = vmatprep.subr.bf16.mxu0 0
      %5294 = vmatpush2.bf16.msra.mxu0 0
      %5295 = vmatprep.subr.bf16.mxu0 0
      %5296 = vmatpush2.bf16.msra.mxu0 0
      %5297 = vmatprep.subr.bf16.mxu0 0
      %5298 = vmatpush2.bf16.msra.mxu0 0
      %5299 = vmatprep.subr.bf16.mxu0 0
      %5300 = vmatpush2.bf16.msra.mxu0 0
      %5301 = vmatprep.subr.bf16.mxu0 0
      %5302 = vmatpush2.bf16.msra.mxu0 0
      %5303 = vmatprep.mubr.bf16.mxu0 0
      %5304 = vmatmul.mubr.bf16.gmra.mxu0 %v4308
      %v5305 = vpop.f32.mrf.mxu0
      %v5306 = vadd.f32 0.0, %v5305
      %v5307 = vpop.f32.mrf.mxu0
      %v5308 = vpop.f32.mrf.mxu0
      %v5309 = vadd.f32 0.0, %v5308
      %v5310 = vpop.f32.mrf.mxu0
      %5311 = vmatprep.mubr.bf16.mxu0 0
      %5312 = vmatmul.mubr.bf16.gmra.mxu0 %v4311
      %v5313 = vpop.f32.mrf.mxu0
      %v5314 = vadd.f32 0.0, %v5313
      %v5315 = vpop.f32.mrf.mxu0
      %v5316 = vpop.f32.mrf.mxu0
      %v5317 = vadd.f32 0.0, %v5316
      %v5318 = vpop.f32.mrf.mxu0
      %5319 = vmatprep.mubr.bf16.mxu0 0
      %5320 = vmatmul.mubr.bf16.gmra.mxu0 %v4314
      %v5321 = vpop.f32.mrf.mxu0
      %v5322 = vadd.f32 0.0, %v5321
      %v5323 = vpop.f32.mrf.mxu0
      %v5324 = vpop.f32.mrf.mxu0
      %v5325 = vadd.f32 0.0, %v5324
      %v5326 = vpop.f32.mrf.mxu0
      %5327 = vmatprep.mubr.bf16.mxu0 0
      %5328 = vmatmul.mubr.bf16.gmra.mxu0 %v4317
      %v5329 = vpop.f32.mrf.mxu0
      %v5330 = vadd.f32 0.0, %v5329
      %v5331 = vpop.f32.mrf.mxu0
      %v5332 = vpop.f32.mrf.mxu0
      %v5333 = vadd.f32 0.0, %v5332
      %v5334 = vpop.f32.mrf.mxu0
      %5335 = vmatprep.mubr.bf16.mxu0 0
      %5336 = vmatmul.mubr.bf16.gmra.mxu0 %v4320
      %v5337 = vpop.f32.mrf.mxu0
      %v5338 = vadd.f32 0.0, %v5337
      %v5339 = vpop.f32.mrf.mxu0
      %v5340 = vpop.f32.mrf.mxu0
      %v5341 = vadd.f32 0.0, %v5340
      %v5342 = vpop.f32.mrf.mxu0
      %5343 = vmatprep.mubr.bf16.mxu0 0
      %5344 = vmatmul.mubr.bf16.gmra.mxu0 %v4323
      %v5345 = vpop.f32.mrf.mxu0
      %v5346 = vadd.f32 0.0, %v5345
      %v5347 = vpop.f32.mrf.mxu0
      %v5348 = vpop.f32.mrf.mxu0
      %v5349 = vadd.f32 0.0, %v5348
      %v5350 = vpop.f32.mrf.mxu0
      %5351 = vmatprep.mubr.bf16.mxu0 0
      %5352 = vmatmul.mubr.bf16.gmra.mxu0 %v4326
      %v5353 = vpop.f32.mrf.mxu0
      %v5354 = vadd.f32 0.0, %v5353
      %v5355 = vpop.f32.mrf.mxu0
      %v5356 = vpop.f32.mrf.mxu0
      %v5357 = vadd.f32 0.0, %v5356
      %v5358 = vpop.f32.mrf.mxu0
      %5359 = vmatprep.mubr.bf16.mxu0 0
      %5360 = vmatmul.mubr.bf16.gmra.mxu0 %v4329
      %v5361 = vpop.f32.mrf.mxu0
      %v5362 = vadd.f32 0.0, %v5361
      %v5363 = vpop.f32.mrf.mxu0
      %v5364 = vpop.f32.mrf.mxu0
      %v5365 = vadd.f32 0.0, %v5364
      %v5366 = vpop.f32.mrf.mxu0
      %5367 = vmatprep.mubr.bf16.mxu0 0
      %5368 = vmatmul.mubr.bf16.gmra.mxu0 %v4332
      %v5369 = vpop.f32.mrf.mxu0
      %v5370 = vadd.f32 0.0, %v5369
      %v5371 = vpop.f32.mrf.mxu0
      %v5372 = vpop.f32.mrf.mxu0
      %v5373 = vadd.f32 0.0, %v5372
      %v5374 = vpop.f32.mrf.mxu0
      %5375 = vmatprep.mubr.bf16.mxu0 0
      %5376 = vmatmul.mubr.bf16.gmra.mxu0 %v4335
      %v5377 = vpop.f32.mrf.mxu0
      %v5378 = vadd.f32 0.0, %v5377
      %v5379 = vpop.f32.mrf.mxu0
      %v5380 = vpop.f32.mrf.mxu0
      %v5381 = vadd.f32 0.0, %v5380
      %v5382 = vpop.f32.mrf.mxu0
      %5383 = vmatprep.mubr.bf16.mxu0 0
      %5384 = vmatmul.mubr.bf16.gmra.mxu0 %v4338
      %v5385 = vpop.f32.mrf.mxu0
      %v5386 = vadd.f32 0.0, %v5385
      %v5387 = vpop.f32.mrf.mxu0
      %v5388 = vpop.f32.mrf.mxu0
      %v5389 = vadd.f32 0.0, %v5388
      %v5390 = vpop.f32.mrf.mxu0
      %5391 = vmatprep.mubr.bf16.mxu0 0
      %5392 = vmatmul.mubr.bf16.gmra.mxu0 %v4341
      %v5393 = vpop.f32.mrf.mxu0
      %v5394 = vadd.f32 0.0, %v5393
      %v5395 = vpop.f32.mrf.mxu0
      %v5396 = vpop.f32.mrf.mxu0
      %v5397 = vadd.f32 0.0, %v5396
      %v5398 = vpop.f32.mrf.mxu0
      %5399 = vmatprep.mubr.bf16.mxu0 0
      %5400 = vmatmul.mubr.bf16.gmra.mxu0 %v4344
      %v5401 = vpop.f32.mrf.mxu0
      %v5402 = vadd.f32 0.0, %v5401
      %v5403 = vpop.f32.mrf.mxu0
      %v5404 = vpop.f32.mrf.mxu0
      %v5405 = vadd.f32 0.0, %v5404
      %v5406 = vpop.f32.mrf.mxu0
      %5407 = vmatprep.mubr.bf16.mxu0 0
      %5408 = vmatmul.mubr.bf16.gmra.mxu0 %v4347
      %v5409 = vpop.f32.mrf.mxu0
      %v5410 = vadd.f32 0.0, %v5409
      %v5411 = vpop.f32.mrf.mxu0
      %v5412 = vpop.f32.mrf.mxu0
      %v5413 = vadd.f32 0.0, %v5412
      %v5414 = vpop.f32.mrf.mxu0
      %5415 = vmatprep.mubr.bf16.mxu0 0
      %5416 = vmatmul.mubr.bf16.gmra.mxu0 %v4350
      %v5417 = vpop.f32.mrf.mxu0
      %v5418 = vadd.f32 0.0, %v5417
      %v5419 = vpop.f32.mrf.mxu0
      %v5420 = vpop.f32.mrf.mxu0
      %v5421 = vadd.f32 0.0, %v5420
      %v5422 = vpop.f32.mrf.mxu0
      %5423 = vmatprep.mubr.bf16.mxu0 0
      %5424 = vmatmul.mubr.bf16.gmra.mxu0 %v5269
      %v5425 = vpop.f32.mrf.mxu0
      %v5426 = vadd.f32 0.0, %v5425
      %v5427 = vpop.f32.mrf.mxu0
      %v5428 = vpop.f32.mrf.mxu0
      %v5429 = vadd.f32 0.0, %v5428
      %v5430 = vpop.f32.mrf.mxu0
      %5431 = vdwg.mxu0
      %v5432 = vadd.f32 %v5216, %v5306
      %v5433 = vadd.f32 %v5217, %v5309
      %v5434 = vadd.f32 %v5218, %v5314
      %v5435 = vadd.f32 %v5219, %v5317
      %v5436 = vadd.f32 %v5220, %v5322
      %v5437 = vadd.f32 %v5221, %v5325
      %v5438 = vadd.f32 %v5222, %v5330
      %v5439 = vadd.f32 %v5223, %v5333
      %v5440 = vadd.f32 %v5224, %v5338
      %v5441 = vadd.f32 %v5225, %v5341
      %v5442 = vadd.f32 %v5226, %v5346
      %v5443 = vadd.f32 %v5227, %v5349
      %v5444 = vadd.f32 %v5228, %v5354
      %v5445 = vadd.f32 %v5229, %v5357
      %v5446 = vadd.f32 %v5230, %v5362
      %v5447 = vadd.f32 %v5231, %v5365
      %v5448 = vadd.f32 %v5232, %v5370
      %v5449 = vadd.f32 %v5233, %v5373
      %v5450 = vadd.f32 %v5234, %v5378
      %v5451 = vadd.f32 %v5235, %v5381
      %v5452 = vadd.f32 %v5236, %v5386
      %v5453 = vadd.f32 %v5237, %v5389
      %v5454 = vadd.f32 %v5238, %v5394
      %v5455 = vadd.f32 %v5239, %v5397
      %v5456 = vadd.f32 %v5240, %v5402
      %v5457 = vadd.f32 %v5241, %v5405
      %v5458 = vadd.f32 %v5242, %v5410
      %v5459 = vadd.f32 %v5243, %v5413
      %v5460 = vadd.f32 %v5244, %v5418
      %v5461 = vadd.f32 %v5245, %v5421
      %v5462 = vadd.f32 %v5246, %v5426
      %v5463 = vadd.f32 %v5247, %v5429
      %v5466 = vrot.slane %v4097, 1
      %v5467 = vrot.slane %v4098, 1
      %v5468 = vsel %vm4744, %v5466, %v5467
      %s5469 = scalar_lea.vmem %s3, 40
      %v5470 = vld [vmem:[%s5469] sm:$0xf]
      %v5471 = vld [vmem:[%s5469 + $0x4] sm:$0xf]
      %v5474 = vunpack.c.l.b16 %v5470
      %v5475 = vunpack.c.l.b16 %v5471
      %v5476 = vpack.c.b16 %v5475, %v5474
      %v5479 = vsel %vm4303, %v5468, 0
      %5481 = vmatprep.subr.bf16.mxu0 0
      %5482 = vmatpush1.bf16.msra.mxu0 0
      %5483 = vmatprep.subr.bf16.mxu0 0
      %5484 = vmatpush1.bf16.msra.mxu0 0
      %5485 = vmatprep.subr.bf16.mxu0 0
      %5486 = vmatpush1.bf16.msra.mxu0 0
      %5487 = vmatprep.subr.bf16.mxu0 0
      %5488 = vmatpush1.bf16.msra.mxu0 0
      %5489 = vmatprep.subr.bf16.mxu0 0
      %5490 = vmatpush1.bf16.msra.mxu0 0
      %5491 = vmatprep.subr.bf16.mxu0 0
      %5492 = vmatpush1.bf16.msra.mxu0 0
      %5493 = vmatprep.subr.bf16.mxu0 0
      %5494 = vmatpush1.bf16.msra.mxu0 0
      %5495 = vmatprep.subr.bf16.mxu0 0
      %5496 = vmatpush1.bf16.msra.mxu0 %v5476
      %5497 = vmatprep.subr.bf16.mxu0 0
      %5498 = vmatpush2.bf16.msra.mxu0 0
      %5499 = vmatprep.subr.bf16.mxu0 0
      %5500 = vmatpush2.bf16.msra.mxu0 0
      %5501 = vmatprep.subr.bf16.mxu0 0
      %5502 = vmatpush2.bf16.msra.mxu0 0
      %5503 = vmatprep.subr.bf16.mxu0 0
      %5504 = vmatpush2.bf16.msra.mxu0 0
      %5505 = vmatprep.subr.bf16.mxu0 0
      %5506 = vmatpush2.bf16.msra.mxu0 0
      %5507 = vmatprep.subr.bf16.mxu0 0
      %5508 = vmatpush2.bf16.msra.mxu0 0
      %5509 = vmatprep.subr.bf16.mxu0 0
      %5510 = vmatpush2.bf16.msra.mxu0 0
      %5511 = vmatprep.subr.bf16.mxu0 0
      %5512 = vmatpush2.bf16.msra.mxu0 0
      %5513 = vmatprep.mubr.bf16.mxu0 0
      %5514 = vmatmul.mubr.bf16.gmra.mxu0 %v4806
      %v5515 = vpop.f32.mrf.mxu0
      %v5516 = vadd.f32 0.0, %v5515
      %v5517 = vpop.f32.mrf.mxu0
      %v5518 = vpop.f32.mrf.mxu0
      %v5519 = vadd.f32 0.0, %v5518
      %v5520 = vpop.f32.mrf.mxu0
      %5521 = vmatprep.mubr.bf16.mxu0 0
      %5522 = vmatmul.mubr.bf16.gmra.mxu0 %v4809
      %v5523 = vpop.f32.mrf.mxu0
      %v5524 = vadd.f32 0.0, %v5523
      %v5525 = vpop.f32.mrf.mxu0
      %v5526 = vpop.f32.mrf.mxu0
      %v5527 = vadd.f32 0.0, %v5526
      %v5528 = vpop.f32.mrf.mxu0
      %5529 = vmatprep.mubr.bf16.mxu0 0
      %5530 = vmatmul.mubr.bf16.gmra.mxu0 %v4812
      %v5531 = vpop.f32.mrf.mxu0
      %v5532 = vadd.f32 0.0, %v5531
      %v5533 = vpop.f32.mrf.mxu0
      %v5534 = vpop.f32.mrf.mxu0
      %v5535 = vadd.f32 0.0, %v5534
      %v5536 = vpop.f32.mrf.mxu0
      %5537 = vmatprep.mubr.bf16.mxu0 0
      %5538 = vmatmul.mubr.bf16.gmra.mxu0 %v4815
      %v5539 = vpop.f32.mrf.mxu0
      %v5540 = vadd.f32 0.0, %v5539
      %v5541 = vpop.f32.mrf.mxu0
      %v5542 = vpop.f32.mrf.mxu0
      %v5543 = vadd.f32 0.0, %v5542
      %v5544 = vpop.f32.mrf.mxu0
      %5545 = vmatprep.mubr.bf16.mxu0 0
      %5546 = vmatmul.mubr.bf16.gmra.mxu0 %v4818
      %v5547 = vpop.f32.mrf.mxu0
      %v5548 = vadd.f32 0.0, %v5547
      %v5549 = vpop.f32.mrf.mxu0
      %v5550 = vpop.f32.mrf.mxu0
      %v5551 = vadd.f32 0.0, %v5550
      %v5552 = vpop.f32.mrf.mxu0
      %5553 = vmatprep.mubr.bf16.mxu0 0
      %5554 = vmatmul.mubr.bf16.gmra.mxu0 %v4821
      %v5555 = vpop.f32.mrf.mxu0
      %v5556 = vadd.f32 0.0, %v5555
      %v5557 = vpop.f32.mrf.mxu0
      %v5558 = vpop.f32.mrf.mxu0
      %v5559 = vadd.f32 0.0, %v5558
      %v5560 = vpop.f32.mrf.mxu0
      %5561 = vmatprep.mubr.bf16.mxu0 0
      %5562 = vmatmul.mubr.bf16.gmra.mxu0 %v4824
      %v5563 = vpop.f32.mrf.mxu0
      %v5564 = vadd.f32 0.0, %v5563
      %v5565 = vpop.f32.mrf.mxu0
      %v5566 = vpop.f32.mrf.mxu0
      %v5567 = vadd.f32 0.0, %v5566
      %v5568 = vpop.f32.mrf.mxu0
      %5569 = vmatprep.mubr.bf16.mxu0 0
      %5570 = vmatmul.mubr.bf16.gmra.mxu0 %v4827
      %v5571 = vpop.f32.mrf.mxu0
      %v5572 = vadd.f32 0.0, %v5571
      %v5573 = vpop.f32.mrf.mxu0
      %v5574 = vpop.f32.mrf.mxu0
      %v5575 = vadd.f32 0.0, %v5574
      %v5576 = vpop.f32.mrf.mxu0
      %5577 = vmatprep.mubr.bf16.mxu0 0
      %5578 = vmatmul.mubr.bf16.gmra.mxu0 %v4830
      %v5579 = vpop.f32.mrf.mxu0
      %v5580 = vadd.f32 0.0, %v5579
      %v5581 = vpop.f32.mrf.mxu0
      %v5582 = vpop.f32.mrf.mxu0
      %v5583 = vadd.f32 0.0, %v5582
      %v5584 = vpop.f32.mrf.mxu0
      %5585 = vmatprep.mubr.bf16.mxu0 0
      %5586 = vmatmul.mubr.bf16.gmra.mxu0 %v4833
      %v5587 = vpop.f32.mrf.mxu0
      %v5588 = vadd.f32 0.0, %v5587
      %v5589 = vpop.f32.mrf.mxu0
      %v5590 = vpop.f32.mrf.mxu0
      %v5591 = vadd.f32 0.0, %v5590
      %v5592 = vpop.f32.mrf.mxu0
      %5593 = vmatprep.mubr.bf16.mxu0 0
      %5594 = vmatmul.mubr.bf16.gmra.mxu0 %v4836
      %v5595 = vpop.f32.mrf.mxu0
      %v5596 = vadd.f32 0.0, %v5595
      %v5597 = vpop.f32.mrf.mxu0
      %v5598 = vpop.f32.mrf.mxu0
      %v5599 = vadd.f32 0.0, %v5598
      %v5600 = vpop.f32.mrf.mxu0
      %5601 = vmatprep.mubr.bf16.mxu0 0
      %5602 = vmatmul.mubr.bf16.gmra.mxu0 %v4839
      %v5603 = vpop.f32.mrf.mxu0
      %v5604 = vadd.f32 0.0, %v5603
      %v5605 = vpop.f32.mrf.mxu0
      %v5606 = vpop.f32.mrf.mxu0
      %v5607 = vadd.f32 0.0, %v5606
      %v5608 = vpop.f32.mrf.mxu0
      %5609 = vmatprep.mubr.bf16.mxu0 0
      %5610 = vmatmul.mubr.bf16.gmra.mxu0 %v4842
      %v5611 = vpop.f32.mrf.mxu0
      %v5612 = vadd.f32 0.0, %v5611
      %v5613 = vpop.f32.mrf.mxu0
      %v5614 = vpop.f32.mrf.mxu0
      %v5615 = vadd.f32 0.0, %v5614
      %v5616 = vpop.f32.mrf.mxu0
      %5617 = vmatprep.mubr.bf16.mxu0 0
      %5618 = vmatmul.mubr.bf16.gmra.mxu0 %v4845
      %v5619 = vpop.f32.mrf.mxu0
      %v5620 = vadd.f32 0.0, %v5619
      %v5621 = vpop.f32.mrf.mxu0
      %v5622 = vpop.f32.mrf.mxu0
      %v5623 = vadd.f32 0.0, %v5622
      %v5624 = vpop.f32.mrf.mxu0
      %5625 = vmatprep.mubr.bf16.mxu0 0
      %5626 = vmatmul.mubr.bf16.gmra.mxu0 %v4848
      %v5627 = vpop.f32.mrf.mxu0
      %v5628 = vadd.f32 0.0, %v5627
      %v5629 = vpop.f32.mrf.mxu0
      %v5630 = vpop.f32.mrf.mxu0
      %v5631 = vadd.f32 0.0, %v5630
      %v5632 = vpop.f32.mrf.mxu0
      %5633 = vmatprep.mubr.bf16.mxu0 0
      %5634 = vmatmul.mubr.bf16.gmra.mxu0 %v5479
      %v5635 = vpop.f32.mrf.mxu0
      %v5636 = vadd.f32 0.0, %v5635
      %v5637 = vpop.f32.mrf.mxu0
      %v5638 = vpop.f32.mrf.mxu0
      %v5639 = vadd.f32 0.0, %v5638
      %v5640 = vpop.f32.mrf.mxu0
      %5641 = vdwg.mxu0
      %v5642 = vadd.f32 %v5432, %v5516
      %v5643 = vadd.f32 %v5433, %v5519
      %v5644 = vadd.f32 %v5434, %v5524
      %v5645 = vadd.f32 %v5435, %v5527
      %v5646 = vadd.f32 %v5436, %v5532
      %v5647 = vadd.f32 %v5437, %v5535
      %v5648 = vadd.f32 %v5438, %v5540
      %v5649 = vadd.f32 %v5439, %v5543
      %v5650 = vadd.f32 %v5440, %v5548
      %v5651 = vadd.f32 %v5441, %v5551
      %v5652 = vadd.f32 %v5442, %v5556
      %v5653 = vadd.f32 %v5443, %v5559
      %v5654 = vadd.f32 %v5444, %v5564
      %v5655 = vadd.f32 %v5445, %v5567
      %v5656 = vadd.f32 %v5446, %v5572
      %v5657 = vadd.f32 %v5447, %v5575
      %v5658 = vadd.f32 %v5448, %v5580
      %v5659 = vadd.f32 %v5449, %v5583
      %v5660 = vadd.f32 %v5450, %v5588
      %v5661 = vadd.f32 %v5451, %v5591
      %v5662 = vadd.f32 %v5452, %v5596
      %v5663 = vadd.f32 %v5453, %v5599
      %v5664 = vadd.f32 %v5454, %v5604
      %v5665 = vadd.f32 %v5455, %v5607
      %v5666 = vadd.f32 %v5456, %v5612
      %v5667 = vadd.f32 %v5457, %v5615
      %v5668 = vadd.f32 %v5458, %v5620
      %v5669 = vadd.f32 %v5459, %v5623
      %v5670 = vadd.f32 %v5460, %v5628
      %v5671 = vadd.f32 %v5461, %v5631
      %v5672 = vadd.f32 %v5462, %v5636
      %v5673 = vadd.f32 %v5463, %v5639
      %s5674 = scalar_lea.vmem %s3, 48
      %v5675 = vld [vmem:[%s5674] sm:$0xf]
      %v5676 = vld [vmem:[%s5674 + $0x4] sm:$0xf]
      %v5679 = vunpack.c.l.b16 %v5675
      %v5680 = vunpack.c.l.b16 %v5676
      %v5681 = vpack.c.b16 %v5680, %v5679
      %5683 = vmatprep.subr.bf16.mxu0 0
      %5684 = vmatpush1.bf16.msra.mxu0 0
      %5685 = vmatprep.subr.bf16.mxu0 0
      %5686 = vmatpush1.bf16.msra.mxu0 0
      %5687 = vmatprep.subr.bf16.mxu0 0
      %5688 = vmatpush1.bf16.msra.mxu0 0
      %5689 = vmatprep.subr.bf16.mxu0 0
      %5690 = vmatpush1.bf16.msra.mxu0 0
      %5691 = vmatprep.subr.bf16.mxu0 0
      %5692 = vmatpush1.bf16.msra.mxu0 0
      %5693 = vmatprep.subr.bf16.mxu0 0
      %5694 = vmatpush1.bf16.msra.mxu0 0
      %5695 = vmatprep.subr.bf16.mxu0 0
      %5696 = vmatpush1.bf16.msra.mxu0 0
      %5697 = vmatprep.subr.bf16.mxu0 0
      %5698 = vmatpush1.bf16.msra.mxu0 %v5681
      %5699 = vmatprep.subr.bf16.mxu0 0
      %5700 = vmatpush2.bf16.msra.mxu0 0
      %5701 = vmatprep.subr.bf16.mxu0 0
      %5702 = vmatpush2.bf16.msra.mxu0 0
      %5703 = vmatprep.subr.bf16.mxu0 0
      %5704 = vmatpush2.bf16.msra.mxu0 0
      %5705 = vmatprep.subr.bf16.mxu0 0
      %5706 = vmatpush2.bf16.msra.mxu0 0
      %5707 = vmatprep.subr.bf16.mxu0 0
      %5708 = vmatpush2.bf16.msra.mxu0 0
      %5709 = vmatprep.subr.bf16.mxu0 0
      %5710 = vmatpush2.bf16.msra.mxu0 0
      %5711 = vmatprep.subr.bf16.mxu0 0
      %5712 = vmatpush2.bf16.msra.mxu0 0
      %5713 = vmatprep.subr.bf16.mxu0 0
      %5714 = vmatpush2.bf16.msra.mxu0 0
      %5715 = vmatprep.mubr.bf16.mxu0 0
      %5716 = vmatmul.mubr.bf16.gmra.mxu0 %v4523
      %v5717 = vpop.f32.mrf.mxu0
      %v5718 = vadd.f32 0.0, %v5717
      %v5719 = vpop.f32.mrf.mxu0
      %v5720 = vpop.f32.mrf.mxu0
      %v5721 = vadd.f32 0.0, %v5720
      %v5722 = vpop.f32.mrf.mxu0
      %5723 = vmatprep.mubr.bf16.mxu0 0
      %5724 = vmatmul.mubr.bf16.gmra.mxu0 %v4525
      %v5725 = vpop.f32.mrf.mxu0
      %v5726 = vadd.f32 0.0, %v5725
      %v5727 = vpop.f32.mrf.mxu0
      %v5728 = vpop.f32.mrf.mxu0
      %v5729 = vadd.f32 0.0, %v5728
      %v5730 = vpop.f32.mrf.mxu0
      %5731 = vmatprep.mubr.bf16.mxu0 0
      %5732 = vmatmul.mubr.bf16.gmra.mxu0 %v4527
      %v5733 = vpop.f32.mrf.mxu0
      %v5734 = vadd.f32 0.0, %v5733
      %v5735 = vpop.f32.mrf.mxu0
      %v5736 = vpop.f32.mrf.mxu0
      %v5737 = vadd.f32 0.0, %v5736
      %v5738 = vpop.f32.mrf.mxu0
      %5739 = vmatprep.mubr.bf16.mxu0 0
      %5740 = vmatmul.mubr.bf16.gmra.mxu0 %v4529
      %v5741 = vpop.f32.mrf.mxu0
      %v5742 = vadd.f32 0.0, %v5741
      %v5743 = vpop.f32.mrf.mxu0
      %v5744 = vpop.f32.mrf.mxu0
      %v5745 = vadd.f32 0.0, %v5744
      %v5746 = vpop.f32.mrf.mxu0
      %5747 = vmatprep.mubr.bf16.mxu0 0
      %5748 = vmatmul.mubr.bf16.gmra.mxu0 %v4531
      %v5749 = vpop.f32.mrf.mxu0
      %v5750 = vadd.f32 0.0, %v5749
      %v5751 = vpop.f32.mrf.mxu0
      %v5752 = vpop.f32.mrf.mxu0
      %v5753 = vadd.f32 0.0, %v5752
      %v5754 = vpop.f32.mrf.mxu0
      %5755 = vmatprep.mubr.bf16.mxu0 0
      %5756 = vmatmul.mubr.bf16.gmra.mxu0 %v4533
      %v5757 = vpop.f32.mrf.mxu0
      %v5758 = vadd.f32 0.0, %v5757
      %v5759 = vpop.f32.mrf.mxu0
      %v5760 = vpop.f32.mrf.mxu0
      %v5761 = vadd.f32 0.0, %v5760
      %v5762 = vpop.f32.mrf.mxu0
      %5763 = vmatprep.mubr.bf16.mxu0 0
      %5764 = vmatmul.mubr.bf16.gmra.mxu0 %v4535
      %v5765 = vpop.f32.mrf.mxu0
      %v5766 = vadd.f32 0.0, %v5765
      %v5767 = vpop.f32.mrf.mxu0
      %v5768 = vpop.f32.mrf.mxu0
      %v5769 = vadd.f32 0.0, %v5768
      %v5770 = vpop.f32.mrf.mxu0
      %5771 = vmatprep.mubr.bf16.mxu0 0
      %5772 = vmatmul.mubr.bf16.gmra.mxu0 %v4537
      %v5773 = vpop.f32.mrf.mxu0
      %v5774 = vadd.f32 0.0, %v5773
      %v5775 = vpop.f32.mrf.mxu0
      %v5776 = vpop.f32.mrf.mxu0
      %v5777 = vadd.f32 0.0, %v5776
      %v5778 = vpop.f32.mrf.mxu0
      %5779 = vmatprep.mubr.bf16.mxu0 0
      %5780 = vmatmul.mubr.bf16.gmra.mxu0 %v4539
      %v5781 = vpop.f32.mrf.mxu0
      %v5782 = vadd.f32 0.0, %v5781
      %v5783 = vpop.f32.mrf.mxu0
      %v5784 = vpop.f32.mrf.mxu0
      %v5785 = vadd.f32 0.0, %v5784
      %v5786 = vpop.f32.mrf.mxu0
      %5787 = vmatprep.mubr.bf16.mxu0 0
      %5788 = vmatmul.mubr.bf16.gmra.mxu0 %v4541
      %v5789 = vpop.f32.mrf.mxu0
      %v5790 = vadd.f32 0.0, %v5789
      %v5791 = vpop.f32.mrf.mxu0
      %v5792 = vpop.f32.mrf.mxu0
      %v5793 = vadd.f32 0.0, %v5792
      %v5794 = vpop.f32.mrf.mxu0
      %5795 = vmatprep.mubr.bf16.mxu0 0
      %5796 = vmatmul.mubr.bf16.gmra.mxu0 %v4543
      %v5797 = vpop.f32.mrf.mxu0
      %v5798 = vadd.f32 0.0, %v5797
      %v5799 = vpop.f32.mrf.mxu0
      %v5800 = vpop.f32.mrf.mxu0
      %v5801 = vadd.f32 0.0, %v5800
      %v5802 = vpop.f32.mrf.mxu0
      %5803 = vmatprep.mubr.bf16.mxu0 0
      %5804 = vmatmul.mubr.bf16.gmra.mxu0 %v4545
      %v5805 = vpop.f32.mrf.mxu0
      %v5806 = vadd.f32 0.0, %v5805
      %v5807 = vpop.f32.mrf.mxu0
      %v5808 = vpop.f32.mrf.mxu0
      %v5809 = vadd.f32 0.0, %v5808
      %v5810 = vpop.f32.mrf.mxu0
      %5811 = vmatprep.mubr.bf16.mxu0 0
      %5812 = vmatmul.mubr.bf16.gmra.mxu0 %v4547
      %v5813 = vpop.f32.mrf.mxu0
      %v5814 = vadd.f32 0.0, %v5813
      %v5815 = vpop.f32.mrf.mxu0
      %v5816 = vpop.f32.mrf.mxu0
      %v5817 = vadd.f32 0.0, %v5816
      %v5818 = vpop.f32.mrf.mxu0
      %5819 = vmatprep.mubr.bf16.mxu0 0
      %5820 = vmatmul.mubr.bf16.gmra.mxu0 %v4549
      %v5821 = vpop.f32.mrf.mxu0
      %v5822 = vadd.f32 0.0, %v5821
      %v5823 = vpop.f32.mrf.mxu0
      %v5824 = vpop.f32.mrf.mxu0
      %v5825 = vadd.f32 0.0, %v5824
      %v5826 = vpop.f32.mrf.mxu0
      %5827 = vmatprep.mubr.bf16.mxu0 0
      %5828 = vmatmul.mubr.bf16.gmra.mxu0 %v5053
      %v5829 = vpop.f32.mrf.mxu0
      %v5830 = vadd.f32 0.0, %v5829
      %v5831 = vpop.f32.mrf.mxu0
      %v5832 = vpop.f32.mrf.mxu0
      %v5833 = vadd.f32 0.0, %v5832
      %v5834 = vpop.f32.mrf.mxu0
      %5835 = vmatprep.mubr.bf16.mxu0 0
      %5836 = vmatmul.mubr.bf16.gmra.mxu0 %v4519
      %v5837 = vpop.f32.mrf.mxu0
      %v5838 = vadd.f32 0.0, %v5837
      %v5839 = vpop.f32.mrf.mxu0
      %v5840 = vpop.f32.mrf.mxu0
      %v5841 = vadd.f32 0.0, %v5840
      %v5842 = vpop.f32.mrf.mxu0
      %5843 = vdwg.mxu0
      %v5844 = vadd.f32 %v5642, %v5718
      %v5845 = vadd.f32 %v5643, %v5721
      %v5846 = vadd.f32 %v5644, %v5726
      %v5847 = vadd.f32 %v5645, %v5729
      %v5848 = vadd.f32 %v5646, %v5734
      %v5849 = vadd.f32 %v5647, %v5737
      %v5850 = vadd.f32 %v5648, %v5742
      %v5851 = vadd.f32 %v5649, %v5745
      %v5852 = vadd.f32 %v5650, %v5750
      %v5853 = vadd.f32 %v5651, %v5753
      %v5854 = vadd.f32 %v5652, %v5758
      %v5855 = vadd.f32 %v5653, %v5761
      %v5856 = vadd.f32 %v5654, %v5766
      %v5857 = vadd.f32 %v5655, %v5769
      %v5858 = vadd.f32 %v5656, %v5774
      %v5859 = vadd.f32 %v5657, %v5777
      %v5860 = vadd.f32 %v5658, %v5782
      %v5861 = vadd.f32 %v5659, %v5785
      %v5862 = vadd.f32 %v5660, %v5790
      %v5863 = vadd.f32 %v5661, %v5793
      %v5864 = vadd.f32 %v5662, %v5798
      %v5865 = vadd.f32 %v5663, %v5801
      %v5866 = vadd.f32 %v5664, %v5806
      %v5867 = vadd.f32 %v5665, %v5809
      %v5868 = vadd.f32 %v5666, %v5814
      %v5869 = vadd.f32 %v5667, %v5817
      %v5870 = vadd.f32 %v5668, %v5822
      %v5871 = vadd.f32 %v5669, %v5825
      %v5872 = vadd.f32 %v5670, %v5830
      %v5873 = vadd.f32 %v5671, %v5833
      %v5874 = vadd.f32 %v5672, %v5838
      %v5875 = vadd.f32 %v5673, %v5841
      %s5876 = scalar_lea.vmem %s3, 56
      %v5877 = vld [vmem:[%s5876] sm:$0xf]
      %v5878 = vld [vmem:[%s5876 + $0x4] sm:$0xf]
      %v5881 = vunpack.c.l.b16 %v5877
      %v5882 = vunpack.c.l.b16 %v5878
      %v5883 = vpack.c.b16 %v5882, %v5881
      %5885 = vmatprep.subr.bf16.mxu0 0
      %5886 = vmatpush1.bf16.msra.mxu0 0
      %5887 = vmatprep.subr.bf16.mxu0 0
      %5888 = vmatpush1.bf16.msra.mxu0 0
      %5889 = vmatprep.subr.bf16.mxu0 0
      %5890 = vmatpush1.bf16.msra.mxu0 0
      %5891 = vmatprep.subr.bf16.mxu0 0
      %5892 = vmatpush1.bf16.msra.mxu0 0
      %5893 = vmatprep.subr.bf16.mxu0 0
      %5894 = vmatpush1.bf16.msra.mxu0 0
      %5895 = vmatprep.subr.bf16.mxu0 0
      %5896 = vmatpush1.bf16.msra.mxu0 0
      %5897 = vmatprep.subr.bf16.mxu0 0
      %5898 = vmatpush1.bf16.msra.mxu0 0
      %5899 = vmatprep.subr.bf16.mxu0 0
      %5900 = vmatpush1.bf16.msra.mxu0 %v5883
      %5901 = vmatprep.subr.bf16.mxu0 0
      %5902 = vmatpush2.bf16.msra.mxu0 0
      %5903 = vmatprep.subr.bf16.mxu0 0
      %5904 = vmatpush2.bf16.msra.mxu0 0
      %5905 = vmatprep.subr.bf16.mxu0 0
      %5906 = vmatpush2.bf16.msra.mxu0 0
      %5907 = vmatprep.subr.bf16.mxu0 0
      %5908 = vmatpush2.bf16.msra.mxu0 0
      %5909 = vmatprep.subr.bf16.mxu0 0
      %5910 = vmatpush2.bf16.msra.mxu0 0
      %5911 = vmatprep.subr.bf16.mxu0 0
      %5912 = vmatpush2.bf16.msra.mxu0 0
      %5913 = vmatprep.subr.bf16.mxu0 0
      %5914 = vmatpush2.bf16.msra.mxu0 0
      %5915 = vmatprep.subr.bf16.mxu0 0
      %5916 = vmatpush2.bf16.msra.mxu0 0
      %5917 = vmatprep.mubr.bf16.mxu0 0
      %5918 = vmatmul.mubr.bf16.gmra.mxu0 %v4311
      %v5919 = vpop.f32.mrf.mxu0
      %v5920 = vadd.f32 0.0, %v5919
      %v5921 = vpop.f32.mrf.mxu0
      %v5922 = vpop.f32.mrf.mxu0
      %v5923 = vadd.f32 0.0, %v5922
      %v5924 = vpop.f32.mrf.mxu0
      %5925 = vmatprep.mubr.bf16.mxu0 0
      %5926 = vmatmul.mubr.bf16.gmra.mxu0 %v4314
      %v5927 = vpop.f32.mrf.mxu0
      %v5928 = vadd.f32 0.0, %v5927
      %v5929 = vpop.f32.mrf.mxu0
      %v5930 = vpop.f32.mrf.mxu0
      %v5931 = vadd.f32 0.0, %v5930
      %v5932 = vpop.f32.mrf.mxu0
      %5933 = vmatprep.mubr.bf16.mxu0 0
      %5934 = vmatmul.mubr.bf16.gmra.mxu0 %v4317
      %v5935 = vpop.f32.mrf.mxu0
      %v5936 = vadd.f32 0.0, %v5935
      %v5937 = vpop.f32.mrf.mxu0
      %v5938 = vpop.f32.mrf.mxu0
      %v5939 = vadd.f32 0.0, %v5938
      %v5940 = vpop.f32.mrf.mxu0
      %5941 = vmatprep.mubr.bf16.mxu0 0
      %5942 = vmatmul.mubr.bf16.gmra.mxu0 %v4320
      %v5943 = vpop.f32.mrf.mxu0
      %v5944 = vadd.f32 0.0, %v5943
      %v5945 = vpop.f32.mrf.mxu0
      %v5946 = vpop.f32.mrf.mxu0
      %v5947 = vadd.f32 0.0, %v5946
      %v5948 = vpop.f32.mrf.mxu0
      %5949 = vmatprep.mubr.bf16.mxu0 0
      %5950 = vmatmul.mubr.bf16.gmra.mxu0 %v4323
      %v5951 = vpop.f32.mrf.mxu0
      %v5952 = vadd.f32 0.0, %v5951
      %v5953 = vpop.f32.mrf.mxu0
      %v5954 = vpop.f32.mrf.mxu0
      %v5955 = vadd.f32 0.0, %v5954
      %v5956 = vpop.f32.mrf.mxu0
      %5957 = vmatprep.mubr.bf16.mxu0 0
      %5958 = vmatmul.mubr.bf16.gmra.mxu0 %v4326
      %v5959 = vpop.f32.mrf.mxu0
      %v5960 = vadd.f32 0.0, %v5959
      %v5961 = vpop.f32.mrf.mxu0
      %v5962 = vpop.f32.mrf.mxu0
      %v5963 = vadd.f32 0.0, %v5962
      %v5964 = vpop.f32.mrf.mxu0
      %5965 = vmatprep.mubr.bf16.mxu0 0
      %5966 = vmatmul.mubr.bf16.gmra.mxu0 %v4329
      %v5967 = vpop.f32.mrf.mxu0
      %v5968 = vadd.f32 0.0, %v5967
      %v5969 = vpop.f32.mrf.mxu0
      %v5970 = vpop.f32.mrf.mxu0
      %v5971 = vadd.f32 0.0, %v5970
      %v5972 = vpop.f32.mrf.mxu0
      %5973 = vmatprep.mubr.bf16.mxu0 0
      %5974 = vmatmul.mubr.bf16.gmra.mxu0 %v4332
      %v5975 = vpop.f32.mrf.mxu0
      %v5976 = vadd.f32 0.0, %v5975
      %v5977 = vpop.f32.mrf.mxu0
      %v5978 = vpop.f32.mrf.mxu0
      %v5979 = vadd.f32 0.0, %v5978
      %v5980 = vpop.f32.mrf.mxu0
      %5981 = vmatprep.mubr.bf16.mxu0 0
      %5982 = vmatmul.mubr.bf16.gmra.mxu0 %v4335
      %v5983 = vpop.f32.mrf.mxu0
      %v5984 = vadd.f32 0.0, %v5983
      %v5985 = vpop.f32.mrf.mxu0
      %v5986 = vpop.f32.mrf.mxu0
      %v5987 = vadd.f32 0.0, %v5986
      %v5988 = vpop.f32.mrf.mxu0
      %5989 = vmatprep.mubr.bf16.mxu0 0
      %5990 = vmatmul.mubr.bf16.gmra.mxu0 %v4338
      %v5991 = vpop.f32.mrf.mxu0
      %v5992 = vadd.f32 0.0, %v5991
      %v5993 = vpop.f32.mrf.mxu0
      %v5994 = vpop.f32.mrf.mxu0
      %v5995 = vadd.f32 0.0, %v5994
      %v5996 = vpop.f32.mrf.mxu0
      %5997 = vmatprep.mubr.bf16.mxu0 0
      %5998 = vmatmul.mubr.bf16.gmra.mxu0 %v4341
      %v5999 = vpop.f32.mrf.mxu0
      %v6000 = vadd.f32 0.0, %v5999
      %v6001 = vpop.f32.mrf.mxu0
      %v6002 = vpop.f32.mrf.mxu0
      %v6003 = vadd.f32 0.0, %v6002
      %v6004 = vpop.f32.mrf.mxu0
      %6005 = vmatprep.mubr.bf16.mxu0 0
      %6006 = vmatmul.mubr.bf16.gmra.mxu0 %v4344
      %v6007 = vpop.f32.mrf.mxu0
      %v6008 = vadd.f32 0.0, %v6007
      %v6009 = vpop.f32.mrf.mxu0
      %v6010 = vpop.f32.mrf.mxu0
      %v6011 = vadd.f32 0.0, %v6010
      %v6012 = vpop.f32.mrf.mxu0
      %6013 = vmatprep.mubr.bf16.mxu0 0
      %6014 = vmatmul.mubr.bf16.gmra.mxu0 %v4347
      %v6015 = vpop.f32.mrf.mxu0
      %v6016 = vadd.f32 0.0, %v6015
      %v6017 = vpop.f32.mrf.mxu0
      %v6018 = vpop.f32.mrf.mxu0
      %v6019 = vadd.f32 0.0, %v6018
      %v6020 = vpop.f32.mrf.mxu0
      %6021 = vmatprep.mubr.bf16.mxu0 0
      %6022 = vmatmul.mubr.bf16.gmra.mxu0 %v4350
      %v6023 = vpop.f32.mrf.mxu0
      %v6024 = vadd.f32 0.0, %v6023
      %v6025 = vpop.f32.mrf.mxu0
      %v6026 = vpop.f32.mrf.mxu0
      %v6027 = vadd.f32 0.0, %v6026
      %v6028 = vpop.f32.mrf.mxu0
      %6029 = vmatprep.mubr.bf16.mxu0 0
      %6030 = vmatmul.mubr.bf16.gmra.mxu0 %v5269
      %v6031 = vpop.f32.mrf.mxu0
      %v6032 = vadd.f32 0.0, %v6031
      %v6033 = vpop.f32.mrf.mxu0
      %v6034 = vpop.f32.mrf.mxu0
      %v6035 = vadd.f32 0.0, %v6034
      %v6036 = vpop.f32.mrf.mxu0
      %6037 = vmatprep.mubr.bf16.mxu0 0
      %6038 = vmatmul.mubr.bf16.gmra.mxu0 %v4305
      %v6039 = vpop.f32.mrf.mxu0
      %v6040 = vadd.f32 0.0, %v6039
      %v6041 = vpop.f32.mrf.mxu0
      %v6042 = vpop.f32.mrf.mxu0
      %v6043 = vadd.f32 0.0, %v6042
      %v6044 = vpop.f32.mrf.mxu0
      %6045 = vdwg.mxu0
      %v6046 = vadd.f32 %v5844, %v5920
      %v6047 = vadd.f32 %v5845, %v5923
      %v6048 = vadd.f32 %v5846, %v5928
      %v6049 = vadd.f32 %v5847, %v5931
      %v6050 = vadd.f32 %v5848, %v5936
      %v6051 = vadd.f32 %v5849, %v5939
      %v6052 = vadd.f32 %v5850, %v5944
      %v6053 = vadd.f32 %v5851, %v5947
      %v6054 = vadd.f32 %v5852, %v5952
      %v6055 = vadd.f32 %v5853, %v5955
      %v6056 = vadd.f32 %v5854, %v5960
      %v6057 = vadd.f32 %v5855, %v5963
      %v6058 = vadd.f32 %v5856, %v5968
      %v6059 = vadd.f32 %v5857, %v5971
      %v6060 = vadd.f32 %v5858, %v5976
      %v6061 = vadd.f32 %v5859, %v5979
      %v6062 = vadd.f32 %v5860, %v5984
      %v6063 = vadd.f32 %v5861, %v5987
      %v6064 = vadd.f32 %v5862, %v5992
      %v6065 = vadd.f32 %v5863, %v5995
      %v6066 = vadd.f32 %v5864, %v6000
      %v6067 = vadd.f32 %v5865, %v6003
      %v6068 = vadd.f32 %v5866, %v6008
      %v6069 = vadd.f32 %v5867, %v6011
      %v6070 = vadd.f32 %v5868, %v6016
      %v6071 = vadd.f32 %v5869, %v6019
      %v6072 = vadd.f32 %v5870, %v6024
      %v6073 = vadd.f32 %v5871, %v6027
      %v6074 = vadd.f32 %v5872, %v6032
      %v6075 = vadd.f32 %v5873, %v6035
      %v6076 = vadd.f32 %v5874, %v6040
      %v6077 = vadd.f32 %v5875, %v6043
      %s6078 = scalar_lea.vmem %s3, 64
      %v6079 = vld [vmem:[%s6078] sm:$0xf]
      %v6080 = vld [vmem:[%s6078 + $0x4] sm:$0xf]
      %v6083 = vunpack.c.l.b16 %v6079
      %v6084 = vunpack.c.l.b16 %v6080
      %v6085 = vpack.c.b16 %v6084, %v6083
      %6087 = vmatprep.subr.bf16.mxu0 0
      %6088 = vmatpush1.bf16.msra.mxu0 0
      %6089 = vmatprep.subr.bf16.mxu0 0
      %6090 = vmatpush1.bf16.msra.mxu0 0
      %6091 = vmatprep.subr.bf16.mxu0 0
      %6092 = vmatpush1.bf16.msra.mxu0 0
      %6093 = vmatprep.subr.bf16.mxu0 0
      %6094 = vmatpush1.bf16.msra.mxu0 0
      %6095 = vmatprep.subr.bf16.mxu0 0
      %6096 = vmatpush1.bf16.msra.mxu0 0
      %6097 = vmatprep.subr.bf16.mxu0 0
      %6098 = vmatpush1.bf16.msra.mxu0 0
      %6099 = vmatprep.subr.bf16.mxu0 0
      %6100 = vmatpush1.bf16.msra.mxu0 0
      %6101 = vmatprep.subr.bf16.mxu0 0
      %6102 = vmatpush1.bf16.msra.mxu0 %v6085
      %6103 = vmatprep.subr.bf16.mxu0 0
      %6104 = vmatpush2.bf16.msra.mxu0 0
      %6105 = vmatprep.subr.bf16.mxu0 0
      %6106 = vmatpush2.bf16.msra.mxu0 0
      %6107 = vmatprep.subr.bf16.mxu0 0
      %6108 = vmatpush2.bf16.msra.mxu0 0
      %6109 = vmatprep.subr.bf16.mxu0 0
      %6110 = vmatpush2.bf16.msra.mxu0 0
      %6111 = vmatprep.subr.bf16.mxu0 0
      %6112 = vmatpush2.bf16.msra.mxu0 0
      %6113 = vmatprep.subr.bf16.mxu0 0
      %6114 = vmatpush2.bf16.msra.mxu0 0
      %6115 = vmatprep.subr.bf16.mxu0 0
      %6116 = vmatpush2.bf16.msra.mxu0 0
      %6117 = vmatprep.subr.bf16.mxu0 0
      %6118 = vmatpush2.bf16.msra.mxu0 0
      %6119 = vmatprep.mubr.bf16.mxu0 0
      %6120 = vmatmul.mubr.bf16.gmra.mxu0 %v4809
      %v6121 = vpop.f32.mrf.mxu0
      %v6122 = vadd.f32 0.0, %v6121
      %v6123 = vpop.f32.mrf.mxu0
      %v6124 = vpop.f32.mrf.mxu0
      %v6125 = vadd.f32 0.0, %v6124
      %v6126 = vpop.f32.mrf.mxu0
      %6127 = vmatprep.mubr.bf16.mxu0 0
      %6128 = vmatmul.mubr.bf16.gmra.mxu0 %v4812
      %v6129 = vpop.f32.mrf.mxu0
      %v6130 = vadd.f32 0.0, %v6129
      %v6131 = vpop.f32.mrf.mxu0
      %v6132 = vpop.f32.mrf.mxu0
      %v6133 = vadd.f32 0.0, %v6132
      %v6134 = vpop.f32.mrf.mxu0
      %6135 = vmatprep.mubr.bf16.mxu0 0
      %6136 = vmatmul.mubr.bf16.gmra.mxu0 %v4815
      %v6137 = vpop.f32.mrf.mxu0
      %v6138 = vadd.f32 0.0, %v6137
      %v6139 = vpop.f32.mrf.mxu0
      %v6140 = vpop.f32.mrf.mxu0
      %v6141 = vadd.f32 0.0, %v6140
      %v6142 = vpop.f32.mrf.mxu0
      %6143 = vmatprep.mubr.bf16.mxu0 0
      %6144 = vmatmul.mubr.bf16.gmra.mxu0 %v4818
      %v6145 = vpop.f32.mrf.mxu0
      %v6146 = vadd.f32 0.0, %v6145
      %v6147 = vpop.f32.mrf.mxu0
      %v6148 = vpop.f32.mrf.mxu0
      %v6149 = vadd.f32 0.0, %v6148
      %v6150 = vpop.f32.mrf.mxu0
      %6151 = vmatprep.mubr.bf16.mxu0 0
      %6152 = vmatmul.mubr.bf16.gmra.mxu0 %v4821
      %v6153 = vpop.f32.mrf.mxu0
      %v6154 = vadd.f32 0.0, %v6153
      %v6155 = vpop.f32.mrf.mxu0
      %v6156 = vpop.f32.mrf.mxu0
      %v6157 = vadd.f32 0.0, %v6156
      %v6158 = vpop.f32.mrf.mxu0
      %6159 = vmatprep.mubr.bf16.mxu0 0
      %6160 = vmatmul.mubr.bf16.gmra.mxu0 %v4824
      %v6161 = vpop.f32.mrf.mxu0
      %v6162 = vadd.f32 0.0, %v6161
      %v6163 = vpop.f32.mrf.mxu0
      %v6164 = vpop.f32.mrf.mxu0
      %v6165 = vadd.f32 0.0, %v6164
      %v6166 = vpop.f32.mrf.mxu0
      %6167 = vmatprep.mubr.bf16.mxu0 0
      %6168 = vmatmul.mubr.bf16.gmra.mxu0 %v4827
      %v6169 = vpop.f32.mrf.mxu0
      %v6170 = vadd.f32 0.0, %v6169
      %v6171 = vpop.f32.mrf.mxu0
      %v6172 = vpop.f32.mrf.mxu0
      %v6173 = vadd.f32 0.0, %v6172
      %v6174 = vpop.f32.mrf.mxu0
      %6175 = vmatprep.mubr.bf16.mxu0 0
      %6176 = vmatmul.mubr.bf16.gmra.mxu0 %v4830
      %v6177 = vpop.f32.mrf.mxu0
      %v6178 = vadd.f32 0.0, %v6177
      %v6179 = vpop.f32.mrf.mxu0
      %v6180 = vpop.f32.mrf.mxu0
      %v6181 = vadd.f32 0.0, %v6180
      %v6182 = vpop.f32.mrf.mxu0
      %6183 = vmatprep.mubr.bf16.mxu0 0
      %6184 = vmatmul.mubr.bf16.gmra.mxu0 %v4833
      %v6185 = vpop.f32.mrf.mxu0
      %v6186 = vadd.f32 0.0, %v6185
      %v6187 = vpop.f32.mrf.mxu0
      %v6188 = vpop.f32.mrf.mxu0
      %v6189 = vadd.f32 0.0, %v6188
      %v6190 = vpop.f32.mrf.mxu0
      %6191 = vmatprep.mubr.bf16.mxu0 0
      %6192 = vmatmul.mubr.bf16.gmra.mxu0 %v4836
      %v6193 = vpop.f32.mrf.mxu0
      %v6194 = vadd.f32 0.0, %v6193
      %v6195 = vpop.f32.mrf.mxu0
      %v6196 = vpop.f32.mrf.mxu0
      %v6197 = vadd.f32 0.0, %v6196
      %v6198 = vpop.f32.mrf.mxu0
      %6199 = vmatprep.mubr.bf16.mxu0 0
      %6200 = vmatmul.mubr.bf16.gmra.mxu0 %v4839
      %v6201 = vpop.f32.mrf.mxu0
      %v6202 = vadd.f32 0.0, %v6201
      %v6203 = vpop.f32.mrf.mxu0
      %v6204 = vpop.f32.mrf.mxu0
      %v6205 = vadd.f32 0.0, %v6204
      %v6206 = vpop.f32.mrf.mxu0
      %6207 = vmatprep.mubr.bf16.mxu0 0
      %6208 = vmatmul.mubr.bf16.gmra.mxu0 %v4842
      %v6209 = vpop.f32.mrf.mxu0
      %v6210 = vadd.f32 0.0, %v6209
      %v6211 = vpop.f32.mrf.mxu0
      %v6212 = vpop.f32.mrf.mxu0
      %v6213 = vadd.f32 0.0, %v6212
      %v6214 = vpop.f32.mrf.mxu0
      %6215 = vmatprep.mubr.bf16.mxu0 0
      %6216 = vmatmul.mubr.bf16.gmra.mxu0 %v4845
      %v6217 = vpop.f32.mrf.mxu0
      %v6218 = vadd.f32 0.0, %v6217
      %v6219 = vpop.f32.mrf.mxu0
      %v6220 = vpop.f32.mrf.mxu0
      %v6221 = vadd.f32 0.0, %v6220
      %v6222 = vpop.f32.mrf.mxu0
      %6223 = vmatprep.mubr.bf16.mxu0 0
      %6224 = vmatmul.mubr.bf16.gmra.mxu0 %v4848
      %v6225 = vpop.f32.mrf.mxu0
      %v6226 = vadd.f32 0.0, %v6225
      %v6227 = vpop.f32.mrf.mxu0
      %v6228 = vpop.f32.mrf.mxu0
      %v6229 = vadd.f32 0.0, %v6228
      %v6230 = vpop.f32.mrf.mxu0
      %6231 = vmatprep.mubr.bf16.mxu0 0
      %6232 = vmatmul.mubr.bf16.gmra.mxu0 %v5479
      %v6233 = vpop.f32.mrf.mxu0
      %v6234 = vadd.f32 0.0, %v6233
      %v6235 = vpop.f32.mrf.mxu0
      %v6236 = vpop.f32.mrf.mxu0
      %v6237 = vadd.f32 0.0, %v6236
      %v6238 = vpop.f32.mrf.mxu0
      %6239 = vmatprep.mubr.bf16.mxu0 0
      %6240 = vmatmul.mubr.bf16.gmra.mxu0 %v4803
      %v6241 = vpop.f32.mrf.mxu0
      %v6242 = vadd.f32 0.0, %v6241
      %v6243 = vpop.f32.mrf.mxu0
      %v6244 = vpop.f32.mrf.mxu0
      %v6245 = vadd.f32 0.0, %v6244
      %v6246 = vpop.f32.mrf.mxu0
      %6247 = vdwg.mxu0
      %v6248 = vadd.f32 %v6046, %v6122
      %v6249 = vadd.f32 %v6047, %v6125
      %v6250 = vadd.f32 %v6048, %v6130
      %v6251 = vadd.f32 %v6049, %v6133
      %v6252 = vadd.f32 %v6050, %v6138
      %v6253 = vadd.f32 %v6051, %v6141
      %v6254 = vadd.f32 %v6052, %v6146
      %v6255 = vadd.f32 %v6053, %v6149
      %v6256 = vadd.f32 %v6054, %v6154
      %v6257 = vadd.f32 %v6055, %v6157
      %v6258 = vadd.f32 %v6056, %v6162
      %v6259 = vadd.f32 %v6057, %v6165
      %v6260 = vadd.f32 %v6058, %v6170
      %v6261 = vadd.f32 %v6059, %v6173
      %v6262 = vadd.f32 %v6060, %v6178
      %v6263 = vadd.f32 %v6061, %v6181
      %v6264 = vadd.f32 %v6062, %v6186
      %v6265 = vadd.f32 %v6063, %v6189
      %v6266 = vadd.f32 %v6064, %v6194
      %v6267 = vadd.f32 %v6065, %v6197
      %v6268 = vadd.f32 %v6066, %v6202
      %v6269 = vadd.f32 %v6067, %v6205
      %v6270 = vadd.f32 %v6068, %v6210
      %v6271 = vadd.f32 %v6069, %v6213
      %v6272 = vadd.f32 %v6070, %v6218
      %v6273 = vadd.f32 %v6071, %v6221
      %v6274 = vadd.f32 %v6072, %v6226
      %v6275 = vadd.f32 %v6073, %v6229
      %v6276 = vadd.f32 %v6074, %v6234
      %v6277 = vadd.f32 %v6075, %v6237
      %v6278 = vadd.f32 %v6076, %v6242
      %v6279 = vadd.f32 %v6077, %v6245
      %v6312 = vunpack.c.l.b16 %v3226
      %v6313 = vunpack.c.l.b16 %v3227
      %v6314 = vunpack.c.l.b16 %v3228
      %v6315 = vunpack.c.l.b16 %v3229
      %v6316 = vunpack.c.l.b16 %v3230
      %v6317 = vunpack.c.l.b16 %v3231
      %v6318 = vunpack.c.l.b16 %v3232
      %v6319 = vunpack.c.l.b16 %v3233
      %v6320 = vunpack.c.l.b16 %v3234
      %v6321 = vunpack.c.l.b16 %v3235
      %v6322 = vunpack.c.l.b16 %v3236
      %v6323 = vunpack.c.l.b16 %v3237
      %v6324 = vunpack.c.l.b16 %v3238
      %v6325 = vunpack.c.l.b16 %v3239
      %v6326 = vunpack.c.l.b16 %v3240
      %v6327 = vunpack.c.l.b16 %v3241
      %v6328 = vunpack.c.l.b16 %v3242
      %v6329 = vunpack.c.l.b16 %v3243
      %v6330 = vunpack.c.l.b16 %v3244
      %v6331 = vunpack.c.l.b16 %v3245
      %v6332 = vunpack.c.l.b16 %v3246
      %v6333 = vunpack.c.l.b16 %v3247
      %v6334 = vunpack.c.l.b16 %v3248
      %v6335 = vunpack.c.l.b16 %v3249
      %v6336 = vunpack.c.l.b16 %v3250
      %v6337 = vunpack.c.l.b16 %v3251
      %v6338 = vunpack.c.l.b16 %v3252
      %v6339 = vunpack.c.l.b16 %v3253
      %v6340 = vunpack.c.l.b16 %v3254
      %v6341 = vunpack.c.l.b16 %v3255
      %v6342 = vunpack.c.l.b16 %v3256
      %v6343 = vunpack.c.l.b16 %v3257
      %v6344 = vpack.c.b16 %v6313, %v6312
      %v6345 = vpack.c.b16 %v6315, %v6314
      %v6346 = vpack.c.b16 %v6317, %v6316
      %v6347 = vpack.c.b16 %v6319, %v6318
      %v6348 = vpack.c.b16 %v6321, %v6320
      %v6349 = vpack.c.b16 %v6323, %v6322
      %v6350 = vpack.c.b16 %v6325, %v6324
      %v6351 = vpack.c.b16 %v6327, %v6326
      %v6352 = vpack.c.b16 %v6329, %v6328
      %v6353 = vpack.c.b16 %v6331, %v6330
      %v6354 = vpack.c.b16 %v6333, %v6332
      %v6355 = vpack.c.b16 %v6335, %v6334
      %v6356 = vpack.c.b16 %v6337, %v6336
      %v6357 = vpack.c.b16 %v6339, %v6338
      %v6358 = vpack.c.b16 %v6341, %v6340
      %v6359 = vpack.c.b16 %v6343, %v6342
      %v6361 = vshrl.u32 0, 16
      %v6363 = vrot.slane %v6361, 7
      %v6364 = vshll.u32 0, 16
      %v6366 = vor.u32 %v6363, %v6364
      %v6368 = vshrl.u32 %v6344, 16
      %v6370 = vrot.slane %v6368, 7
      %v6371 = vshll.u32 %v6344, 16
      %v6373 = vor.u32 %v6370, %v6371
      %v6375 = vshrl.u32 %v6345, 16
      %v6377 = vrot.slane %v6375, 7
      %v6378 = vshll.u32 %v6345, 16
      %v6380 = vor.u32 %v6377, %v6378
      %v6382 = vshrl.u32 %v6346, 16
      %v6384 = vrot.slane %v6382, 7
      %v6385 = vshll.u32 %v6346, 16
      %v6387 = vor.u32 %v6384, %v6385
      %v6389 = vshrl.u32 %v6347, 16
      %v6391 = vrot.slane %v6389, 7
      %v6392 = vshll.u32 %v6347, 16
      %v6394 = vor.u32 %v6391, %v6392
      %v6396 = vshrl.u32 %v6348, 16
      %v6398 = vrot.slane %v6396, 7
      %v6399 = vshll.u32 %v6348, 16
      %v6401 = vor.u32 %v6398, %v6399
      %v6403 = vshrl.u32 %v6349, 16
      %v6405 = vrot.slane %v6403, 7
      %v6406 = vshll.u32 %v6349, 16
      %v6408 = vor.u32 %v6405, %v6406
      %v6410 = vshrl.u32 %v6350, 16
      %v6412 = vrot.slane %v6410, 7
      %v6413 = vshll.u32 %v6350, 16
      %v6415 = vor.u32 %v6412, %v6413
      %v6417 = vshrl.u32 %v6351, 16
      %v6419 = vrot.slane %v6417, 7
      %v6420 = vshll.u32 %v6351, 16
      %v6422 = vor.u32 %v6419, %v6420
      %v6424 = vshrl.u32 %v6352, 16
      %v6426 = vrot.slane %v6424, 7
      %v6427 = vshll.u32 %v6352, 16
      %v6429 = vor.u32 %v6426, %v6427
      %v6431 = vshrl.u32 %v6353, 16
      %v6433 = vrot.slane %v6431, 7
      %v6434 = vshll.u32 %v6353, 16
      %v6436 = vor.u32 %v6433, %v6434
      %v6438 = vshrl.u32 %v6354, 16
      %v6440 = vrot.slane %v6438, 7
      %v6441 = vshll.u32 %v6354, 16
      %v6443 = vor.u32 %v6440, %v6441
      %v6445 = vshrl.u32 %v6355, 16
      %v6447 = vrot.slane %v6445, 7
      %v6448 = vshll.u32 %v6355, 16
      %v6450 = vor.u32 %v6447, %v6448
      %v6452 = vshrl.u32 %v6356, 16
      %v6454 = vrot.slane %v6452, 7
      %v6455 = vshll.u32 %v6356, 16
      %v6457 = vor.u32 %v6454, %v6455
      %v6459 = vshrl.u32 %v6357, 16
      %v6461 = vrot.slane %v6459, 7
      %v6462 = vshll.u32 %v6357, 16
      %v6464 = vor.u32 %v6461, %v6462
      %v6466 = vshrl.u32 %v6358, 16
      %v6468 = vrot.slane %v6466, 7
      %v6469 = vshll.u32 %v6358, 16
      %v6471 = vor.u32 %v6468, %v6469
      %v6473 = vshrl.u32 %v6359, 16
      %v6475 = vrot.slane %v6473, 7
      %v6476 = vshll.u32 %v6359, 16
      %v6478 = vor.u32 %v6475, %v6476
      %vm6513 = vcmask 1040384
      %vm6514 = vsmask.f32 256
      %vm6515 = vmand %vm6513, %vm6514
      %v6516 = vsel %vm6515, 0, %v6366
      %v6517 = vsel %vm6515, 0, %v6373
      %v6518 = vsel %vm6515, 0, %v6380
      %v6519 = vsel %vm6515, 0, %v6387
      %v6520 = vsel %vm6515, 0, %v6394
      %v6521 = vsel %vm6515, 0, %v6401
      %v6522 = vsel %vm6515, 0, %v6408
      %v6523 = vsel %vm6515, 0, %v6415
      %v6524 = vsel %vm6515, 0, %v6422
      %v6525 = vsel %vm6515, 0, %v6429
      %v6526 = vsel %vm6515, 0, %v6436
      %v6527 = vsel %vm6515, 0, %v6443
      %v6528 = vsel %vm6515, 0, %v6450
      %v6529 = vsel %vm6515, 0, %v6457
      %v6530 = vsel %vm6515, 0, %v6464
      %v6531 = vsel %vm6515, 0, %v6471
      %v6532 = vsel %vm6515, 0, %v6478
      %v6533 = vsel %vm6515, %v6363, 0
      %v6534 = vsel %vm6515, %v6370, 0
      %v6535 = vsel %vm6515, %v6377, 0
      %v6536 = vsel %vm6515, %v6384, 0
      %v6537 = vsel %vm6515, %v6391, 0
      %v6538 = vsel %vm6515, %v6398, 0
      %v6539 = vsel %vm6515, %v6405, 0
      %v6540 = vsel %vm6515, %v6412, 0
      %v6541 = vsel %vm6515, %v6419, 0
      %v6542 = vsel %vm6515, %v6426, 0
      %v6543 = vsel %vm6515, %v6433, 0
      %v6544 = vsel %vm6515, %v6440, 0
      %v6545 = vsel %vm6515, %v6447, 0
      %v6546 = vsel %vm6515, %v6454, 0
      %v6547 = vsel %vm6515, %v6461, 0
      %v6548 = vsel %vm6515, %v6468, 0
      %v6549 = vsel %vm6515, %v6475, 0
      %v6550 = vld [vmem:[%s4] sm:$0xf]
      %v6551 = vld [vmem:[%s4 + $0x4] sm:$0xf]
      %v6554 = vunpack.c.l.b16 %v6550
      %v6555 = vunpack.c.l.b16 %v6551
      %v6556 = vpack.c.b16 %v6555, %v6554
      %v6559 = vsel %vm4303, %v6516, 0
      %v6562 = vsel %vm4303, %v6517, 0
      %v6565 = vsel %vm4303, %v6518, 0
      %v6568 = vsel %vm4303, %v6519, 0
      %v6571 = vsel %vm4303, %v6520, 0
      %v6574 = vsel %vm4303, %v6521, 0
      %v6577 = vsel %vm4303, %v6522, 0
      %v6580 = vsel %vm4303, %v6523, 0
      %v6583 = vsel %vm4303, %v6524, 0
      %v6586 = vsel %vm4303, %v6525, 0
      %v6589 = vsel %vm4303, %v6526, 0
      %v6592 = vsel %vm4303, %v6527, 0
      %v6595 = vsel %vm4303, %v6528, 0
      %v6598 = vsel %vm4303, %v6529, 0
      %v6601 = vsel %vm4303, %v6530, 0
      %v6604 = vsel %vm4303, %v6531, 0
      %6606 = vmatprep.subr.bf16.mxu0 0
      %6607 = vmatpush1.bf16.msra.mxu0 0
      %6608 = vmatprep.subr.bf16.mxu0 0
      %6609 = vmatpush1.bf16.msra.mxu0 0
      %6610 = vmatprep.subr.bf16.mxu0 0
      %6611 = vmatpush1.bf16.msra.mxu0 0
      %6612 = vmatprep.subr.bf16.mxu0 0
      %6613 = vmatpush1.bf16.msra.mxu0 0
      %6614 = vmatprep.subr.bf16.mxu0 0
      %6615 = vmatpush1.bf16.msra.mxu0 0
      %6616 = vmatprep.subr.bf16.mxu0 0
      %6617 = vmatpush1.bf16.msra.mxu0 0
      %6618 = vmatprep.subr.bf16.mxu0 0
      %6619 = vmatpush1.bf16.msra.mxu0 0
      %6620 = vmatprep.subr.bf16.mxu0 0
      %6621 = vmatpush1.bf16.msra.mxu0 %v6556
      %6622 = vmatprep.subr.bf16.mxu0 0
      %6623 = vmatpush2.bf16.msra.mxu0 0
      %6624 = vmatprep.subr.bf16.mxu0 0
      %6625 = vmatpush2.bf16.msra.mxu0 0
      %6626 = vmatprep.subr.bf16.mxu0 0
      %6627 = vmatpush2.bf16.msra.mxu0 0
      %6628 = vmatprep.subr.bf16.mxu0 0
      %6629 = vmatpush2.bf16.msra.mxu0 0
      %6630 = vmatprep.subr.bf16.mxu0 0
      %6631 = vmatpush2.bf16.msra.mxu0 0
      %6632 = vmatprep.subr.bf16.mxu0 0
      %6633 = vmatpush2.bf16.msra.mxu0 0
      %6634 = vmatprep.subr.bf16.mxu0 0
      %6635 = vmatpush2.bf16.msra.mxu0 0
      %6636 = vmatprep.subr.bf16.mxu0 0
      %6637 = vmatpush2.bf16.msra.mxu0 0
      %6638 = vmatprep.mubr.bf16.mxu0 0
      %6639 = vmatmul.mubr.bf16.gmra.mxu0 %v6559
      %v6640 = vpop.f32.mrf.mxu0
      %v6641 = vadd.f32 0.0, %v6640
      %v6642 = vpop.f32.mrf.mxu0
      %v6643 = vpop.f32.mrf.mxu0
      %v6644 = vadd.f32 0.0, %v6643
      %v6645 = vpop.f32.mrf.mxu0
      %6646 = vmatprep.mubr.bf16.mxu0 0
      %6647 = vmatmul.mubr.bf16.gmra.mxu0 %v6562
      %v6648 = vpop.f32.mrf.mxu0
      %v6649 = vadd.f32 0.0, %v6648
      %v6650 = vpop.f32.mrf.mxu0
      %v6651 = vpop.f32.mrf.mxu0
      %v6652 = vadd.f32 0.0, %v6651
      %v6653 = vpop.f32.mrf.mxu0
      %6654 = vmatprep.mubr.bf16.mxu0 0
      %6655 = vmatmul.mubr.bf16.gmra.mxu0 %v6565
      %v6656 = vpop.f32.mrf.mxu0
      %v6657 = vadd.f32 0.0, %v6656
      %v6658 = vpop.f32.mrf.mxu0
      %v6659 = vpop.f32.mrf.mxu0
      %v6660 = vadd.f32 0.0, %v6659
      %v6661 = vpop.f32.mrf.mxu0
      %6662 = vmatprep.mubr.bf16.mxu0 0
      %6663 = vmatmul.mubr.bf16.gmra.mxu0 %v6568
      %v6664 = vpop.f32.mrf.mxu0
      %v6665 = vadd.f32 0.0, %v6664
      %v6666 = vpop.f32.mrf.mxu0
      %v6667 = vpop.f32.mrf.mxu0
      %v6668 = vadd.f32 0.0, %v6667
      %v6669 = vpop.f32.mrf.mxu0
      %6670 = vmatprep.mubr.bf16.mxu0 0
      %6671 = vmatmul.mubr.bf16.gmra.mxu0 %v6571
      %v6672 = vpop.f32.mrf.mxu0
      %v6673 = vadd.f32 0.0, %v6672
      %v6674 = vpop.f32.mrf.mxu0
      %v6675 = vpop.f32.mrf.mxu0
      %v6676 = vadd.f32 0.0, %v6675
      %v6677 = vpop.f32.mrf.mxu0
      %6678 = vmatprep.mubr.bf16.mxu0 0
      %6679 = vmatmul.mubr.bf16.gmra.mxu0 %v6574
      %v6680 = vpop.f32.mrf.mxu0
      %v6681 = vadd.f32 0.0, %v6680
      %v6682 = vpop.f32.mrf.mxu0
      %v6683 = vpop.f32.mrf.mxu0
      %v6684 = vadd.f32 0.0, %v6683
      %v6685 = vpop.f32.mrf.mxu0
      %6686 = vmatprep.mubr.bf16.mxu0 0
      %6687 = vmatmul.mubr.bf16.gmra.mxu0 %v6577
      %v6688 = vpop.f32.mrf.mxu0
      %v6689 = vadd.f32 0.0, %v6688
      %v6690 = vpop.f32.mrf.mxu0
      %v6691 = vpop.f32.mrf.mxu0
      %v6692 = vadd.f32 0.0, %v6691
      %v6693 = vpop.f32.mrf.mxu0
      %6694 = vmatprep.mubr.bf16.mxu0 0
      %6695 = vmatmul.mubr.bf16.gmra.mxu0 %v6580
      %v6696 = vpop.f32.mrf.mxu0
      %v6697 = vadd.f32 0.0, %v6696
      %v6698 = vpop.f32.mrf.mxu0
      %v6699 = vpop.f32.mrf.mxu0
      %v6700 = vadd.f32 0.0, %v6699
      %v6701 = vpop.f32.mrf.mxu0
      %6702 = vmatprep.mubr.bf16.mxu0 0
      %6703 = vmatmul.mubr.bf16.gmra.mxu0 %v6583
      %v6704 = vpop.f32.mrf.mxu0
      %v6705 = vadd.f32 0.0, %v6704
      %v6706 = vpop.f32.mrf.mxu0
      %v6707 = vpop.f32.mrf.mxu0
      %v6708 = vadd.f32 0.0, %v6707
      %v6709 = vpop.f32.mrf.mxu0
      %6710 = vmatprep.mubr.bf16.mxu0 0
      %6711 = vmatmul.mubr.bf16.gmra.mxu0 %v6586
      %v6712 = vpop.f32.mrf.mxu0
      %v6713 = vadd.f32 0.0, %v6712
      %v6714 = vpop.f32.mrf.mxu0
      %v6715 = vpop.f32.mrf.mxu0
      %v6716 = vadd.f32 0.0, %v6715
      %v6717 = vpop.f32.mrf.mxu0
      %6718 = vmatprep.mubr.bf16.mxu0 0
      %6719 = vmatmul.mubr.bf16.gmra.mxu0 %v6589
      %v6720 = vpop.f32.mrf.mxu0
      %v6721 = vadd.f32 0.0, %v6720
      %v6722 = vpop.f32.mrf.mxu0
      %v6723 = vpop.f32.mrf.mxu0
      %v6724 = vadd.f32 0.0, %v6723
      %v6725 = vpop.f32.mrf.mxu0
      %6726 = vmatprep.mubr.bf16.mxu0 0
      %6727 = vmatmul.mubr.bf16.gmra.mxu0 %v6592
      %v6728 = vpop.f32.mrf.mxu0
      %v6729 = vadd.f32 0.0, %v6728
      %v6730 = vpop.f32.mrf.mxu0
      %v6731 = vpop.f32.mrf.mxu0
      %v6732 = vadd.f32 0.0, %v6731
      %v6733 = vpop.f32.mrf.mxu0
      %6734 = vmatprep.mubr.bf16.mxu0 0
      %6735 = vmatmul.mubr.bf16.gmra.mxu0 %v6595
      %v6736 = vpop.f32.mrf.mxu0
      %v6737 = vadd.f32 0.0, %v6736
      %v6738 = vpop.f32.mrf.mxu0
      %v6739 = vpop.f32.mrf.mxu0
      %v6740 = vadd.f32 0.0, %v6739
      %v6741 = vpop.f32.mrf.mxu0
      %6742 = vmatprep.mubr.bf16.mxu0 0
      %6743 = vmatmul.mubr.bf16.gmra.mxu0 %v6598
      %v6744 = vpop.f32.mrf.mxu0
      %v6745 = vadd.f32 0.0, %v6744
      %v6746 = vpop.f32.mrf.mxu0
      %v6747 = vpop.f32.mrf.mxu0
      %v6748 = vadd.f32 0.0, %v6747
      %v6749 = vpop.f32.mrf.mxu0
      %6750 = vmatprep.mubr.bf16.mxu0 0
      %6751 = vmatmul.mubr.bf16.gmra.mxu0 %v6601
      %v6752 = vpop.f32.mrf.mxu0
      %v6753 = vadd.f32 0.0, %v6752
      %v6754 = vpop.f32.mrf.mxu0
      %v6755 = vpop.f32.mrf.mxu0
      %v6756 = vadd.f32 0.0, %v6755
      %v6757 = vpop.f32.mrf.mxu0
      %6758 = vmatprep.mubr.bf16.mxu0 0
      %6759 = vmatmul.mubr.bf16.gmra.mxu0 %v6604
      %v6760 = vpop.f32.mrf.mxu0
      %v6761 = vadd.f32 0.0, %v6760
      %v6762 = vpop.f32.mrf.mxu0
      %v6763 = vpop.f32.mrf.mxu0
      %v6764 = vadd.f32 0.0, %v6763
      %v6765 = vpop.f32.mrf.mxu0
      %6766 = vdwg.mxu0
      %v6767 = vadd.f32 %v6248, %v6641
      %v6768 = vadd.f32 %v6249, %v6644
      %v6769 = vadd.f32 %v6250, %v6649
      %v6770 = vadd.f32 %v6251, %v6652
      %v6771 = vadd.f32 %v6252, %v6657
      %v6772 = vadd.f32 %v6253, %v6660
      %v6773 = vadd.f32 %v6254, %v6665
      %v6774 = vadd.f32 %v6255, %v6668
      %v6775 = vadd.f32 %v6256, %v6673
      %v6776 = vadd.f32 %v6257, %v6676
      %v6777 = vadd.f32 %v6258, %v6681
      %v6778 = vadd.f32 %v6259, %v6684
      %v6779 = vadd.f32 %v6260, %v6689
      %v6780 = vadd.f32 %v6261, %v6692
      %v6781 = vadd.f32 %v6262, %v6697
      %v6782 = vadd.f32 %v6263, %v6700
      %v6783 = vadd.f32 %v6264, %v6705
      %v6784 = vadd.f32 %v6265, %v6708
      %v6785 = vadd.f32 %v6266, %v6713
      %v6786 = vadd.f32 %v6267, %v6716
      %v6787 = vadd.f32 %v6268, %v6721
      %v6788 = vadd.f32 %v6269, %v6724
      %v6789 = vadd.f32 %v6270, %v6729
      %v6790 = vadd.f32 %v6271, %v6732
      %v6791 = vadd.f32 %v6272, %v6737
      %v6792 = vadd.f32 %v6273, %v6740
      %v6793 = vadd.f32 %v6274, %v6745
      %v6794 = vadd.f32 %v6275, %v6748
      %v6795 = vadd.f32 %v6276, %v6753
      %v6796 = vadd.f32 %v6277, %v6756
      %v6797 = vadd.f32 %v6278, %v6761
      %v6798 = vadd.f32 %v6279, %v6764
      %v6799 = vshrl.u32 %v6516, 16
      %v6801 = vshll.u32 %v6516, 16
      %v6803 = vrot.slane %v6801, 1
      %v6804 = vor.u32 %v6799, %v6803
      %v6806 = vshll.u32 %v6533, 16
      %v6808 = vrot.slane %v6806, 1
      %v6809 = vsel %vm4101, %v6804, %v6808
      %v6810 = vshrl.u32 %v6517, 16
      %v6812 = vshll.u32 %v6517, 16
      %v6814 = vrot.slane %v6812, 1
      %v6815 = vor.u32 %v6810, %v6814
      %v6817 = vshll.u32 %v6534, 16
      %v6819 = vrot.slane %v6817, 1
      %v6820 = vsel %vm4101, %v6815, %v6819
      %v6821 = vshrl.u32 %v6518, 16
      %v6823 = vshll.u32 %v6518, 16
      %v6825 = vrot.slane %v6823, 1
      %v6826 = vor.u32 %v6821, %v6825
      %v6828 = vshll.u32 %v6535, 16
      %v6830 = vrot.slane %v6828, 1
      %v6831 = vsel %vm4101, %v6826, %v6830
      %v6832 = vshrl.u32 %v6519, 16
      %v6834 = vshll.u32 %v6519, 16
      %v6836 = vrot.slane %v6834, 1
      %v6837 = vor.u32 %v6832, %v6836
      %v6839 = vshll.u32 %v6536, 16
      %v6841 = vrot.slane %v6839, 1
      %v6842 = vsel %vm4101, %v6837, %v6841
      %v6843 = vshrl.u32 %v6520, 16
      %v6845 = vshll.u32 %v6520, 16
      %v6847 = vrot.slane %v6845, 1
      %v6848 = vor.u32 %v6843, %v6847
      %v6850 = vshll.u32 %v6537, 16
      %v6852 = vrot.slane %v6850, 1
      %v6853 = vsel %vm4101, %v6848, %v6852
      %v6854 = vshrl.u32 %v6521, 16
      %v6856 = vshll.u32 %v6521, 16
      %v6858 = vrot.slane %v6856, 1
      %v6859 = vor.u32 %v6854, %v6858
      %v6861 = vshll.u32 %v6538, 16
      %v6863 = vrot.slane %v6861, 1
      %v6864 = vsel %vm4101, %v6859, %v6863
      %v6865 = vshrl.u32 %v6522, 16
      %v6867 = vshll.u32 %v6522, 16
      %v6869 = vrot.slane %v6867, 1
      %v6870 = vor.u32 %v6865, %v6869
      %v6872 = vshll.u32 %v6539, 16
      %v6874 = vrot.slane %v6872, 1
      %v6875 = vsel %vm4101, %v6870, %v6874
      %v6876 = vshrl.u32 %v6523, 16
      %v6878 = vshll.u32 %v6523, 16
      %v6880 = vrot.slane %v6878, 1
      %v6881 = vor.u32 %v6876, %v6880
      %v6883 = vshll.u32 %v6540, 16
      %v6885 = vrot.slane %v6883, 1
      %v6886 = vsel %vm4101, %v6881, %v6885
      %v6887 = vshrl.u32 %v6524, 16
      %v6889 = vshll.u32 %v6524, 16
      %v6891 = vrot.slane %v6889, 1
      %v6892 = vor.u32 %v6887, %v6891
      %v6894 = vshll.u32 %v6541, 16
      %v6896 = vrot.slane %v6894, 1
      %v6897 = vsel %vm4101, %v6892, %v6896
      %v6898 = vshrl.u32 %v6525, 16
      %v6900 = vshll.u32 %v6525, 16
      %v6902 = vrot.slane %v6900, 1
      %v6903 = vor.u32 %v6898, %v6902
      %v6905 = vshll.u32 %v6542, 16
      %v6907 = vrot.slane %v6905, 1
      %v6908 = vsel %vm4101, %v6903, %v6907
      %v6909 = vshrl.u32 %v6526, 16
      %v6911 = vshll.u32 %v6526, 16
      %v6913 = vrot.slane %v6911, 1
      %v6914 = vor.u32 %v6909, %v6913
      %v6916 = vshll.u32 %v6543, 16
      %v6918 = vrot.slane %v6916, 1
      %v6919 = vsel %vm4101, %v6914, %v6918
      %v6920 = vshrl.u32 %v6527, 16
      %v6922 = vshll.u32 %v6527, 16
      %v6924 = vrot.slane %v6922, 1
      %v6925 = vor.u32 %v6920, %v6924
      %v6927 = vshll.u32 %v6544, 16
      %v6929 = vrot.slane %v6927, 1
      %v6930 = vsel %vm4101, %v6925, %v6929
      %v6931 = vshrl.u32 %v6528, 16
      %v6933 = vshll.u32 %v6528, 16
      %v6935 = vrot.slane %v6933, 1
      %v6936 = vor.u32 %v6931, %v6935
      %v6938 = vshll.u32 %v6545, 16
      %v6940 = vrot.slane %v6938, 1
      %v6941 = vsel %vm4101, %v6936, %v6940
      %v6942 = vshrl.u32 %v6529, 16
      %v6944 = vshll.u32 %v6529, 16
      %v6946 = vrot.slane %v6944, 1
      %v6947 = vor.u32 %v6942, %v6946
      %v6949 = vshll.u32 %v6546, 16
      %v6951 = vrot.slane %v6949, 1
      %v6952 = vsel %vm4101, %v6947, %v6951
      %v6953 = vshrl.u32 %v6530, 16
      %v6955 = vshll.u32 %v6530, 16
      %v6957 = vrot.slane %v6955, 1
      %v6958 = vor.u32 %v6953, %v6957
      %v6960 = vshll.u32 %v6547, 16
      %v6962 = vrot.slane %v6960, 1
      %v6963 = vsel %vm4101, %v6958, %v6962
      %v6964 = vshrl.u32 %v6531, 16
      %v6966 = vshll.u32 %v6531, 16
      %v6968 = vrot.slane %v6966, 1
      %v6969 = vor.u32 %v6964, %v6968
      %v6971 = vshll.u32 %v6548, 16
      %v6973 = vrot.slane %v6971, 1
      %v6974 = vsel %vm4101, %v6969, %v6973
      %s6975 = scalar_lea.vmem %s4, 8
      %v6976 = vld [vmem:[%s6975] sm:$0xf]
      %v6977 = vld [vmem:[%s6975 + $0x4] sm:$0xf]
      %v6980 = vunpack.c.l.b16 %v6976
      %v6981 = vunpack.c.l.b16 %v6977
      %v6982 = vpack.c.b16 %v6981, %v6980
      %v6985 = vsel %vm4303, %v6809, 0
      %v6988 = vsel %vm4303, %v6820, 0
      %v6991 = vsel %vm4303, %v6831, 0
      %v6994 = vsel %vm4303, %v6842, 0
      %v6997 = vsel %vm4303, %v6853, 0
      %v7000 = vsel %vm4303, %v6864, 0
      %v7003 = vsel %vm4303, %v6875, 0
      %v7006 = vsel %vm4303, %v6886, 0
      %v7009 = vsel %vm4303, %v6897, 0
      %v7012 = vsel %vm4303, %v6908, 0
      %v7015 = vsel %vm4303, %v6919, 0
      %v7018 = vsel %vm4303, %v6930, 0
      %v7021 = vsel %vm4303, %v6941, 0
      %v7024 = vsel %vm4303, %v6952, 0
      %v7027 = vsel %vm4303, %v6963, 0
      %v7030 = vsel %vm4303, %v6974, 0
      %7032 = vmatprep.subr.bf16.mxu0 0
      %7033 = vmatpush1.bf16.msra.mxu0 0
      %7034 = vmatprep.subr.bf16.mxu0 0
      %7035 = vmatpush1.bf16.msra.mxu0 0
      %7036 = vmatprep.subr.bf16.mxu0 0
      %7037 = vmatpush1.bf16.msra.mxu0 0
      %7038 = vmatprep.subr.bf16.mxu0 0
      %7039 = vmatpush1.bf16.msra.mxu0 0
      %7040 = vmatprep.subr.bf16.mxu0 0
      %7041 = vmatpush1.bf16.msra.mxu0 0
      %7042 = vmatprep.subr.bf16.mxu0 0
      %7043 = vmatpush1.bf16.msra.mxu0 0
      %7044 = vmatprep.subr.bf16.mxu0 0
      %7045 = vmatpush1.bf16.msra.mxu0 0
      %7046 = vmatprep.subr.bf16.mxu0 0
      %7047 = vmatpush1.bf16.msra.mxu0 %v6982
      %7048 = vmatprep.subr.bf16.mxu0 0
      %7049 = vmatpush2.bf16.msra.mxu0 0
      %7050 = vmatprep.subr.bf16.mxu0 0
      %7051 = vmatpush2.bf16.msra.mxu0 0
      %7052 = vmatprep.subr.bf16.mxu0 0
      %7053 = vmatpush2.bf16.msra.mxu0 0
      %7054 = vmatprep.subr.bf16.mxu0 0
      %7055 = vmatpush2.bf16.msra.mxu0 0
      %7056 = vmatprep.subr.bf16.mxu0 0
      %7057 = vmatpush2.bf16.msra.mxu0 0
      %7058 = vmatprep.subr.bf16.mxu0 0
      %7059 = vmatpush2.bf16.msra.mxu0 0
      %7060 = vmatprep.subr.bf16.mxu0 0
      %7061 = vmatpush2.bf16.msra.mxu0 0
      %7062 = vmatprep.subr.bf16.mxu0 0
      %7063 = vmatpush2.bf16.msra.mxu0 0
      %7064 = vmatprep.mubr.bf16.mxu0 0
      %7065 = vmatmul.mubr.bf16.gmra.mxu0 %v6985
      %v7066 = vpop.f32.mrf.mxu0
      %v7067 = vadd.f32 0.0, %v7066
      %v7068 = vpop.f32.mrf.mxu0
      %v7069 = vpop.f32.mrf.mxu0
      %v7070 = vadd.f32 0.0, %v7069
      %v7071 = vpop.f32.mrf.mxu0
      %7072 = vmatprep.mubr.bf16.mxu0 0
      %7073 = vmatmul.mubr.bf16.gmra.mxu0 %v6988
      %v7074 = vpop.f32.mrf.mxu0
      %v7075 = vadd.f32 0.0, %v7074
      %v7076 = vpop.f32.mrf.mxu0
      %v7077 = vpop.f32.mrf.mxu0
      %v7078 = vadd.f32 0.0, %v7077
      %v7079 = vpop.f32.mrf.mxu0
      %7080 = vmatprep.mubr.bf16.mxu0 0
      %7081 = vmatmul.mubr.bf16.gmra.mxu0 %v6991
      %v7082 = vpop.f32.mrf.mxu0
      %v7083 = vadd.f32 0.0, %v7082
      %v7084 = vpop.f32.mrf.mxu0
      %v7085 = vpop.f32.mrf.mxu0
      %v7086 = vadd.f32 0.0, %v7085
      %v7087 = vpop.f32.mrf.mxu0
      %7088 = vmatprep.mubr.bf16.mxu0 0
      %7089 = vmatmul.mubr.bf16.gmra.mxu0 %v6994
      %v7090 = vpop.f32.mrf.mxu0
      %v7091 = vadd.f32 0.0, %v7090
      %v7092 = vpop.f32.mrf.mxu0
      %v7093 = vpop.f32.mrf.mxu0
      %v7094 = vadd.f32 0.0, %v7093
      %v7095 = vpop.f32.mrf.mxu0
      %7096 = vmatprep.mubr.bf16.mxu0 0
      %7097 = vmatmul.mubr.bf16.gmra.mxu0 %v6997
      %v7098 = vpop.f32.mrf.mxu0
      %v7099 = vadd.f32 0.0, %v7098
      %v7100 = vpop.f32.mrf.mxu0
      %v7101 = vpop.f32.mrf.mxu0
      %v7102 = vadd.f32 0.0, %v7101
      %v7103 = vpop.f32.mrf.mxu0
      %7104 = vmatprep.mubr.bf16.mxu0 0
      %7105 = vmatmul.mubr.bf16.gmra.mxu0 %v7000
      %v7106 = vpop.f32.mrf.mxu0
      %v7107 = vadd.f32 0.0, %v7106
      %v7108 = vpop.f32.mrf.mxu0
      %v7109 = vpop.f32.mrf.mxu0
      %v7110 = vadd.f32 0.0, %v7109
      %v7111 = vpop.f32.mrf.mxu0
      %7112 = vmatprep.mubr.bf16.mxu0 0
      %7113 = vmatmul.mubr.bf16.gmra.mxu0 %v7003
      %v7114 = vpop.f32.mrf.mxu0
      %v7115 = vadd.f32 0.0, %v7114
      %v7116 = vpop.f32.mrf.mxu0
      %v7117 = vpop.f32.mrf.mxu0
      %v7118 = vadd.f32 0.0, %v7117
      %v7119 = vpop.f32.mrf.mxu0
      %7120 = vmatprep.mubr.bf16.mxu0 0
      %7121 = vmatmul.mubr.bf16.gmra.mxu0 %v7006
      %v7122 = vpop.f32.mrf.mxu0
      %v7123 = vadd.f32 0.0, %v7122
      %v7124 = vpop.f32.mrf.mxu0
      %v7125 = vpop.f32.mrf.mxu0
      %v7126 = vadd.f32 0.0, %v7125
      %v7127 = vpop.f32.mrf.mxu0
      %7128 = vmatprep.mubr.bf16.mxu0 0
      %7129 = vmatmul.mubr.bf16.gmra.mxu0 %v7009
      %v7130 = vpop.f32.mrf.mxu0
      %v7131 = vadd.f32 0.0, %v7130
      %v7132 = vpop.f32.mrf.mxu0
      %v7133 = vpop.f32.mrf.mxu0
      %v7134 = vadd.f32 0.0, %v7133
      %v7135 = vpop.f32.mrf.mxu0
      %7136 = vmatprep.mubr.bf16.mxu0 0
      %7137 = vmatmul.mubr.bf16.gmra.mxu0 %v7012
      %v7138 = vpop.f32.mrf.mxu0
      %v7139 = vadd.f32 0.0, %v7138
      %v7140 = vpop.f32.mrf.mxu0
      %v7141 = vpop.f32.mrf.mxu0
      %v7142 = vadd.f32 0.0, %v7141
      %v7143 = vpop.f32.mrf.mxu0
      %7144 = vmatprep.mubr.bf16.mxu0 0
      %7145 = vmatmul.mubr.bf16.gmra.mxu0 %v7015
      %v7146 = vpop.f32.mrf.mxu0
      %v7147 = vadd.f32 0.0, %v7146
      %v7148 = vpop.f32.mrf.mxu0
      %v7149 = vpop.f32.mrf.mxu0
      %v7150 = vadd.f32 0.0, %v7149
      %v7151 = vpop.f32.mrf.mxu0
      %7152 = vmatprep.mubr.bf16.mxu0 0
      %7153 = vmatmul.mubr.bf16.gmra.mxu0 %v7018
      %v7154 = vpop.f32.mrf.mxu0
      %v7155 = vadd.f32 0.0, %v7154
      %v7156 = vpop.f32.mrf.mxu0
      %v7157 = vpop.f32.mrf.mxu0
      %v7158 = vadd.f32 0.0, %v7157
      %v7159 = vpop.f32.mrf.mxu0
      %7160 = vmatprep.mubr.bf16.mxu0 0
      %7161 = vmatmul.mubr.bf16.gmra.mxu0 %v7021
      %v7162 = vpop.f32.mrf.mxu0
      %v7163 = vadd.f32 0.0, %v7162
      %v7164 = vpop.f32.mrf.mxu0
      %v7165 = vpop.f32.mrf.mxu0
      %v7166 = vadd.f32 0.0, %v7165
      %v7167 = vpop.f32.mrf.mxu0
      %7168 = vmatprep.mubr.bf16.mxu0 0
      %7169 = vmatmul.mubr.bf16.gmra.mxu0 %v7024
      %v7170 = vpop.f32.mrf.mxu0
      %v7171 = vadd.f32 0.0, %v7170
      %v7172 = vpop.f32.mrf.mxu0
      %v7173 = vpop.f32.mrf.mxu0
      %v7174 = vadd.f32 0.0, %v7173
      %v7175 = vpop.f32.mrf.mxu0
      %7176 = vmatprep.mubr.bf16.mxu0 0
      %7177 = vmatmul.mubr.bf16.gmra.mxu0 %v7027
      %v7178 = vpop.f32.mrf.mxu0
      %v7179 = vadd.f32 0.0, %v7178
      %v7180 = vpop.f32.mrf.mxu0
      %v7181 = vpop.f32.mrf.mxu0
      %v7182 = vadd.f32 0.0, %v7181
      %v7183 = vpop.f32.mrf.mxu0
      %7184 = vmatprep.mubr.bf16.mxu0 0
      %7185 = vmatmul.mubr.bf16.gmra.mxu0 %v7030
      %v7186 = vpop.f32.mrf.mxu0
      %v7187 = vadd.f32 0.0, %v7186
      %v7188 = vpop.f32.mrf.mxu0
      %v7189 = vpop.f32.mrf.mxu0
      %v7190 = vadd.f32 0.0, %v7189
      %v7191 = vpop.f32.mrf.mxu0
      %7192 = vdwg.mxu0
      %v7193 = vadd.f32 %v6767, %v7067
      %v7194 = vadd.f32 %v6768, %v7070
      %v7195 = vadd.f32 %v6769, %v7075
      %v7196 = vadd.f32 %v6770, %v7078
      %v7197 = vadd.f32 %v6771, %v7083
      %v7198 = vadd.f32 %v6772, %v7086
      %v7199 = vadd.f32 %v6773, %v7091
      %v7200 = vadd.f32 %v6774, %v7094
      %v7201 = vadd.f32 %v6775, %v7099
      %v7202 = vadd.f32 %v6776, %v7102
      %v7203 = vadd.f32 %v6777, %v7107
      %v7204 = vadd.f32 %v6778, %v7110
      %v7205 = vadd.f32 %v6779, %v7115
      %v7206 = vadd.f32 %v6780, %v7118
      %v7207 = vadd.f32 %v6781, %v7123
      %v7208 = vadd.f32 %v6782, %v7126
      %v7209 = vadd.f32 %v6783, %v7131
      %v7210 = vadd.f32 %v6784, %v7134
      %v7211 = vadd.f32 %v6785, %v7139
      %v7212 = vadd.f32 %v6786, %v7142
      %v7213 = vadd.f32 %v6787, %v7147
      %v7214 = vadd.f32 %v6788, %v7150
      %v7215 = vadd.f32 %v6789, %v7155
      %v7216 = vadd.f32 %v6790, %v7158
      %v7217 = vadd.f32 %v6791, %v7163
      %v7218 = vadd.f32 %v6792, %v7166
      %v7219 = vadd.f32 %v6793, %v7171
      %v7220 = vadd.f32 %v6794, %v7174
      %v7221 = vadd.f32 %v6795, %v7179
      %v7222 = vadd.f32 %v6796, %v7182
      %v7223 = vadd.f32 %v6797, %v7187
      %v7224 = vadd.f32 %v6798, %v7190
      %v7257 = vrot.slane %v6516, 1
      %v7258 = vrot.slane %v6533, 1
      %v7259 = vsel %vm4744, %v7257, %v7258
      %v7260 = vrot.slane %v6517, 1
      %v7261 = vrot.slane %v6534, 1
      %v7262 = vsel %vm4744, %v7260, %v7261
      %v7263 = vrot.slane %v6518, 1
      %v7264 = vrot.slane %v6535, 1
      %v7265 = vsel %vm4744, %v7263, %v7264
      %v7266 = vrot.slane %v6519, 1
      %v7267 = vrot.slane %v6536, 1
      %v7268 = vsel %vm4744, %v7266, %v7267
      %v7269 = vrot.slane %v6520, 1
      %v7270 = vrot.slane %v6537, 1
      %v7271 = vsel %vm4744, %v7269, %v7270
      %v7272 = vrot.slane %v6521, 1
      %v7273 = vrot.slane %v6538, 1
      %v7274 = vsel %vm4744, %v7272, %v7273
      %v7275 = vrot.slane %v6522, 1
      %v7276 = vrot.slane %v6539, 1
      %v7277 = vsel %vm4744, %v7275, %v7276
      %v7278 = vrot.slane %v6523, 1
      %v7279 = vrot.slane %v6540, 1
      %v7280 = vsel %vm4744, %v7278, %v7279
      %v7281 = vrot.slane %v6524, 1
      %v7282 = vrot.slane %v6541, 1
      %v7283 = vsel %vm4744, %v7281, %v7282
      %v7284 = vrot.slane %v6525, 1
      %v7285 = vrot.slane %v6542, 1
      %v7286 = vsel %vm4744, %v7284, %v7285
      %v7287 = vrot.slane %v6526, 1
      %v7288 = vrot.slane %v6543, 1
      %v7289 = vsel %vm4744, %v7287, %v7288
      %v7290 = vrot.slane %v6527, 1
      %v7291 = vrot.slane %v6544, 1
      %v7292 = vsel %vm4744, %v7290, %v7291
      %v7293 = vrot.slane %v6528, 1
      %v7294 = vrot.slane %v6545, 1
      %v7295 = vsel %vm4744, %v7293, %v7294
      %v7296 = vrot.slane %v6529, 1
      %v7297 = vrot.slane %v6546, 1
      %v7298 = vsel %vm4744, %v7296, %v7297
      %v7299 = vrot.slane %v6530, 1
      %v7300 = vrot.slane %v6547, 1
      %v7301 = vsel %vm4744, %v7299, %v7300
      %v7302 = vrot.slane %v6531, 1
      %v7303 = vrot.slane %v6548, 1
      %v7304 = vsel %vm4744, %v7302, %v7303
      %s7305 = scalar_lea.vmem %s4, 16
      %v7306 = vld [vmem:[%s7305] sm:$0xf]
      %v7307 = vld [vmem:[%s7305 + $0x4] sm:$0xf]
      %v7310 = vunpack.c.l.b16 %v7306
      %v7311 = vunpack.c.l.b16 %v7307
      %v7312 = vpack.c.b16 %v7311, %v7310
      %v7315 = vsel %vm4303, %v7259, 0
      %v7318 = vsel %vm4303, %v7262, 0
      %v7321 = vsel %vm4303, %v7265, 0
      %v7324 = vsel %vm4303, %v7268, 0
      %v7327 = vsel %vm4303, %v7271, 0
      %v7330 = vsel %vm4303, %v7274, 0
      %v7333 = vsel %vm4303, %v7277, 0
      %v7336 = vsel %vm4303, %v7280, 0
      %v7339 = vsel %vm4303, %v7283, 0
      %v7342 = vsel %vm4303, %v7286, 0
      %v7345 = vsel %vm4303, %v7289, 0
      %v7348 = vsel %vm4303, %v7292, 0
      %v7351 = vsel %vm4303, %v7295, 0
      %v7354 = vsel %vm4303, %v7298, 0
      %v7357 = vsel %vm4303, %v7301, 0
      %v7360 = vsel %vm4303, %v7304, 0
      %7362 = vmatprep.subr.bf16.mxu0 0
      %7363 = vmatpush1.bf16.msra.mxu0 0
      %7364 = vmatprep.subr.bf16.mxu0 0
      %7365 = vmatpush1.bf16.msra.mxu0 0
      %7366 = vmatprep.subr.bf16.mxu0 0
      %7367 = vmatpush1.bf16.msra.mxu0 0
      %7368 = vmatprep.subr.bf16.mxu0 0
      %7369 = vmatpush1.bf16.msra.mxu0 0
      %7370 = vmatprep.subr.bf16.mxu0 0
      %7371 = vmatpush1.bf16.msra.mxu0 0
      %7372 = vmatprep.subr.bf16.mxu0 0
      %7373 = vmatpush1.bf16.msra.mxu0 0
      %7374 = vmatprep.subr.bf16.mxu0 0
      %7375 = vmatpush1.bf16.msra.mxu0 0
      %7376 = vmatprep.subr.bf16.mxu0 0
      %7377 = vmatpush1.bf16.msra.mxu0 %v7312
      %7378 = vmatprep.subr.bf16.mxu0 0
      %7379 = vmatpush2.bf16.msra.mxu0 0
      %7380 = vmatprep.subr.bf16.mxu0 0
      %7381 = vmatpush2.bf16.msra.mxu0 0
      %7382 = vmatprep.subr.bf16.mxu0 0
      %7383 = vmatpush2.bf16.msra.mxu0 0
      %7384 = vmatprep.subr.bf16.mxu0 0
      %7385 = vmatpush2.bf16.msra.mxu0 0
      %7386 = vmatprep.subr.bf16.mxu0 0
      %7387 = vmatpush2.bf16.msra.mxu0 0
      %7388 = vmatprep.subr.bf16.mxu0 0
      %7389 = vmatpush2.bf16.msra.mxu0 0
      %7390 = vmatprep.subr.bf16.mxu0 0
      %7391 = vmatpush2.bf16.msra.mxu0 0
      %7392 = vmatprep.subr.bf16.mxu0 0
      %7393 = vmatpush2.bf16.msra.mxu0 0
      %7394 = vmatprep.mubr.bf16.mxu0 0
      %7395 = vmatmul.mubr.bf16.gmra.mxu0 %v7315
      %v7396 = vpop.f32.mrf.mxu0
      %v7397 = vadd.f32 0.0, %v7396
      %v7398 = vpop.f32.mrf.mxu0
      %v7399 = vpop.f32.mrf.mxu0
      %v7400 = vadd.f32 0.0, %v7399
      %v7401 = vpop.f32.mrf.mxu0
      %7402 = vmatprep.mubr.bf16.mxu0 0
      %7403 = vmatmul.mubr.bf16.gmra.mxu0 %v7318
      %v7404 = vpop.f32.mrf.mxu0
      %v7405 = vadd.f32 0.0, %v7404
      %v7406 = vpop.f32.mrf.mxu0
      %v7407 = vpop.f32.mrf.mxu0
      %v7408 = vadd.f32 0.0, %v7407
      %v7409 = vpop.f32.mrf.mxu0
      %7410 = vmatprep.mubr.bf16.mxu0 0
      %7411 = vmatmul.mubr.bf16.gmra.mxu0 %v7321
      %v7412 = vpop.f32.mrf.mxu0
      %v7413 = vadd.f32 0.0, %v7412
      %v7414 = vpop.f32.mrf.mxu0
      %v7415 = vpop.f32.mrf.mxu0
      %v7416 = vadd.f32 0.0, %v7415
      %v7417 = vpop.f32.mrf.mxu0
      %7418 = vmatprep.mubr.bf16.mxu0 0
      %7419 = vmatmul.mubr.bf16.gmra.mxu0 %v7324
      %v7420 = vpop.f32.mrf.mxu0
      %v7421 = vadd.f32 0.0, %v7420
      %v7422 = vpop.f32.mrf.mxu0
      %v7423 = vpop.f32.mrf.mxu0
      %v7424 = vadd.f32 0.0, %v7423
      %v7425 = vpop.f32.mrf.mxu0
      %7426 = vmatprep.mubr.bf16.mxu0 0
      %7427 = vmatmul.mubr.bf16.gmra.mxu0 %v7327
      %v7428 = vpop.f32.mrf.mxu0
      %v7429 = vadd.f32 0.0, %v7428
      %v7430 = vpop.f32.mrf.mxu0
      %v7431 = vpop.f32.mrf.mxu0
      %v7432 = vadd.f32 0.0, %v7431
      %v7433 = vpop.f32.mrf.mxu0
      %7434 = vmatprep.mubr.bf16.mxu0 0
      %7435 = vmatmul.mubr.bf16.gmra.mxu0 %v7330
      %v7436 = vpop.f32.mrf.mxu0
      %v7437 = vadd.f32 0.0, %v7436
      %v7438 = vpop.f32.mrf.mxu0
      %v7439 = vpop.f32.mrf.mxu0
      %v7440 = vadd.f32 0.0, %v7439
      %v7441 = vpop.f32.mrf.mxu0
      %7442 = vmatprep.mubr.bf16.mxu0 0
      %7443 = vmatmul.mubr.bf16.gmra.mxu0 %v7333
      %v7444 = vpop.f32.mrf.mxu0
      %v7445 = vadd.f32 0.0, %v7444
      %v7446 = vpop.f32.mrf.mxu0
      %v7447 = vpop.f32.mrf.mxu0
      %v7448 = vadd.f32 0.0, %v7447
      %v7449 = vpop.f32.mrf.mxu0
      %7450 = vmatprep.mubr.bf16.mxu0 0
      %7451 = vmatmul.mubr.bf16.gmra.mxu0 %v7336
      %v7452 = vpop.f32.mrf.mxu0
      %v7453 = vadd.f32 0.0, %v7452
      %v7454 = vpop.f32.mrf.mxu0
      %v7455 = vpop.f32.mrf.mxu0
      %v7456 = vadd.f32 0.0, %v7455
      %v7457 = vpop.f32.mrf.mxu0
      %7458 = vmatprep.mubr.bf16.mxu0 0
      %7459 = vmatmul.mubr.bf16.gmra.mxu0 %v7339
      %v7460 = vpop.f32.mrf.mxu0
      %v7461 = vadd.f32 0.0, %v7460
      %v7462 = vpop.f32.mrf.mxu0
      %v7463 = vpop.f32.mrf.mxu0
      %v7464 = vadd.f32 0.0, %v7463
      %v7465 = vpop.f32.mrf.mxu0
      %7466 = vmatprep.mubr.bf16.mxu0 0
      %7467 = vmatmul.mubr.bf16.gmra.mxu0 %v7342
      %v7468 = vpop.f32.mrf.mxu0
      %v7469 = vadd.f32 0.0, %v7468
      %v7470 = vpop.f32.mrf.mxu0
      %v7471 = vpop.f32.mrf.mxu0
      %v7472 = vadd.f32 0.0, %v7471
      %v7473 = vpop.f32.mrf.mxu0
      %7474 = vmatprep.mubr.bf16.mxu0 0
      %7475 = vmatmul.mubr.bf16.gmra.mxu0 %v7345
      %v7476 = vpop.f32.mrf.mxu0
      %v7477 = vadd.f32 0.0, %v7476
      %v7478 = vpop.f32.mrf.mxu0
      %v7479 = vpop.f32.mrf.mxu0
      %v7480 = vadd.f32 0.0, %v7479
      %v7481 = vpop.f32.mrf.mxu0
      %7482 = vmatprep.mubr.bf16.mxu0 0
      %7483 = vmatmul.mubr.bf16.gmra.mxu0 %v7348
      %v7484 = vpop.f32.mrf.mxu0
      %v7485 = vadd.f32 0.0, %v7484
      %v7486 = vpop.f32.mrf.mxu0
      %v7487 = vpop.f32.mrf.mxu0
      %v7488 = vadd.f32 0.0, %v7487
      %v7489 = vpop.f32.mrf.mxu0
      %7490 = vmatprep.mubr.bf16.mxu0 0
      %7491 = vmatmul.mubr.bf16.gmra.mxu0 %v7351
      %v7492 = vpop.f32.mrf.mxu0
      %v7493 = vadd.f32 0.0, %v7492
      %v7494 = vpop.f32.mrf.mxu0
      %v7495 = vpop.f32.mrf.mxu0
      %v7496 = vadd.f32 0.0, %v7495
      %v7497 = vpop.f32.mrf.mxu0
      %7498 = vmatprep.mubr.bf16.mxu0 0
      %7499 = vmatmul.mubr.bf16.gmra.mxu0 %v7354
      %v7500 = vpop.f32.mrf.mxu0
      %v7501 = vadd.f32 0.0, %v7500
      %v7502 = vpop.f32.mrf.mxu0
      %v7503 = vpop.f32.mrf.mxu0
      %v7504 = vadd.f32 0.0, %v7503
      %v7505 = vpop.f32.mrf.mxu0
      %7506 = vmatprep.mubr.bf16.mxu0 0
      %7507 = vmatmul.mubr.bf16.gmra.mxu0 %v7357
      %v7508 = vpop.f32.mrf.mxu0
      %v7509 = vadd.f32 0.0, %v7508
      %v7510 = vpop.f32.mrf.mxu0
      %v7511 = vpop.f32.mrf.mxu0
      %v7512 = vadd.f32 0.0, %v7511
      %v7513 = vpop.f32.mrf.mxu0
      %7514 = vmatprep.mubr.bf16.mxu0 0
      %7515 = vmatmul.mubr.bf16.gmra.mxu0 %v7360
      %v7516 = vpop.f32.mrf.mxu0
      %v7517 = vadd.f32 0.0, %v7516
      %v7518 = vpop.f32.mrf.mxu0
      %v7519 = vpop.f32.mrf.mxu0
      %v7520 = vadd.f32 0.0, %v7519
      %v7521 = vpop.f32.mrf.mxu0
      %7522 = vdwg.mxu0
      %v7523 = vadd.f32 %v7193, %v7397
      %v7524 = vadd.f32 %v7194, %v7400
      %v7525 = vadd.f32 %v7195, %v7405
      %v7526 = vadd.f32 %v7196, %v7408
      %v7527 = vadd.f32 %v7197, %v7413
      %v7528 = vadd.f32 %v7198, %v7416
      %v7529 = vadd.f32 %v7199, %v7421
      %v7530 = vadd.f32 %v7200, %v7424
      %v7531 = vadd.f32 %v7201, %v7429
      %v7532 = vadd.f32 %v7202, %v7432
      %v7533 = vadd.f32 %v7203, %v7437
      %v7534 = vadd.f32 %v7204, %v7440
      %v7535 = vadd.f32 %v7205, %v7445
      %v7536 = vadd.f32 %v7206, %v7448
      %v7537 = vadd.f32 %v7207, %v7453
      %v7538 = vadd.f32 %v7208, %v7456
      %v7539 = vadd.f32 %v7209, %v7461
      %v7540 = vadd.f32 %v7210, %v7464
      %v7541 = vadd.f32 %v7211, %v7469
      %v7542 = vadd.f32 %v7212, %v7472
      %v7543 = vadd.f32 %v7213, %v7477
      %v7544 = vadd.f32 %v7214, %v7480
      %v7545 = vadd.f32 %v7215, %v7485
      %v7546 = vadd.f32 %v7216, %v7488
      %v7547 = vadd.f32 %v7217, %v7493
      %v7548 = vadd.f32 %v7218, %v7496
      %v7549 = vadd.f32 %v7219, %v7501
      %v7550 = vadd.f32 %v7220, %v7504
      %v7551 = vadd.f32 %v7221, %v7509
      %v7552 = vadd.f32 %v7222, %v7512
      %v7553 = vadd.f32 %v7223, %v7517
      %v7554 = vadd.f32 %v7224, %v7520
      %s7555 = scalar_lea.vmem %s4, 24
      %v7556 = vld [vmem:[%s7555] sm:$0xf]
      %v7557 = vld [vmem:[%s7555 + $0x4] sm:$0xf]
      %v7560 = vunpack.c.l.b16 %v7556
      %v7561 = vunpack.c.l.b16 %v7557
      %v7562 = vpack.c.b16 %v7561, %v7560
      %v7565 = vsel %vm4303, %v6532, 0
      %7567 = vmatprep.subr.bf16.mxu0 0
      %7568 = vmatpush1.bf16.msra.mxu0 0
      %7569 = vmatprep.subr.bf16.mxu0 0
      %7570 = vmatpush1.bf16.msra.mxu0 0
      %7571 = vmatprep.subr.bf16.mxu0 0
      %7572 = vmatpush1.bf16.msra.mxu0 0
      %7573 = vmatprep.subr.bf16.mxu0 0
      %7574 = vmatpush1.bf16.msra.mxu0 0
      %7575 = vmatprep.subr.bf16.mxu0 0
      %7576 = vmatpush1.bf16.msra.mxu0 0
      %7577 = vmatprep.subr.bf16.mxu0 0
      %7578 = vmatpush1.bf16.msra.mxu0 0
      %7579 = vmatprep.subr.bf16.mxu0 0
      %7580 = vmatpush1.bf16.msra.mxu0 0
      %7581 = vmatprep.subr.bf16.mxu0 0
      %7582 = vmatpush1.bf16.msra.mxu0 %v7562
      %7583 = vmatprep.subr.bf16.mxu0 0
      %7584 = vmatpush2.bf16.msra.mxu0 0
      %7585 = vmatprep.subr.bf16.mxu0 0
      %7586 = vmatpush2.bf16.msra.mxu0 0
      %7587 = vmatprep.subr.bf16.mxu0 0
      %7588 = vmatpush2.bf16.msra.mxu0 0
      %7589 = vmatprep.subr.bf16.mxu0 0
      %7590 = vmatpush2.bf16.msra.mxu0 0
      %7591 = vmatprep.subr.bf16.mxu0 0
      %7592 = vmatpush2.bf16.msra.mxu0 0
      %7593 = vmatprep.subr.bf16.mxu0 0
      %7594 = vmatpush2.bf16.msra.mxu0 0
      %7595 = vmatprep.subr.bf16.mxu0 0
      %7596 = vmatpush2.bf16.msra.mxu0 0
      %7597 = vmatprep.subr.bf16.mxu0 0
      %7598 = vmatpush2.bf16.msra.mxu0 0
      %7599 = vmatprep.mubr.bf16.mxu0 0
      %7600 = vmatmul.mubr.bf16.gmra.mxu0 %v6562
      %v7601 = vpop.f32.mrf.mxu0
      %v7602 = vadd.f32 0.0, %v7601
      %v7603 = vpop.f32.mrf.mxu0
      %v7604 = vpop.f32.mrf.mxu0
      %v7605 = vadd.f32 0.0, %v7604
      %v7606 = vpop.f32.mrf.mxu0
      %7607 = vmatprep.mubr.bf16.mxu0 0
      %7608 = vmatmul.mubr.bf16.gmra.mxu0 %v6565
      %v7609 = vpop.f32.mrf.mxu0
      %v7610 = vadd.f32 0.0, %v7609
      %v7611 = vpop.f32.mrf.mxu0
      %v7612 = vpop.f32.mrf.mxu0
      %v7613 = vadd.f32 0.0, %v7612
      %v7614 = vpop.f32.mrf.mxu0
      %7615 = vmatprep.mubr.bf16.mxu0 0
      %7616 = vmatmul.mubr.bf16.gmra.mxu0 %v6568
      %v7617 = vpop.f32.mrf.mxu0
      %v7618 = vadd.f32 0.0, %v7617
      %v7619 = vpop.f32.mrf.mxu0
      %v7620 = vpop.f32.mrf.mxu0
      %v7621 = vadd.f32 0.0, %v7620
      %v7622 = vpop.f32.mrf.mxu0
      %7623 = vmatprep.mubr.bf16.mxu0 0
      %7624 = vmatmul.mubr.bf16.gmra.mxu0 %v6571
      %v7625 = vpop.f32.mrf.mxu0
      %v7626 = vadd.f32 0.0, %v7625
      %v7627 = vpop.f32.mrf.mxu0
      %v7628 = vpop.f32.mrf.mxu0
      %v7629 = vadd.f32 0.0, %v7628
      %v7630 = vpop.f32.mrf.mxu0
      %7631 = vmatprep.mubr.bf16.mxu0 0
      %7632 = vmatmul.mubr.bf16.gmra.mxu0 %v6574
      %v7633 = vpop.f32.mrf.mxu0
      %v7634 = vadd.f32 0.0, %v7633
      %v7635 = vpop.f32.mrf.mxu0
      %v7636 = vpop.f32.mrf.mxu0
      %v7637 = vadd.f32 0.0, %v7636
      %v7638 = vpop.f32.mrf.mxu0
      %7639 = vmatprep.mubr.bf16.mxu0 0
      %7640 = vmatmul.mubr.bf16.gmra.mxu0 %v6577
      %v7641 = vpop.f32.mrf.mxu0
      %v7642 = vadd.f32 0.0, %v7641
      %v7643 = vpop.f32.mrf.mxu0
      %v7644 = vpop.f32.mrf.mxu0
      %v7645 = vadd.f32 0.0, %v7644
      %v7646 = vpop.f32.mrf.mxu0
      %7647 = vmatprep.mubr.bf16.mxu0 0
      %7648 = vmatmul.mubr.bf16.gmra.mxu0 %v6580
      %v7649 = vpop.f32.mrf.mxu0
      %v7650 = vadd.f32 0.0, %v7649
      %v7651 = vpop.f32.mrf.mxu0
      %v7652 = vpop.f32.mrf.mxu0
      %v7653 = vadd.f32 0.0, %v7652
      %v7654 = vpop.f32.mrf.mxu0
      %7655 = vmatprep.mubr.bf16.mxu0 0
      %7656 = vmatmul.mubr.bf16.gmra.mxu0 %v6583
      %v7657 = vpop.f32.mrf.mxu0
      %v7658 = vadd.f32 0.0, %v7657
      %v7659 = vpop.f32.mrf.mxu0
      %v7660 = vpop.f32.mrf.mxu0
      %v7661 = vadd.f32 0.0, %v7660
      %v7662 = vpop.f32.mrf.mxu0
      %7663 = vmatprep.mubr.bf16.mxu0 0
      %7664 = vmatmul.mubr.bf16.gmra.mxu0 %v6586
      %v7665 = vpop.f32.mrf.mxu0
      %v7666 = vadd.f32 0.0, %v7665
      %v7667 = vpop.f32.mrf.mxu0
      %v7668 = vpop.f32.mrf.mxu0
      %v7669 = vadd.f32 0.0, %v7668
      %v7670 = vpop.f32.mrf.mxu0
      %7671 = vmatprep.mubr.bf16.mxu0 0
      %7672 = vmatmul.mubr.bf16.gmra.mxu0 %v6589
      %v7673 = vpop.f32.mrf.mxu0
      %v7674 = vadd.f32 0.0, %v7673
      %v7675 = vpop.f32.mrf.mxu0
      %v7676 = vpop.f32.mrf.mxu0
      %v7677 = vadd.f32 0.0, %v7676
      %v7678 = vpop.f32.mrf.mxu0
      %7679 = vmatprep.mubr.bf16.mxu0 0
      %7680 = vmatmul.mubr.bf16.gmra.mxu0 %v6592
      %v7681 = vpop.f32.mrf.mxu0
      %v7682 = vadd.f32 0.0, %v7681
      %v7683 = vpop.f32.mrf.mxu0
      %v7684 = vpop.f32.mrf.mxu0
      %v7685 = vadd.f32 0.0, %v7684
      %v7686 = vpop.f32.mrf.mxu0
      %7687 = vmatprep.mubr.bf16.mxu0 0
      %7688 = vmatmul.mubr.bf16.gmra.mxu0 %v6595
      %v7689 = vpop.f32.mrf.mxu0
      %v7690 = vadd.f32 0.0, %v7689
      %v7691 = vpop.f32.mrf.mxu0
      %v7692 = vpop.f32.mrf.mxu0
      %v7693 = vadd.f32 0.0, %v7692
      %v7694 = vpop.f32.mrf.mxu0
      %7695 = vmatprep.mubr.bf16.mxu0 0
      %7696 = vmatmul.mubr.bf16.gmra.mxu0 %v6598
      %v7697 = vpop.f32.mrf.mxu0
      %v7698 = vadd.f32 0.0, %v7697
      %v7699 = vpop.f32.mrf.mxu0
      %v7700 = vpop.f32.mrf.mxu0
      %v7701 = vadd.f32 0.0, %v7700
      %v7702 = vpop.f32.mrf.mxu0
      %7703 = vmatprep.mubr.bf16.mxu0 0
      %7704 = vmatmul.mubr.bf16.gmra.mxu0 %v6601
      %v7705 = vpop.f32.mrf.mxu0
      %v7706 = vadd.f32 0.0, %v7705
      %v7707 = vpop.f32.mrf.mxu0
      %v7708 = vpop.f32.mrf.mxu0
      %v7709 = vadd.f32 0.0, %v7708
      %v7710 = vpop.f32.mrf.mxu0
      %7711 = vmatprep.mubr.bf16.mxu0 0
      %7712 = vmatmul.mubr.bf16.gmra.mxu0 %v6604
      %v7713 = vpop.f32.mrf.mxu0
      %v7714 = vadd.f32 0.0, %v7713
      %v7715 = vpop.f32.mrf.mxu0
      %v7716 = vpop.f32.mrf.mxu0
      %v7717 = vadd.f32 0.0, %v7716
      %v7718 = vpop.f32.mrf.mxu0
      %7719 = vmatprep.mubr.bf16.mxu0 0
      %7720 = vmatmul.mubr.bf16.gmra.mxu0 %v7565
      %v7721 = vpop.f32.mrf.mxu0
      %v7722 = vadd.f32 0.0, %v7721
      %v7723 = vpop.f32.mrf.mxu0
      %v7724 = vpop.f32.mrf.mxu0
      %v7725 = vadd.f32 0.0, %v7724
      %v7726 = vpop.f32.mrf.mxu0
      %7727 = vdwg.mxu0
      %v7728 = vadd.f32 %v7523, %v7602
      %v7729 = vadd.f32 %v7524, %v7605
      %v7730 = vadd.f32 %v7525, %v7610
      %v7731 = vadd.f32 %v7526, %v7613
      %v7732 = vadd.f32 %v7527, %v7618
      %v7733 = vadd.f32 %v7528, %v7621
      %v7734 = vadd.f32 %v7529, %v7626
      %v7735 = vadd.f32 %v7530, %v7629
      %v7736 = vadd.f32 %v7531, %v7634
      %v7737 = vadd.f32 %v7532, %v7637
      %v7738 = vadd.f32 %v7533, %v7642
      %v7739 = vadd.f32 %v7534, %v7645
      %v7740 = vadd.f32 %v7535, %v7650
      %v7741 = vadd.f32 %v7536, %v7653
      %v7742 = vadd.f32 %v7537, %v7658
      %v7743 = vadd.f32 %v7538, %v7661
      %v7744 = vadd.f32 %v7539, %v7666
      %v7745 = vadd.f32 %v7540, %v7669
      %v7746 = vadd.f32 %v7541, %v7674
      %v7747 = vadd.f32 %v7542, %v7677
      %v7748 = vadd.f32 %v7543, %v7682
      %v7749 = vadd.f32 %v7544, %v7685
      %v7750 = vadd.f32 %v7545, %v7690
      %v7751 = vadd.f32 %v7546, %v7693
      %v7752 = vadd.f32 %v7547, %v7698
      %v7753 = vadd.f32 %v7548, %v7701
      %v7754 = vadd.f32 %v7549, %v7706
      %v7755 = vadd.f32 %v7550, %v7709
      %v7756 = vadd.f32 %v7551, %v7714
      %v7757 = vadd.f32 %v7552, %v7717
      %v7758 = vadd.f32 %v7553, %v7722
      %v7759 = vadd.f32 %v7554, %v7725
      %v7760 = vshrl.u32 %v6532, 16
      %v7762 = vshll.u32 %v6532, 16
      %v7764 = vrot.slane %v7762, 1
      %v7765 = vor.u32 %v7760, %v7764
      %v7767 = vshll.u32 %v6549, 16
      %v7769 = vrot.slane %v7767, 1
      %v7770 = vsel %vm4101, %v7765, %v7769
      %s7771 = scalar_lea.vmem %s4, 32
      %v7772 = vld [vmem:[%s7771] sm:$0xf]
      %v7773 = vld [vmem:[%s7771 + $0x4] sm:$0xf]
      %v7776 = vunpack.c.l.b16 %v7772
      %v7777 = vunpack.c.l.b16 %v7773
      %v7778 = vpack.c.b16 %v7777, %v7776
      %v7781 = vsel %vm4303, %v7770, 0
      %7783 = vmatprep.subr.bf16.mxu0 0
      %7784 = vmatpush1.bf16.msra.mxu0 0
      %7785 = vmatprep.subr.bf16.mxu0 0
      %7786 = vmatpush1.bf16.msra.mxu0 0
      %7787 = vmatprep.subr.bf16.mxu0 0
      %7788 = vmatpush1.bf16.msra.mxu0 0
      %7789 = vmatprep.subr.bf16.mxu0 0
      %7790 = vmatpush1.bf16.msra.mxu0 0
      %7791 = vmatprep.subr.bf16.mxu0 0
      %7792 = vmatpush1.bf16.msra.mxu0 0
      %7793 = vmatprep.subr.bf16.mxu0 0
      %7794 = vmatpush1.bf16.msra.mxu0 0
      %7795 = vmatprep.subr.bf16.mxu0 0
      %7796 = vmatpush1.bf16.msra.mxu0 0
      %7797 = vmatprep.subr.bf16.mxu0 0
      %7798 = vmatpush1.bf16.msra.mxu0 %v7778
      %7799 = vmatprep.subr.bf16.mxu0 0
      %7800 = vmatpush2.bf16.msra.mxu0 0
      %7801 = vmatprep.subr.bf16.mxu0 0
      %7802 = vmatpush2.bf16.msra.mxu0 0
      %7803 = vmatprep.subr.bf16.mxu0 0
      %7804 = vmatpush2.bf16.msra.mxu0 0
      %7805 = vmatprep.subr.bf16.mxu0 0
      %7806 = vmatpush2.bf16.msra.mxu0 0
      %7807 = vmatprep.subr.bf16.mxu0 0
      %7808 = vmatpush2.bf16.msra.mxu0 0
      %7809 = vmatprep.subr.bf16.mxu0 0
      %7810 = vmatpush2.bf16.msra.mxu0 0
      %7811 = vmatprep.subr.bf16.mxu0 0
      %7812 = vmatpush2.bf16.msra.mxu0 0
      %7813 = vmatprep.subr.bf16.mxu0 0
      %7814 = vmatpush2.bf16.msra.mxu0 0
      %7815 = vmatprep.mubr.bf16.mxu0 0
      %7816 = vmatmul.mubr.bf16.gmra.mxu0 %v6988
      %v7817 = vpop.f32.mrf.mxu0
      %v7818 = vadd.f32 0.0, %v7817
      %v7819 = vpop.f32.mrf.mxu0
      %v7820 = vpop.f32.mrf.mxu0
      %v7821 = vadd.f32 0.0, %v7820
      %v7822 = vpop.f32.mrf.mxu0
      %7823 = vmatprep.mubr.bf16.mxu0 0
      %7824 = vmatmul.mubr.bf16.gmra.mxu0 %v6991
      %v7825 = vpop.f32.mrf.mxu0
      %v7826 = vadd.f32 0.0, %v7825
      %v7827 = vpop.f32.mrf.mxu0
      %v7828 = vpop.f32.mrf.mxu0
      %v7829 = vadd.f32 0.0, %v7828
      %v7830 = vpop.f32.mrf.mxu0
      %7831 = vmatprep.mubr.bf16.mxu0 0
      %7832 = vmatmul.mubr.bf16.gmra.mxu0 %v6994
      %v7833 = vpop.f32.mrf.mxu0
      %v7834 = vadd.f32 0.0, %v7833
      %v7835 = vpop.f32.mrf.mxu0
      %v7836 = vpop.f32.mrf.mxu0
      %v7837 = vadd.f32 0.0, %v7836
      %v7838 = vpop.f32.mrf.mxu0
      %7839 = vmatprep.mubr.bf16.mxu0 0
      %7840 = vmatmul.mubr.bf16.gmra.mxu0 %v6997
      %v7841 = vpop.f32.mrf.mxu0
      %v7842 = vadd.f32 0.0, %v7841
      %v7843 = vpop.f32.mrf.mxu0
      %v7844 = vpop.f32.mrf.mxu0
      %v7845 = vadd.f32 0.0, %v7844
      %v7846 = vpop.f32.mrf.mxu0
      %7847 = vmatprep.mubr.bf16.mxu0 0
      %7848 = vmatmul.mubr.bf16.gmra.mxu0 %v7000
      %v7849 = vpop.f32.mrf.mxu0
      %v7850 = vadd.f32 0.0, %v7849
      %v7851 = vpop.f32.mrf.mxu0
      %v7852 = vpop.f32.mrf.mxu0
      %v7853 = vadd.f32 0.0, %v7852
      %v7854 = vpop.f32.mrf.mxu0
      %7855 = vmatprep.mubr.bf16.mxu0 0
      %7856 = vmatmul.mubr.bf16.gmra.mxu0 %v7003
      %v7857 = vpop.f32.mrf.mxu0
      %v7858 = vadd.f32 0.0, %v7857
      %v7859 = vpop.f32.mrf.mxu0
      %v7860 = vpop.f32.mrf.mxu0
      %v7861 = vadd.f32 0.0, %v7860
      %v7862 = vpop.f32.mrf.mxu0
      %7863 = vmatprep.mubr.bf16.mxu0 0
      %7864 = vmatmul.mubr.bf16.gmra.mxu0 %v7006
      %v7865 = vpop.f32.mrf.mxu0
      %v7866 = vadd.f32 0.0, %v7865
      %v7867 = vpop.f32.mrf.mxu0
      %v7868 = vpop.f32.mrf.mxu0
      %v7869 = vadd.f32 0.0, %v7868
      %v7870 = vpop.f32.mrf.mxu0
      %7871 = vmatprep.mubr.bf16.mxu0 0
      %7872 = vmatmul.mubr.bf16.gmra.mxu0 %v7009
      %v7873 = vpop.f32.mrf.mxu0
      %v7874 = vadd.f32 0.0, %v7873
      %v7875 = vpop.f32.mrf.mxu0
      %v7876 = vpop.f32.mrf.mxu0
      %v7877 = vadd.f32 0.0, %v7876
      %v7878 = vpop.f32.mrf.mxu0
      %7879 = vmatprep.mubr.bf16.mxu0 0
      %7880 = vmatmul.mubr.bf16.gmra.mxu0 %v7012
      %v7881 = vpop.f32.mrf.mxu0
      %v7882 = vadd.f32 0.0, %v7881
      %v7883 = vpop.f32.mrf.mxu0
      %v7884 = vpop.f32.mrf.mxu0
      %v7885 = vadd.f32 0.0, %v7884
      %v7886 = vpop.f32.mrf.mxu0
      %7887 = vmatprep.mubr.bf16.mxu0 0
      %7888 = vmatmul.mubr.bf16.gmra.mxu0 %v7015
      %v7889 = vpop.f32.mrf.mxu0
      %v7890 = vadd.f32 0.0, %v7889
      %v7891 = vpop.f32.mrf.mxu0
      %v7892 = vpop.f32.mrf.mxu0
      %v7893 = vadd.f32 0.0, %v7892
      %v7894 = vpop.f32.mrf.mxu0
      %7895 = vmatprep.mubr.bf16.mxu0 0
      %7896 = vmatmul.mubr.bf16.gmra.mxu0 %v7018
      %v7897 = vpop.f32.mrf.mxu0
      %v7898 = vadd.f32 0.0, %v7897
      %v7899 = vpop.f32.mrf.mxu0
      %v7900 = vpop.f32.mrf.mxu0
      %v7901 = vadd.f32 0.0, %v7900
      %v7902 = vpop.f32.mrf.mxu0
      %7903 = vmatprep.mubr.bf16.mxu0 0
      %7904 = vmatmul.mubr.bf16.gmra.mxu0 %v7021
      %v7905 = vpop.f32.mrf.mxu0
      %v7906 = vadd.f32 0.0, %v7905
      %v7907 = vpop.f32.mrf.mxu0
      %v7908 = vpop.f32.mrf.mxu0
      %v7909 = vadd.f32 0.0, %v7908
      %v7910 = vpop.f32.mrf.mxu0
      %7911 = vmatprep.mubr.bf16.mxu0 0
      %7912 = vmatmul.mubr.bf16.gmra.mxu0 %v7024
      %v7913 = vpop.f32.mrf.mxu0
      %v7914 = vadd.f32 0.0, %v7913
      %v7915 = vpop.f32.mrf.mxu0
      %v7916 = vpop.f32.mrf.mxu0
      %v7917 = vadd.f32 0.0, %v7916
      %v7918 = vpop.f32.mrf.mxu0
      %7919 = vmatprep.mubr.bf16.mxu0 0
      %7920 = vmatmul.mubr.bf16.gmra.mxu0 %v7027
      %v7921 = vpop.f32.mrf.mxu0
      %v7922 = vadd.f32 0.0, %v7921
      %v7923 = vpop.f32.mrf.mxu0
      %v7924 = vpop.f32.mrf.mxu0
      %v7925 = vadd.f32 0.0, %v7924
      %v7926 = vpop.f32.mrf.mxu0
      %7927 = vmatprep.mubr.bf16.mxu0 0
      %7928 = vmatmul.mubr.bf16.gmra.mxu0 %v7030
      %v7929 = vpop.f32.mrf.mxu0
      %v7930 = vadd.f32 0.0, %v7929
      %v7931 = vpop.f32.mrf.mxu0
      %v7932 = vpop.f32.mrf.mxu0
      %v7933 = vadd.f32 0.0, %v7932
      %v7934 = vpop.f32.mrf.mxu0
      %7935 = vmatprep.mubr.bf16.mxu0 0
      %7936 = vmatmul.mubr.bf16.gmra.mxu0 %v7781
      %v7937 = vpop.f32.mrf.mxu0
      %v7938 = vadd.f32 0.0, %v7937
      %v7939 = vpop.f32.mrf.mxu0
      %v7940 = vpop.f32.mrf.mxu0
      %v7941 = vadd.f32 0.0, %v7940
      %v7942 = vpop.f32.mrf.mxu0
      %7943 = vdwg.mxu0
      %v7944 = vadd.f32 %v7728, %v7818
      %v7945 = vadd.f32 %v7729, %v7821
      %v7946 = vadd.f32 %v7730, %v7826
      %v7947 = vadd.f32 %v7731, %v7829
      %v7948 = vadd.f32 %v7732, %v7834
      %v7949 = vadd.f32 %v7733, %v7837
      %v7950 = vadd.f32 %v7734, %v7842
      %v7951 = vadd.f32 %v7735, %v7845
      %v7952 = vadd.f32 %v7736, %v7850
      %v7953 = vadd.f32 %v7737, %v7853
      %v7954 = vadd.f32 %v7738, %v7858
      %v7955 = vadd.f32 %v7739, %v7861
      %v7956 = vadd.f32 %v7740, %v7866
      %v7957 = vadd.f32 %v7741, %v7869
      %v7958 = vadd.f32 %v7742, %v7874
      %v7959 = vadd.f32 %v7743, %v7877
      %v7960 = vadd.f32 %v7744, %v7882
      %v7961 = vadd.f32 %v7745, %v7885
      %v7962 = vadd.f32 %v7746, %v7890
      %v7963 = vadd.f32 %v7747, %v7893
      %v7964 = vadd.f32 %v7748, %v7898
      %v7965 = vadd.f32 %v7749, %v7901
      %v7966 = vadd.f32 %v7750, %v7906
      %v7967 = vadd.f32 %v7751, %v7909
      %v7968 = vadd.f32 %v7752, %v7914
      %v7969 = vadd.f32 %v7753, %v7917
      %v7970 = vadd.f32 %v7754, %v7922
      %v7971 = vadd.f32 %v7755, %v7925
      %v7972 = vadd.f32 %v7756, %v7930
      %v7973 = vadd.f32 %v7757, %v7933
      %v7974 = vadd.f32 %v7758, %v7938
      %v7975 = vadd.f32 %v7759, %v7941
      %v7978 = vrot.slane %v6532, 1
      %v7979 = vrot.slane %v6549, 1
      %v7980 = vsel %vm4744, %v7978, %v7979
      %s7981 = scalar_lea.vmem %s4, 40
      %v7982 = vld [vmem:[%s7981] sm:$0xf]
      %v7983 = vld [vmem:[%s7981 + $0x4] sm:$0xf]
      %v7986 = vunpack.c.l.b16 %v7982
      %v7987 = vunpack.c.l.b16 %v7983
      %v7988 = vpack.c.b16 %v7987, %v7986
      %v7991 = vsel %vm4303, %v7980, 0
      %7993 = vmatprep.subr.bf16.mxu0 0
      %7994 = vmatpush1.bf16.msra.mxu0 0
      %7995 = vmatprep.subr.bf16.mxu0 0
      %7996 = vmatpush1.bf16.msra.mxu0 0
      %7997 = vmatprep.subr.bf16.mxu0 0
      %7998 = vmatpush1.bf16.msra.mxu0 0
      %7999 = vmatprep.subr.bf16.mxu0 0
      %8000 = vmatpush1.bf16.msra.mxu0 0
      %8001 = vmatprep.subr.bf16.mxu0 0
      %8002 = vmatpush1.bf16.msra.mxu0 0
      %8003 = vmatprep.subr.bf16.mxu0 0
      %8004 = vmatpush1.bf16.msra.mxu0 0
      %8005 = vmatprep.subr.bf16.mxu0 0
      %8006 = vmatpush1.bf16.msra.mxu0 0
      %8007 = vmatprep.subr.bf16.mxu0 0
      %8008 = vmatpush1.bf16.msra.mxu0 %v7988
      %8009 = vmatprep.subr.bf16.mxu0 0
      %8010 = vmatpush2.bf16.msra.mxu0 0
      %8011 = vmatprep.subr.bf16.mxu0 0
      %8012 = vmatpush2.bf16.msra.mxu0 0
      %8013 = vmatprep.subr.bf16.mxu0 0
      %8014 = vmatpush2.bf16.msra.mxu0 0
      %8015 = vmatprep.subr.bf16.mxu0 0
      %8016 = vmatpush2.bf16.msra.mxu0 0
      %8017 = vmatprep.subr.bf16.mxu0 0
      %8018 = vmatpush2.bf16.msra.mxu0 0
      %8019 = vmatprep.subr.bf16.mxu0 0
      %8020 = vmatpush2.bf16.msra.mxu0 0
      %8021 = vmatprep.subr.bf16.mxu0 0
      %8022 = vmatpush2.bf16.msra.mxu0 0
      %8023 = vmatprep.subr.bf16.mxu0 0
      %8024 = vmatpush2.bf16.msra.mxu0 0
      %8025 = vmatprep.mubr.bf16.mxu0 0
      %8026 = vmatmul.mubr.bf16.gmra.mxu0 %v7318
      %v8027 = vpop.f32.mrf.mxu0
      %v8028 = vadd.f32 0.0, %v8027
      %v8029 = vpop.f32.mrf.mxu0
      %v8030 = vpop.f32.mrf.mxu0
      %v8031 = vadd.f32 0.0, %v8030
      %v8032 = vpop.f32.mrf.mxu0
      %8033 = vmatprep.mubr.bf16.mxu0 0
      %8034 = vmatmul.mubr.bf16.gmra.mxu0 %v7321
      %v8035 = vpop.f32.mrf.mxu0
      %v8036 = vadd.f32 0.0, %v8035
      %v8037 = vpop.f32.mrf.mxu0
      %v8038 = vpop.f32.mrf.mxu0
      %v8039 = vadd.f32 0.0, %v8038
      %v8040 = vpop.f32.mrf.mxu0
      %8041 = vmatprep.mubr.bf16.mxu0 0
      %8042 = vmatmul.mubr.bf16.gmra.mxu0 %v7324
      %v8043 = vpop.f32.mrf.mxu0
      %v8044 = vadd.f32 0.0, %v8043
      %v8045 = vpop.f32.mrf.mxu0
      %v8046 = vpop.f32.mrf.mxu0
      %v8047 = vadd.f32 0.0, %v8046
      %v8048 = vpop.f32.mrf.mxu0
      %8049 = vmatprep.mubr.bf16.mxu0 0
      %8050 = vmatmul.mubr.bf16.gmra.mxu0 %v7327
      %v8051 = vpop.f32.mrf.mxu0
      %v8052 = vadd.f32 0.0, %v8051
      %v8053 = vpop.f32.mrf.mxu0
      %v8054 = vpop.f32.mrf.mxu0
      %v8055 = vadd.f32 0.0, %v8054
      %v8056 = vpop.f32.mrf.mxu0
      %8057 = vmatprep.mubr.bf16.mxu0 0
      %8058 = vmatmul.mubr.bf16.gmra.mxu0 %v7330
      %v8059 = vpop.f32.mrf.mxu0
      %v8060 = vadd.f32 0.0, %v8059
      %v8061 = vpop.f32.mrf.mxu0
      %v8062 = vpop.f32.mrf.mxu0
      %v8063 = vadd.f32 0.0, %v8062
      %v8064 = vpop.f32.mrf.mxu0
      %8065 = vmatprep.mubr.bf16.mxu0 0
      %8066 = vmatmul.mubr.bf16.gmra.mxu0 %v7333
      %v8067 = vpop.f32.mrf.mxu0
      %v8068 = vadd.f32 0.0, %v8067
      %v8069 = vpop.f32.mrf.mxu0
      %v8070 = vpop.f32.mrf.mxu0
      %v8071 = vadd.f32 0.0, %v8070
      %v8072 = vpop.f32.mrf.mxu0
      %8073 = vmatprep.mubr.bf16.mxu0 0
      %8074 = vmatmul.mubr.bf16.gmra.mxu0 %v7336
      %v8075 = vpop.f32.mrf.mxu0
      %v8076 = vadd.f32 0.0, %v8075
      %v8077 = vpop.f32.mrf.mxu0
      %v8078 = vpop.f32.mrf.mxu0
      %v8079 = vadd.f32 0.0, %v8078
      %v8080 = vpop.f32.mrf.mxu0
      %8081 = vmatprep.mubr.bf16.mxu0 0
      %8082 = vmatmul.mubr.bf16.gmra.mxu0 %v7339
      %v8083 = vpop.f32.mrf.mxu0
      %v8084 = vadd.f32 0.0, %v8083
      %v8085 = vpop.f32.mrf.mxu0
      %v8086 = vpop.f32.mrf.mxu0
      %v8087 = vadd.f32 0.0, %v8086
      %v8088 = vpop.f32.mrf.mxu0
      %8089 = vmatprep.mubr.bf16.mxu0 0
      %8090 = vmatmul.mubr.bf16.gmra.mxu0 %v7342
      %v8091 = vpop.f32.mrf.mxu0
      %v8092 = vadd.f32 0.0, %v8091
      %v8093 = vpop.f32.mrf.mxu0
      %v8094 = vpop.f32.mrf.mxu0
      %v8095 = vadd.f32 0.0, %v8094
      %v8096 = vpop.f32.mrf.mxu0
      %8097 = vmatprep.mubr.bf16.mxu0 0
      %8098 = vmatmul.mubr.bf16.gmra.mxu0 %v7345
      %v8099 = vpop.f32.mrf.mxu0
      %v8100 = vadd.f32 0.0, %v8099
      %v8101 = vpop.f32.mrf.mxu0
      %v8102 = vpop.f32.mrf.mxu0
      %v8103 = vadd.f32 0.0, %v8102
      %v8104 = vpop.f32.mrf.mxu0
      %8105 = vmatprep.mubr.bf16.mxu0 0
      %8106 = vmatmul.mubr.bf16.gmra.mxu0 %v7348
      %v8107 = vpop.f32.mrf.mxu0
      %v8108 = vadd.f32 0.0, %v8107
      %v8109 = vpop.f32.mrf.mxu0
      %v8110 = vpop.f32.mrf.mxu0
      %v8111 = vadd.f32 0.0, %v8110
      %v8112 = vpop.f32.mrf.mxu0
      %8113 = vmatprep.mubr.bf16.mxu0 0
      %8114 = vmatmul.mubr.bf16.gmra.mxu0 %v7351
      %v8115 = vpop.f32.mrf.mxu0
      %v8116 = vadd.f32 0.0, %v8115
      %v8117 = vpop.f32.mrf.mxu0
      %v8118 = vpop.f32.mrf.mxu0
      %v8119 = vadd.f32 0.0, %v8118
      %v8120 = vpop.f32.mrf.mxu0
      %8121 = vmatprep.mubr.bf16.mxu0 0
      %8122 = vmatmul.mubr.bf16.gmra.mxu0 %v7354
      %v8123 = vpop.f32.mrf.mxu0
      %v8124 = vadd.f32 0.0, %v8123
      %v8125 = vpop.f32.mrf.mxu0
      %v8126 = vpop.f32.mrf.mxu0
      %v8127 = vadd.f32 0.0, %v8126
      %v8128 = vpop.f32.mrf.mxu0
      %8129 = vmatprep.mubr.bf16.mxu0 0
      %8130 = vmatmul.mubr.bf16.gmra.mxu0 %v7357
      %v8131 = vpop.f32.mrf.mxu0
      %v8132 = vadd.f32 0.0, %v8131
      %v8133 = vpop.f32.mrf.mxu0
      %v8134 = vpop.f32.mrf.mxu0
      %v8135 = vadd.f32 0.0, %v8134
      %v8136 = vpop.f32.mrf.mxu0
      %8137 = vmatprep.mubr.bf16.mxu0 0
      %8138 = vmatmul.mubr.bf16.gmra.mxu0 %v7360
      %v8139 = vpop.f32.mrf.mxu0
      %v8140 = vadd.f32 0.0, %v8139
      %v8141 = vpop.f32.mrf.mxu0
      %v8142 = vpop.f32.mrf.mxu0
      %v8143 = vadd.f32 0.0, %v8142
      %v8144 = vpop.f32.mrf.mxu0
      %8145 = vmatprep.mubr.bf16.mxu0 0
      %8146 = vmatmul.mubr.bf16.gmra.mxu0 %v7991
      %v8147 = vpop.f32.mrf.mxu0
      %v8148 = vadd.f32 0.0, %v8147
      %v8149 = vpop.f32.mrf.mxu0
      %v8150 = vpop.f32.mrf.mxu0
      %v8151 = vadd.f32 0.0, %v8150
      %v8152 = vpop.f32.mrf.mxu0
      %8153 = vdwg.mxu0
      %v8154 = vadd.f32 %v7944, %v8028
      %v8155 = vadd.f32 %v7945, %v8031
      %v8156 = vadd.f32 %v7946, %v8036
      %v8157 = vadd.f32 %v7947, %v8039
      %v8158 = vadd.f32 %v7948, %v8044
      %v8159 = vadd.f32 %v7949, %v8047
      %v8160 = vadd.f32 %v7950, %v8052
      %v8161 = vadd.f32 %v7951, %v8055
      %v8162 = vadd.f32 %v7952, %v8060
      %v8163 = vadd.f32 %v7953, %v8063
      %v8164 = vadd.f32 %v7954, %v8068
      %v8165 = vadd.f32 %v7955, %v8071
      %v8166 = vadd.f32 %v7956, %v8076
      %v8167 = vadd.f32 %v7957, %v8079
      %v8168 = vadd.f32 %v7958, %v8084
      %v8169 = vadd.f32 %v7959, %v8087
      %v8170 = vadd.f32 %v7960, %v8092
      %v8171 = vadd.f32 %v7961, %v8095
      %v8172 = vadd.f32 %v7962, %v8100
      %v8173 = vadd.f32 %v7963, %v8103
      %v8174 = vadd.f32 %v7964, %v8108
      %v8175 = vadd.f32 %v7965, %v8111
      %v8176 = vadd.f32 %v7966, %v8116
      %v8177 = vadd.f32 %v7967, %v8119
      %v8178 = vadd.f32 %v7968, %v8124
      %v8179 = vadd.f32 %v7969, %v8127
      %v8180 = vadd.f32 %v7970, %v8132
      %v8181 = vadd.f32 %v7971, %v8135
      %v8182 = vadd.f32 %v7972, %v8140
      %v8183 = vadd.f32 %v7973, %v8143
      %v8184 = vadd.f32 %v7974, %v8148
      %v8185 = vadd.f32 %v7975, %v8151
      %s8186 = scalar_lea.vmem %s4, 48
      %v8187 = vld [vmem:[%s8186] sm:$0xf]
      %v8188 = vld [vmem:[%s8186 + $0x4] sm:$0xf]
      %v8191 = vunpack.c.l.b16 %v8187
      %v8192 = vunpack.c.l.b16 %v8188
      %v8193 = vpack.c.b16 %v8192, %v8191
      %8195 = vmatprep.subr.bf16.mxu0 0
      %8196 = vmatpush1.bf16.msra.mxu0 0
      %8197 = vmatprep.subr.bf16.mxu0 0
      %8198 = vmatpush1.bf16.msra.mxu0 0
      %8199 = vmatprep.subr.bf16.mxu0 0
      %8200 = vmatpush1.bf16.msra.mxu0 0
      %8201 = vmatprep.subr.bf16.mxu0 0
      %8202 = vmatpush1.bf16.msra.mxu0 0
      %8203 = vmatprep.subr.bf16.mxu0 0
      %8204 = vmatpush1.bf16.msra.mxu0 0
      %8205 = vmatprep.subr.bf16.mxu0 0
      %8206 = vmatpush1.bf16.msra.mxu0 0
      %8207 = vmatprep.subr.bf16.mxu0 0
      %8208 = vmatpush1.bf16.msra.mxu0 0
      %8209 = vmatprep.subr.bf16.mxu0 0
      %8210 = vmatpush1.bf16.msra.mxu0 %v8193
      %8211 = vmatprep.subr.bf16.mxu0 0
      %8212 = vmatpush2.bf16.msra.mxu0 0
      %8213 = vmatprep.subr.bf16.mxu0 0
      %8214 = vmatpush2.bf16.msra.mxu0 0
      %8215 = vmatprep.subr.bf16.mxu0 0
      %8216 = vmatpush2.bf16.msra.mxu0 0
      %8217 = vmatprep.subr.bf16.mxu0 0
      %8218 = vmatpush2.bf16.msra.mxu0 0
      %8219 = vmatprep.subr.bf16.mxu0 0
      %8220 = vmatpush2.bf16.msra.mxu0 0
      %8221 = vmatprep.subr.bf16.mxu0 0
      %8222 = vmatpush2.bf16.msra.mxu0 0
      %8223 = vmatprep.subr.bf16.mxu0 0
      %8224 = vmatpush2.bf16.msra.mxu0 0
      %8225 = vmatprep.subr.bf16.mxu0 0
      %8226 = vmatpush2.bf16.msra.mxu0 0
      %8227 = vmatprep.mubr.bf16.mxu0 0
      %8228 = vmatmul.mubr.bf16.gmra.mxu0 %v6565
      %v8229 = vpop.f32.mrf.mxu0
      %v8230 = vadd.f32 0.0, %v8229
      %v8231 = vpop.f32.mrf.mxu0
      %v8232 = vpop.f32.mrf.mxu0
      %v8233 = vadd.f32 0.0, %v8232
      %v8234 = vpop.f32.mrf.mxu0
      %8235 = vmatprep.mubr.bf16.mxu0 0
      %8236 = vmatmul.mubr.bf16.gmra.mxu0 %v6568
      %v8237 = vpop.f32.mrf.mxu0
      %v8238 = vadd.f32 0.0, %v8237
      %v8239 = vpop.f32.mrf.mxu0
      %v8240 = vpop.f32.mrf.mxu0
      %v8241 = vadd.f32 0.0, %v8240
      %v8242 = vpop.f32.mrf.mxu0
      %8243 = vmatprep.mubr.bf16.mxu0 0
      %8244 = vmatmul.mubr.bf16.gmra.mxu0 %v6571
      %v8245 = vpop.f32.mrf.mxu0
      %v8246 = vadd.f32 0.0, %v8245
      %v8247 = vpop.f32.mrf.mxu0
      %v8248 = vpop.f32.mrf.mxu0
      %v8249 = vadd.f32 0.0, %v8248
      %v8250 = vpop.f32.mrf.mxu0
      %8251 = vmatprep.mubr.bf16.mxu0 0
      %8252 = vmatmul.mubr.bf16.gmra.mxu0 %v6574
      %v8253 = vpop.f32.mrf.mxu0
      %v8254 = vadd.f32 0.0, %v8253
      %v8255 = vpop.f32.mrf.mxu0
      %v8256 = vpop.f32.mrf.mxu0
      %v8257 = vadd.f32 0.0, %v8256
      %v8258 = vpop.f32.mrf.mxu0
      %8259 = vmatprep.mubr.bf16.mxu0 0
      %8260 = vmatmul.mubr.bf16.gmra.mxu0 %v6577
      %v8261 = vpop.f32.mrf.mxu0
      %v8262 = vadd.f32 0.0, %v8261
      %v8263 = vpop.f32.mrf.mxu0
      %v8264 = vpop.f32.mrf.mxu0
      %v8265 = vadd.f32 0.0, %v8264
      %v8266 = vpop.f32.mrf.mxu0
      %8267 = vmatprep.mubr.bf16.mxu0 0
      %8268 = vmatmul.mubr.bf16.gmra.mxu0 %v6580
      %v8269 = vpop.f32.mrf.mxu0
      %v8270 = vadd.f32 0.0, %v8269
      %v8271 = vpop.f32.mrf.mxu0
      %v8272 = vpop.f32.mrf.mxu0
      %v8273 = vadd.f32 0.0, %v8272
      %v8274 = vpop.f32.mrf.mxu0
      %8275 = vmatprep.mubr.bf16.mxu0 0
      %8276 = vmatmul.mubr.bf16.gmra.mxu0 %v6583
      %v8277 = vpop.f32.mrf.mxu0
      %v8278 = vadd.f32 0.0, %v8277
      %v8279 = vpop.f32.mrf.mxu0
      %v8280 = vpop.f32.mrf.mxu0
      %v8281 = vadd.f32 0.0, %v8280
      %v8282 = vpop.f32.mrf.mxu0
      %8283 = vmatprep.mubr.bf16.mxu0 0
      %8284 = vmatmul.mubr.bf16.gmra.mxu0 %v6586
      %v8285 = vpop.f32.mrf.mxu0
      %v8286 = vadd.f32 0.0, %v8285
      %v8287 = vpop.f32.mrf.mxu0
      %v8288 = vpop.f32.mrf.mxu0
      %v8289 = vadd.f32 0.0, %v8288
      %v8290 = vpop.f32.mrf.mxu0
      %8291 = vmatprep.mubr.bf16.mxu0 0
      %8292 = vmatmul.mubr.bf16.gmra.mxu0 %v6589
      %v8293 = vpop.f32.mrf.mxu0
      %v8294 = vadd.f32 0.0, %v8293
      %v8295 = vpop.f32.mrf.mxu0
      %v8296 = vpop.f32.mrf.mxu0
      %v8297 = vadd.f32 0.0, %v8296
      %v8298 = vpop.f32.mrf.mxu0
      %8299 = vmatprep.mubr.bf16.mxu0 0
      %8300 = vmatmul.mubr.bf16.gmra.mxu0 %v6592
      %v8301 = vpop.f32.mrf.mxu0
      %v8302 = vadd.f32 0.0, %v8301
      %v8303 = vpop.f32.mrf.mxu0
      %v8304 = vpop.f32.mrf.mxu0
      %v8305 = vadd.f32 0.0, %v8304
      %v8306 = vpop.f32.mrf.mxu0
      %8307 = vmatprep.mubr.bf16.mxu0 0
      %8308 = vmatmul.mubr.bf16.gmra.mxu0 %v6595
      %v8309 = vpop.f32.mrf.mxu0
      %v8310 = vadd.f32 0.0, %v8309
      %v8311 = vpop.f32.mrf.mxu0
      %v8312 = vpop.f32.mrf.mxu0
      %v8313 = vadd.f32 0.0, %v8312
      %v8314 = vpop.f32.mrf.mxu0
      %8315 = vmatprep.mubr.bf16.mxu0 0
      %8316 = vmatmul.mubr.bf16.gmra.mxu0 %v6598
      %v8317 = vpop.f32.mrf.mxu0
      %v8318 = vadd.f32 0.0, %v8317
      %v8319 = vpop.f32.mrf.mxu0
      %v8320 = vpop.f32.mrf.mxu0
      %v8321 = vadd.f32 0.0, %v8320
      %v8322 = vpop.f32.mrf.mxu0
      %8323 = vmatprep.mubr.bf16.mxu0 0
      %8324 = vmatmul.mubr.bf16.gmra.mxu0 %v6601
      %v8325 = vpop.f32.mrf.mxu0
      %v8326 = vadd.f32 0.0, %v8325
      %v8327 = vpop.f32.mrf.mxu0
      %v8328 = vpop.f32.mrf.mxu0
      %v8329 = vadd.f32 0.0, %v8328
      %v8330 = vpop.f32.mrf.mxu0
      %8331 = vmatprep.mubr.bf16.mxu0 0
      %8332 = vmatmul.mubr.bf16.gmra.mxu0 %v6604
      %v8333 = vpop.f32.mrf.mxu0
      %v8334 = vadd.f32 0.0, %v8333
      %v8335 = vpop.f32.mrf.mxu0
      %v8336 = vpop.f32.mrf.mxu0
      %v8337 = vadd.f32 0.0, %v8336
      %v8338 = vpop.f32.mrf.mxu0
      %8339 = vmatprep.mubr.bf16.mxu0 0
      %8340 = vmatmul.mubr.bf16.gmra.mxu0 %v7565
      %v8341 = vpop.f32.mrf.mxu0
      %v8342 = vadd.f32 0.0, %v8341
      %v8343 = vpop.f32.mrf.mxu0
      %v8344 = vpop.f32.mrf.mxu0
      %v8345 = vadd.f32 0.0, %v8344
      %v8346 = vpop.f32.mrf.mxu0
      %8347 = vmatprep.mubr.bf16.mxu0 0
      %8348 = vmatmul.mubr.bf16.gmra.mxu0 %v6559
      %v8349 = vpop.f32.mrf.mxu0
      %v8350 = vadd.f32 0.0, %v8349
      %v8351 = vpop.f32.mrf.mxu0
      %v8352 = vpop.f32.mrf.mxu0
      %v8353 = vadd.f32 0.0, %v8352
      %v8354 = vpop.f32.mrf.mxu0
      %8355 = vdwg.mxu0
      %v8356 = vadd.f32 %v8154, %v8230
      %v8357 = vadd.f32 %v8155, %v8233
      %v8358 = vadd.f32 %v8156, %v8238
      %v8359 = vadd.f32 %v8157, %v8241
      %v8360 = vadd.f32 %v8158, %v8246
      %v8361 = vadd.f32 %v8159, %v8249
      %v8362 = vadd.f32 %v8160, %v8254
      %v8363 = vadd.f32 %v8161, %v8257
      %v8364 = vadd.f32 %v8162, %v8262
      %v8365 = vadd.f32 %v8163, %v8265
      %v8366 = vadd.f32 %v8164, %v8270
      %v8367 = vadd.f32 %v8165, %v8273
      %v8368 = vadd.f32 %v8166, %v8278
      %v8369 = vadd.f32 %v8167, %v8281
      %v8370 = vadd.f32 %v8168, %v8286
      %v8371 = vadd.f32 %v8169, %v8289
      %v8372 = vadd.f32 %v8170, %v8294
      %v8373 = vadd.f32 %v8171, %v8297
      %v8374 = vadd.f32 %v8172, %v8302
      %v8375 = vadd.f32 %v8173, %v8305
      %v8376 = vadd.f32 %v8174, %v8310
      %v8377 = vadd.f32 %v8175, %v8313
      %v8378 = vadd.f32 %v8176, %v8318
      %v8379 = vadd.f32 %v8177, %v8321
      %v8380 = vadd.f32 %v8178, %v8326
      %v8381 = vadd.f32 %v8179, %v8329
      %v8382 = vadd.f32 %v8180, %v8334
      %v8383 = vadd.f32 %v8181, %v8337
      %v8384 = vadd.f32 %v8182, %v8342
      %v8385 = vadd.f32 %v8183, %v8345
      %v8386 = vadd.f32 %v8184, %v8350
      %v8387 = vadd.f32 %v8185, %v8353
      %s8388 = scalar_lea.vmem %s4, 56
      %v8389 = vld [vmem:[%s8388] sm:$0xf]
      %v8390 = vld [vmem:[%s8388 + $0x4] sm:$0xf]
      %v8393 = vunpack.c.l.b16 %v8389
      %v8394 = vunpack.c.l.b16 %v8390
      %v8395 = vpack.c.b16 %v8394, %v8393
      %8397 = vmatprep.subr.bf16.mxu0 0
      %8398 = vmatpush1.bf16.msra.mxu0 0
      %8399 = vmatprep.subr.bf16.mxu0 0
      %8400 = vmatpush1.bf16.msra.mxu0 0
      %8401 = vmatprep.subr.bf16.mxu0 0
      %8402 = vmatpush1.bf16.msra.mxu0 0
      %8403 = vmatprep.subr.bf16.mxu0 0
      %8404 = vmatpush1.bf16.msra.mxu0 0
      %8405 = vmatprep.subr.bf16.mxu0 0
      %8406 = vmatpush1.bf16.msra.mxu0 0
      %8407 = vmatprep.subr.bf16.mxu0 0
      %8408 = vmatpush1.bf16.msra.mxu0 0
      %8409 = vmatprep.subr.bf16.mxu0 0
      %8410 = vmatpush1.bf16.msra.mxu0 0
      %8411 = vmatprep.subr.bf16.mxu0 0
      %8412 = vmatpush1.bf16.msra.mxu0 %v8395
      %8413 = vmatprep.subr.bf16.mxu0 0
      %8414 = vmatpush2.bf16.msra.mxu0 0
      %8415 = vmatprep.subr.bf16.mxu0 0
      %8416 = vmatpush2.bf16.msra.mxu0 0
      %8417 = vmatprep.subr.bf16.mxu0 0
      %8418 = vmatpush2.bf16.msra.mxu0 0
      %8419 = vmatprep.subr.bf16.mxu0 0
      %8420 = vmatpush2.bf16.msra.mxu0 0
      %8421 = vmatprep.subr.bf16.mxu0 0
      %8422 = vmatpush2.bf16.msra.mxu0 0
      %8423 = vmatprep.subr.bf16.mxu0 0
      %8424 = vmatpush2.bf16.msra.mxu0 0
      %8425 = vmatprep.subr.bf16.mxu0 0
      %8426 = vmatpush2.bf16.msra.mxu0 0
      %8427 = vmatprep.subr.bf16.mxu0 0
      %8428 = vmatpush2.bf16.msra.mxu0 0
      %8429 = vmatprep.mubr.bf16.mxu0 0
      %8430 = vmatmul.mubr.bf16.gmra.mxu0 %v6991
      %v8431 = vpop.f32.mrf.mxu0
      %v8432 = vadd.f32 0.0, %v8431
      %v8433 = vpop.f32.mrf.mxu0
      %v8434 = vpop.f32.mrf.mxu0
      %v8435 = vadd.f32 0.0, %v8434
      %v8436 = vpop.f32.mrf.mxu0
      %8437 = vmatprep.mubr.bf16.mxu0 0
      %8438 = vmatmul.mubr.bf16.gmra.mxu0 %v6994
      %v8439 = vpop.f32.mrf.mxu0
      %v8440 = vadd.f32 0.0, %v8439
      %v8441 = vpop.f32.mrf.mxu0
      %v8442 = vpop.f32.mrf.mxu0
      %v8443 = vadd.f32 0.0, %v8442
      %v8444 = vpop.f32.mrf.mxu0
      %8445 = vmatprep.mubr.bf16.mxu0 0
      %8446 = vmatmul.mubr.bf16.gmra.mxu0 %v6997
      %v8447 = vpop.f32.mrf.mxu0
      %v8448 = vadd.f32 0.0, %v8447
      %v8449 = vpop.f32.mrf.mxu0
      %v8450 = vpop.f32.mrf.mxu0
      %v8451 = vadd.f32 0.0, %v8450
      %v8452 = vpop.f32.mrf.mxu0
      %8453 = vmatprep.mubr.bf16.mxu0 0
      %8454 = vmatmul.mubr.bf16.gmra.mxu0 %v7000
      %v8455 = vpop.f32.mrf.mxu0
      %v8456 = vadd.f32 0.0, %v8455
      %v8457 = vpop.f32.mrf.mxu0
      %v8458 = vpop.f32.mrf.mxu0
      %v8459 = vadd.f32 0.0, %v8458
      %v8460 = vpop.f32.mrf.mxu0
      %8461 = vmatprep.mubr.bf16.mxu0 0
      %8462 = vmatmul.mubr.bf16.gmra.mxu0 %v7003
      %v8463 = vpop.f32.mrf.mxu0
      %v8464 = vadd.f32 0.0, %v8463
      %v8465 = vpop.f32.mrf.mxu0
      %v8466 = vpop.f32.mrf.mxu0
      %v8467 = vadd.f32 0.0, %v8466
      %v8468 = vpop.f32.mrf.mxu0
      %8469 = vmatprep.mubr.bf16.mxu0 0
      %8470 = vmatmul.mubr.bf16.gmra.mxu0 %v7006
      %v8471 = vpop.f32.mrf.mxu0
      %v8472 = vadd.f32 0.0, %v8471
      %v8473 = vpop.f32.mrf.mxu0
      %v8474 = vpop.f32.mrf.mxu0
      %v8475 = vadd.f32 0.0, %v8474
      %v8476 = vpop.f32.mrf.mxu0
      %8477 = vmatprep.mubr.bf16.mxu0 0
      %8478 = vmatmul.mubr.bf16.gmra.mxu0 %v7009
      %v8479 = vpop.f32.mrf.mxu0
      %v8480 = vadd.f32 0.0, %v8479
      %v8481 = vpop.f32.mrf.mxu0
      %v8482 = vpop.f32.mrf.mxu0
      %v8483 = vadd.f32 0.0, %v8482
      %v8484 = vpop.f32.mrf.mxu0
      %8485 = vmatprep.mubr.bf16.mxu0 0
      %8486 = vmatmul.mubr.bf16.gmra.mxu0 %v7012
      %v8487 = vpop.f32.mrf.mxu0
      %v8488 = vadd.f32 0.0, %v8487
      %v8489 = vpop.f32.mrf.mxu0
      %v8490 = vpop.f32.mrf.mxu0
      %v8491 = vadd.f32 0.0, %v8490
      %v8492 = vpop.f32.mrf.mxu0
      %8493 = vmatprep.mubr.bf16.mxu0 0
      %8494 = vmatmul.mubr.bf16.gmra.mxu0 %v7015
      %v8495 = vpop.f32.mrf.mxu0
      %v8496 = vadd.f32 0.0, %v8495
      %v8497 = vpop.f32.mrf.mxu0
      %v8498 = vpop.f32.mrf.mxu0
      %v8499 = vadd.f32 0.0, %v8498
      %v8500 = vpop.f32.mrf.mxu0
      %8501 = vmatprep.mubr.bf16.mxu0 0
      %8502 = vmatmul.mubr.bf16.gmra.mxu0 %v7018
      %v8503 = vpop.f32.mrf.mxu0
      %v8504 = vadd.f32 0.0, %v8503
      %v8505 = vpop.f32.mrf.mxu0
      %v8506 = vpop.f32.mrf.mxu0
      %v8507 = vadd.f32 0.0, %v8506
      %v8508 = vpop.f32.mrf.mxu0
      %8509 = vmatprep.mubr.bf16.mxu0 0
      %8510 = vmatmul.mubr.bf16.gmra.mxu0 %v7021
      %v8511 = vpop.f32.mrf.mxu0
      %v8512 = vadd.f32 0.0, %v8511
      %v8513 = vpop.f32.mrf.mxu0
      %v8514 = vpop.f32.mrf.mxu0
      %v8515 = vadd.f32 0.0, %v8514
      %v8516 = vpop.f32.mrf.mxu0
      %8517 = vmatprep.mubr.bf16.mxu0 0
      %8518 = vmatmul.mubr.bf16.gmra.mxu0 %v7024
      %v8519 = vpop.f32.mrf.mxu0
      %v8520 = vadd.f32 0.0, %v8519
      %v8521 = vpop.f32.mrf.mxu0
      %v8522 = vpop.f32.mrf.mxu0
      %v8523 = vadd.f32 0.0, %v8522
      %v8524 = vpop.f32.mrf.mxu0
      %8525 = vmatprep.mubr.bf16.mxu0 0
      %8526 = vmatmul.mubr.bf16.gmra.mxu0 %v7027
      %v8527 = vpop.f32.mrf.mxu0
      %v8528 = vadd.f32 0.0, %v8527
      %v8529 = vpop.f32.mrf.mxu0
      %v8530 = vpop.f32.mrf.mxu0
      %v8531 = vadd.f32 0.0, %v8530
      %v8532 = vpop.f32.mrf.mxu0
      %8533 = vmatprep.mubr.bf16.mxu0 0
      %8534 = vmatmul.mubr.bf16.gmra.mxu0 %v7030
      %v8535 = vpop.f32.mrf.mxu0
      %v8536 = vadd.f32 0.0, %v8535
      %v8537 = vpop.f32.mrf.mxu0
      %v8538 = vpop.f32.mrf.mxu0
      %v8539 = vadd.f32 0.0, %v8538
      %v8540 = vpop.f32.mrf.mxu0
      %8541 = vmatprep.mubr.bf16.mxu0 0
      %8542 = vmatmul.mubr.bf16.gmra.mxu0 %v7781
      %v8543 = vpop.f32.mrf.mxu0
      %v8544 = vadd.f32 0.0, %v8543
      %v8545 = vpop.f32.mrf.mxu0
      %v8546 = vpop.f32.mrf.mxu0
      %v8547 = vadd.f32 0.0, %v8546
      %v8548 = vpop.f32.mrf.mxu0
      %8549 = vmatprep.mubr.bf16.mxu0 0
      %8550 = vmatmul.mubr.bf16.gmra.mxu0 %v6985
      %v8551 = vpop.f32.mrf.mxu0
      %v8552 = vadd.f32 0.0, %v8551
      %v8553 = vpop.f32.mrf.mxu0
      %v8554 = vpop.f32.mrf.mxu0
      %v8555 = vadd.f32 0.0, %v8554
      %v8556 = vpop.f32.mrf.mxu0
      %8557 = vdwg.mxu0
      %v8558 = vadd.f32 %v8356, %v8432
      %v8559 = vadd.f32 %v8357, %v8435
      %v8560 = vadd.f32 %v8358, %v8440
      %v8561 = vadd.f32 %v8359, %v8443
      %v8562 = vadd.f32 %v8360, %v8448
      %v8563 = vadd.f32 %v8361, %v8451
      %v8564 = vadd.f32 %v8362, %v8456
      %v8565 = vadd.f32 %v8363, %v8459
      %v8566 = vadd.f32 %v8364, %v8464
      %v8567 = vadd.f32 %v8365, %v8467
      %v8568 = vadd.f32 %v8366, %v8472
      %v8569 = vadd.f32 %v8367, %v8475
      %v8570 = vadd.f32 %v8368, %v8480
      %v8571 = vadd.f32 %v8369, %v8483
      %v8572 = vadd.f32 %v8370, %v8488
      %v8573 = vadd.f32 %v8371, %v8491
      %v8574 = vadd.f32 %v8372, %v8496
      %v8575 = vadd.f32 %v8373, %v8499
      %v8576 = vadd.f32 %v8374, %v8504
      %v8577 = vadd.f32 %v8375, %v8507
      %v8578 = vadd.f32 %v8376, %v8512
      %v8579 = vadd.f32 %v8377, %v8515
      %v8580 = vadd.f32 %v8378, %v8520
      %v8581 = vadd.f32 %v8379, %v8523
      %v8582 = vadd.f32 %v8380, %v8528
      %v8583 = vadd.f32 %v8381, %v8531
      %v8584 = vadd.f32 %v8382, %v8536
      %v8585 = vadd.f32 %v8383, %v8539
      %v8586 = vadd.f32 %v8384, %v8544
      %v8587 = vadd.f32 %v8385, %v8547
      %v8588 = vadd.f32 %v8386, %v8552
      %v8589 = vadd.f32 %v8387, %v8555
      %s8590 = scalar_lea.vmem %s4, 64
      %v8591 = vld [vmem:[%s8590] sm:$0xf]
      %v8592 = vld [vmem:[%s8590 + $0x4] sm:$0xf]
      %v8595 = vunpack.c.l.b16 %v8591
      %v8596 = vunpack.c.l.b16 %v8592
      %v8597 = vpack.c.b16 %v8596, %v8595
      %8599 = vmatprep.subr.bf16.mxu0 0
      %8600 = vmatpush1.bf16.msra.mxu0 0
      %8601 = vmatprep.subr.bf16.mxu0 0
      %8602 = vmatpush1.bf16.msra.mxu0 0
      %8603 = vmatprep.subr.bf16.mxu0 0
      %8604 = vmatpush1.bf16.msra.mxu0 0
      %8605 = vmatprep.subr.bf16.mxu0 0
      %8606 = vmatpush1.bf16.msra.mxu0 0
      %8607 = vmatprep.subr.bf16.mxu0 0
      %8608 = vmatpush1.bf16.msra.mxu0 0
      %8609 = vmatprep.subr.bf16.mxu0 0
      %8610 = vmatpush1.bf16.msra.mxu0 0
      %8611 = vmatprep.subr.bf16.mxu0 0
      %8612 = vmatpush1.bf16.msra.mxu0 0
      %8613 = vmatprep.subr.bf16.mxu0 0
      %8614 = vmatpush1.bf16.msra.mxu0 %v8597
      %8615 = vmatprep.subr.bf16.mxu0 0
      %8616 = vmatpush2.bf16.msra.mxu0 0
      %8617 = vmatprep.subr.bf16.mxu0 0
      %8618 = vmatpush2.bf16.msra.mxu0 0
      %8619 = vmatprep.subr.bf16.mxu0 0
      %8620 = vmatpush2.bf16.msra.mxu0 0
      %8621 = vmatprep.subr.bf16.mxu0 0
      %8622 = vmatpush2.bf16.msra.mxu0 0
      %8623 = vmatprep.subr.bf16.mxu0 0
      %8624 = vmatpush2.bf16.msra.mxu0 0
      %8625 = vmatprep.subr.bf16.mxu0 0
      %8626 = vmatpush2.bf16.msra.mxu0 0
      %8627 = vmatprep.subr.bf16.mxu0 0
      %8628 = vmatpush2.bf16.msra.mxu0 0
      %8629 = vmatprep.subr.bf16.mxu0 0
      %8630 = vmatpush2.bf16.msra.mxu0 0
      %8631 = vmatprep.mubr.bf16.mxu0 0
      %8632 = vmatmul.mubr.bf16.gmra.mxu0 %v7321
      %v8633 = vpop.f32.mrf.mxu0
      %v8634 = vadd.f32 0.0, %v8633
      %v8635 = vpop.f32.mrf.mxu0
      %v8636 = vpop.f32.mrf.mxu0
      %v8637 = vadd.f32 0.0, %v8636
      %v8638 = vpop.f32.mrf.mxu0
      %8639 = vmatprep.mubr.bf16.mxu0 0
      %8640 = vmatmul.mubr.bf16.gmra.mxu0 %v7324
      %v8641 = vpop.f32.mrf.mxu0
      %v8642 = vadd.f32 0.0, %v8641
      %v8643 = vpop.f32.mrf.mxu0
      %v8644 = vpop.f32.mrf.mxu0
      %v8645 = vadd.f32 0.0, %v8644
      %v8646 = vpop.f32.mrf.mxu0
      %8647 = vmatprep.mubr.bf16.mxu0 0
      %8648 = vmatmul.mubr.bf16.gmra.mxu0 %v7327
      %v8649 = vpop.f32.mrf.mxu0
      %v8650 = vadd.f32 0.0, %v8649
      %v8651 = vpop.f32.mrf.mxu0
      %v8652 = vpop.f32.mrf.mxu0
      %v8653 = vadd.f32 0.0, %v8652
      %v8654 = vpop.f32.mrf.mxu0
      %8655 = vmatprep.mubr.bf16.mxu0 0
      %8656 = vmatmul.mubr.bf16.gmra.mxu0 %v7330
      %v8657 = vpop.f32.mrf.mxu0
      %v8658 = vadd.f32 0.0, %v8657
      %v8659 = vpop.f32.mrf.mxu0
      %v8660 = vpop.f32.mrf.mxu0
      %v8661 = vadd.f32 0.0, %v8660
      %v8662 = vpop.f32.mrf.mxu0
      %8663 = vmatprep.mubr.bf16.mxu0 0
      %8664 = vmatmul.mubr.bf16.gmra.mxu0 %v7333
      %v8665 = vpop.f32.mrf.mxu0
      %v8666 = vadd.f32 0.0, %v8665
      %v8667 = vpop.f32.mrf.mxu0
      %v8668 = vpop.f32.mrf.mxu0
      %v8669 = vadd.f32 0.0, %v8668
      %v8670 = vpop.f32.mrf.mxu0
      %8671 = vmatprep.mubr.bf16.mxu0 0
      %8672 = vmatmul.mubr.bf16.gmra.mxu0 %v7336
      %v8673 = vpop.f32.mrf.mxu0
      %v8674 = vadd.f32 0.0, %v8673
      %v8675 = vpop.f32.mrf.mxu0
      %v8676 = vpop.f32.mrf.mxu0
      %v8677 = vadd.f32 0.0, %v8676
      %v8678 = vpop.f32.mrf.mxu0
      %8679 = vmatprep.mubr.bf16.mxu0 0
      %8680 = vmatmul.mubr.bf16.gmra.mxu0 %v7339
      %v8681 = vpop.f32.mrf.mxu0
      %v8682 = vadd.f32 0.0, %v8681
      %v8683 = vpop.f32.mrf.mxu0
      %v8684 = vpop.f32.mrf.mxu0
      %v8685 = vadd.f32 0.0, %v8684
      %v8686 = vpop.f32.mrf.mxu0
      %8687 = vmatprep.mubr.bf16.mxu0 0
      %8688 = vmatmul.mubr.bf16.gmra.mxu0 %v7342
      %v8689 = vpop.f32.mrf.mxu0
      %v8690 = vadd.f32 0.0, %v8689
      %v8691 = vpop.f32.mrf.mxu0
      %v8692 = vpop.f32.mrf.mxu0
      %v8693 = vadd.f32 0.0, %v8692
      %v8694 = vpop.f32.mrf.mxu0
      %8695 = vmatprep.mubr.bf16.mxu0 0
      %8696 = vmatmul.mubr.bf16.gmra.mxu0 %v7345
      %v8697 = vpop.f32.mrf.mxu0
      %v8698 = vadd.f32 0.0, %v8697
      %v8699 = vpop.f32.mrf.mxu0
      %v8700 = vpop.f32.mrf.mxu0
      %v8701 = vadd.f32 0.0, %v8700
      %v8702 = vpop.f32.mrf.mxu0
      %8703 = vmatprep.mubr.bf16.mxu0 0
      %8704 = vmatmul.mubr.bf16.gmra.mxu0 %v7348
      %v8705 = vpop.f32.mrf.mxu0
      %v8706 = vadd.f32 0.0, %v8705
      %v8707 = vpop.f32.mrf.mxu0
      %v8708 = vpop.f32.mrf.mxu0
      %v8709 = vadd.f32 0.0, %v8708
      %v8710 = vpop.f32.mrf.mxu0
      %8711 = vmatprep.mubr.bf16.mxu0 0
      %8712 = vmatmul.mubr.bf16.gmra.mxu0 %v7351
      %v8713 = vpop.f32.mrf.mxu0
      %v8714 = vadd.f32 0.0, %v8713
      %v8715 = vpop.f32.mrf.mxu0
      %v8716 = vpop.f32.mrf.mxu0
      %v8717 = vadd.f32 0.0, %v8716
      %v8718 = vpop.f32.mrf.mxu0
      %8719 = vmatprep.mubr.bf16.mxu0 0
      %8720 = vmatmul.mubr.bf16.gmra.mxu0 %v7354
      %v8721 = vpop.f32.mrf.mxu0
      %v8722 = vadd.f32 0.0, %v8721
      %v8723 = vpop.f32.mrf.mxu0
      %v8724 = vpop.f32.mrf.mxu0
      %v8725 = vadd.f32 0.0, %v8724
      %v8726 = vpop.f32.mrf.mxu0
      %8727 = vmatprep.mubr.bf16.mxu0 0
      %8728 = vmatmul.mubr.bf16.gmra.mxu0 %v7357
      %v8729 = vpop.f32.mrf.mxu0
      %v8730 = vadd.f32 0.0, %v8729
      %v8731 = vpop.f32.mrf.mxu0
      %v8732 = vpop.f32.mrf.mxu0
      %v8733 = vadd.f32 0.0, %v8732
      %v8734 = vpop.f32.mrf.mxu0
      %8735 = vmatprep.mubr.bf16.mxu0 0
      %8736 = vmatmul.mubr.bf16.gmra.mxu0 %v7360
      %v8737 = vpop.f32.mrf.mxu0
      %v8738 = vadd.f32 0.0, %v8737
      %v8739 = vpop.f32.mrf.mxu0
      %v8740 = vpop.f32.mrf.mxu0
      %v8741 = vadd.f32 0.0, %v8740
      %v8742 = vpop.f32.mrf.mxu0
      %8743 = vmatprep.mubr.bf16.mxu0 0
      %8744 = vmatmul.mubr.bf16.gmra.mxu0 %v7991
      %v8745 = vpop.f32.mrf.mxu0
      %v8746 = vadd.f32 0.0, %v8745
      %v8747 = vpop.f32.mrf.mxu0
      %v8748 = vpop.f32.mrf.mxu0
      %v8749 = vadd.f32 0.0, %v8748
      %v8750 = vpop.f32.mrf.mxu0
      %8751 = vmatprep.mubr.bf16.mxu0 0
      %8752 = vmatmul.mubr.bf16.gmra.mxu0 %v7315
      %v8753 = vpop.f32.mrf.mxu0
      %v8754 = vadd.f32 0.0, %v8753
      %v8755 = vpop.f32.mrf.mxu0
      %v8756 = vpop.f32.mrf.mxu0
      %v8757 = vadd.f32 0.0, %v8756
      %v8758 = vpop.f32.mrf.mxu0
      %8759 = vdwg.mxu0
      %v8760 = vadd.f32 %v8558, %v8634
      %v8761 = vadd.f32 %v8559, %v8637
      %v8762 = vadd.f32 %v8560, %v8642
      %v8763 = vadd.f32 %v8561, %v8645
      %v8764 = vadd.f32 %v8562, %v8650
      %v8765 = vadd.f32 %v8563, %v8653
      %v8766 = vadd.f32 %v8564, %v8658
      %v8767 = vadd.f32 %v8565, %v8661
      %v8768 = vadd.f32 %v8566, %v8666
      %v8769 = vadd.f32 %v8567, %v8669
      %v8770 = vadd.f32 %v8568, %v8674
      %v8771 = vadd.f32 %v8569, %v8677
      %v8772 = vadd.f32 %v8570, %v8682
      %v8773 = vadd.f32 %v8571, %v8685
      %v8774 = vadd.f32 %v8572, %v8690
      %v8775 = vadd.f32 %v8573, %v8693
      %v8776 = vadd.f32 %v8574, %v8698
      %v8777 = vadd.f32 %v8575, %v8701
      %v8778 = vadd.f32 %v8576, %v8706
      %v8779 = vadd.f32 %v8577, %v8709
      %v8780 = vadd.f32 %v8578, %v8714
      %v8781 = vadd.f32 %v8579, %v8717
      %v8782 = vadd.f32 %v8580, %v8722
      %v8783 = vadd.f32 %v8581, %v8725
      %v8784 = vadd.f32 %v8582, %v8730
      %v8785 = vadd.f32 %v8583, %v8733
      %v8786 = vadd.f32 %v8584, %v8738
      %v8787 = vadd.f32 %v8585, %v8741
      %v8788 = vadd.f32 %v8586, %v8746
      %v8789 = vadd.f32 %v8587, %v8749
      %v8790 = vadd.f32 %v8588, %v8754
      %v8791 = vadd.f32 %v8589, %v8757
      %v8792 = vld [vmem:[%s7] sm:$0x1]
      %v8794 = vlaneseq
      %v8795 = vshrl.u32 %v8794, 7
      %v8796 = vsub.s32 0, %v8795
      %v8797 = vrot.slane %v8792, %v8796
      %v8799 = vadd.f32 %v8760, %v8797
      %v8800 = vadd.f32 %v8761, %v8797
      %v8801 = vadd.f32 %v8762, %v8797
      %v8802 = vadd.f32 %v8763, %v8797
      %v8803 = vadd.f32 %v8764, %v8797
      %v8804 = vadd.f32 %v8765, %v8797
      %v8805 = vadd.f32 %v8766, %v8797
      %v8806 = vadd.f32 %v8767, %v8797
      %v8807 = vadd.f32 %v8768, %v8797
      %v8808 = vadd.f32 %v8769, %v8797
      %v8809 = vadd.f32 %v8770, %v8797
      %v8810 = vadd.f32 %v8771, %v8797
      %v8811 = vadd.f32 %v8772, %v8797
      %v8812 = vadd.f32 %v8773, %v8797
      %v8813 = vadd.f32 %v8774, %v8797
      %v8814 = vadd.f32 %v8775, %v8797
      %v8815 = vadd.f32 %v8776, %v8797
      %v8816 = vadd.f32 %v8777, %v8797
      %v8817 = vadd.f32 %v8778, %v8797
      %v8818 = vadd.f32 %v8779, %v8797
      %v8819 = vadd.f32 %v8780, %v8797
      %v8820 = vadd.f32 %v8781, %v8797
      %v8821 = vadd.f32 %v8782, %v8797
      %v8822 = vadd.f32 %v8783, %v8797
      %v8823 = vadd.f32 %v8784, %v8797
      %v8824 = vadd.f32 %v8785, %v8797
      %v8825 = vadd.f32 %v8786, %v8797
      %v8826 = vadd.f32 %v8787, %v8797
      %v8827 = vadd.f32 %v8788, %v8797
      %v8828 = vadd.f32 %v8789, %v8797
      %v8829 = vadd.f32 %v8790, %v8797
      %v8830 = vadd.f32 %v8791, %v8797
      %v8831 = vmax.f32 %v8799, 0.0
      %v8832 = vmax.f32 %v8800, 0.0
      %v8833 = vmax.f32 %v8801, 0.0
      %v8834 = vmax.f32 %v8802, 0.0
      %v8835 = vmax.f32 %v8803, 0.0
      %v8836 = vmax.f32 %v8804, 0.0
      %v8837 = vmax.f32 %v8805, 0.0
      %v8838 = vmax.f32 %v8806, 0.0
      %v8839 = vmax.f32 %v8807, 0.0
      %v8840 = vmax.f32 %v8808, 0.0
      %v8841 = vmax.f32 %v8809, 0.0
      %v8842 = vmax.f32 %v8810, 0.0
      %v8843 = vmax.f32 %v8811, 0.0
      %v8844 = vmax.f32 %v8812, 0.0
      %v8845 = vmax.f32 %v8813, 0.0
      %v8846 = vmax.f32 %v8814, 0.0
      %v8847 = vmax.f32 %v8815, 0.0
      %v8848 = vmax.f32 %v8816, 0.0
      %v8849 = vmax.f32 %v8817, 0.0
      %v8850 = vmax.f32 %v8818, 0.0
      %v8851 = vmax.f32 %v8819, 0.0
      %v8852 = vmax.f32 %v8820, 0.0
      %v8853 = vmax.f32 %v8821, 0.0
      %v8854 = vmax.f32 %v8822, 0.0
      %v8855 = vmax.f32 %v8823, 0.0
      %v8856 = vmax.f32 %v8824, 0.0
      %v8857 = vmax.f32 %v8825, 0.0
      %v8858 = vmax.f32 %v8826, 0.0
      %v8859 = vmax.f32 %v8827, 0.0
      %v8860 = vmax.f32 %v8828, 0.0
      %v8861 = vmax.f32 %v8829, 0.0
      %v8862 = vmax.f32 %v8830, 0.0
      %v8895 = vrot.slane %v8831, 7
      %v8896 = vrot.slane %v8832, 7
      %v8897 = vsel %vm1913, %v8895, %v8896
      %v8898 = vrot.slane %v8833, 7
      %v8899 = vrot.slane %v8834, 7
      %v8900 = vsel %vm1913, %v8898, %v8899
      %v8901 = vrot.slane %v8835, 7
      %v8902 = vrot.slane %v8836, 7
      %v8903 = vsel %vm1913, %v8901, %v8902
      %v8904 = vrot.slane %v8837, 7
      %v8905 = vrot.slane %v8838, 7
      %v8906 = vsel %vm1913, %v8904, %v8905
      %v8907 = vrot.slane %v8839, 7
      %v8908 = vrot.slane %v8840, 7
      %v8909 = vsel %vm1913, %v8907, %v8908
      %v8910 = vrot.slane %v8841, 7
      %v8911 = vrot.slane %v8842, 7
      %v8912 = vsel %vm1913, %v8910, %v8911
      %v8913 = vrot.slane %v8843, 7
      %v8914 = vrot.slane %v8844, 7
      %v8915 = vsel %vm1913, %v8913, %v8914
      %v8916 = vrot.slane %v8845, 7
      %v8917 = vrot.slane %v8846, 7
      %v8918 = vsel %vm1913, %v8916, %v8917
      %v8919 = vrot.slane %v8847, 7
      %v8920 = vrot.slane %v8848, 7
      %v8921 = vsel %vm1913, %v8919, %v8920
      %v8922 = vrot.slane %v8849, 7
      %v8923 = vrot.slane %v8850, 7
      %v8924 = vsel %vm1913, %v8922, %v8923
      %v8925 = vrot.slane %v8851, 7
      %v8926 = vrot.slane %v8852, 7
      %v8927 = vsel %vm1913, %v8925, %v8926
      %v8928 = vrot.slane %v8853, 7
      %v8929 = vrot.slane %v8854, 7
      %v8930 = vsel %vm1913, %v8928, %v8929
      %v8931 = vrot.slane %v8855, 7
      %v8932 = vrot.slane %v8856, 7
      %v8933 = vsel %vm1913, %v8931, %v8932
      %v8934 = vrot.slane %v8857, 7
      %v8935 = vrot.slane %v8858, 7
      %v8936 = vsel %vm1913, %v8934, %v8935
      %v8937 = vrot.slane %v8859, 7
      %v8938 = vrot.slane %v8860, 7
      %v8939 = vsel %vm1913, %v8937, %v8938
      %v8940 = vrot.slane %v8861, 7
      %v8941 = vrot.slane %v8862, 7
      %v8942 = vsel %vm1913, %v8940, %v8941
      %v8991 = vsel %vm1913, 0.0, %v8895
      %v8992 = vsel %vm1913, 0.0, %v8898
      %v8993 = vsel %vm1913, 0.0, %v8901
      %v8994 = vsel %vm1913, 0.0, %v8904
      %v8995 = vsel %vm1913, 0.0, %v8907
      %v8996 = vsel %vm1913, 0.0, %v8910
      %v8997 = vsel %vm1913, 0.0, %v8913
      %v8998 = vsel %vm1913, 0.0, %v8916
      %v8999 = vsel %vm1913, 0.0, %v8919
      %v9000 = vsel %vm1913, 0.0, %v8922
      %v9001 = vsel %vm1913, 0.0, %v8925
      %v9002 = vsel %vm1913, 0.0, %v8928
      %v9003 = vsel %vm1913, 0.0, %v8931
      %v9004 = vsel %vm1913, 0.0, %v8934
      %v9005 = vsel %vm1913, 0.0, %v8937
      %v9006 = vsel %vm1913, 0.0, %v8940
      %v9007 = vsel %vm1913, %v8896, 0.0
      %v9008 = vsel %vm1913, %v8899, 0.0
      %v9009 = vsel %vm1913, %v8902, 0.0
      %v9010 = vsel %vm1913, %v8905, 0.0
      %v9011 = vsel %vm1913, %v8908, 0.0
      %v9012 = vsel %vm1913, %v8911, 0.0
      %v9013 = vsel %vm1913, %v8914, 0.0
      %v9014 = vsel %vm1913, %v8917, 0.0
      %v9015 = vsel %vm1913, %v8920, 0.0
      %v9016 = vsel %vm1913, %v8923, 0.0
      %v9017 = vsel %vm1913, %v8926, 0.0
      %v9018 = vsel %vm1913, %v8929, 0.0
      %v9019 = vsel %vm1913, %v8932, 0.0
      %v9020 = vsel %vm1913, %v8935, 0.0
      %v9021 = vsel %vm1913, %v8938, 0.0
      %v9022 = vsel %vm1913, %v8941, 0.0
      %v9023 = vpack.c.bf16 %v8897, %v8991
      %v9024 = vpack.c.bf16 %v9007, %v9007
      %v9025 = vpack.c.bf16 %v8900, %v8992
      %v9026 = vpack.c.bf16 %v9008, %v9008
      %v9027 = vpack.c.bf16 %v8903, %v8993
      %v9028 = vpack.c.bf16 %v9009, %v9009
      %v9029 = vpack.c.bf16 %v8906, %v8994
      %v9030 = vpack.c.bf16 %v9010, %v9010
      %v9031 = vpack.c.bf16 %v8909, %v8995
      %v9032 = vpack.c.bf16 %v9011, %v9011
      %v9033 = vpack.c.bf16 %v8912, %v8996
      %v9034 = vpack.c.bf16 %v9012, %v9012
      %v9035 = vpack.c.bf16 %v8915, %v8997
      %v9036 = vpack.c.bf16 %v9013, %v9013
      %v9037 = vpack.c.bf16 %v8918, %v8998
      %v9038 = vpack.c.bf16 %v9014, %v9014
      %v9039 = vpack.c.bf16 %v8921, %v8999
      %v9040 = vpack.c.bf16 %v9015, %v9015
      %v9041 = vpack.c.bf16 %v8924, %v9000
      %v9042 = vpack.c.bf16 %v9016, %v9016
      %v9043 = vpack.c.bf16 %v8927, %v9001
      %v9044 = vpack.c.bf16 %v9017, %v9017
      %v9045 = vpack.c.bf16 %v8930, %v9002
      %v9046 = vpack.c.bf16 %v9018, %v9018
      %v9047 = vpack.c.bf16 %v8933, %v9003
      %v9048 = vpack.c.bf16 %v9019, %v9019
      %v9049 = vpack.c.bf16 %v8936, %v9004
      %v9050 = vpack.c.bf16 %v9020, %v9020
      %v9051 = vpack.c.bf16 %v8939, %v9005
      %v9052 = vpack.c.bf16 %v9021, %v9021
      %v9053 = vpack.c.bf16 %v8942, %v9006
      %v9054 = vpack.c.bf16 %v9022, %v9022
      %v9055 = vld [vmem:[%s5] sm:$0xf]
      %v9056 = vld [vmem:[%s5 + $0x4] sm:$0xf]
      %v9058 = vshrl.u32 %v9023, 16
      %v9060 = vshll.u32 %v9023, 16
      %v9062 = vrot.slane %v9060, 1
      %v9063 = vor.u32 %v9058, %v9062
      %v9065 = vshll.u32 %v9024, 16
      %v9067 = vrot.slane %v9065, 1
      %v9068 = vsel %vm4101, %v9063, %v9067
      %v9070 = vshrl.u32 %v9025, 16
      %v9072 = vshll.u32 %v9025, 16
      %v9074 = vrot.slane %v9072, 1
      %v9075 = vor.u32 %v9070, %v9074
      %v9077 = vshll.u32 %v9026, 16
      %v9079 = vrot.slane %v9077, 1
      %v9080 = vsel %vm4101, %v9075, %v9079
      %v9082 = vshrl.u32 %v9027, 16
      %v9084 = vshll.u32 %v9027, 16
      %v9086 = vrot.slane %v9084, 1
      %v9087 = vor.u32 %v9082, %v9086
      %v9089 = vshll.u32 %v9028, 16
      %v9091 = vrot.slane %v9089, 1
      %v9092 = vsel %vm4101, %v9087, %v9091
      %v9094 = vshrl.u32 %v9029, 16
      %v9096 = vshll.u32 %v9029, 16
      %v9098 = vrot.slane %v9096, 1
      %v9099 = vor.u32 %v9094, %v9098
      %v9101 = vshll.u32 %v9030, 16
      %v9103 = vrot.slane %v9101, 1
      %v9104 = vsel %vm4101, %v9099, %v9103
      %v9106 = vshrl.u32 %v9031, 16
      %v9108 = vshll.u32 %v9031, 16
      %v9110 = vrot.slane %v9108, 1
      %v9111 = vor.u32 %v9106, %v9110
      %v9113 = vshll.u32 %v9032, 16
      %v9115 = vrot.slane %v9113, 1
      %v9116 = vsel %vm4101, %v9111, %v9115
      %v9118 = vshrl.u32 %v9033, 16
      %v9120 = vshll.u32 %v9033, 16
      %v9122 = vrot.slane %v9120, 1
      %v9123 = vor.u32 %v9118, %v9122
      %v9125 = vshll.u32 %v9034, 16
      %v9127 = vrot.slane %v9125, 1
      %v9128 = vsel %vm4101, %v9123, %v9127
      %v9130 = vshrl.u32 %v9035, 16
      %v9132 = vshll.u32 %v9035, 16
      %v9134 = vrot.slane %v9132, 1
      %v9135 = vor.u32 %v9130, %v9134
      %v9137 = vshll.u32 %v9036, 16
      %v9139 = vrot.slane %v9137, 1
      %v9140 = vsel %vm4101, %v9135, %v9139
      %v9142 = vshrl.u32 %v9037, 16
      %v9144 = vshll.u32 %v9037, 16
      %v9146 = vrot.slane %v9144, 1
      %v9147 = vor.u32 %v9142, %v9146
      %v9149 = vshll.u32 %v9038, 16
      %v9151 = vrot.slane %v9149, 1
      %v9152 = vsel %vm4101, %v9147, %v9151
      %v9154 = vshrl.u32 %v9039, 16
      %v9156 = vshll.u32 %v9039, 16
      %v9158 = vrot.slane %v9156, 1
      %v9159 = vor.u32 %v9154, %v9158
      %v9161 = vshll.u32 %v9040, 16
      %v9163 = vrot.slane %v9161, 1
      %v9164 = vsel %vm4101, %v9159, %v9163
      %v9166 = vshrl.u32 %v9041, 16
      %v9168 = vshll.u32 %v9041, 16
      %v9170 = vrot.slane %v9168, 1
      %v9171 = vor.u32 %v9166, %v9170
      %v9173 = vshll.u32 %v9042, 16
      %v9175 = vrot.slane %v9173, 1
      %v9176 = vsel %vm4101, %v9171, %v9175
      %v9178 = vshrl.u32 %v9043, 16
      %v9180 = vshll.u32 %v9043, 16
      %v9182 = vrot.slane %v9180, 1
      %v9183 = vor.u32 %v9178, %v9182
      %v9185 = vshll.u32 %v9044, 16
      %v9187 = vrot.slane %v9185, 1
      %v9188 = vsel %vm4101, %v9183, %v9187
      %v9190 = vshrl.u32 %v9045, 16
      %v9192 = vshll.u32 %v9045, 16
      %v9194 = vrot.slane %v9192, 1
      %v9195 = vor.u32 %v9190, %v9194
      %v9197 = vshll.u32 %v9046, 16
      %v9199 = vrot.slane %v9197, 1
      %v9200 = vsel %vm4101, %v9195, %v9199
      %v9202 = vshrl.u32 %v9047, 16
      %v9204 = vshll.u32 %v9047, 16
      %v9206 = vrot.slane %v9204, 1
      %v9207 = vor.u32 %v9202, %v9206
      %v9209 = vshll.u32 %v9048, 16
      %v9211 = vrot.slane %v9209, 1
      %v9212 = vsel %vm4101, %v9207, %v9211
      %v9214 = vshrl.u32 %v9049, 16
      %v9216 = vshll.u32 %v9049, 16
      %v9218 = vrot.slane %v9216, 1
      %v9219 = vor.u32 %v9214, %v9218
      %v9221 = vshll.u32 %v9050, 16
      %v9223 = vrot.slane %v9221, 1
      %v9224 = vsel %vm4101, %v9219, %v9223
      %v9226 = vshrl.u32 %v9051, 16
      %v9228 = vshll.u32 %v9051, 16
      %v9230 = vrot.slane %v9228, 1
      %v9231 = vor.u32 %v9226, %v9230
      %v9233 = vshll.u32 %v9052, 16
      %v9235 = vrot.slane %v9233, 1
      %v9236 = vsel %vm4101, %v9231, %v9235
      %s9237 = scalar_lea.vmem %s5, 8
      %v9238 = vld [vmem:[%s9237] sm:$0xf]
      %v9239 = vld [vmem:[%s9237 + $0x4] sm:$0xf]
      %v9242 = vunpack.c.l.b16 %v9238
      %v9243 = vunpack.c.l.b16 %v9239
      %v9244 = vpack.c.b16 %v9243, %v9242
      %v9247 = vsel %vm4303, %v9068, 0
      %v9250 = vsel %vm4303, %v9080, 0
      %v9253 = vsel %vm4303, %v9092, 0
      %v9256 = vsel %vm4303, %v9104, 0
      %v9259 = vsel %vm4303, %v9116, 0
      %v9262 = vsel %vm4303, %v9128, 0
      %v9265 = vsel %vm4303, %v9140, 0
      %v9268 = vsel %vm4303, %v9152, 0
      %v9271 = vsel %vm4303, %v9164, 0
      %v9274 = vsel %vm4303, %v9176, 0
      %v9277 = vsel %vm4303, %v9188, 0
      %v9280 = vsel %vm4303, %v9200, 0
      %v9283 = vsel %vm4303, %v9212, 0
      %v9286 = vsel %vm4303, %v9224, 0
      %v9289 = vsel %vm4303, %v9236, 0
      %9291 = vmatprep.subr.bf16.mxu0 0
      %9292 = vmatpush1.bf16.msra.mxu0 0
      %9293 = vmatprep.subr.bf16.mxu0 0
      %9294 = vmatpush1.bf16.msra.mxu0 0
      %9295 = vmatprep.subr.bf16.mxu0 0
      %9296 = vmatpush1.bf16.msra.mxu0 0
      %9297 = vmatprep.subr.bf16.mxu0 0
      %9298 = vmatpush1.bf16.msra.mxu0 0
      %9299 = vmatprep.subr.bf16.mxu0 0
      %9300 = vmatpush1.bf16.msra.mxu0 0
      %9301 = vmatprep.subr.bf16.mxu0 0
      %9302 = vmatpush1.bf16.msra.mxu0 0
      %9303 = vmatprep.subr.bf16.mxu0 0
      %9304 = vmatpush1.bf16.msra.mxu0 0
      %9305 = vmatprep.subr.bf16.mxu0 0
      %9306 = vmatpush1.bf16.msra.mxu0 %v9244
      %9307 = vmatprep.subr.bf16.mxu0 0
      %9308 = vmatpush2.bf16.msra.mxu0 0
      %9309 = vmatprep.subr.bf16.mxu0 0
      %9310 = vmatpush2.bf16.msra.mxu0 0
      %9311 = vmatprep.subr.bf16.mxu0 0
      %9312 = vmatpush2.bf16.msra.mxu0 0
      %9313 = vmatprep.subr.bf16.mxu0 0
      %9314 = vmatpush2.bf16.msra.mxu0 0
      %9315 = vmatprep.subr.bf16.mxu0 0
      %9316 = vmatpush2.bf16.msra.mxu0 0
      %9317 = vmatprep.subr.bf16.mxu0 0
      %9318 = vmatpush2.bf16.msra.mxu0 0
      %9319 = vmatprep.subr.bf16.mxu0 0
      %9320 = vmatpush2.bf16.msra.mxu0 0
      %9321 = vmatprep.subr.bf16.mxu0 0
      %9322 = vmatpush2.bf16.msra.mxu0 0
      %9323 = vmatprep.mubr.bf16.mxu0 0
      %9324 = vmatmul.mubr.bf16.gmra.mxu0 %v4305
      %v9325 = vpop.f32.mrf.mxu0
      %v9326 = vadd.f32 0.0, %v9325
      %v9327 = vpop.f32.mrf.mxu0
      %v9328 = vpop.f32.mrf.mxu0
      %v9329 = vadd.f32 0.0, %v9328
      %v9330 = vpop.f32.mrf.mxu0
      %9331 = vmatprep.mubr.bf16.mxu0 0
      %9332 = vmatmul.mubr.bf16.gmra.mxu0 %v9247
      %v9333 = vpop.f32.mrf.mxu0
      %v9334 = vadd.f32 0.0, %v9333
      %v9335 = vpop.f32.mrf.mxu0
      %v9336 = vpop.f32.mrf.mxu0
      %v9337 = vadd.f32 0.0, %v9336
      %v9338 = vpop.f32.mrf.mxu0
      %9339 = vmatprep.mubr.bf16.mxu0 0
      %9340 = vmatmul.mubr.bf16.gmra.mxu0 %v9250
      %v9341 = vpop.f32.mrf.mxu0
      %v9342 = vadd.f32 0.0, %v9341
      %v9343 = vpop.f32.mrf.mxu0
      %v9344 = vpop.f32.mrf.mxu0
      %v9345 = vadd.f32 0.0, %v9344
      %v9346 = vpop.f32.mrf.mxu0
      %9347 = vmatprep.mubr.bf16.mxu0 0
      %9348 = vmatmul.mubr.bf16.gmra.mxu0 %v9253
      %v9349 = vpop.f32.mrf.mxu0
      %v9350 = vadd.f32 0.0, %v9349
      %v9351 = vpop.f32.mrf.mxu0
      %v9352 = vpop.f32.mrf.mxu0
      %v9353 = vadd.f32 0.0, %v9352
      %v9354 = vpop.f32.mrf.mxu0
      %9355 = vmatprep.mubr.bf16.mxu0 0
      %9356 = vmatmul.mubr.bf16.gmra.mxu0 %v9256
      %v9357 = vpop.f32.mrf.mxu0
      %v9358 = vadd.f32 0.0, %v9357
      %v9359 = vpop.f32.mrf.mxu0
      %v9360 = vpop.f32.mrf.mxu0
      %v9361 = vadd.f32 0.0, %v9360
      %v9362 = vpop.f32.mrf.mxu0
      %9363 = vmatprep.mubr.bf16.mxu0 0
      %9364 = vmatmul.mubr.bf16.gmra.mxu0 %v9259
      %v9365 = vpop.f32.mrf.mxu0
      %v9366 = vadd.f32 0.0, %v9365
      %v9367 = vpop.f32.mrf.mxu0
      %v9368 = vpop.f32.mrf.mxu0
      %v9369 = vadd.f32 0.0, %v9368
      %v9370 = vpop.f32.mrf.mxu0
      %9371 = vmatprep.mubr.bf16.mxu0 0
      %9372 = vmatmul.mubr.bf16.gmra.mxu0 %v9262
      %v9373 = vpop.f32.mrf.mxu0
      %v9374 = vadd.f32 0.0, %v9373
      %v9375 = vpop.f32.mrf.mxu0
      %v9376 = vpop.f32.mrf.mxu0
      %v9377 = vadd.f32 0.0, %v9376
      %v9378 = vpop.f32.mrf.mxu0
      %9379 = vmatprep.mubr.bf16.mxu0 0
      %9380 = vmatmul.mubr.bf16.gmra.mxu0 %v9265
      %v9381 = vpop.f32.mrf.mxu0
      %v9382 = vadd.f32 0.0, %v9381
      %v9383 = vpop.f32.mrf.mxu0
      %v9384 = vpop.f32.mrf.mxu0
      %v9385 = vadd.f32 0.0, %v9384
      %v9386 = vpop.f32.mrf.mxu0
      %9387 = vmatprep.mubr.bf16.mxu0 0
      %9388 = vmatmul.mubr.bf16.gmra.mxu0 %v9268
      %v9389 = vpop.f32.mrf.mxu0
      %v9390 = vadd.f32 0.0, %v9389
      %v9391 = vpop.f32.mrf.mxu0
      %v9392 = vpop.f32.mrf.mxu0
      %v9393 = vadd.f32 0.0, %v9392
      %v9394 = vpop.f32.mrf.mxu0
      %9395 = vmatprep.mubr.bf16.mxu0 0
      %9396 = vmatmul.mubr.bf16.gmra.mxu0 %v9271
      %v9397 = vpop.f32.mrf.mxu0
      %v9398 = vadd.f32 0.0, %v9397
      %v9399 = vpop.f32.mrf.mxu0
      %v9400 = vpop.f32.mrf.mxu0
      %v9401 = vadd.f32 0.0, %v9400
      %v9402 = vpop.f32.mrf.mxu0
      %9403 = vmatprep.mubr.bf16.mxu0 0
      %9404 = vmatmul.mubr.bf16.gmra.mxu0 %v9274
      %v9405 = vpop.f32.mrf.mxu0
      %v9406 = vadd.f32 0.0, %v9405
      %v9407 = vpop.f32.mrf.mxu0
      %v9408 = vpop.f32.mrf.mxu0
      %v9409 = vadd.f32 0.0, %v9408
      %v9410 = vpop.f32.mrf.mxu0
      %9411 = vmatprep.mubr.bf16.mxu0 0
      %9412 = vmatmul.mubr.bf16.gmra.mxu0 %v9277
      %v9413 = vpop.f32.mrf.mxu0
      %v9414 = vadd.f32 0.0, %v9413
      %v9415 = vpop.f32.mrf.mxu0
      %v9416 = vpop.f32.mrf.mxu0
      %v9417 = vadd.f32 0.0, %v9416
      %v9418 = vpop.f32.mrf.mxu0
      %9419 = vmatprep.mubr.bf16.mxu0 0
      %9420 = vmatmul.mubr.bf16.gmra.mxu0 %v9280
      %v9421 = vpop.f32.mrf.mxu0
      %v9422 = vadd.f32 0.0, %v9421
      %v9423 = vpop.f32.mrf.mxu0
      %v9424 = vpop.f32.mrf.mxu0
      %v9425 = vadd.f32 0.0, %v9424
      %v9426 = vpop.f32.mrf.mxu0
      %9427 = vmatprep.mubr.bf16.mxu0 0
      %9428 = vmatmul.mubr.bf16.gmra.mxu0 %v9283
      %v9429 = vpop.f32.mrf.mxu0
      %v9430 = vadd.f32 0.0, %v9429
      %v9431 = vpop.f32.mrf.mxu0
      %v9432 = vpop.f32.mrf.mxu0
      %v9433 = vadd.f32 0.0, %v9432
      %v9434 = vpop.f32.mrf.mxu0
      %9435 = vmatprep.mubr.bf16.mxu0 0
      %9436 = vmatmul.mubr.bf16.gmra.mxu0 %v9286
      %v9437 = vpop.f32.mrf.mxu0
      %v9438 = vadd.f32 0.0, %v9437
      %v9439 = vpop.f32.mrf.mxu0
      %v9440 = vpop.f32.mrf.mxu0
      %v9441 = vadd.f32 0.0, %v9440
      %v9442 = vpop.f32.mrf.mxu0
      %9443 = vmatprep.mubr.bf16.mxu0 0
      %9444 = vmatmul.mubr.bf16.gmra.mxu0 %v9289
      %v9445 = vpop.f32.mrf.mxu0
      %v9446 = vadd.f32 0.0, %v9445
      %v9447 = vpop.f32.mrf.mxu0
      %v9448 = vpop.f32.mrf.mxu0
      %v9449 = vadd.f32 0.0, %v9448
      %v9450 = vpop.f32.mrf.mxu0
      %9451 = vdwg.mxu0
      %v9454 = vunpack.c.l.b16 %v9055
      %v9455 = vunpack.c.l.b16 %v9056
      %v9456 = vpack.c.b16 %v9455, %v9454
      %v9458 = vsel %vm4303, %v9023, 0
      %v9460 = vsel %vm4303, %v9025, 0
      %v9462 = vsel %vm4303, %v9027, 0
      %v9464 = vsel %vm4303, %v9029, 0
      %v9466 = vsel %vm4303, %v9031, 0
      %v9468 = vsel %vm4303, %v9033, 0
      %v9470 = vsel %vm4303, %v9035, 0
      %v9472 = vsel %vm4303, %v9037, 0
      %v9474 = vsel %vm4303, %v9039, 0
      %v9476 = vsel %vm4303, %v9041, 0
      %v9478 = vsel %vm4303, %v9043, 0
      %v9480 = vsel %vm4303, %v9045, 0
      %v9482 = vsel %vm4303, %v9047, 0
      %v9484 = vsel %vm4303, %v9049, 0
      %v9486 = vsel %vm4303, %v9051, 0
      %9488 = vmatprep.subr.bf16.mxu0 0
      %9489 = vmatpush1.bf16.msra.mxu0 0
      %9490 = vmatprep.subr.bf16.mxu0 0
      %9491 = vmatpush1.bf16.msra.mxu0 0
      %9492 = vmatprep.subr.bf16.mxu0 0
      %9493 = vmatpush1.bf16.msra.mxu0 0
      %9494 = vmatprep.subr.bf16.mxu0 0
      %9495 = vmatpush1.bf16.msra.mxu0 0
      %9496 = vmatprep.subr.bf16.mxu0 0
      %9497 = vmatpush1.bf16.msra.mxu0 0
      %9498 = vmatprep.subr.bf16.mxu0 0
      %9499 = vmatpush1.bf16.msra.mxu0 0
      %9500 = vmatprep.subr.bf16.mxu0 0
      %9501 = vmatpush1.bf16.msra.mxu0 0
      %9502 = vmatprep.subr.bf16.mxu0 0
      %9503 = vmatpush1.bf16.msra.mxu0 %v9456
      %9504 = vmatprep.subr.bf16.mxu0 0
      %9505 = vmatpush2.bf16.msra.mxu0 0
      %9506 = vmatprep.subr.bf16.mxu0 0
      %9507 = vmatpush2.bf16.msra.mxu0 0
      %9508 = vmatprep.subr.bf16.mxu0 0
      %9509 = vmatpush2.bf16.msra.mxu0 0
      %9510 = vmatprep.subr.bf16.mxu0 0
      %9511 = vmatpush2.bf16.msra.mxu0 0
      %9512 = vmatprep.subr.bf16.mxu0 0
      %9513 = vmatpush2.bf16.msra.mxu0 0
      %9514 = vmatprep.subr.bf16.mxu0 0
      %9515 = vmatpush2.bf16.msra.mxu0 0
      %9516 = vmatprep.subr.bf16.mxu0 0
      %9517 = vmatpush2.bf16.msra.mxu0 0
      %9518 = vmatprep.subr.bf16.mxu0 0
      %9519 = vmatpush2.bf16.msra.mxu0 0
      %9520 = vmatprep.mubr.bf16.mxu0 0
      %9521 = vmatmul.mubr.bf16.gmra.mxu0 %v4519
      %v9522 = vpop.f32.mrf.mxu0
      %v9523 = vadd.f32 %v9326, %v9522
      %v9524 = vpop.f32.mrf.mxu0
      %v9525 = vpop.f32.mrf.mxu0
      %v9526 = vadd.f32 %v9329, %v9525
      %v9527 = vpop.f32.mrf.mxu0
      %9528 = vmatprep.mubr.bf16.mxu0 0
      %9529 = vmatmul.mubr.bf16.gmra.mxu0 %v9458
      %v9530 = vpop.f32.mrf.mxu0
      %v9531 = vadd.f32 %v9334, %v9530
      %v9532 = vpop.f32.mrf.mxu0
      %v9533 = vpop.f32.mrf.mxu0
      %v9534 = vadd.f32 %v9337, %v9533
      %v9535 = vpop.f32.mrf.mxu0
      %9536 = vmatprep.mubr.bf16.mxu0 0
      %9537 = vmatmul.mubr.bf16.gmra.mxu0 %v9460
      %v9538 = vpop.f32.mrf.mxu0
      %v9539 = vadd.f32 %v9342, %v9538
      %v9540 = vpop.f32.mrf.mxu0
      %v9541 = vpop.f32.mrf.mxu0
      %v9542 = vadd.f32 %v9345, %v9541
      %v9543 = vpop.f32.mrf.mxu0
      %9544 = vmatprep.mubr.bf16.mxu0 0
      %9545 = vmatmul.mubr.bf16.gmra.mxu0 %v9462
      %v9546 = vpop.f32.mrf.mxu0
      %v9547 = vadd.f32 %v9350, %v9546
      %v9548 = vpop.f32.mrf.mxu0
      %v9549 = vpop.f32.mrf.mxu0
      %v9550 = vadd.f32 %v9353, %v9549
      %v9551 = vpop.f32.mrf.mxu0
      %9552 = vmatprep.mubr.bf16.mxu0 0
      %9553 = vmatmul.mubr.bf16.gmra.mxu0 %v9464
      %v9554 = vpop.f32.mrf.mxu0
      %v9555 = vadd.f32 %v9358, %v9554
      %v9556 = vpop.f32.mrf.mxu0
      %v9557 = vpop.f32.mrf.mxu0
      %v9558 = vadd.f32 %v9361, %v9557
      %v9559 = vpop.f32.mrf.mxu0
      %9560 = vmatprep.mubr.bf16.mxu0 0
      %9561 = vmatmul.mubr.bf16.gmra.mxu0 %v9466
      %v9562 = vpop.f32.mrf.mxu0
      %v9563 = vadd.f32 %v9366, %v9562
      %v9564 = vpop.f32.mrf.mxu0
      %v9565 = vpop.f32.mrf.mxu0
      %v9566 = vadd.f32 %v9369, %v9565
      %v9567 = vpop.f32.mrf.mxu0
      %9568 = vmatprep.mubr.bf16.mxu0 0
      %9569 = vmatmul.mubr.bf16.gmra.mxu0 %v9468
      %v9570 = vpop.f32.mrf.mxu0
      %v9571 = vadd.f32 %v9374, %v9570
      %v9572 = vpop.f32.mrf.mxu0
      %v9573 = vpop.f32.mrf.mxu0
      %v9574 = vadd.f32 %v9377, %v9573
      %v9575 = vpop.f32.mrf.mxu0
      %9576 = vmatprep.mubr.bf16.mxu0 0
      %9577 = vmatmul.mubr.bf16.gmra.mxu0 %v9470
      %v9578 = vpop.f32.mrf.mxu0
      %v9579 = vadd.f32 %v9382, %v9578
      %v9580 = vpop.f32.mrf.mxu0
      %v9581 = vpop.f32.mrf.mxu0
      %v9582 = vadd.f32 %v9385, %v9581
      %v9583 = vpop.f32.mrf.mxu0
      %9584 = vmatprep.mubr.bf16.mxu0 0
      %9585 = vmatmul.mubr.bf16.gmra.mxu0 %v9472
      %v9586 = vpop.f32.mrf.mxu0
      %v9587 = vadd.f32 %v9390, %v9586
      %v9588 = vpop.f32.mrf.mxu0
      %v9589 = vpop.f32.mrf.mxu0
      %v9590 = vadd.f32 %v9393, %v9589
      %v9591 = vpop.f32.mrf.mxu0
      %9592 = vmatprep.mubr.bf16.mxu0 0
      %9593 = vmatmul.mubr.bf16.gmra.mxu0 %v9474
      %v9594 = vpop.f32.mrf.mxu0
      %v9595 = vadd.f32 %v9398, %v9594
      %v9596 = vpop.f32.mrf.mxu0
      %v9597 = vpop.f32.mrf.mxu0
      %v9598 = vadd.f32 %v9401, %v9597
      %v9599 = vpop.f32.mrf.mxu0
      %9600 = vmatprep.mubr.bf16.mxu0 0
      %9601 = vmatmul.mubr.bf16.gmra.mxu0 %v9476
      %v9602 = vpop.f32.mrf.mxu0
      %v9603 = vadd.f32 %v9406, %v9602
      %v9604 = vpop.f32.mrf.mxu0
      %v9605 = vpop.f32.mrf.mxu0
      %v9606 = vadd.f32 %v9409, %v9605
      %v9607 = vpop.f32.mrf.mxu0
      %9608 = vmatprep.mubr.bf16.mxu0 0
      %9609 = vmatmul.mubr.bf16.gmra.mxu0 %v9478
      %v9610 = vpop.f32.mrf.mxu0
      %v9611 = vadd.f32 %v9414, %v9610
      %v9612 = vpop.f32.mrf.mxu0
      %v9613 = vpop.f32.mrf.mxu0
      %v9614 = vadd.f32 %v9417, %v9613
      %v9615 = vpop.f32.mrf.mxu0
      %9616 = vmatprep.mubr.bf16.mxu0 0
      %9617 = vmatmul.mubr.bf16.gmra.mxu0 %v9480
      %v9618 = vpop.f32.mrf.mxu0
      %v9619 = vadd.f32 %v9422, %v9618
      %v9620 = vpop.f32.mrf.mxu0
      %v9621 = vpop.f32.mrf.mxu0
      %v9622 = vadd.f32 %v9425, %v9621
      %v9623 = vpop.f32.mrf.mxu0
      %9624 = vmatprep.mubr.bf16.mxu0 0
      %9625 = vmatmul.mubr.bf16.gmra.mxu0 %v9482
      %v9626 = vpop.f32.mrf.mxu0
      %v9627 = vadd.f32 %v9430, %v9626
      %v9628 = vpop.f32.mrf.mxu0
      %v9629 = vpop.f32.mrf.mxu0
      %v9630 = vadd.f32 %v9433, %v9629
      %v9631 = vpop.f32.mrf.mxu0
      %9632 = vmatprep.mubr.bf16.mxu0 0
      %9633 = vmatmul.mubr.bf16.gmra.mxu0 %v9484
      %v9634 = vpop.f32.mrf.mxu0
      %v9635 = vadd.f32 %v9438, %v9634
      %v9636 = vpop.f32.mrf.mxu0
      %v9637 = vpop.f32.mrf.mxu0
      %v9638 = vadd.f32 %v9441, %v9637
      %v9639 = vpop.f32.mrf.mxu0
      %9640 = vmatprep.mubr.bf16.mxu0 0
      %9641 = vmatmul.mubr.bf16.gmra.mxu0 %v9486
      %v9642 = vpop.f32.mrf.mxu0
      %v9643 = vadd.f32 %v9446, %v9642
      %v9644 = vpop.f32.mrf.mxu0
      %v9645 = vpop.f32.mrf.mxu0
      %v9646 = vadd.f32 %v9449, %v9645
      %v9647 = vpop.f32.mrf.mxu0
      %9648 = vdwg.mxu0
      %v9679 = vrot.slane %v9023, 1
      %v9680 = vrot.slane %v9024, 1
      %v9681 = vsel %vm4744, %v9679, %v9680
      %v9682 = vrot.slane %v9025, 1
      %v9683 = vrot.slane %v9026, 1
      %v9684 = vsel %vm4744, %v9682, %v9683
      %v9685 = vrot.slane %v9027, 1
      %v9686 = vrot.slane %v9028, 1
      %v9687 = vsel %vm4744, %v9685, %v9686
      %v9688 = vrot.slane %v9029, 1
      %v9689 = vrot.slane %v9030, 1
      %v9690 = vsel %vm4744, %v9688, %v9689
      %v9691 = vrot.slane %v9031, 1
      %v9692 = vrot.slane %v9032, 1
      %v9693 = vsel %vm4744, %v9691, %v9692
      %v9694 = vrot.slane %v9033, 1
      %v9695 = vrot.slane %v9034, 1
      %v9696 = vsel %vm4744, %v9694, %v9695
      %v9697 = vrot.slane %v9035, 1
      %v9698 = vrot.slane %v9036, 1
      %v9699 = vsel %vm4744, %v9697, %v9698
      %v9700 = vrot.slane %v9037, 1
      %v9701 = vrot.slane %v9038, 1
      %v9702 = vsel %vm4744, %v9700, %v9701
      %v9703 = vrot.slane %v9039, 1
      %v9704 = vrot.slane %v9040, 1
      %v9705 = vsel %vm4744, %v9703, %v9704
      %v9706 = vrot.slane %v9041, 1
      %v9707 = vrot.slane %v9042, 1
      %v9708 = vsel %vm4744, %v9706, %v9707
      %v9709 = vrot.slane %v9043, 1
      %v9710 = vrot.slane %v9044, 1
      %v9711 = vsel %vm4744, %v9709, %v9710
      %v9712 = vrot.slane %v9045, 1
      %v9713 = vrot.slane %v9046, 1
      %v9714 = vsel %vm4744, %v9712, %v9713
      %v9715 = vrot.slane %v9047, 1
      %v9716 = vrot.slane %v9048, 1
      %v9717 = vsel %vm4744, %v9715, %v9716
      %v9718 = vrot.slane %v9049, 1
      %v9719 = vrot.slane %v9050, 1
      %v9720 = vsel %vm4744, %v9718, %v9719
      %v9721 = vrot.slane %v9051, 1
      %v9722 = vrot.slane %v9052, 1
      %v9723 = vsel %vm4744, %v9721, %v9722
      %s9724 = scalar_lea.vmem %s5, 16
      %v9725 = vld [vmem:[%s9724] sm:$0xf]
      %v9726 = vld [vmem:[%s9724 + $0x4] sm:$0xf]
      %v9729 = vunpack.c.l.b16 %v9725
      %v9730 = vunpack.c.l.b16 %v9726
      %v9731 = vpack.c.b16 %v9730, %v9729
      %v9734 = vsel %vm4303, %v9681, 0
      %v9737 = vsel %vm4303, %v9684, 0
      %v9740 = vsel %vm4303, %v9687, 0
      %v9743 = vsel %vm4303, %v9690, 0
      %v9746 = vsel %vm4303, %v9693, 0
      %v9749 = vsel %vm4303, %v9696, 0
      %v9752 = vsel %vm4303, %v9699, 0
      %v9755 = vsel %vm4303, %v9702, 0
      %v9758 = vsel %vm4303, %v9705, 0
      %v9761 = vsel %vm4303, %v9708, 0
      %v9764 = vsel %vm4303, %v9711, 0
      %v9767 = vsel %vm4303, %v9714, 0
      %v9770 = vsel %vm4303, %v9717, 0
      %v9773 = vsel %vm4303, %v9720, 0
      %v9776 = vsel %vm4303, %v9723, 0
      %9778 = vmatprep.subr.bf16.mxu0 0
      %9779 = vmatpush1.bf16.msra.mxu0 0
      %9780 = vmatprep.subr.bf16.mxu0 0
      %9781 = vmatpush1.bf16.msra.mxu0 0
      %9782 = vmatprep.subr.bf16.mxu0 0
      %9783 = vmatpush1.bf16.msra.mxu0 0
      %9784 = vmatprep.subr.bf16.mxu0 0
      %9785 = vmatpush1.bf16.msra.mxu0 0
      %9786 = vmatprep.subr.bf16.mxu0 0
      %9787 = vmatpush1.bf16.msra.mxu0 0
      %9788 = vmatprep.subr.bf16.mxu0 0
      %9789 = vmatpush1.bf16.msra.mxu0 0
      %9790 = vmatprep.subr.bf16.mxu0 0
      %9791 = vmatpush1.bf16.msra.mxu0 0
      %9792 = vmatprep.subr.bf16.mxu0 0
      %9793 = vmatpush1.bf16.msra.mxu0 %v9731
      %9794 = vmatprep.subr.bf16.mxu0 0
      %9795 = vmatpush2.bf16.msra.mxu0 0
      %9796 = vmatprep.subr.bf16.mxu0 0
      %9797 = vmatpush2.bf16.msra.mxu0 0
      %9798 = vmatprep.subr.bf16.mxu0 0
      %9799 = vmatpush2.bf16.msra.mxu0 0
      %9800 = vmatprep.subr.bf16.mxu0 0
      %9801 = vmatpush2.bf16.msra.mxu0 0
      %9802 = vmatprep.subr.bf16.mxu0 0
      %9803 = vmatpush2.bf16.msra.mxu0 0
      %9804 = vmatprep.subr.bf16.mxu0 0
      %9805 = vmatpush2.bf16.msra.mxu0 0
      %9806 = vmatprep.subr.bf16.mxu0 0
      %9807 = vmatpush2.bf16.msra.mxu0 0
      %9808 = vmatprep.subr.bf16.mxu0 0
      %9809 = vmatpush2.bf16.msra.mxu0 0
      %9810 = vmatprep.mubr.bf16.mxu0 0
      %9811 = vmatmul.mubr.bf16.gmra.mxu0 %v4803
      %v9812 = vpop.f32.mrf.mxu0
      %v9813 = vadd.f32 0.0, %v9812
      %v9814 = vpop.f32.mrf.mxu0
      %v9815 = vpop.f32.mrf.mxu0
      %v9816 = vadd.f32 0.0, %v9815
      %v9817 = vpop.f32.mrf.mxu0
      %9818 = vmatprep.mubr.bf16.mxu0 0
      %9819 = vmatmul.mubr.bf16.gmra.mxu0 %v9734
      %v9820 = vpop.f32.mrf.mxu0
      %v9821 = vadd.f32 0.0, %v9820
      %v9822 = vpop.f32.mrf.mxu0
      %v9823 = vpop.f32.mrf.mxu0
      %v9824 = vadd.f32 0.0, %v9823
      %v9825 = vpop.f32.mrf.mxu0
      %9826 = vmatprep.mubr.bf16.mxu0 0
      %9827 = vmatmul.mubr.bf16.gmra.mxu0 %v9737
      %v9828 = vpop.f32.mrf.mxu0
      %v9829 = vadd.f32 0.0, %v9828
      %v9830 = vpop.f32.mrf.mxu0
      %v9831 = vpop.f32.mrf.mxu0
      %v9832 = vadd.f32 0.0, %v9831
      %v9833 = vpop.f32.mrf.mxu0
      %9834 = vmatprep.mubr.bf16.mxu0 0
      %9835 = vmatmul.mubr.bf16.gmra.mxu0 %v9740
      %v9836 = vpop.f32.mrf.mxu0
      %v9837 = vadd.f32 0.0, %v9836
      %v9838 = vpop.f32.mrf.mxu0
      %v9839 = vpop.f32.mrf.mxu0
      %v9840 = vadd.f32 0.0, %v9839
      %v9841 = vpop.f32.mrf.mxu0
      %9842 = vmatprep.mubr.bf16.mxu0 0
      %9843 = vmatmul.mubr.bf16.gmra.mxu0 %v9743
      %v9844 = vpop.f32.mrf.mxu0
      %v9845 = vadd.f32 0.0, %v9844
      %v9846 = vpop.f32.mrf.mxu0
      %v9847 = vpop.f32.mrf.mxu0
      %v9848 = vadd.f32 0.0, %v9847
      %v9849 = vpop.f32.mrf.mxu0
      %9850 = vmatprep.mubr.bf16.mxu0 0
      %9851 = vmatmul.mubr.bf16.gmra.mxu0 %v9746
      %v9852 = vpop.f32.mrf.mxu0
      %v9853 = vadd.f32 0.0, %v9852
      %v9854 = vpop.f32.mrf.mxu0
      %v9855 = vpop.f32.mrf.mxu0
      %v9856 = vadd.f32 0.0, %v9855
      %v9857 = vpop.f32.mrf.mxu0
      %9858 = vmatprep.mubr.bf16.mxu0 0
      %9859 = vmatmul.mubr.bf16.gmra.mxu0 %v9749
      %v9860 = vpop.f32.mrf.mxu0
      %v9861 = vadd.f32 0.0, %v9860
      %v9862 = vpop.f32.mrf.mxu0
      %v9863 = vpop.f32.mrf.mxu0
      %v9864 = vadd.f32 0.0, %v9863
      %v9865 = vpop.f32.mrf.mxu0
      %9866 = vmatprep.mubr.bf16.mxu0 0
      %9867 = vmatmul.mubr.bf16.gmra.mxu0 %v9752
      %v9868 = vpop.f32.mrf.mxu0
      %v9869 = vadd.f32 0.0, %v9868
      %v9870 = vpop.f32.mrf.mxu0
      %v9871 = vpop.f32.mrf.mxu0
      %v9872 = vadd.f32 0.0, %v9871
      %v9873 = vpop.f32.mrf.mxu0
      %9874 = vmatprep.mubr.bf16.mxu0 0
      %9875 = vmatmul.mubr.bf16.gmra.mxu0 %v9755
      %v9876 = vpop.f32.mrf.mxu0
      %v9877 = vadd.f32 0.0, %v9876
      %v9878 = vpop.f32.mrf.mxu0
      %v9879 = vpop.f32.mrf.mxu0
      %v9880 = vadd.f32 0.0, %v9879
      %v9881 = vpop.f32.mrf.mxu0
      %9882 = vmatprep.mubr.bf16.mxu0 0
      %9883 = vmatmul.mubr.bf16.gmra.mxu0 %v9758
      %v9884 = vpop.f32.mrf.mxu0
      %v9885 = vadd.f32 0.0, %v9884
      %v9886 = vpop.f32.mrf.mxu0
      %v9887 = vpop.f32.mrf.mxu0
      %v9888 = vadd.f32 0.0, %v9887
      %v9889 = vpop.f32.mrf.mxu0
      %9890 = vmatprep.mubr.bf16.mxu0 0
      %9891 = vmatmul.mubr.bf16.gmra.mxu0 %v9761
      %v9892 = vpop.f32.mrf.mxu0
      %v9893 = vadd.f32 0.0, %v9892
      %v9894 = vpop.f32.mrf.mxu0
      %v9895 = vpop.f32.mrf.mxu0
      %v9896 = vadd.f32 0.0, %v9895
      %v9897 = vpop.f32.mrf.mxu0
      %9898 = vmatprep.mubr.bf16.mxu0 0
      %9899 = vmatmul.mubr.bf16.gmra.mxu0 %v9764
      %v9900 = vpop.f32.mrf.mxu0
      %v9901 = vadd.f32 0.0, %v9900
      %v9902 = vpop.f32.mrf.mxu0
      %v9903 = vpop.f32.mrf.mxu0
      %v9904 = vadd.f32 0.0, %v9903
      %v9905 = vpop.f32.mrf.mxu0
      %9906 = vmatprep.mubr.bf16.mxu0 0
      %9907 = vmatmul.mubr.bf16.gmra.mxu0 %v9767
      %v9908 = vpop.f32.mrf.mxu0
      %v9909 = vadd.f32 0.0, %v9908
      %v9910 = vpop.f32.mrf.mxu0
      %v9911 = vpop.f32.mrf.mxu0
      %v9912 = vadd.f32 0.0, %v9911
      %v9913 = vpop.f32.mrf.mxu0
      %9914 = vmatprep.mubr.bf16.mxu0 0
      %9915 = vmatmul.mubr.bf16.gmra.mxu0 %v9770
      %v9916 = vpop.f32.mrf.mxu0
      %v9917 = vadd.f32 0.0, %v9916
      %v9918 = vpop.f32.mrf.mxu0
      %v9919 = vpop.f32.mrf.mxu0
      %v9920 = vadd.f32 0.0, %v9919
      %v9921 = vpop.f32.mrf.mxu0
      %9922 = vmatprep.mubr.bf16.mxu0 0
      %9923 = vmatmul.mubr.bf16.gmra.mxu0 %v9773
      %v9924 = vpop.f32.mrf.mxu0
      %v9925 = vadd.f32 0.0, %v9924
      %v9926 = vpop.f32.mrf.mxu0
      %v9927 = vpop.f32.mrf.mxu0
      %v9928 = vadd.f32 0.0, %v9927
      %v9929 = vpop.f32.mrf.mxu0
      %9930 = vmatprep.mubr.bf16.mxu0 0
      %9931 = vmatmul.mubr.bf16.gmra.mxu0 %v9776
      %v9932 = vpop.f32.mrf.mxu0
      %v9933 = vadd.f32 0.0, %v9932
      %v9934 = vpop.f32.mrf.mxu0
      %v9935 = vpop.f32.mrf.mxu0
      %v9936 = vadd.f32 0.0, %v9935
      %v9937 = vpop.f32.mrf.mxu0
      %9938 = vdwg.mxu0
      %v9939 = vadd.f32 %v9523, %v9813
      %v9940 = vadd.f32 %v9526, %v9816
      %v9941 = vadd.f32 %v9531, %v9821
      %v9942 = vadd.f32 %v9534, %v9824
      %v9943 = vadd.f32 %v9539, %v9829
      %v9944 = vadd.f32 %v9542, %v9832
      %v9945 = vadd.f32 %v9547, %v9837
      %v9946 = vadd.f32 %v9550, %v9840
      %v9947 = vadd.f32 %v9555, %v9845
      %v9948 = vadd.f32 %v9558, %v9848
      %v9949 = vadd.f32 %v9563, %v9853
      %v9950 = vadd.f32 %v9566, %v9856
      %v9951 = vadd.f32 %v9571, %v9861
      %v9952 = vadd.f32 %v9574, %v9864
      %v9953 = vadd.f32 %v9579, %v9869
      %v9954 = vadd.f32 %v9582, %v9872
      %v9955 = vadd.f32 %v9587, %v9877
      %v9956 = vadd.f32 %v9590, %v9880
      %v9957 = vadd.f32 %v9595, %v9885
      %v9958 = vadd.f32 %v9598, %v9888
      %v9959 = vadd.f32 %v9603, %v9893
      %v9960 = vadd.f32 %v9606, %v9896
      %v9961 = vadd.f32 %v9611, %v9901
      %v9962 = vadd.f32 %v9614, %v9904
      %v9963 = vadd.f32 %v9619, %v9909
      %v9964 = vadd.f32 %v9622, %v9912
      %v9965 = vadd.f32 %v9627, %v9917
      %v9966 = vadd.f32 %v9630, %v9920
      %v9967 = vadd.f32 %v9635, %v9925
      %v9968 = vadd.f32 %v9638, %v9928
      %v9969 = vadd.f32 %v9643, %v9933
      %v9970 = vadd.f32 %v9646, %v9936
      %s9971 = scalar_lea.vmem %s5, 24
      %v9972 = vld [vmem:[%s9971] sm:$0xf]
      %v9973 = vld [vmem:[%s9971 + $0x4] sm:$0xf]
      %v9976 = vunpack.c.l.b16 %v9972
      %v9977 = vunpack.c.l.b16 %v9973
      %v9978 = vpack.c.b16 %v9977, %v9976
      %v9981 = vsel %vm4303, %v9053, 0
      %9983 = vmatprep.subr.bf16.mxu0 0
      %9984 = vmatpush1.bf16.msra.mxu0 0
      %9985 = vmatprep.subr.bf16.mxu0 0
      %9986 = vmatpush1.bf16.msra.mxu0 0
      %9987 = vmatprep.subr.bf16.mxu0 0
      %9988 = vmatpush1.bf16.msra.mxu0 0
      %9989 = vmatprep.subr.bf16.mxu0 0
      %9990 = vmatpush1.bf16.msra.mxu0 0
      %9991 = vmatprep.subr.bf16.mxu0 0
      %9992 = vmatpush1.bf16.msra.mxu0 0
      %9993 = vmatprep.subr.bf16.mxu0 0
      %9994 = vmatpush1.bf16.msra.mxu0 0
      %9995 = vmatprep.subr.bf16.mxu0 0
      %9996 = vmatpush1.bf16.msra.mxu0 0
      %9997 = vmatprep.subr.bf16.mxu0 0
      %9998 = vmatpush1.bf16.msra.mxu0 %v9978
      %9999 = vmatprep.subr.bf16.mxu0 0
      %10000 = vmatpush2.bf16.msra.mxu0 0
      %10001 = vmatprep.subr.bf16.mxu0 0
      %10002 = vmatpush2.bf16.msra.mxu0 0
      %10003 = vmatprep.subr.bf16.mxu0 0
      %10004 = vmatpush2.bf16.msra.mxu0 0
      %10005 = vmatprep.subr.bf16.mxu0 0
      %10006 = vmatpush2.bf16.msra.mxu0 0
      %10007 = vmatprep.subr.bf16.mxu0 0
      %10008 = vmatpush2.bf16.msra.mxu0 0
      %10009 = vmatprep.subr.bf16.mxu0 0
      %10010 = vmatpush2.bf16.msra.mxu0 0
      %10011 = vmatprep.subr.bf16.mxu0 0
      %10012 = vmatpush2.bf16.msra.mxu0 0
      %10013 = vmatprep.subr.bf16.mxu0 0
      %10014 = vmatpush2.bf16.msra.mxu0 0
      %10015 = vmatprep.mubr.bf16.mxu0 0
      %10016 = vmatmul.mubr.bf16.gmra.mxu0 %v9458
      %v10017 = vpop.f32.mrf.mxu0
      %v10018 = vadd.f32 0.0, %v10017
      %v10019 = vpop.f32.mrf.mxu0
      %v10020 = vpop.f32.mrf.mxu0
      %v10021 = vadd.f32 0.0, %v10020
      %v10022 = vpop.f32.mrf.mxu0
      %10023 = vmatprep.mubr.bf16.mxu0 0
      %10024 = vmatmul.mubr.bf16.gmra.mxu0 %v9460
      %v10025 = vpop.f32.mrf.mxu0
      %v10026 = vadd.f32 0.0, %v10025
      %v10027 = vpop.f32.mrf.mxu0
      %v10028 = vpop.f32.mrf.mxu0
      %v10029 = vadd.f32 0.0, %v10028
      %v10030 = vpop.f32.mrf.mxu0
      %10031 = vmatprep.mubr.bf16.mxu0 0
      %10032 = vmatmul.mubr.bf16.gmra.mxu0 %v9462
      %v10033 = vpop.f32.mrf.mxu0
      %v10034 = vadd.f32 0.0, %v10033
      %v10035 = vpop.f32.mrf.mxu0
      %v10036 = vpop.f32.mrf.mxu0
      %v10037 = vadd.f32 0.0, %v10036
      %v10038 = vpop.f32.mrf.mxu0
      %10039 = vmatprep.mubr.bf16.mxu0 0
      %10040 = vmatmul.mubr.bf16.gmra.mxu0 %v9464
      %v10041 = vpop.f32.mrf.mxu0
      %v10042 = vadd.f32 0.0, %v10041
      %v10043 = vpop.f32.mrf.mxu0
      %v10044 = vpop.f32.mrf.mxu0
      %v10045 = vadd.f32 0.0, %v10044
      %v10046 = vpop.f32.mrf.mxu0
      %10047 = vmatprep.mubr.bf16.mxu0 0
      %10048 = vmatmul.mubr.bf16.gmra.mxu0 %v9466
      %v10049 = vpop.f32.mrf.mxu0
      %v10050 = vadd.f32 0.0, %v10049
      %v10051 = vpop.f32.mrf.mxu0
      %v10052 = vpop.f32.mrf.mxu0
      %v10053 = vadd.f32 0.0, %v10052
      %v10054 = vpop.f32.mrf.mxu0
      %10055 = vmatprep.mubr.bf16.mxu0 0
      %10056 = vmatmul.mubr.bf16.gmra.mxu0 %v9468
      %v10057 = vpop.f32.mrf.mxu0
      %v10058 = vadd.f32 0.0, %v10057
      %v10059 = vpop.f32.mrf.mxu0
      %v10060 = vpop.f32.mrf.mxu0
      %v10061 = vadd.f32 0.0, %v10060
      %v10062 = vpop.f32.mrf.mxu0
      %10063 = vmatprep.mubr.bf16.mxu0 0
      %10064 = vmatmul.mubr.bf16.gmra.mxu0 %v9470
      %v10065 = vpop.f32.mrf.mxu0
      %v10066 = vadd.f32 0.0, %v10065
      %v10067 = vpop.f32.mrf.mxu0
      %v10068 = vpop.f32.mrf.mxu0
      %v10069 = vadd.f32 0.0, %v10068
      %v10070 = vpop.f32.mrf.mxu0
      %10071 = vmatprep.mubr.bf16.mxu0 0
      %10072 = vmatmul.mubr.bf16.gmra.mxu0 %v9472
      %v10073 = vpop.f32.mrf.mxu0
      %v10074 = vadd.f32 0.0, %v10073
      %v10075 = vpop.f32.mrf.mxu0
      %v10076 = vpop.f32.mrf.mxu0
      %v10077 = vadd.f32 0.0, %v10076
      %v10078 = vpop.f32.mrf.mxu0
      %10079 = vmatprep.mubr.bf16.mxu0 0
      %10080 = vmatmul.mubr.bf16.gmra.mxu0 %v9474
      %v10081 = vpop.f32.mrf.mxu0
      %v10082 = vadd.f32 0.0, %v10081
      %v10083 = vpop.f32.mrf.mxu0
      %v10084 = vpop.f32.mrf.mxu0
      %v10085 = vadd.f32 0.0, %v10084
      %v10086 = vpop.f32.mrf.mxu0
      %10087 = vmatprep.mubr.bf16.mxu0 0
      %10088 = vmatmul.mubr.bf16.gmra.mxu0 %v9476
      %v10089 = vpop.f32.mrf.mxu0
      %v10090 = vadd.f32 0.0, %v10089
      %v10091 = vpop.f32.mrf.mxu0
      %v10092 = vpop.f32.mrf.mxu0
      %v10093 = vadd.f32 0.0, %v10092
      %v10094 = vpop.f32.mrf.mxu0
      %10095 = vmatprep.mubr.bf16.mxu0 0
      %10096 = vmatmul.mubr.bf16.gmra.mxu0 %v9478
      %v10097 = vpop.f32.mrf.mxu0
      %v10098 = vadd.f32 0.0, %v10097
      %v10099 = vpop.f32.mrf.mxu0
      %v10100 = vpop.f32.mrf.mxu0
      %v10101 = vadd.f32 0.0, %v10100
      %v10102 = vpop.f32.mrf.mxu0
      %10103 = vmatprep.mubr.bf16.mxu0 0
      %10104 = vmatmul.mubr.bf16.gmra.mxu0 %v9480
      %v10105 = vpop.f32.mrf.mxu0
      %v10106 = vadd.f32 0.0, %v10105
      %v10107 = vpop.f32.mrf.mxu0
      %v10108 = vpop.f32.mrf.mxu0
      %v10109 = vadd.f32 0.0, %v10108
      %v10110 = vpop.f32.mrf.mxu0
      %10111 = vmatprep.mubr.bf16.mxu0 0
      %10112 = vmatmul.mubr.bf16.gmra.mxu0 %v9482
      %v10113 = vpop.f32.mrf.mxu0
      %v10114 = vadd.f32 0.0, %v10113
      %v10115 = vpop.f32.mrf.mxu0
      %v10116 = vpop.f32.mrf.mxu0
      %v10117 = vadd.f32 0.0, %v10116
      %v10118 = vpop.f32.mrf.mxu0
      %10119 = vmatprep.mubr.bf16.mxu0 0
      %10120 = vmatmul.mubr.bf16.gmra.mxu0 %v9484
      %v10121 = vpop.f32.mrf.mxu0
      %v10122 = vadd.f32 0.0, %v10121
      %v10123 = vpop.f32.mrf.mxu0
      %v10124 = vpop.f32.mrf.mxu0
      %v10125 = vadd.f32 0.0, %v10124
      %v10126 = vpop.f32.mrf.mxu0
      %10127 = vmatprep.mubr.bf16.mxu0 0
      %10128 = vmatmul.mubr.bf16.gmra.mxu0 %v9486
      %v10129 = vpop.f32.mrf.mxu0
      %v10130 = vadd.f32 0.0, %v10129
      %v10131 = vpop.f32.mrf.mxu0
      %v10132 = vpop.f32.mrf.mxu0
      %v10133 = vadd.f32 0.0, %v10132
      %v10134 = vpop.f32.mrf.mxu0
      %10135 = vmatprep.mubr.bf16.mxu0 0
      %10136 = vmatmul.mubr.bf16.gmra.mxu0 %v9981
      %v10137 = vpop.f32.mrf.mxu0
      %v10138 = vadd.f32 0.0, %v10137
      %v10139 = vpop.f32.mrf.mxu0
      %v10140 = vpop.f32.mrf.mxu0
      %v10141 = vadd.f32 0.0, %v10140
      %v10142 = vpop.f32.mrf.mxu0
      %10143 = vdwg.mxu0
      %v10144 = vadd.f32 %v9939, %v10018
      %v10145 = vadd.f32 %v9940, %v10021
      %v10146 = vadd.f32 %v9941, %v10026
      %v10147 = vadd.f32 %v9942, %v10029
      %v10148 = vadd.f32 %v9943, %v10034
      %v10149 = vadd.f32 %v9944, %v10037
      %v10150 = vadd.f32 %v9945, %v10042
      %v10151 = vadd.f32 %v9946, %v10045
      %v10152 = vadd.f32 %v9947, %v10050
      %v10153 = vadd.f32 %v9948, %v10053
      %v10154 = vadd.f32 %v9949, %v10058
      %v10155 = vadd.f32 %v9950, %v10061
      %v10156 = vadd.f32 %v9951, %v10066
      %v10157 = vadd.f32 %v9952, %v10069
      %v10158 = vadd.f32 %v9953, %v10074
      %v10159 = vadd.f32 %v9954, %v10077
      %v10160 = vadd.f32 %v9955, %v10082
      %v10161 = vadd.f32 %v9956, %v10085
      %v10162 = vadd.f32 %v9957, %v10090
      %v10163 = vadd.f32 %v9958, %v10093
      %v10164 = vadd.f32 %v9959, %v10098
      %v10165 = vadd.f32 %v9960, %v10101
      %v10166 = vadd.f32 %v9961, %v10106
      %v10167 = vadd.f32 %v9962, %v10109
      %v10168 = vadd.f32 %v9963, %v10114
      %v10169 = vadd.f32 %v9964, %v10117
      %v10170 = vadd.f32 %v9965, %v10122
      %v10171 = vadd.f32 %v9966, %v10125
      %v10172 = vadd.f32 %v9967, %v10130
      %v10173 = vadd.f32 %v9968, %v10133
      %v10174 = vadd.f32 %v9969, %v10138
      %v10175 = vadd.f32 %v9970, %v10141
      %v10176 = vshrl.u32 %v9053, 16
      %v10178 = vshll.u32 %v9053, 16
      %v10180 = vrot.slane %v10178, 1
      %v10181 = vor.u32 %v10176, %v10180
      %v10183 = vshll.u32 %v9054, 16
      %v10185 = vrot.slane %v10183, 1
      %v10186 = vsel %vm4101, %v10181, %v10185
      %s10187 = scalar_lea.vmem %s5, 32
      %v10188 = vld [vmem:[%s10187] sm:$0xf]
      %v10189 = vld [vmem:[%s10187 + $0x4] sm:$0xf]
      %v10192 = vunpack.c.l.b16 %v10188
      %v10193 = vunpack.c.l.b16 %v10189
      %v10194 = vpack.c.b16 %v10193, %v10192
      %v10197 = vsel %vm4303, %v10186, 0
      %10199 = vmatprep.subr.bf16.mxu0 0
      %10200 = vmatpush1.bf16.msra.mxu0 0
      %10201 = vmatprep.subr.bf16.mxu0 0
      %10202 = vmatpush1.bf16.msra.mxu0 0
      %10203 = vmatprep.subr.bf16.mxu0 0
      %10204 = vmatpush1.bf16.msra.mxu0 0
      %10205 = vmatprep.subr.bf16.mxu0 0
      %10206 = vmatpush1.bf16.msra.mxu0 0
      %10207 = vmatprep.subr.bf16.mxu0 0
      %10208 = vmatpush1.bf16.msra.mxu0 0
      %10209 = vmatprep.subr.bf16.mxu0 0
      %10210 = vmatpush1.bf16.msra.mxu0 0
      %10211 = vmatprep.subr.bf16.mxu0 0
      %10212 = vmatpush1.bf16.msra.mxu0 0
      %10213 = vmatprep.subr.bf16.mxu0 0
      %10214 = vmatpush1.bf16.msra.mxu0 %v10194
      %10215 = vmatprep.subr.bf16.mxu0 0
      %10216 = vmatpush2.bf16.msra.mxu0 0
      %10217 = vmatprep.subr.bf16.mxu0 0
      %10218 = vmatpush2.bf16.msra.mxu0 0
      %10219 = vmatprep.subr.bf16.mxu0 0
      %10220 = vmatpush2.bf16.msra.mxu0 0
      %10221 = vmatprep.subr.bf16.mxu0 0
      %10222 = vmatpush2.bf16.msra.mxu0 0
      %10223 = vmatprep.subr.bf16.mxu0 0
      %10224 = vmatpush2.bf16.msra.mxu0 0
      %10225 = vmatprep.subr.bf16.mxu0 0
      %10226 = vmatpush2.bf16.msra.mxu0 0
      %10227 = vmatprep.subr.bf16.mxu0 0
      %10228 = vmatpush2.bf16.msra.mxu0 0
      %10229 = vmatprep.subr.bf16.mxu0 0
      %10230 = vmatpush2.bf16.msra.mxu0 0
      %10231 = vmatprep.mubr.bf16.mxu0 0
      %10232 = vmatmul.mubr.bf16.gmra.mxu0 %v9247
      %v10233 = vpop.f32.mrf.mxu0
      %v10234 = vadd.f32 0.0, %v10233
      %v10235 = vpop.f32.mrf.mxu0
      %v10236 = vpop.f32.mrf.mxu0
      %v10237 = vadd.f32 0.0, %v10236
      %v10238 = vpop.f32.mrf.mxu0
      %10239 = vmatprep.mubr.bf16.mxu0 0
      %10240 = vmatmul.mubr.bf16.gmra.mxu0 %v9250
      %v10241 = vpop.f32.mrf.mxu0
      %v10242 = vadd.f32 0.0, %v10241
      %v10243 = vpop.f32.mrf.mxu0
      %v10244 = vpop.f32.mrf.mxu0
      %v10245 = vadd.f32 0.0, %v10244
      %v10246 = vpop.f32.mrf.mxu0
      %10247 = vmatprep.mubr.bf16.mxu0 0
      %10248 = vmatmul.mubr.bf16.gmra.mxu0 %v9253
      %v10249 = vpop.f32.mrf.mxu0
      %v10250 = vadd.f32 0.0, %v10249
      %v10251 = vpop.f32.mrf.mxu0
      %v10252 = vpop.f32.mrf.mxu0
      %v10253 = vadd.f32 0.0, %v10252
      %v10254 = vpop.f32.mrf.mxu0
      %10255 = vmatprep.mubr.bf16.mxu0 0
      %10256 = vmatmul.mubr.bf16.gmra.mxu0 %v9256
      %v10257 = vpop.f32.mrf.mxu0
      %v10258 = vadd.f32 0.0, %v10257
      %v10259 = vpop.f32.mrf.mxu0
      %v10260 = vpop.f32.mrf.mxu0
      %v10261 = vadd.f32 0.0, %v10260
      %v10262 = vpop.f32.mrf.mxu0
      %10263 = vmatprep.mubr.bf16.mxu0 0
      %10264 = vmatmul.mubr.bf16.gmra.mxu0 %v9259
      %v10265 = vpop.f32.mrf.mxu0
      %v10266 = vadd.f32 0.0, %v10265
      %v10267 = vpop.f32.mrf.mxu0
      %v10268 = vpop.f32.mrf.mxu0
      %v10269 = vadd.f32 0.0, %v10268
      %v10270 = vpop.f32.mrf.mxu0
      %10271 = vmatprep.mubr.bf16.mxu0 0
      %10272 = vmatmul.mubr.bf16.gmra.mxu0 %v9262
      %v10273 = vpop.f32.mrf.mxu0
      %v10274 = vadd.f32 0.0, %v10273
      %v10275 = vpop.f32.mrf.mxu0
      %v10276 = vpop.f32.mrf.mxu0
      %v10277 = vadd.f32 0.0, %v10276
      %v10278 = vpop.f32.mrf.mxu0
      %10279 = vmatprep.mubr.bf16.mxu0 0
      %10280 = vmatmul.mubr.bf16.gmra.mxu0 %v9265
      %v10281 = vpop.f32.mrf.mxu0
      %v10282 = vadd.f32 0.0, %v10281
      %v10283 = vpop.f32.mrf.mxu0
      %v10284 = vpop.f32.mrf.mxu0
      %v10285 = vadd.f32 0.0, %v10284
      %v10286 = vpop.f32.mrf.mxu0
      %10287 = vmatprep.mubr.bf16.mxu0 0
      %10288 = vmatmul.mubr.bf16.gmra.mxu0 %v9268
      %v10289 = vpop.f32.mrf.mxu0
      %v10290 = vadd.f32 0.0, %v10289
      %v10291 = vpop.f32.mrf.mxu0
      %v10292 = vpop.f32.mrf.mxu0
      %v10293 = vadd.f32 0.0, %v10292
      %v10294 = vpop.f32.mrf.mxu0
      %10295 = vmatprep.mubr.bf16.mxu0 0
      %10296 = vmatmul.mubr.bf16.gmra.mxu0 %v9271
      %v10297 = vpop.f32.mrf.mxu0
      %v10298 = vadd.f32 0.0, %v10297
      %v10299 = vpop.f32.mrf.mxu0
      %v10300 = vpop.f32.mrf.mxu0
      %v10301 = vadd.f32 0.0, %v10300
      %v10302 = vpop.f32.mrf.mxu0
      %10303 = vmatprep.mubr.bf16.mxu0 0
      %10304 = vmatmul.mubr.bf16.gmra.mxu0 %v9274
      %v10305 = vpop.f32.mrf.mxu0
      %v10306 = vadd.f32 0.0, %v10305
      %v10307 = vpop.f32.mrf.mxu0
      %v10308 = vpop.f32.mrf.mxu0
      %v10309 = vadd.f32 0.0, %v10308
      %v10310 = vpop.f32.mrf.mxu0
      %10311 = vmatprep.mubr.bf16.mxu0 0
      %10312 = vmatmul.mubr.bf16.gmra.mxu0 %v9277
      %v10313 = vpop.f32.mrf.mxu0
      %v10314 = vadd.f32 0.0, %v10313
      %v10315 = vpop.f32.mrf.mxu0
      %v10316 = vpop.f32.mrf.mxu0
      %v10317 = vadd.f32 0.0, %v10316
      %v10318 = vpop.f32.mrf.mxu0
      %10319 = vmatprep.mubr.bf16.mxu0 0
      %10320 = vmatmul.mubr.bf16.gmra.mxu0 %v9280
      %v10321 = vpop.f32.mrf.mxu0
      %v10322 = vadd.f32 0.0, %v10321
      %v10323 = vpop.f32.mrf.mxu0
      %v10324 = vpop.f32.mrf.mxu0
      %v10325 = vadd.f32 0.0, %v10324
      %v10326 = vpop.f32.mrf.mxu0
      %10327 = vmatprep.mubr.bf16.mxu0 0
      %10328 = vmatmul.mubr.bf16.gmra.mxu0 %v9283
      %v10329 = vpop.f32.mrf.mxu0
      %v10330 = vadd.f32 0.0, %v10329
      %v10331 = vpop.f32.mrf.mxu0
      %v10332 = vpop.f32.mrf.mxu0
      %v10333 = vadd.f32 0.0, %v10332
      %v10334 = vpop.f32.mrf.mxu0
      %10335 = vmatprep.mubr.bf16.mxu0 0
      %10336 = vmatmul.mubr.bf16.gmra.mxu0 %v9286
      %v10337 = vpop.f32.mrf.mxu0
      %v10338 = vadd.f32 0.0, %v10337
      %v10339 = vpop.f32.mrf.mxu0
      %v10340 = vpop.f32.mrf.mxu0
      %v10341 = vadd.f32 0.0, %v10340
      %v10342 = vpop.f32.mrf.mxu0
      %10343 = vmatprep.mubr.bf16.mxu0 0
      %10344 = vmatmul.mubr.bf16.gmra.mxu0 %v9289
      %v10345 = vpop.f32.mrf.mxu0
      %v10346 = vadd.f32 0.0, %v10345
      %v10347 = vpop.f32.mrf.mxu0
      %v10348 = vpop.f32.mrf.mxu0
      %v10349 = vadd.f32 0.0, %v10348
      %v10350 = vpop.f32.mrf.mxu0
      %10351 = vmatprep.mubr.bf16.mxu0 0
      %10352 = vmatmul.mubr.bf16.gmra.mxu0 %v10197
      %v10353 = vpop.f32.mrf.mxu0
      %v10354 = vadd.f32 0.0, %v10353
      %v10355 = vpop.f32.mrf.mxu0
      %v10356 = vpop.f32.mrf.mxu0
      %v10357 = vadd.f32 0.0, %v10356
      %v10358 = vpop.f32.mrf.mxu0
      %10359 = vdwg.mxu0
      %v10360 = vadd.f32 %v10144, %v10234
      %v10361 = vadd.f32 %v10145, %v10237
      %v10362 = vadd.f32 %v10146, %v10242
      %v10363 = vadd.f32 %v10147, %v10245
      %v10364 = vadd.f32 %v10148, %v10250
      %v10365 = vadd.f32 %v10149, %v10253
      %v10366 = vadd.f32 %v10150, %v10258
      %v10367 = vadd.f32 %v10151, %v10261
      %v10368 = vadd.f32 %v10152, %v10266
      %v10369 = vadd.f32 %v10153, %v10269
      %v10370 = vadd.f32 %v10154, %v10274
      %v10371 = vadd.f32 %v10155, %v10277
      %v10372 = vadd.f32 %v10156, %v10282
      %v10373 = vadd.f32 %v10157, %v10285
      %v10374 = vadd.f32 %v10158, %v10290
      %v10375 = vadd.f32 %v10159, %v10293
      %v10376 = vadd.f32 %v10160, %v10298
      %v10377 = vadd.f32 %v10161, %v10301
      %v10378 = vadd.f32 %v10162, %v10306
      %v10379 = vadd.f32 %v10163, %v10309
      %v10380 = vadd.f32 %v10164, %v10314
      %v10381 = vadd.f32 %v10165, %v10317
      %v10382 = vadd.f32 %v10166, %v10322
      %v10383 = vadd.f32 %v10167, %v10325
      %v10384 = vadd.f32 %v10168, %v10330
      %v10385 = vadd.f32 %v10169, %v10333
      %v10386 = vadd.f32 %v10170, %v10338
      %v10387 = vadd.f32 %v10171, %v10341
      %v10388 = vadd.f32 %v10172, %v10346
      %v10389 = vadd.f32 %v10173, %v10349
      %v10390 = vadd.f32 %v10174, %v10354
      %v10391 = vadd.f32 %v10175, %v10357
      %v10394 = vrot.slane %v9053, 1
      %v10395 = vrot.slane %v9054, 1
      %v10396 = vsel %vm4744, %v10394, %v10395
      %s10397 = scalar_lea.vmem %s5, 40
      %v10398 = vld [vmem:[%s10397] sm:$0xf]
      %v10399 = vld [vmem:[%s10397 + $0x4] sm:$0xf]
      %v10402 = vunpack.c.l.b16 %v10398
      %v10403 = vunpack.c.l.b16 %v10399
      %v10404 = vpack.c.b16 %v10403, %v10402
      %v10407 = vsel %vm4303, %v10396, 0
      %10409 = vmatprep.subr.bf16.mxu0 0
      %10410 = vmatpush1.bf16.msra.mxu0 0
      %10411 = vmatprep.subr.bf16.mxu0 0
      %10412 = vmatpush1.bf16.msra.mxu0 0
      %10413 = vmatprep.subr.bf16.mxu0 0
      %10414 = vmatpush1.bf16.msra.mxu0 0
      %10415 = vmatprep.subr.bf16.mxu0 0
      %10416 = vmatpush1.bf16.msra.mxu0 0
      %10417 = vmatprep.subr.bf16.mxu0 0
      %10418 = vmatpush1.bf16.msra.mxu0 0
      %10419 = vmatprep.subr.bf16.mxu0 0
      %10420 = vmatpush1.bf16.msra.mxu0 0
      %10421 = vmatprep.subr.bf16.mxu0 0
      %10422 = vmatpush1.bf16.msra.mxu0 0
      %10423 = vmatprep.subr.bf16.mxu0 0
      %10424 = vmatpush1.bf16.msra.mxu0 %v10404
      %10425 = vmatprep.subr.bf16.mxu0 0
      %10426 = vmatpush2.bf16.msra.mxu0 0
      %10427 = vmatprep.subr.bf16.mxu0 0
      %10428 = vmatpush2.bf16.msra.mxu0 0
      %10429 = vmatprep.subr.bf16.mxu0 0
      %10430 = vmatpush2.bf16.msra.mxu0 0
      %10431 = vmatprep.subr.bf16.mxu0 0
      %10432 = vmatpush2.bf16.msra.mxu0 0
      %10433 = vmatprep.subr.bf16.mxu0 0
      %10434 = vmatpush2.bf16.msra.mxu0 0
      %10435 = vmatprep.subr.bf16.mxu0 0
      %10436 = vmatpush2.bf16.msra.mxu0 0
      %10437 = vmatprep.subr.bf16.mxu0 0
      %10438 = vmatpush2.bf16.msra.mxu0 0
      %10439 = vmatprep.subr.bf16.mxu0 0
      %10440 = vmatpush2.bf16.msra.mxu0 0
      %10441 = vmatprep.mubr.bf16.mxu0 0
      %10442 = vmatmul.mubr.bf16.gmra.mxu0 %v9734
      %v10443 = vpop.f32.mrf.mxu0
      %v10444 = vadd.f32 0.0, %v10443
      %v10445 = vpop.f32.mrf.mxu0
      %v10446 = vpop.f32.mrf.mxu0
      %v10447 = vadd.f32 0.0, %v10446
      %v10448 = vpop.f32.mrf.mxu0
      %10449 = vmatprep.mubr.bf16.mxu0 0
      %10450 = vmatmul.mubr.bf16.gmra.mxu0 %v9737
      %v10451 = vpop.f32.mrf.mxu0
      %v10452 = vadd.f32 0.0, %v10451
      %v10453 = vpop.f32.mrf.mxu0
      %v10454 = vpop.f32.mrf.mxu0
      %v10455 = vadd.f32 0.0, %v10454
      %v10456 = vpop.f32.mrf.mxu0
      %10457 = vmatprep.mubr.bf16.mxu0 0
      %10458 = vmatmul.mubr.bf16.gmra.mxu0 %v9740
      %v10459 = vpop.f32.mrf.mxu0
      %v10460 = vadd.f32 0.0, %v10459
      %v10461 = vpop.f32.mrf.mxu0
      %v10462 = vpop.f32.mrf.mxu0
      %v10463 = vadd.f32 0.0, %v10462
      %v10464 = vpop.f32.mrf.mxu0
      %10465 = vmatprep.mubr.bf16.mxu0 0
      %10466 = vmatmul.mubr.bf16.gmra.mxu0 %v9743
      %v10467 = vpop.f32.mrf.mxu0
      %v10468 = vadd.f32 0.0, %v10467
      %v10469 = vpop.f32.mrf.mxu0
      %v10470 = vpop.f32.mrf.mxu0
      %v10471 = vadd.f32 0.0, %v10470
      %v10472 = vpop.f32.mrf.mxu0
      %10473 = vmatprep.mubr.bf16.mxu0 0
      %10474 = vmatmul.mubr.bf16.gmra.mxu0 %v9746
      %v10475 = vpop.f32.mrf.mxu0
      %v10476 = vadd.f32 0.0, %v10475
      %v10477 = vpop.f32.mrf.mxu0
      %v10478 = vpop.f32.mrf.mxu0
      %v10479 = vadd.f32 0.0, %v10478
      %v10480 = vpop.f32.mrf.mxu0
      %10481 = vmatprep.mubr.bf16.mxu0 0
      %10482 = vmatmul.mubr.bf16.gmra.mxu0 %v9749
      %v10483 = vpop.f32.mrf.mxu0
      %v10484 = vadd.f32 0.0, %v10483
      %v10485 = vpop.f32.mrf.mxu0
      %v10486 = vpop.f32.mrf.mxu0
      %v10487 = vadd.f32 0.0, %v10486
      %v10488 = vpop.f32.mrf.mxu0
      %10489 = vmatprep.mubr.bf16.mxu0 0
      %10490 = vmatmul.mubr.bf16.gmra.mxu0 %v9752
      %v10491 = vpop.f32.mrf.mxu0
      %v10492 = vadd.f32 0.0, %v10491
      %v10493 = vpop.f32.mrf.mxu0
      %v10494 = vpop.f32.mrf.mxu0
      %v10495 = vadd.f32 0.0, %v10494
      %v10496 = vpop.f32.mrf.mxu0
      %10497 = vmatprep.mubr.bf16.mxu0 0
      %10498 = vmatmul.mubr.bf16.gmra.mxu0 %v9755
      %v10499 = vpop.f32.mrf.mxu0
      %v10500 = vadd.f32 0.0, %v10499
      %v10501 = vpop.f32.mrf.mxu0
      %v10502 = vpop.f32.mrf.mxu0
      %v10503 = vadd.f32 0.0, %v10502
      %v10504 = vpop.f32.mrf.mxu0
      %10505 = vmatprep.mubr.bf16.mxu0 0
      %10506 = vmatmul.mubr.bf16.gmra.mxu0 %v9758
      %v10507 = vpop.f32.mrf.mxu0
      %v10508 = vadd.f32 0.0, %v10507
      %v10509 = vpop.f32.mrf.mxu0
      %v10510 = vpop.f32.mrf.mxu0
      %v10511 = vadd.f32 0.0, %v10510
      %v10512 = vpop.f32.mrf.mxu0
      %10513 = vmatprep.mubr.bf16.mxu0 0
      %10514 = vmatmul.mubr.bf16.gmra.mxu0 %v9761
      %v10515 = vpop.f32.mrf.mxu0
      %v10516 = vadd.f32 0.0, %v10515
      %v10517 = vpop.f32.mrf.mxu0
      %v10518 = vpop.f32.mrf.mxu0
      %v10519 = vadd.f32 0.0, %v10518
      %v10520 = vpop.f32.mrf.mxu0
      %10521 = vmatprep.mubr.bf16.mxu0 0
      %10522 = vmatmul.mubr.bf16.gmra.mxu0 %v9764
      %v10523 = vpop.f32.mrf.mxu0
      %v10524 = vadd.f32 0.0, %v10523
      %v10525 = vpop.f32.mrf.mxu0
      %v10526 = vpop.f32.mrf.mxu0
      %v10527 = vadd.f32 0.0, %v10526
      %v10528 = vpop.f32.mrf.mxu0
      %10529 = vmatprep.mubr.bf16.mxu0 0
      %10530 = vmatmul.mubr.bf16.gmra.mxu0 %v9767
      %v10531 = vpop.f32.mrf.mxu0
      %v10532 = vadd.f32 0.0, %v10531
      %v10533 = vpop.f32.mrf.mxu0
      %v10534 = vpop.f32.mrf.mxu0
      %v10535 = vadd.f32 0.0, %v10534
      %v10536 = vpop.f32.mrf.mxu0
      %10537 = vmatprep.mubr.bf16.mxu0 0
      %10538 = vmatmul.mubr.bf16.gmra.mxu0 %v9770
      %v10539 = vpop.f32.mrf.mxu0
      %v10540 = vadd.f32 0.0, %v10539
      %v10541 = vpop.f32.mrf.mxu0
      %v10542 = vpop.f32.mrf.mxu0
      %v10543 = vadd.f32 0.0, %v10542
      %v10544 = vpop.f32.mrf.mxu0
      %10545 = vmatprep.mubr.bf16.mxu0 0
      %10546 = vmatmul.mubr.bf16.gmra.mxu0 %v9773
      %v10547 = vpop.f32.mrf.mxu0
      %v10548 = vadd.f32 0.0, %v10547
      %v10549 = vpop.f32.mrf.mxu0
      %v10550 = vpop.f32.mrf.mxu0
      %v10551 = vadd.f32 0.0, %v10550
      %v10552 = vpop.f32.mrf.mxu0
      %10553 = vmatprep.mubr.bf16.mxu0 0
      %10554 = vmatmul.mubr.bf16.gmra.mxu0 %v9776
      %v10555 = vpop.f32.mrf.mxu0
      %v10556 = vadd.f32 0.0, %v10555
      %v10557 = vpop.f32.mrf.mxu0
      %v10558 = vpop.f32.mrf.mxu0
      %v10559 = vadd.f32 0.0, %v10558
      %v10560 = vpop.f32.mrf.mxu0
      %10561 = vmatprep.mubr.bf16.mxu0 0
      %10562 = vmatmul.mubr.bf16.gmra.mxu0 %v10407
      %v10563 = vpop.f32.mrf.mxu0
      %v10564 = vadd.f32 0.0, %v10563
      %v10565 = vpop.f32.mrf.mxu0
      %v10566 = vpop.f32.mrf.mxu0
      %v10567 = vadd.f32 0.0, %v10566
      %v10568 = vpop.f32.mrf.mxu0
      %10569 = vdwg.mxu0
      %v10570 = vadd.f32 %v10360, %v10444
      %v10571 = vadd.f32 %v10361, %v10447
      %v10572 = vadd.f32 %v10362, %v10452
      %v10573 = vadd.f32 %v10363, %v10455
      %v10574 = vadd.f32 %v10364, %v10460
      %v10575 = vadd.f32 %v10365, %v10463
      %v10576 = vadd.f32 %v10366, %v10468
      %v10577 = vadd.f32 %v10367, %v10471
      %v10578 = vadd.f32 %v10368, %v10476
      %v10579 = vadd.f32 %v10369, %v10479
      %v10580 = vadd.f32 %v10370, %v10484
      %v10581 = vadd.f32 %v10371, %v10487
      %v10582 = vadd.f32 %v10372, %v10492
      %v10583 = vadd.f32 %v10373, %v10495
      %v10584 = vadd.f32 %v10374, %v10500
      %v10585 = vadd.f32 %v10375, %v10503
      %v10586 = vadd.f32 %v10376, %v10508
      %v10587 = vadd.f32 %v10377, %v10511
      %v10588 = vadd.f32 %v10378, %v10516
      %v10589 = vadd.f32 %v10379, %v10519
      %v10590 = vadd.f32 %v10380, %v10524
      %v10591 = vadd.f32 %v10381, %v10527
      %v10592 = vadd.f32 %v10382, %v10532
      %v10593 = vadd.f32 %v10383, %v10535
      %v10594 = vadd.f32 %v10384, %v10540
      %v10595 = vadd.f32 %v10385, %v10543
      %v10596 = vadd.f32 %v10386, %v10548
      %v10597 = vadd.f32 %v10387, %v10551
      %v10598 = vadd.f32 %v10388, %v10556
      %v10599 = vadd.f32 %v10389, %v10559
      %v10600 = vadd.f32 %v10390, %v10564
      %v10601 = vadd.f32 %v10391, %v10567
      %s10602 = scalar_lea.vmem %s5, 48
      %v10603 = vld [vmem:[%s10602] sm:$0xf]
      %v10604 = vld [vmem:[%s10602 + $0x4] sm:$0xf]
      %v10607 = vunpack.c.l.b16 %v10603
      %v10608 = vunpack.c.l.b16 %v10604
      %v10609 = vpack.c.b16 %v10608, %v10607
      %10611 = vmatprep.subr.bf16.mxu0 0
      %10612 = vmatpush1.bf16.msra.mxu0 0
      %10613 = vmatprep.subr.bf16.mxu0 0
      %10614 = vmatpush1.bf16.msra.mxu0 0
      %10615 = vmatprep.subr.bf16.mxu0 0
      %10616 = vmatpush1.bf16.msra.mxu0 0
      %10617 = vmatprep.subr.bf16.mxu0 0
      %10618 = vmatpush1.bf16.msra.mxu0 0
      %10619 = vmatprep.subr.bf16.mxu0 0
      %10620 = vmatpush1.bf16.msra.mxu0 0
      %10621 = vmatprep.subr.bf16.mxu0 0
      %10622 = vmatpush1.bf16.msra.mxu0 0
      %10623 = vmatprep.subr.bf16.mxu0 0
      %10624 = vmatpush1.bf16.msra.mxu0 0
      %10625 = vmatprep.subr.bf16.mxu0 0
      %10626 = vmatpush1.bf16.msra.mxu0 %v10609
      %10627 = vmatprep.subr.bf16.mxu0 0
      %10628 = vmatpush2.bf16.msra.mxu0 0
      %10629 = vmatprep.subr.bf16.mxu0 0
      %10630 = vmatpush2.bf16.msra.mxu0 0
      %10631 = vmatprep.subr.bf16.mxu0 0
      %10632 = vmatpush2.bf16.msra.mxu0 0
      %10633 = vmatprep.subr.bf16.mxu0 0
      %10634 = vmatpush2.bf16.msra.mxu0 0
      %10635 = vmatprep.subr.bf16.mxu0 0
      %10636 = vmatpush2.bf16.msra.mxu0 0
      %10637 = vmatprep.subr.bf16.mxu0 0
      %10638 = vmatpush2.bf16.msra.mxu0 0
      %10639 = vmatprep.subr.bf16.mxu0 0
      %10640 = vmatpush2.bf16.msra.mxu0 0
      %10641 = vmatprep.subr.bf16.mxu0 0
      %10642 = vmatpush2.bf16.msra.mxu0 0
      %10643 = vmatprep.mubr.bf16.mxu0 0
      %10644 = vmatmul.mubr.bf16.gmra.mxu0 %v9460
      %v10645 = vpop.f32.mrf.mxu0
      %v10646 = vadd.f32 0.0, %v10645
      %v10647 = vpop.f32.mrf.mxu0
      %v10648 = vpop.f32.mrf.mxu0
      %v10649 = vadd.f32 0.0, %v10648
      %v10650 = vpop.f32.mrf.mxu0
      %10651 = vmatprep.mubr.bf16.mxu0 0
      %10652 = vmatmul.mubr.bf16.gmra.mxu0 %v9462
      %v10653 = vpop.f32.mrf.mxu0
      %v10654 = vadd.f32 0.0, %v10653
      %v10655 = vpop.f32.mrf.mxu0
      %v10656 = vpop.f32.mrf.mxu0
      %v10657 = vadd.f32 0.0, %v10656
      %v10658 = vpop.f32.mrf.mxu0
      %10659 = vmatprep.mubr.bf16.mxu0 0
      %10660 = vmatmul.mubr.bf16.gmra.mxu0 %v9464
      %v10661 = vpop.f32.mrf.mxu0
      %v10662 = vadd.f32 0.0, %v10661
      %v10663 = vpop.f32.mrf.mxu0
      %v10664 = vpop.f32.mrf.mxu0
      %v10665 = vadd.f32 0.0, %v10664
      %v10666 = vpop.f32.mrf.mxu0
      %10667 = vmatprep.mubr.bf16.mxu0 0
      %10668 = vmatmul.mubr.bf16.gmra.mxu0 %v9466
      %v10669 = vpop.f32.mrf.mxu0
      %v10670 = vadd.f32 0.0, %v10669
      %v10671 = vpop.f32.mrf.mxu0
      %v10672 = vpop.f32.mrf.mxu0
      %v10673 = vadd.f32 0.0, %v10672
      %v10674 = vpop.f32.mrf.mxu0
      %10675 = vmatprep.mubr.bf16.mxu0 0
      %10676 = vmatmul.mubr.bf16.gmra.mxu0 %v9468
      %v10677 = vpop.f32.mrf.mxu0
      %v10678 = vadd.f32 0.0, %v10677
      %v10679 = vpop.f32.mrf.mxu0
      %v10680 = vpop.f32.mrf.mxu0
      %v10681 = vadd.f32 0.0, %v10680
      %v10682 = vpop.f32.mrf.mxu0
      %10683 = vmatprep.mubr.bf16.mxu0 0
      %10684 = vmatmul.mubr.bf16.gmra.mxu0 %v9470
      %v10685 = vpop.f32.mrf.mxu0
      %v10686 = vadd.f32 0.0, %v10685
      %v10687 = vpop.f32.mrf.mxu0
      %v10688 = vpop.f32.mrf.mxu0
      %v10689 = vadd.f32 0.0, %v10688
      %v10690 = vpop.f32.mrf.mxu0
      %10691 = vmatprep.mubr.bf16.mxu0 0
      %10692 = vmatmul.mubr.bf16.gmra.mxu0 %v9472
      %v10693 = vpop.f32.mrf.mxu0
      %v10694 = vadd.f32 0.0, %v10693
      %v10695 = vpop.f32.mrf.mxu0
      %v10696 = vpop.f32.mrf.mxu0
      %v10697 = vadd.f32 0.0, %v10696
      %v10698 = vpop.f32.mrf.mxu0
      %10699 = vmatprep.mubr.bf16.mxu0 0
      %10700 = vmatmul.mubr.bf16.gmra.mxu0 %v9474
      %v10701 = vpop.f32.mrf.mxu0
      %v10702 = vadd.f32 0.0, %v10701
      %v10703 = vpop.f32.mrf.mxu0
      %v10704 = vpop.f32.mrf.mxu0
      %v10705 = vadd.f32 0.0, %v10704
      %v10706 = vpop.f32.mrf.mxu0
      %10707 = vmatprep.mubr.bf16.mxu0 0
      %10708 = vmatmul.mubr.bf16.gmra.mxu0 %v9476
      %v10709 = vpop.f32.mrf.mxu0
      %v10710 = vadd.f32 0.0, %v10709
      %v10711 = vpop.f32.mrf.mxu0
      %v10712 = vpop.f32.mrf.mxu0
      %v10713 = vadd.f32 0.0, %v10712
      %v10714 = vpop.f32.mrf.mxu0
      %10715 = vmatprep.mubr.bf16.mxu0 0
      %10716 = vmatmul.mubr.bf16.gmra.mxu0 %v9478
      %v10717 = vpop.f32.mrf.mxu0
      %v10718 = vadd.f32 0.0, %v10717
      %v10719 = vpop.f32.mrf.mxu0
      %v10720 = vpop.f32.mrf.mxu0
      %v10721 = vadd.f32 0.0, %v10720
      %v10722 = vpop.f32.mrf.mxu0
      %10723 = vmatprep.mubr.bf16.mxu0 0
      %10724 = vmatmul.mubr.bf16.gmra.mxu0 %v9480
      %v10725 = vpop.f32.mrf.mxu0
      %v10726 = vadd.f32 0.0, %v10725
      %v10727 = vpop.f32.mrf.mxu0
      %v10728 = vpop.f32.mrf.mxu0
      %v10729 = vadd.f32 0.0, %v10728
      %v10730 = vpop.f32.mrf.mxu0
      %10731 = vmatprep.mubr.bf16.mxu0 0
      %10732 = vmatmul.mubr.bf16.gmra.mxu0 %v9482
      %v10733 = vpop.f32.mrf.mxu0
      %v10734 = vadd.f32 0.0, %v10733
      %v10735 = vpop.f32.mrf.mxu0
      %v10736 = vpop.f32.mrf.mxu0
      %v10737 = vadd.f32 0.0, %v10736
      %v10738 = vpop.f32.mrf.mxu0
      %10739 = vmatprep.mubr.bf16.mxu0 0
      %10740 = vmatmul.mubr.bf16.gmra.mxu0 %v9484
      %v10741 = vpop.f32.mrf.mxu0
      %v10742 = vadd.f32 0.0, %v10741
      %v10743 = vpop.f32.mrf.mxu0
      %v10744 = vpop.f32.mrf.mxu0
      %v10745 = vadd.f32 0.0, %v10744
      %v10746 = vpop.f32.mrf.mxu0
      %10747 = vmatprep.mubr.bf16.mxu0 0
      %10748 = vmatmul.mubr.bf16.gmra.mxu0 %v9486
      %v10749 = vpop.f32.mrf.mxu0
      %v10750 = vadd.f32 0.0, %v10749
      %v10751 = vpop.f32.mrf.mxu0
      %v10752 = vpop.f32.mrf.mxu0
      %v10753 = vadd.f32 0.0, %v10752
      %v10754 = vpop.f32.mrf.mxu0
      %10755 = vmatprep.mubr.bf16.mxu0 0
      %10756 = vmatmul.mubr.bf16.gmra.mxu0 %v9981
      %v10757 = vpop.f32.mrf.mxu0
      %v10758 = vadd.f32 0.0, %v10757
      %v10759 = vpop.f32.mrf.mxu0
      %v10760 = vpop.f32.mrf.mxu0
      %v10761 = vadd.f32 0.0, %v10760
      %v10762 = vpop.f32.mrf.mxu0
      %10763 = vmatprep.mubr.bf16.mxu0 0
      %10764 = vmatmul.mubr.bf16.gmra.mxu0 %v4519
      %v10765 = vpop.f32.mrf.mxu0
      %v10766 = vadd.f32 0.0, %v10765
      %v10767 = vpop.f32.mrf.mxu0
      %v10768 = vpop.f32.mrf.mxu0
      %v10769 = vadd.f32 0.0, %v10768
      %v10770 = vpop.f32.mrf.mxu0
      %10771 = vdwg.mxu0
      %v10772 = vadd.f32 %v10570, %v10646
      %v10773 = vadd.f32 %v10571, %v10649
      %v10774 = vadd.f32 %v10572, %v10654
      %v10775 = vadd.f32 %v10573, %v10657
      %v10776 = vadd.f32 %v10574, %v10662
      %v10777 = vadd.f32 %v10575, %v10665
      %v10778 = vadd.f32 %v10576, %v10670
      %v10779 = vadd.f32 %v10577, %v10673
      %v10780 = vadd.f32 %v10578, %v10678
      %v10781 = vadd.f32 %v10579, %v10681
      %v10782 = vadd.f32 %v10580, %v10686
      %v10783 = vadd.f32 %v10581, %v10689
      %v10784 = vadd.f32 %v10582, %v10694
      %v10785 = vadd.f32 %v10583, %v10697
      %v10786 = vadd.f32 %v10584, %v10702
      %v10787 = vadd.f32 %v10585, %v10705
      %v10788 = vadd.f32 %v10586, %v10710
      %v10789 = vadd.f32 %v10587, %v10713
      %v10790 = vadd.f32 %v10588, %v10718
      %v10791 = vadd.f32 %v10589, %v10721
      %v10792 = vadd.f32 %v10590, %v10726
      %v10793 = vadd.f32 %v10591, %v10729
      %v10794 = vadd.f32 %v10592, %v10734
      %v10795 = vadd.f32 %v10593, %v10737
      %v10796 = vadd.f32 %v10594, %v10742
      %v10797 = vadd.f32 %v10595, %v10745
      %v10798 = vadd.f32 %v10596, %v10750
      %v10799 = vadd.f32 %v10597, %v10753
      %v10800 = vadd.f32 %v10598, %v10758
      %v10801 = vadd.f32 %v10599, %v10761
      %v10802 = vadd.f32 %v10600, %v10766
      %v10803 = vadd.f32 %v10601, %v10769
      %s10804 = scalar_lea.vmem %s5, 56
      %v10805 = vld [vmem:[%s10804] sm:$0xf]
      %v10806 = vld [vmem:[%s10804 + $0x4] sm:$0xf]
      %v10809 = vunpack.c.l.b16 %v10805
      %v10810 = vunpack.c.l.b16 %v10806
      %v10811 = vpack.c.b16 %v10810, %v10809
      %10813 = vmatprep.subr.bf16.mxu0 0
      %10814 = vmatpush1.bf16.msra.mxu0 0
      %10815 = vmatprep.subr.bf16.mxu0 0
      %10816 = vmatpush1.bf16.msra.mxu0 0
      %10817 = vmatprep.subr.bf16.mxu0 0
      %10818 = vmatpush1.bf16.msra.mxu0 0
      %10819 = vmatprep.subr.bf16.mxu0 0
      %10820 = vmatpush1.bf16.msra.mxu0 0
      %10821 = vmatprep.subr.bf16.mxu0 0
      %10822 = vmatpush1.bf16.msra.mxu0 0
      %10823 = vmatprep.subr.bf16.mxu0 0
      %10824 = vmatpush1.bf16.msra.mxu0 0
      %10825 = vmatprep.subr.bf16.mxu0 0
      %10826 = vmatpush1.bf16.msra.mxu0 0
      %10827 = vmatprep.subr.bf16.mxu0 0
      %10828 = vmatpush1.bf16.msra.mxu0 %v10811
      %10829 = vmatprep.subr.bf16.mxu0 0
      %10830 = vmatpush2.bf16.msra.mxu0 0
      %10831 = vmatprep.subr.bf16.mxu0 0
      %10832 = vmatpush2.bf16.msra.mxu0 0
      %10833 = vmatprep.subr.bf16.mxu0 0
      %10834 = vmatpush2.bf16.msra.mxu0 0
      %10835 = vmatprep.subr.bf16.mxu0 0
      %10836 = vmatpush2.bf16.msra.mxu0 0
      %10837 = vmatprep.subr.bf16.mxu0 0
      %10838 = vmatpush2.bf16.msra.mxu0 0
      %10839 = vmatprep.subr.bf16.mxu0 0
      %10840 = vmatpush2.bf16.msra.mxu0 0
      %10841 = vmatprep.subr.bf16.mxu0 0
      %10842 = vmatpush2.bf16.msra.mxu0 0
      %10843 = vmatprep.subr.bf16.mxu0 0
      %10844 = vmatpush2.bf16.msra.mxu0 0
      %10845 = vmatprep.mubr.bf16.mxu0 0
      %10846 = vmatmul.mubr.bf16.gmra.mxu0 %v9250
      %v10847 = vpop.f32.mrf.mxu0
      %v10848 = vadd.f32 0.0, %v10847
      %v10849 = vpop.f32.mrf.mxu0
      %v10850 = vpop.f32.mrf.mxu0
      %v10851 = vadd.f32 0.0, %v10850
      %v10852 = vpop.f32.mrf.mxu0
      %10853 = vmatprep.mubr.bf16.mxu0 0
      %10854 = vmatmul.mubr.bf16.gmra.mxu0 %v9253
      %v10855 = vpop.f32.mrf.mxu0
      %v10856 = vadd.f32 0.0, %v10855
      %v10857 = vpop.f32.mrf.mxu0
      %v10858 = vpop.f32.mrf.mxu0
      %v10859 = vadd.f32 0.0, %v10858
      %v10860 = vpop.f32.mrf.mxu0
      %10861 = vmatprep.mubr.bf16.mxu0 0
      %10862 = vmatmul.mubr.bf16.gmra.mxu0 %v9256
      %v10863 = vpop.f32.mrf.mxu0
      %v10864 = vadd.f32 0.0, %v10863
      %v10865 = vpop.f32.mrf.mxu0
      %v10866 = vpop.f32.mrf.mxu0
      %v10867 = vadd.f32 0.0, %v10866
      %v10868 = vpop.f32.mrf.mxu0
      %10869 = vmatprep.mubr.bf16.mxu0 0
      %10870 = vmatmul.mubr.bf16.gmra.mxu0 %v9259
      %v10871 = vpop.f32.mrf.mxu0
      %v10872 = vadd.f32 0.0, %v10871
      %v10873 = vpop.f32.mrf.mxu0
      %v10874 = vpop.f32.mrf.mxu0
      %v10875 = vadd.f32 0.0, %v10874
      %v10876 = vpop.f32.mrf.mxu0
      %10877 = vmatprep.mubr.bf16.mxu0 0
      %10878 = vmatmul.mubr.bf16.gmra.mxu0 %v9262
      %v10879 = vpop.f32.mrf.mxu0
      %v10880 = vadd.f32 0.0, %v10879
      %v10881 = vpop.f32.mrf.mxu0
      %v10882 = vpop.f32.mrf.mxu0
      %v10883 = vadd.f32 0.0, %v10882
      %v10884 = vpop.f32.mrf.mxu0
      %10885 = vmatprep.mubr.bf16.mxu0 0
      %10886 = vmatmul.mubr.bf16.gmra.mxu0 %v9265
      %v10887 = vpop.f32.mrf.mxu0
      %v10888 = vadd.f32 0.0, %v10887
      %v10889 = vpop.f32.mrf.mxu0
      %v10890 = vpop.f32.mrf.mxu0
      %v10891 = vadd.f32 0.0, %v10890
      %v10892 = vpop.f32.mrf.mxu0
      %10893 = vmatprep.mubr.bf16.mxu0 0
      %10894 = vmatmul.mubr.bf16.gmra.mxu0 %v9268
      %v10895 = vpop.f32.mrf.mxu0
      %v10896 = vadd.f32 0.0, %v10895
      %v10897 = vpop.f32.mrf.mxu0
      %v10898 = vpop.f32.mrf.mxu0
      %v10899 = vadd.f32 0.0, %v10898
      %v10900 = vpop.f32.mrf.mxu0
      %10901 = vmatprep.mubr.bf16.mxu0 0
      %10902 = vmatmul.mubr.bf16.gmra.mxu0 %v9271
      %v10903 = vpop.f32.mrf.mxu0
      %v10904 = vadd.f32 0.0, %v10903
      %v10905 = vpop.f32.mrf.mxu0
      %v10906 = vpop.f32.mrf.mxu0
      %v10907 = vadd.f32 0.0, %v10906
      %v10908 = vpop.f32.mrf.mxu0
      %10909 = vmatprep.mubr.bf16.mxu0 0
      %10910 = vmatmul.mubr.bf16.gmra.mxu0 %v9274
      %v10911 = vpop.f32.mrf.mxu0
      %v10912 = vadd.f32 0.0, %v10911
      %v10913 = vpop.f32.mrf.mxu0
      %v10914 = vpop.f32.mrf.mxu0
      %v10915 = vadd.f32 0.0, %v10914
      %v10916 = vpop.f32.mrf.mxu0
      %10917 = vmatprep.mubr.bf16.mxu0 0
      %10918 = vmatmul.mubr.bf16.gmra.mxu0 %v9277
      %v10919 = vpop.f32.mrf.mxu0
      %v10920 = vadd.f32 0.0, %v10919
      %v10921 = vpop.f32.mrf.mxu0
      %v10922 = vpop.f32.mrf.mxu0
      %v10923 = vadd.f32 0.0, %v10922
      %v10924 = vpop.f32.mrf.mxu0
      %10925 = vmatprep.mubr.bf16.mxu0 0
      %10926 = vmatmul.mubr.bf16.gmra.mxu0 %v9280
      %v10927 = vpop.f32.mrf.mxu0
      %v10928 = vadd.f32 0.0, %v10927
      %v10929 = vpop.f32.mrf.mxu0
      %v10930 = vpop.f32.mrf.mxu0
      %v10931 = vadd.f32 0.0, %v10930
      %v10932 = vpop.f32.mrf.mxu0
      %10933 = vmatprep.mubr.bf16.mxu0 0
      %10934 = vmatmul.mubr.bf16.gmra.mxu0 %v9283
      %v10935 = vpop.f32.mrf.mxu0
      %v10936 = vadd.f32 0.0, %v10935
      %v10937 = vpop.f32.mrf.mxu0
      %v10938 = vpop.f32.mrf.mxu0
      %v10939 = vadd.f32 0.0, %v10938
      %v10940 = vpop.f32.mrf.mxu0
      %10941 = vmatprep.mubr.bf16.mxu0 0
      %10942 = vmatmul.mubr.bf16.gmra.mxu0 %v9286
      %v10943 = vpop.f32.mrf.mxu0
      %v10944 = vadd.f32 0.0, %v10943
      %v10945 = vpop.f32.mrf.mxu0
      %v10946 = vpop.f32.mrf.mxu0
      %v10947 = vadd.f32 0.0, %v10946
      %v10948 = vpop.f32.mrf.mxu0
      %10949 = vmatprep.mubr.bf16.mxu0 0
      %10950 = vmatmul.mubr.bf16.gmra.mxu0 %v9289
      %v10951 = vpop.f32.mrf.mxu0
      %v10952 = vadd.f32 0.0, %v10951
      %v10953 = vpop.f32.mrf.mxu0
      %v10954 = vpop.f32.mrf.mxu0
      %v10955 = vadd.f32 0.0, %v10954
      %v10956 = vpop.f32.mrf.mxu0
      %10957 = vmatprep.mubr.bf16.mxu0 0
      %10958 = vmatmul.mubr.bf16.gmra.mxu0 %v10197
      %v10959 = vpop.f32.mrf.mxu0
      %v10960 = vadd.f32 0.0, %v10959
      %v10961 = vpop.f32.mrf.mxu0
      %v10962 = vpop.f32.mrf.mxu0
      %v10963 = vadd.f32 0.0, %v10962
      %v10964 = vpop.f32.mrf.mxu0
      %10965 = vmatprep.mubr.bf16.mxu0 0
      %10966 = vmatmul.mubr.bf16.gmra.mxu0 %v4305
      %v10967 = vpop.f32.mrf.mxu0
      %v10968 = vadd.f32 0.0, %v10967
      %v10969 = vpop.f32.mrf.mxu0
      %v10970 = vpop.f32.mrf.mxu0
      %v10971 = vadd.f32 0.0, %v10970
      %v10972 = vpop.f32.mrf.mxu0
      %10973 = vdwg.mxu0
      %v10974 = vadd.f32 %v10772, %v10848
      %v10975 = vadd.f32 %v10773, %v10851
      %v10976 = vadd.f32 %v10774, %v10856
      %v10977 = vadd.f32 %v10775, %v10859
      %v10978 = vadd.f32 %v10776, %v10864
      %v10979 = vadd.f32 %v10777, %v10867
      %v10980 = vadd.f32 %v10778, %v10872
      %v10981 = vadd.f32 %v10779, %v10875
      %v10982 = vadd.f32 %v10780, %v10880
      %v10983 = vadd.f32 %v10781, %v10883
      %v10984 = vadd.f32 %v10782, %v10888
      %v10985 = vadd.f32 %v10783, %v10891
      %v10986 = vadd.f32 %v10784, %v10896
      %v10987 = vadd.f32 %v10785, %v10899
      %v10988 = vadd.f32 %v10786, %v10904
      %v10989 = vadd.f32 %v10787, %v10907
      %v10990 = vadd.f32 %v10788, %v10912
      %v10991 = vadd.f32 %v10789, %v10915
      %v10992 = vadd.f32 %v10790, %v10920
      %v10993 = vadd.f32 %v10791, %v10923
      %v10994 = vadd.f32 %v10792, %v10928
      %v10995 = vadd.f32 %v10793, %v10931
      %v10996 = vadd.f32 %v10794, %v10936
      %v10997 = vadd.f32 %v10795, %v10939
      %v10998 = vadd.f32 %v10796, %v10944
      %v10999 = vadd.f32 %v10797, %v10947
      %v11000 = vadd.f32 %v10798, %v10952
      %v11001 = vadd.f32 %v10799, %v10955
      %v11002 = vadd.f32 %v10800, %v10960
      %v11003 = vadd.f32 %v10801, %v10963
      %v11004 = vadd.f32 %v10802, %v10968
      %v11005 = vadd.f32 %v10803, %v10971
      %s11006 = scalar_lea.vmem %s5, 64
      %v11007 = vld [vmem:[%s11006] sm:$0xf]
      %v11008 = vld [vmem:[%s11006 + $0x4] sm:$0xf]
      %v11011 = vunpack.c.l.b16 %v11007
      %v11012 = vunpack.c.l.b16 %v11008
      %v11013 = vpack.c.b16 %v11012, %v11011
      %11015 = vmatprep.subr.bf16.mxu0 0
      %11016 = vmatpush1.bf16.msra.mxu0 0
      %11017 = vmatprep.subr.bf16.mxu0 0
      %11018 = vmatpush1.bf16.msra.mxu0 0
      %11019 = vmatprep.subr.bf16.mxu0 0
      %11020 = vmatpush1.bf16.msra.mxu0 0
      %11021 = vmatprep.subr.bf16.mxu0 0
      %11022 = vmatpush1.bf16.msra.mxu0 0
      %11023 = vmatprep.subr.bf16.mxu0 0
      %11024 = vmatpush1.bf16.msra.mxu0 0
      %11025 = vmatprep.subr.bf16.mxu0 0
      %11026 = vmatpush1.bf16.msra.mxu0 0
      %11027 = vmatprep.subr.bf16.mxu0 0
      %11028 = vmatpush1.bf16.msra.mxu0 0
      %11029 = vmatprep.subr.bf16.mxu0 0
      %11030 = vmatpush1.bf16.msra.mxu0 %v11013
      %11031 = vmatprep.subr.bf16.mxu0 0
      %11032 = vmatpush2.bf16.msra.mxu0 0
      %11033 = vmatprep.subr.bf16.mxu0 0
      %11034 = vmatpush2.bf16.msra.mxu0 0
      %11035 = vmatprep.subr.bf16.mxu0 0
      %11036 = vmatpush2.bf16.msra.mxu0 0
      %11037 = vmatprep.subr.bf16.mxu0 0
      %11038 = vmatpush2.bf16.msra.mxu0 0
      %11039 = vmatprep.subr.bf16.mxu0 0
      %11040 = vmatpush2.bf16.msra.mxu0 0
      %11041 = vmatprep.subr.bf16.mxu0 0
      %11042 = vmatpush2.bf16.msra.mxu0 0
      %11043 = vmatprep.subr.bf16.mxu0 0
      %11044 = vmatpush2.bf16.msra.mxu0 0
      %11045 = vmatprep.subr.bf16.mxu0 0
      %11046 = vmatpush2.bf16.msra.mxu0 0
      %11047 = vmatprep.mubr.bf16.mxu0 0
      %11048 = vmatmul.mubr.bf16.gmra.mxu0 %v9737
      %v11049 = vpop.f32.mrf.mxu0
      %v11050 = vadd.f32 0.0, %v11049
      %v11051 = vpop.f32.mrf.mxu0
      %v11052 = vpop.f32.mrf.mxu0
      %v11053 = vadd.f32 0.0, %v11052
      %v11054 = vpop.f32.mrf.mxu0
      %11055 = vmatprep.mubr.bf16.mxu0 0
      %11056 = vmatmul.mubr.bf16.gmra.mxu0 %v9740
      %v11057 = vpop.f32.mrf.mxu0
      %v11058 = vadd.f32 0.0, %v11057
      %v11059 = vpop.f32.mrf.mxu0
      %v11060 = vpop.f32.mrf.mxu0
      %v11061 = vadd.f32 0.0, %v11060
      %v11062 = vpop.f32.mrf.mxu0
      %11063 = vmatprep.mubr.bf16.mxu0 0
      %11064 = vmatmul.mubr.bf16.gmra.mxu0 %v9743
      %v11065 = vpop.f32.mrf.mxu0
      %v11066 = vadd.f32 0.0, %v11065
      %v11067 = vpop.f32.mrf.mxu0
      %v11068 = vpop.f32.mrf.mxu0
      %v11069 = vadd.f32 0.0, %v11068
      %v11070 = vpop.f32.mrf.mxu0
      %11071 = vmatprep.mubr.bf16.mxu0 0
      %11072 = vmatmul.mubr.bf16.gmra.mxu0 %v9746
      %v11073 = vpop.f32.mrf.mxu0
      %v11074 = vadd.f32 0.0, %v11073
      %v11075 = vpop.f32.mrf.mxu0
      %v11076 = vpop.f32.mrf.mxu0
      %v11077 = vadd.f32 0.0, %v11076
      %v11078 = vpop.f32.mrf.mxu0
      %11079 = vmatprep.mubr.bf16.mxu0 0
      %11080 = vmatmul.mubr.bf16.gmra.mxu0 %v9749
      %v11081 = vpop.f32.mrf.mxu0
      %v11082 = vadd.f32 0.0, %v11081
      %v11083 = vpop.f32.mrf.mxu0
      %v11084 = vpop.f32.mrf.mxu0
      %v11085 = vadd.f32 0.0, %v11084
      %v11086 = vpop.f32.mrf.mxu0
      %11087 = vmatprep.mubr.bf16.mxu0 0
      %11088 = vmatmul.mubr.bf16.gmra.mxu0 %v9752
      %v11089 = vpop.f32.mrf.mxu0
      %v11090 = vadd.f32 0.0, %v11089
      %v11091 = vpop.f32.mrf.mxu0
      %v11092 = vpop.f32.mrf.mxu0
      %v11093 = vadd.f32 0.0, %v11092
      %v11094 = vpop.f32.mrf.mxu0
      %11095 = vmatprep.mubr.bf16.mxu0 0
      %11096 = vmatmul.mubr.bf16.gmra.mxu0 %v9755
      %v11097 = vpop.f32.mrf.mxu0
      %v11098 = vadd.f32 0.0, %v11097
      %v11099 = vpop.f32.mrf.mxu0
      %v11100 = vpop.f32.mrf.mxu0
      %v11101 = vadd.f32 0.0, %v11100
      %v11102 = vpop.f32.mrf.mxu0
      %11103 = vmatprep.mubr.bf16.mxu0 0
      %11104 = vmatmul.mubr.bf16.gmra.mxu0 %v9758
      %v11105 = vpop.f32.mrf.mxu0
      %v11106 = vadd.f32 0.0, %v11105
      %v11107 = vpop.f32.mrf.mxu0
      %v11108 = vpop.f32.mrf.mxu0
      %v11109 = vadd.f32 0.0, %v11108
      %v11110 = vpop.f32.mrf.mxu0
      %11111 = vmatprep.mubr.bf16.mxu0 0
      %11112 = vmatmul.mubr.bf16.gmra.mxu0 %v9761
      %v11113 = vpop.f32.mrf.mxu0
      %v11114 = vadd.f32 0.0, %v11113
      %v11115 = vpop.f32.mrf.mxu0
      %v11116 = vpop.f32.mrf.mxu0
      %v11117 = vadd.f32 0.0, %v11116
      %v11118 = vpop.f32.mrf.mxu0
      %11119 = vmatprep.mubr.bf16.mxu0 0
      %11120 = vmatmul.mubr.bf16.gmra.mxu0 %v9764
      %v11121 = vpop.f32.mrf.mxu0
      %v11122 = vadd.f32 0.0, %v11121
      %v11123 = vpop.f32.mrf.mxu0
      %v11124 = vpop.f32.mrf.mxu0
      %v11125 = vadd.f32 0.0, %v11124
      %v11126 = vpop.f32.mrf.mxu0
      %11127 = vmatprep.mubr.bf16.mxu0 0
      %11128 = vmatmul.mubr.bf16.gmra.mxu0 %v9767
      %v11129 = vpop.f32.mrf.mxu0
      %v11130 = vadd.f32 0.0, %v11129
      %v11131 = vpop.f32.mrf.mxu0
      %v11132 = vpop.f32.mrf.mxu0
      %v11133 = vadd.f32 0.0, %v11132
      %v11134 = vpop.f32.mrf.mxu0
      %11135 = vmatprep.mubr.bf16.mxu0 0
      %11136 = vmatmul.mubr.bf16.gmra.mxu0 %v9770
      %v11137 = vpop.f32.mrf.mxu0
      %v11138 = vadd.f32 0.0, %v11137
      %v11139 = vpop.f32.mrf.mxu0
      %v11140 = vpop.f32.mrf.mxu0
      %v11141 = vadd.f32 0.0, %v11140
      %v11142 = vpop.f32.mrf.mxu0
      %11143 = vmatprep.mubr.bf16.mxu0 0
      %11144 = vmatmul.mubr.bf16.gmra.mxu0 %v9773
      %v11145 = vpop.f32.mrf.mxu0
      %v11146 = vadd.f32 0.0, %v11145
      %v11147 = vpop.f32.mrf.mxu0
      %v11148 = vpop.f32.mrf.mxu0
      %v11149 = vadd.f32 0.0, %v11148
      %v11150 = vpop.f32.mrf.mxu0
      %11151 = vmatprep.mubr.bf16.mxu0 0
      %11152 = vmatmul.mubr.bf16.gmra.mxu0 %v9776
      %v11153 = vpop.f32.mrf.mxu0
      %v11154 = vadd.f32 0.0, %v11153
      %v11155 = vpop.f32.mrf.mxu0
      %v11156 = vpop.f32.mrf.mxu0
      %v11157 = vadd.f32 0.0, %v11156
      %v11158 = vpop.f32.mrf.mxu0
      %11159 = vmatprep.mubr.bf16.mxu0 0
      %11160 = vmatmul.mubr.bf16.gmra.mxu0 %v10407
      %v11161 = vpop.f32.mrf.mxu0
      %v11162 = vadd.f32 0.0, %v11161
      %v11163 = vpop.f32.mrf.mxu0
      %v11164 = vpop.f32.mrf.mxu0
      %v11165 = vadd.f32 0.0, %v11164
      %v11166 = vpop.f32.mrf.mxu0
      %11167 = vmatprep.mubr.bf16.mxu0 0
      %11168 = vmatmul.mubr.bf16.gmra.mxu0 %v4803
      %v11169 = vpop.f32.mrf.mxu0
      %v11170 = vadd.f32 0.0, %v11169
      %v11171 = vpop.f32.mrf.mxu0
      %v11172 = vpop.f32.mrf.mxu0
      %v11173 = vadd.f32 0.0, %v11172
      %v11174 = vpop.f32.mrf.mxu0
      %11175 = vdwg.mxu0
      %v11176 = vadd.f32 %v10974, %v11050
      %v11177 = vadd.f32 %v10975, %v11053
      %v11178 = vadd.f32 %v10976, %v11058
      %v11179 = vadd.f32 %v10977, %v11061
      %v11180 = vadd.f32 %v10978, %v11066
      %v11181 = vadd.f32 %v10979, %v11069
      %v11182 = vadd.f32 %v10980, %v11074
      %v11183 = vadd.f32 %v10981, %v11077
      %v11184 = vadd.f32 %v10982, %v11082
      %v11185 = vadd.f32 %v10983, %v11085
      %v11186 = vadd.f32 %v10984, %v11090
      %v11187 = vadd.f32 %v10985, %v11093
      %v11188 = vadd.f32 %v10986, %v11098
      %v11189 = vadd.f32 %v10987, %v11101
      %v11190 = vadd.f32 %v10988, %v11106
      %v11191 = vadd.f32 %v10989, %v11109
      %v11192 = vadd.f32 %v10990, %v11114
      %v11193 = vadd.f32 %v10991, %v11117
      %v11194 = vadd.f32 %v10992, %v11122
      %v11195 = vadd.f32 %v10993, %v11125
      %v11196 = vadd.f32 %v10994, %v11130
      %v11197 = vadd.f32 %v10995, %v11133
      %v11198 = vadd.f32 %v10996, %v11138
      %v11199 = vadd.f32 %v10997, %v11141
      %v11200 = vadd.f32 %v10998, %v11146
      %v11201 = vadd.f32 %v10999, %v11149
      %v11202 = vadd.f32 %v11000, %v11154
      %v11203 = vadd.f32 %v11001, %v11157
      %v11204 = vadd.f32 %v11002, %v11162
      %v11205 = vadd.f32 %v11003, %v11165
      %v11206 = vadd.f32 %v11004, %v11170
      %v11207 = vadd.f32 %v11005, %v11173
      %v11208 = vld [vmem:[%s8] sm:$0x1]
      %v11210 = vlaneseq
      %v11211 = vshrl.u32 %v11210, 7
      %v11212 = vsub.s32 0, %v11211
      %v11213 = vrot.slane %v11208, %v11212
      %v11215 = vadd.f32 %v11176, %v11213
      %v11216 = vadd.f32 %v11177, %v11213
      %v11217 = vadd.f32 %v11178, %v11213
      %v11218 = vadd.f32 %v11179, %v11213
      %v11219 = vadd.f32 %v11180, %v11213
      %v11220 = vadd.f32 %v11181, %v11213
      %v11221 = vadd.f32 %v11182, %v11213
      %v11222 = vadd.f32 %v11183, %v11213
      %v11223 = vadd.f32 %v11184, %v11213
      %v11224 = vadd.f32 %v11185, %v11213
      %v11225 = vadd.f32 %v11186, %v11213
      %v11226 = vadd.f32 %v11187, %v11213
      %v11227 = vadd.f32 %v11188, %v11213
      %v11228 = vadd.f32 %v11189, %v11213
      %v11229 = vadd.f32 %v11190, %v11213
      %v11230 = vadd.f32 %v11191, %v11213
      %v11231 = vadd.f32 %v11192, %v11213
      %v11232 = vadd.f32 %v11193, %v11213
      %v11233 = vadd.f32 %v11194, %v11213
      %v11234 = vadd.f32 %v11195, %v11213
      %v11235 = vadd.f32 %v11196, %v11213
      %v11236 = vadd.f32 %v11197, %v11213
      %v11237 = vadd.f32 %v11198, %v11213
      %v11238 = vadd.f32 %v11199, %v11213
      %v11239 = vadd.f32 %v11200, %v11213
      %v11240 = vadd.f32 %v11201, %v11213
      %v11241 = vadd.f32 %v11202, %v11213
      %v11242 = vadd.f32 %v11203, %v11213
      %v11243 = vadd.f32 %v11204, %v11213
      %v11244 = vadd.f32 %v11205, %v11213
      %v11245 = vadd.f32 %v11206, %v11213
      %v11246 = vadd.f32 %v11207, %v11213
      %v11247 = vmax.f32 %v11215, 0.0
      %v11248 = vmax.f32 %v11216, 0.0
      %v11249 = vmax.f32 %v11217, 0.0
      %v11250 = vmax.f32 %v11218, 0.0
      %v11251 = vmax.f32 %v11219, 0.0
      %v11252 = vmax.f32 %v11220, 0.0
      %v11253 = vmax.f32 %v11221, 0.0
      %v11254 = vmax.f32 %v11222, 0.0
      %v11255 = vmax.f32 %v11223, 0.0
      %v11256 = vmax.f32 %v11224, 0.0
      %v11257 = vmax.f32 %v11225, 0.0
      %v11258 = vmax.f32 %v11226, 0.0
      %v11259 = vmax.f32 %v11227, 0.0
      %v11260 = vmax.f32 %v11228, 0.0
      %v11261 = vmax.f32 %v11229, 0.0
      %v11262 = vmax.f32 %v11230, 0.0
      %v11263 = vmax.f32 %v11231, 0.0
      %v11264 = vmax.f32 %v11232, 0.0
      %v11265 = vmax.f32 %v11233, 0.0
      %v11266 = vmax.f32 %v11234, 0.0
      %v11267 = vmax.f32 %v11235, 0.0
      %v11268 = vmax.f32 %v11236, 0.0
      %v11269 = vmax.f32 %v11237, 0.0
      %v11270 = vmax.f32 %v11238, 0.0
      %v11271 = vmax.f32 %v11239, 0.0
      %v11272 = vmax.f32 %v11240, 0.0
      %v11273 = vmax.f32 %v11241, 0.0
      %v11274 = vmax.f32 %v11242, 0.0
      %v11275 = vmax.f32 %v11243, 0.0
      %v11276 = vmax.f32 %v11244, 0.0
      %v11277 = vmax.f32 %v11245, 0.0
      %v11278 = vmax.f32 %v11246, 0.0
      %11279 = vst.msk [vmem:[%s352] sm:$0xff] %vm4303, %v11247
      %11280 = vst.msk [vmem:[%s352 + $0x8] sm:$0xff] %vm4303, %v11248
      %11281 = vst.msk [vmem:[%s352 + $0x10] sm:$0xff] %vm4303, %v11249
      %11282 = vst.msk [vmem:[%s352 + $0x18] sm:$0xff] %vm4303, %v11250
      %11283 = vst.msk [vmem:[%s352 + $0x20] sm:$0xff] %vm4303, %v11251
      %11284 = vst.msk [vmem:[%s352 + $0x28] sm:$0xff] %vm4303, %v11252
      %11285 = vst.msk [vmem:[%s352 + $0x30] sm:$0xff] %vm4303, %v11253
      %11286 = vst.msk [vmem:[%s352 + $0x38] sm:$0xff] %vm4303, %v11254
      %11287 = vst.msk [vmem:[%s352 + $0x40] sm:$0xff] %vm4303, %v11255
      %11288 = vst.msk [vmem:[%s352 + $0x48] sm:$0xff] %vm4303, %v11256
      %11289 = vst.msk [vmem:[%s352 + $0x50] sm:$0xff] %vm4303, %v11257
      %11290 = vst.msk [vmem:[%s352 + $0x58] sm:$0xff] %vm4303, %v11258
      %11291 = vst.msk [vmem:[%s352 + $0x60] sm:$0xff] %vm4303, %v11259
      %11292 = vst.msk [vmem:[%s352 + $0x68] sm:$0xff] %vm4303, %v11260
      %11293 = vst.msk [vmem:[%s352 + $0x70] sm:$0xff] %vm4303, %v11261
      %11294 = vst.msk [vmem:[%s352 + $0x78] sm:$0xff] %vm4303, %v11262
      %11295 = vst.msk [vmem:[%s352 + $0x80] sm:$0xff] %vm4303, %v11263
      %11296 = vst.msk [vmem:[%s352 + $0x88] sm:$0xff] %vm4303, %v11264
      %11297 = vst.msk [vmem:[%s352 + $0x90] sm:$0xff] %vm4303, %v11265
      %11298 = vst.msk [vmem:[%s352 + $0x98] sm:$0xff] %vm4303, %v11266
      %11299 = vst.msk [vmem:[%s352 + $0xa0] sm:$0xff] %vm4303, %v11267
      %11300 = vst.msk [vmem:[%s352 + $0xa8] sm:$0xff] %vm4303, %v11268
      %11301 = vst.msk [vmem:[%s352 + $0xb0] sm:$0xff] %vm4303, %v11269
      %11302 = vst.msk [vmem:[%s352 + $0xb8] sm:$0xff] %vm4303, %v11270
      %11303 = vst.msk [vmem:[%s352 + $0xc0] sm:$0xff] %vm4303, %v11271
      %11304 = vst.msk [vmem:[%s352 + $0xc8] sm:$0xff] %vm4303, %v11272
      %11305 = vst.msk [vmem:[%s352 + $0xd0] sm:$0xff] %vm4303, %v11273
      %11306 = vst.msk [vmem:[%s352 + $0xd8] sm:$0xff] %vm4303, %v11274
      %11307 = vst.msk [vmem:[%s352 + $0xe0] sm:$0xff] %vm4303, %v11275
      %11308 = vst.msk [vmem:[%s352 + $0xe8] sm:$0xff] %vm4303, %v11276
      %11309 = vst.msk [vmem:[%s352 + $0xf0] sm:$0xff] %vm4303, %v11277
      %11310 = vst.msk [vmem:[%s352 + $0xf8] sm:$0xff] %vm4303, %v11278
      %p11311 = scmp.lt.s32.totalorder %s20, 1
      %s11312 = scalar_select %p11311, %s20, 1
      %s11313 = smul.addr %s11312, 32
      %s11314 = smul.addr %s11313, 8
      %s11315 = scalar_lea.vmem %s9, %s11314
      // Predicated region
      $region57: #{unet_up_block.1} parent=55 // pred_check
        %p11316 = pneg %p237
      $region58: #{unet_up_block.1} parent=55 // pred_check_branch
        %11318 = sbr.rel (%p11316) target = $region60
      $region59: #{unet_up_block.1} parent=55 // pred_region
        _
      $region60: #{unet_up_block.1} parent=55 // pred_fallthru
        _
    $region56: #{unet_up_block.1} parent=5 // pred_fallthru
      _
    %p11319 = scmp.le.s32.totalorder 2, %s15
    // Predicated region
    $region61: #{unet_up_block.1} parent=5 // pred_check
      %p11320 = pneg %p11319
    $region62: #{unet_up_block.1} parent=5 // pred_check_branch
      %11322 = sbr.rel (%p11320) target = $region64
    $region63: #{unet_up_block.1} parent=5 // pred_region
      %s11323 = ssub.s32 %s15, 2
      // Predicated region
      $region65: #{unet_up_block.1} parent=63 // pred_check
        %p11324 = pneg %p243
      $region66: #{unet_up_block.1} parent=63 // pred_check_branch
        %11326 = sbr.rel (%p11324) target = $region68
      $region67: #{unet_up_block.1} parent=63 // pred_region
        %p11327 = scmp.lt.s32.totalorder %s21, 1
        %s11328 = scalar_select %p11327, %s21, 1
        %s11329 = smul.addr %s11328, 32
        %s11330 = smul.addr %s11329, 8
        %s11331 = scalar_lea.vmem %s9, %s11330
      $region68: #{unet_up_block.1} parent=63 // pred_fallthru
        _
    $region64: #{unet_up_block.1} parent=5 // pred_fallthru
      _
  $region6: #{unet_up_block.1} parent=0 // loop_footer
    %s19 = sadd.s32 1, %s15
  $region7: #{unet_up_block.1} parent=0 // loop_footer_branch
    %14 = sbr.rel target = $region3
  $region8: #{unet_up_block.1} parent=0 // loop_exit
    _

</llo_original>
